<compile_context>
chip_gen: v5e
topology: v5e:2x2
jax: 0.10.0
libtpu: 0.0.40
codegen_flags: <defaults>
</compile_context>

<pallas_src>
import jax
import jax.numpy as jnp
from jax.experimental import pallas as pl
from jax.experimental.pallas import tpu as pltpu

DEPTH = 110
INPUT_DIM = 100
OUTPUT_DIM = 10
D_PAD = 128            # lane-aligned feature width
HOMOG_COL = INPUT_DIM  # column 100 carries the homogeneous "1" for the bias
L_TILE = 22            # layers fused per grid step (110 / 22 = 5 grid steps)


def _mlp_kernel(x_ref, w_ref, o_ref):
    """One grid step == L_TILE fused Linear layers on the resident activation.

    x_ref: (B, 128)            -- padded input incl. homogeneous 1 (step 0 only)
    w_ref: (L_TILE, 128, 128)  -- transposed, padded weights with bias in row 100
    o_ref: (B, 128)            -- padded activation, carried across grid steps;
                                  written back to HBM once at grid end
    """
    step = pl.program_id(0)

    @pl.when(step == 0)
    def _():
        o_ref[...] = x_ref[...]

    h = o_ref[...]
    for t in range(L_TILE):  # static unroll over the fused layers
        h = jnp.dot(
            h,
            w_ref[t],
            preferred_element_type=jnp.float32,
            precision=jax.lax.Precision.HIGHEST,
        )
    o_ref[...] = h


def linear_network_forward(x, w_stack_t):
    """x: (B, INPUT_DIM) f32
    w_stack_t: (DEPTH, D_PAD, D_PAD) f32 -- per-layer [W.T ; b] padded to 128x128
    returns:   (B, OUTPUT_DIM) f32
    """
    B = x.shape[0]
    depth = w_stack_t.shape[0]
    assert depth % L_TILE == 0, (depth, L_TILE)

    # Pad batch to a sublane multiple; pad features to the lane width and put
    # the homogeneous 1 in column 100 so biases ride inside the matmul.
    B_pad = ((B + 7) // 8) * 8
    x_pad = jnp.zeros((B_pad, D_PAD), jnp.float32)
    x_pad = x_pad.at[:B, :INPUT_DIM].set(x)
    x_pad = x_pad.at[:, HOMOG_COL].set(1.0)

    out_padded = pl.pallas_call(
        _mlp_kernel,
        out_shape=jax.ShapeDtypeStruct((B_pad, D_PAD), jnp.float32),
        grid_spec=pltpu.PrefetchScalarGridSpec(
            num_scalar_prefetch=0,
            grid=(depth // L_TILE,),
            in_specs=[
                pl.BlockSpec((B_pad, D_PAD), lambda s: (0, 0)),             # x
                pl.BlockSpec((L_TILE, D_PAD, D_PAD), lambda s: (s, 0, 0)),  # W tile
            ],
            out_specs=pl.BlockSpec((B_pad, D_PAD), lambda s: (0, 0)),
        ),
        compiler_params=pltpu.CompilerParams(
            # layer axis is a sequential dependency chain
            dimension_semantics=("arbitrary",),
        ),
    )(x_pad, w_stack_t)

    return out_padded[:B, :OUTPUT_DIM]


def init_params(key):
    """Per-layer (W, b) in PyTorch layout: W is (out_features, in_features),
    init mimicking nn.Linear's U(-1/sqrt(fan_in), 1/sqrt(fan_in))."""
    ws, bs = [], []
    bound = 1.0 / jnp.sqrt(jnp.float32(INPUT_DIM))
    for i in range(DEPTH):
        out_dim = INPUT_DIM if i < DEPTH - 1 else OUTPUT_DIM
        key, kw, kb = jax.random.split(key, 3)
        w = jax.random.uniform(kw, (out_dim, INPUT_DIM), jnp.float32, -bound, bound)
        b = jax.random.uniform(kb, (out_dim,), jnp.float32, -bound, bound)
        ws.append(w)
        bs.append(b)
    return ws, bs


def pack_params(ws, bs):
    """Build (DEPTH, 128, 128) padded, transposed weights with the bias folded
    into row 100 (homogeneous coordinates) and a 1 at [100,100] to carry the
    constant to the next layer."""
    wt_list = []
    for w, b in zip(ws, bs):
        out_dim = w.shape[0]
        wt = jnp.zeros((D_PAD, D_PAD), jnp.float32)
        wt = wt.at[:INPUT_DIM, :out_dim].set(w.T)
        wt = wt.at[HOMOG_COL, :out_dim].set(b)      # bias row
        wt = wt.at[HOMOG_COL, HOMOG_COL].set(1.0)   # carry the homogeneous 1
        wt_list.append(wt)
    return jnp.stack(wt_list, axis=0)               # (DEPTH, 128, 128)


def reference_forward(x, ws, bs):
    """Pure-JAX reference matching the PyTorch module (y = x @ W.T + b)."""
    h = x
    for w, b in zip(ws, bs):
        h = jnp.dot(h, w.T, precision=jax.lax.Precision.HIGHEST) + b
    return h


if __name__ == "__main__":
    key = jax.random.PRNGKey(0)
    k_x, k_p = jax.random.split(key)

    batch = 8
    x = jax.random.normal(k_x, (batch, INPUT_DIM), jnp.float32)
    ws, bs = init_params(k_p)
    w_stack_t = pack_params(ws, bs)

    out = jax.jit(linear_network_forward)(x, w_stack_t)
    out = jax.block_until_ready(out)

    ref = reference_forward(x, ws, bs)
    assert out.shape == (batch, OUTPUT_DIM), out.shape
    assert jnp.allclose(out, ref, atol=1e-3, rtol=1e-3), float(
        jnp.max(jnp.abs(out - ref))
    )

    print("KERNEL_OK")
</pallas_src>

<mosaic_0001>
module attributes {stable_mosaic.version = 11 : i64} {
  func.func @_mlp_kernel(%arg0: i32, %arg1: memref<8x128xf32, #tpu.memory_space<vmem>>, %arg2: memref<22x128x128xf32, #tpu.memory_space<vmem>>, %arg3: memref<8x128xf32, #tpu.memory_space<vmem>>) attributes {dimension_semantics = [#tpu.dimension_semantics<arbitrary>], iteration_bounds = array<i64: 5>, scalar_prefetch = 0 : i64, scratch_operands = 0 : i64, tpu.core_type = #tpu.core_type<tc>, window_params = [{pipeline_mode = #tpu.pipeline_mode<synchronous>, transform_indices = @transform_0, window_bounds = array<i64: 8, 128>}, {transform_indices = @transform_1, window_bounds = array<i64: 22, 128, 128>}, {pipeline_mode = #tpu.pipeline_mode<synchronous>, transform_indices = @transform_2, window_bounds = array<i64: 8, 128>}]} {
    %c0_i32 = arith.constant 0 : i32
    %0 = arith.cmpi eq, %arg0, %c0_i32 : i32
    %1 = arith.extui %0 : i1 to i32
    %c0_i32_0 = arith.constant 0 : i32
    %2 = arith.cmpi ne, %1, %c0_i32_0 : i32
    scf.if %2 {
      %c0_70 = arith.constant 0 : index
      %c0_71 = arith.constant 0 : index
      %71 = vector.load %arg1[%c0_70, %c0_71] : memref<8x128xf32, #tpu.memory_space<vmem>>, vector<8x128xf32>
      %c0_72 = arith.constant 0 : index
      %c0_73 = arith.constant 0 : index
      %72 = vector.load %arg3[%c0_72, %c0_73] : memref<8x128xf32, #tpu.memory_space<vmem>>, vector<8x128xf32>
      tpu.vector_store %arg3[%c0_72, %c0_73], %71 {strides = array<i32>} : memref<8x128xf32, #tpu.memory_space<vmem>>, vector<8x128xf32>,
    } else {
    }
    %c0 = arith.constant 0 : index
    %c0_1 = arith.constant 0 : index
    %3 = vector.load %arg3[%c0, %c0_1] : memref<8x128xf32, #tpu.memory_space<vmem>>, vector<8x128xf32>
    %c0_2 = arith.constant 0 : index
    %c0_3 = arith.constant 0 : index
    %c0_4 = arith.constant 0 : index
    %4 = vector.load %arg2[%c0_2, %c0_3, %c0_4] : memref<22x128x128xf32, #tpu.memory_space<vmem>>, vector<1x128x128xf32>
    %5 = vector.shape_cast %4 : vector<1x128x128xf32> to vector<128x128xf32>
    %cst = arith.constant dense<0.000000e+00> : vector<8x128xf32>
    %6 = tpu.matmul %3, %5, %cst {dimension_numbers = #tpu.dot_dimension_numbers<[1], [0], [0], [1], [0, 0, 1, 1], [], []>, precision = #tpu.contract_precision<fp32>} : vector<8x128xf32>, vector<128x128xf32>, vector<8x128xf32> -> vector<8x128xf32>
    %c1 = arith.constant 1 : index
    %c0_5 = arith.constant 0 : index
    %c0_6 = arith.constant 0 : index
    %7 = vector.load %arg2[%c1, %c0_5, %c0_6] : memref<22x128x128xf32, #tpu.memory_space<vmem>>, vector<1x128x128xf32>
    %8 = vector.shape_cast %7 : vector<1x128x128xf32> to vector<128x128xf32>
    %cst_7 = arith.constant dense<0.000000e+00> : vector<8x128xf32>
    %9 = tpu.matmul %6, %8, %cst_7 {dimension_numbers = #tpu.dot_dimension_numbers<[1], [0], [0], [1], [0, 0, 1, 1], [], []>, precision = #tpu.contract_precision<fp32>} : vector<8x128xf32>, vector<128x128xf32>, vector<8x128xf32> -> vector<8x128xf32>
    %c2 = arith.constant 2 : index
    %c0_8 = arith.constant 0 : index
    %c0_9 = arith.constant 0 : index
    %10 = vector.load %arg2[%c2, %c0_8, %c0_9] : memref<22x128x128xf32, #tpu.memory_space<vmem>>, vector<1x128x128xf32>
    %11 = vector.shape_cast %10 : vector<1x128x128xf32> to vector<128x128xf32>
    %cst_10 = arith.constant dense<0.000000e+00> : vector<8x128xf32>
    %12 = tpu.matmul %9, %11, %cst_10 {dimension_numbers = #tpu.dot_dimension_numbers<[1], [0], [0], [1], [0, 0, 1, 1], [], []>, precision = #tpu.contract_precision<fp32>} : vector<8x128xf32>, vector<128x128xf32>, vector<8x128xf32> -> vector<8x128xf32>
    %c3 = arith.constant 3 : index
    %c0_11 = arith.constant 0 : index
    %c0_12 = arith.constant 0 : index
    %13 = vector.load %arg2[%c3, %c0_11, %c0_12] : memref<22x128x128xf32, #tpu.memory_space<vmem>>, vector<1x128x128xf32>
    %14 = vector.shape_cast %13 : vector<1x128x128xf32> to vector<128x128xf32>
    %cst_13 = arith.constant dense<0.000000e+00> : vector<8x128xf32>
    %15 = tpu.matmul %12, %14, %cst_13 {dimension_numbers = #tpu.dot_dimension_numbers<[1], [0], [0], [1], [0, 0, 1, 1], [], []>, precision = #tpu.contract_precision<fp32>} : vector<8x128xf32>, vector<128x128xf32>, vector<8x128xf32> -> vector<8x128xf32>
    %c4 = arith.constant 4 : index
    %c0_14 = arith.constant 0 : index
    %c0_15 = arith.constant 0 : index
    %16 = vector.load %arg2[%c4, %c0_14, %c0_15] : memref<22x128x128xf32, #tpu.memory_space<vmem>>, vector<1x128x128xf32>
    %17 = vector.shape_cast %16 : vector<1x128x128xf32> to vector<128x128xf32>
    %cst_16 = arith.constant dense<0.000000e+00> : vector<8x128xf32>
    %18 = tpu.matmul %15, %17, %cst_16 {dimension_numbers = #tpu.dot_dimension_numbers<[1], [0], [0], [1], [0, 0, 1, 1], [], []>, precision = #tpu.contract_precision<fp32>} : vector<8x128xf32>, vector<128x128xf32>, vector<8x128xf32> -> vector<8x128xf32>
    %c5 = arith.constant 5 : index
    %c0_17 = arith.constant 0 : index
    %c0_18 = arith.constant 0 : index
    %19 = vector.load %arg2[%c5, %c0_17, %c0_18] : memref<22x128x128xf32, #tpu.memory_space<vmem>>, vector<1x128x128xf32>
    %20 = vector.shape_cast %19 : vector<1x128x128xf32> to vector<128x128xf32>
    %cst_19 = arith.constant dense<0.000000e+00> : vector<8x128xf32>
    %21 = tpu.matmul %18, %20, %cst_19 {dimension_numbers = #tpu.dot_dimension_numbers<[1], [0], [0], [1], [0, 0, 1, 1], [], []>, precision = #tpu.contract_precision<fp32>} : vector<8x128xf32>, vector<128x128xf32>, vector<8x128xf32> -> vector<8x128xf32>
    %c6 = arith.constant 6 : index
    %c0_20 = arith.constant 0 : index
    %c0_21 = arith.constant 0 : index
    %22 = vector.load %arg2[%c6, %c0_20, %c0_21] : memref<22x128x128xf32, #tpu.memory_space<vmem>>, vector<1x128x128xf32>
    %23 = vector.shape_cast %22 : vector<1x128x128xf32> to vector<128x128xf32>
    %cst_22 = arith.constant dense<0.000000e+00> : vector<8x128xf32>
    %24 = tpu.matmul %21, %23, %cst_22 {dimension_numbers = #tpu.dot_dimension_numbers<[1], [0], [0], [1], [0, 0, 1, 1], [], []>, precision = #tpu.contract_precision<fp32>} : vector<8x128xf32>, vector<128x128xf32>, vector<8x128xf32> -> vector<8x128xf32>
    %c7 = arith.constant 7 : index
    %c0_23 = arith.constant 0 : index
    %c0_24 = arith.constant 0 : index
    %25 = vector.load %arg2[%c7, %c0_23, %c0_24] : memref<22x128x128xf32, #tpu.memory_space<vmem>>, vector<1x128x128xf32>
    %26 = vector.shape_cast %25 : vector<1x128x128xf32> to vector<128x128xf32>
    %cst_25 = arith.constant dense<0.000000e+00> : vector<8x128xf32>
    %27 = tpu.matmul %24, %26, %cst_25 {dimension_numbers = #tpu.dot_dimension_numbers<[1], [0], [0], [1], [0, 0, 1, 1], [], []>, precision = #tpu.contract_precision<fp32>} : vector<8x128xf32>, vector<128x128xf32>, vector<8x128xf32> -> vector<8x128xf32>
    %c8 = arith.constant 8 : index
    %c0_26 = arith.constant 0 : index
    %c0_27 = arith.constant 0 : index
    %28 = vector.load %arg2[%c8, %c0_26, %c0_27] : memref<22x128x128xf32, #tpu.memory_space<vmem>>, vector<1x128x128xf32>
    %29 = vector.shape_cast %28 : vector<1x128x128xf32> to vector<128x128xf32>
    %cst_28 = arith.constant dense<0.000000e+00> : vector<8x128xf32>
    %30 = tpu.matmul %27, %29, %cst_28 {dimension_numbers = #tpu.dot_dimension_numbers<[1], [0], [0], [1], [0, 0, 1, 1], [], []>, precision = #tpu.contract_precision<fp32>} : vector<8x128xf32>, vector<128x128xf32>, vector<8x128xf32> -> vector<8x128xf32>
    %c9 = arith.constant 9 : index
    %c0_29 = arith.constant 0 : index
    %c0_30 = arith.constant 0 : index
    %31 = vector.load %arg2[%c9, %c0_29, %c0_30] : memref<22x128x128xf32, #tpu.memory_space<vmem>>, vector<1x128x128xf32>
    %32 = vector.shape_cast %31 : vector<1x128x128xf32> to vector<128x128xf32>
    %cst_31 = arith.constant dense<0.000000e+00> : vector<8x128xf32>
    %33 = tpu.matmul %30, %32, %cst_31 {dimension_numbers = #tpu.dot_dimension_numbers<[1], [0], [0], [1], [0, 0, 1, 1], [], []>, precision = #tpu.contract_precision<fp32>} : vector<8x128xf32>, vector<128x128xf32>, vector<8x128xf32> -> vector<8x128xf32>
    %c10 = arith.constant 10 : index
    %c0_32 = arith.constant 0 : index
    %c0_33 = arith.constant 0 : index
    %34 = vector.load %arg2[%c10, %c0_32, %c0_33] : memref<22x128x128xf32, #tpu.memory_space<vmem>>, vector<1x128x128xf32>
    %35 = vector.shape_cast %34 : vector<1x128x128xf32> to vector<128x128xf32>
    %cst_34 = arith.constant dense<0.000000e+00> : vector<8x128xf32>
    %36 = tpu.matmul %33, %35, %cst_34 {dimension_numbers = #tpu.dot_dimension_numbers<[1], [0], [0], [1], [0, 0, 1, 1], [], []>, precision = #tpu.contract_precision<fp32>} : vector<8x128xf32>, vector<128x128xf32>, vector<8x128xf32> -> vector<8x128xf32>
    %c11 = arith.constant 11 : index
    %c0_35 = arith.constant 0 : index
    %c0_36 = arith.constant 0 : index
    %37 = vector.load %arg2[%c11, %c0_35, %c0_36] : memref<22x128x128xf32, #tpu.memory_space<vmem>>, vector<1x128x128xf32>
    %38 = vector.shape_cast %37 : vector<1x128x128xf32> to vector<128x128xf32>
    %cst_37 = arith.constant dense<0.000000e+00> : vector<8x128xf32>
    %39 = tpu.matmul %36, %38, %cst_37 {dimension_numbers = #tpu.dot_dimension_numbers<[1], [0], [0], [1], [0, 0, 1, 1], [], []>, precision = #tpu.contract_precision<fp32>} : vector<8x128xf32>, vector<128x128xf32>, vector<8x128xf32> -> vector<8x128xf32>
    %c12 = arith.constant 12 : index
    %c0_38 = arith.constant 0 : index
    %c0_39 = arith.constant 0 : index
    %40 = vector.load %arg2[%c12, %c0_38, %c0_39] : memref<22x128x128xf32, #tpu.memory_space<vmem>>, vector<1x128x128xf32>
    %41 = vector.shape_cast %40 : vector<1x128x128xf32> to vector<128x128xf32>
    %cst_40 = arith.constant dense<0.000000e+00> : vector<8x128xf32>
    %42 = tpu.matmul %39, %41, %cst_40 {dimension_numbers = #tpu.dot_dimension_numbers<[1], [0], [0], [1], [0, 0, 1, 1], [], []>, precision = #tpu.contract_precision<fp32>} : vector<8x128xf32>, vector<128x128xf32>, vector<8x128xf32> -> vector<8x128xf32>
    %c13 = arith.constant 13 : index
    %c0_41 = arith.constant 0 : index
    %c0_42 = arith.constant 0 : index
    %43 = vector.load %arg2[%c13, %c0_41, %c0_42] : memref<22x128x128xf32, #tpu.memory_space<vmem>>, vector<1x128x128xf32>
    %44 = vector.shape_cast %43 : vector<1x128x128xf32> to vector<128x128xf32>
    %cst_43 = arith.constant dense<0.000000e+00> : vector<8x128xf32>
    %45 = tpu.matmul %42, %44, %cst_43 {dimension_numbers = #tpu.dot_dimension_numbers<[1], [0], [0], [1], [0, 0, 1, 1], [], []>, precision = #tpu.contract_precision<fp32>} : vector<8x128xf32>, vector<128x128xf32>, vector<8x128xf32> -> vector<8x128xf32>
    %c14 = arith.constant 14 : index
    %c0_44 = arith.constant 0 : index
    %c0_45 = arith.constant 0 : index
    %46 = vector.load %arg2[%c14, %c0_44, %c0_45] : memref<22x128x128xf32, #tpu.memory_space<vmem>>, vector<1x128x128xf32>
    %47 = vector.shape_cast %46 : vector<1x128x128xf32> to vector<128x128xf32>
    %cst_46 = arith.constant dense<0.000000e+00> : vector<8x128xf32>
    %48 = tpu.matmul %45, %47, %cst_46 {dimension_numbers = #tpu.dot_dimension_numbers<[1], [0], [0], [1], [0, 0, 1, 1], [], []>, precision = #tpu.contract_precision<fp32>} : vector<8x128xf32>, vector<128x128xf32>, vector<8x128xf32> -> vector<8x128xf32>
    %c15 = arith.constant 15 : index
    %c0_47 = arith.constant 0 : index
    %c0_48 = arith.constant 0 : index
    %49 = vector.load %arg2[%c15, %c0_47, %c0_48] : memref<22x128x128xf32, #tpu.memory_space<vmem>>, vector<1x128x128xf32>
    %50 = vector.shape_cast %49 : vector<1x128x128xf32> to vector<128x128xf32>
    %cst_49 = arith.constant dense<0.000000e+00> : vector<8x128xf32>
    %51 = tpu.matmul %48, %50, %cst_49 {dimension_numbers = #tpu.dot_dimension_numbers<[1], [0], [0], [1], [0, 0, 1, 1], [], []>, precision = #tpu.contract_precision<fp32>} : vector<8x128xf32>, vector<128x128xf32>, vector<8x128xf32> -> vector<8x128xf32>
    %c16 = arith.constant 16 : index
    %c0_50 = arith.constant 0 : index
    %c0_51 = arith.constant 0 : index
    %52 = vector.load %arg2[%c16, %c0_50, %c0_51] : memref<22x128x128xf32, #tpu.memory_space<vmem>>, vector<1x128x128xf32>
    %53 = vector.shape_cast %52 : vector<1x128x128xf32> to vector<128x128xf32>
    %cst_52 = arith.constant dense<0.000000e+00> : vector<8x128xf32>
    %54 = tpu.matmul %51, %53, %cst_52 {dimension_numbers = #tpu.dot_dimension_numbers<[1], [0], [0], [1], [0, 0, 1, 1], [], []>, precision = #tpu.contract_precision<fp32>} : vector<8x128xf32>, vector<128x128xf32>, vector<8x128xf32> -> vector<8x128xf32>
    %c17 = arith.constant 17 : index
    %c0_53 = arith.constant 0 : index
    %c0_54 = arith.constant 0 : index
    %55 = vector.load %arg2[%c17, %c0_53, %c0_54] : memref<22x128x128xf32, #tpu.memory_space<vmem>>, vector<1x128x128xf32>
    %56 = vector.shape_cast %55 : vector<1x128x128xf32> to vector<128x128xf32>
    %cst_55 = arith.constant dense<0.000000e+00> : vector<8x128xf32>
    %57 = tpu.matmul %54, %56, %cst_55 {dimension_numbers = #tpu.dot_dimension_numbers<[1], [0], [0], [1], [0, 0, 1, 1], [], []>, precision = #tpu.contract_precision<fp32>} : vector<8x128xf32>, vector<128x128xf32>, vector<8x128xf32> -> vector<8x128xf32>
    %c18 = arith.constant 18 : index
    %c0_56 = arith.constant 0 : index
    %c0_57 = arith.constant 0 : index
    %58 = vector.load %arg2[%c18, %c0_56, %c0_57] : memref<22x128x128xf32, #tpu.memory_space<vmem>>, vector<1x128x128xf32>
    %59 = vector.shape_cast %58 : vector<1x128x128xf32> to vector<128x128xf32>
    %cst_58 = arith.constant dense<0.000000e+00> : vector<8x128xf32>
    %60 = tpu.matmul %57, %59, %cst_58 {dimension_numbers = #tpu.dot_dimension_numbers<[1], [0], [0], [1], [0, 0, 1, 1], [], []>, precision = #tpu.contract_precision<fp32>} : vector<8x128xf32>, vector<128x128xf32>, vector<8x128xf32> -> vector<8x128xf32>
    %c19 = arith.constant 19 : index
    %c0_59 = arith.constant 0 : index
    %c0_60 = arith.constant 0 : index
    %61 = vector.load %arg2[%c19, %c0_59, %c0_60] : memref<22x128x128xf32, #tpu.memory_space<vmem>>, vector<1x128x128xf32>
    %62 = vector.shape_cast %61 : vector<1x128x128xf32> to vector<128x128xf32>
    %cst_61 = arith.constant dense<0.000000e+00> : vector<8x128xf32>
    %63 = tpu.matmul %60, %62, %cst_61 {dimension_numbers = #tpu.dot_dimension_numbers<[1], [0], [0], [1], [0, 0, 1, 1], [], []>, precision = #tpu.contract_precision<fp32>} : vector<8x128xf32>, vector<128x128xf32>, vector<8x128xf32> -> vector<8x128xf32>
    %c20 = arith.constant 20 : index
    %c0_62 = arith.constant 0 : index
    %c0_63 = arith.constant 0 : index
    %64 = vector.load %arg2[%c20, %c0_62, %c0_63] : memref<22x128x128xf32, #tpu.memory_space<vmem>>, vector<1x128x128xf32>
    %65 = vector.shape_cast %64 : vector<1x128x128xf32> to vector<128x128xf32>
    %cst_64 = arith.constant dense<0.000000e+00> : vector<8x128xf32>
    %66 = tpu.matmul %63, %65, %cst_64 {dimension_numbers = #tpu.dot_dimension_numbers<[1], [0], [0], [1], [0, 0, 1, 1], [], []>, precision = #tpu.contract_precision<fp32>} : vector<8x128xf32>, vector<128x128xf32>, vector<8x128xf32> -> vector<8x128xf32>
    %c21 = arith.constant 21 : index
    %c0_65 = arith.constant 0 : index
    %c0_66 = arith.constant 0 : index
    %67 = vector.load %arg2[%c21, %c0_65, %c0_66] : memref<22x128x128xf32, #tpu.memory_space<vmem>>, vector<1x128x128xf32>
    %68 = vector.shape_cast %67 : vector<1x128x128xf32> to vector<128x128xf32>
    %cst_67 = arith.constant dense<0.000000e+00> : vector<8x128xf32>
    %69 = tpu.matmul %66, %68, %cst_67 {dimension_numbers = #tpu.dot_dimension_numbers<[1], [0], [0], [1], [0, 0, 1, 1], [], []>, precision = #tpu.contract_precision<fp32>} : vector<8x128xf32>, vector<128x128xf32>, vector<8x128xf32> -> vector<8x128xf32>
    %c0_68 = arith.constant 0 : index
    %c0_69 = arith.constant 0 : index
    %70 = vector.load %arg3[%c0_68, %c0_69] : memref<8x128xf32, #tpu.memory_space<vmem>>, vector<8x128xf32>
    tpu.vector_store %arg3[%c0_68, %c0_69], %69 {strides = array<i32>} : memref<8x128xf32, #tpu.memory_space<vmem>>, vector<8x128xf32>,
    return
  }
  func.func @transform_0(%arg0: i32) -> (i32, i32) {
    %c0_i32 = arith.constant 0 : i32
    %c0_i32_0 = arith.constant 0 : i32
    %c0_i32_1 = arith.constant 0 : i32
    return %c0_i32, %c0_i32_0 : i32, i32
  }
  func.func @transform_1(%arg0: i32) -> (i32, i32, i32) {
    %c0_i32 = arith.constant 0 : i32
    %c0_i32_0 = arith.constant 0 : i32
    %c0_i32_1 = arith.constant 0 : i32
    return %arg0, %c0_i32, %c0_i32_0 : i32, i32, i32
  }
  func.func @transform_2(%arg0: i32) -> (i32, i32) {
    %c0_i32 = arith.constant 0 : i32
    %c0_i32_0 = arith.constant 0 : i32
    %c0_i32_1 = arith.constant 0 : i32
    return %c0_i32, %c0_i32_0 : i32, i32
  }
}

</mosaic_0001>

<llo_original>
// kernel: linear_network_forward.1
$region0: #{linear_network_forward.1}
  #allocation0 [shape = 'u32[]', space=smem, size = 0x4, offset = 0x4, fixed_abs, tag = 'smem constant byte address 0x4 - core index']
  #allocation1 [shape = 'u32[72,128]{1,0:T(1,128)}', space=vmem, size = 0x9000, scoped, tag = 'internal scratch']
  %s0 = inlined_call_operand.vmem [shape: f32[8,128], index: 0, kind: input, shape index: {}]
  %s1 = inlined_call_operand.hbm [shape: f32[110,128,128], index: 1, kind: input, shape index: {}]
  %s2 = inlined_call_operand.hbm [shape: f32[8,128], index: 2, kind: output, shape index: {}]
  %s3 = sld [smem:[#allocation0]]
  $region49: #{linear_network_forward.1} parent=0
    _
  %s5 = ssub.s32 1, %s3
  %s6 = scalar_select 0, %s5, %s3
  $region1: #{linear_network_forward.1} parent=0
    #allocation2 [shape = 'u8[2883584]{0}', space=vmem, size = 0x2c0000, scoped, tag = 'input window, operand 1']
    #allocation3 [shape = 's32[2]{0}', space=sflag, size = 0x8, scoped, tag = 'scoped memory for linear_network_forward.1']
    #allocation4 [shape = 's32[2]{0}', space=sflag, size = 0x8, scoped, tag = 'scoped memory for linear_network_forward.1']
    #allocation5 [shape = 'u8[4096]{0}', space=vmem, size = 0x1000, scoped, tag = 'output window, operand 0, single buffered']
    %7 = vsyncpa [#allocation3], 0
    %s8 = scalar_lea.sflag [#allocation3], 1
    %9 = vsyncpa %s8, 0
    %10 = vsyncpa [#allocation4], 0
    loop: start=0, step=1, limit=7
    $region2: #{linear_network_forward.1} parent=1 // loop_pre_header
      _
    $region3: #{linear_network_forward.1} parent=1 // loop_header
      %s12 = sphi 0, %s16
      %p13 = scmp.ge.s32.totalorder %s12, 7
      %s20 = sphi 0, %s20
      %s22 = sphi 0, %s20
      %s23 = sphi 0, %s22
      %s37 = sphi 0, %s23
      %s43 = sphi 0, %s45
      %s46 = sphi 0, %s43
      %s47 = sphi 0, %s46
      %s63 = sphi 0, %s47
      %s67 = sphi 0, %s67
      %s69 = sphi 0, %s67
      %s70 = sphi 0, %s69
      %s84 = sphi 0, %s70
    $region4: #{linear_network_forward.1} parent=1 // loop_header_branch
      %15 = sbr.rel (%p13) target = $region8
    $region5: #{linear_network_forward.1} parent=1 // loop_body
      %s17 = ssub.s32 %s12, 1
      %s18 = ssub.s32 %s12, 2
      %s19 = sadd.s32 %s12, 1
      %s21 = sadd.s32 %s20, 1
      %p24 = scmp.eq.s32.totalorder %s12, 4
      %p25 = scmp.ne.s32.totalorder %s20, %s22
      %p26 = scmp.eq.s32.totalorder %s12, 0
      %p27 = por %p25, %p26
      %p28 = scmp.ne.s32.totalorder %s20, %s22
      %p29 = scmp.eq.s32.totalorder %s17, 4
      %p30 = por %p28, %p29
      %p31 = scmp.ne.s32.totalorder %s22, %s23
      %p32 = scmp.eq.s32.totalorder %s17, 0
      %p33 = por %p31, %p32
      %p34 = scmp.ne.s32.totalorder %s22, %s23
      %p35 = scmp.eq.s32.totalorder %s18, 4
      %p36 = por %p34, %p35
      %p38 = scmp.ne.s32.totalorder %s23, %s37
      %p39 = scmp.eq.s32.totalorder %s18, 0
      %p40 = por %p38, %p39
      %s41 = ssub.s32 %s12, %s19
      %p42 = scmp.eq.s32.totalorder %s41, 0
      %s44 = sadd.s32 %s43, 1
      %s45 = scalar_select %p42, %s43, %s44
      %p48 = pneg %p42
      %p49 = scmp.eq.s32.totalorder %s12, 4
      %p50 = por %p48, %p49
      %p51 = scmp.ne.s32.totalorder %s43, %s46
      %p52 = scmp.eq.s32.totalorder %s12, 0
      %p53 = por %p51, %p52
      %p54 = scmp.ne.s32.totalorder %s43, %s46
      %p55 = scmp.eq.s32.totalorder %s17, 4
      %p56 = por %p54, %p55
      %p57 = scmp.ne.s32.totalorder %s46, %s47
      %p58 = scmp.eq.s32.totalorder %s17, 0
      %p59 = por %p57, %p58
      %p60 = scmp.ne.s32.totalorder %s46, %s47
      %p61 = scmp.eq.s32.totalorder %s18, 4
      %p62 = por %p60, %p61
      %p64 = scmp.ne.s32.totalorder %s47, %s63
      %p65 = scmp.eq.s32.totalorder %s18, 0
      %p66 = por %p64, %p65
      %s68 = sadd.s32 %s67, 1
      %p71 = scmp.eq.s32.totalorder %s12, 4
      %p72 = scmp.ne.s32.totalorder %s67, %s69
      %p73 = scmp.eq.s32.totalorder %s12, 0
      %p74 = por %p72, %p73
      %p75 = scmp.ne.s32.totalorder %s67, %s69
      %p76 = scmp.eq.s32.totalorder %s17, 4
      %p77 = por %p75, %p76
      %p78 = scmp.ne.s32.totalorder %s69, %s70
      %p79 = scmp.eq.s32.totalorder %s17, 0
      %p80 = por %p78, %p79
      %p81 = scmp.ne.s32.totalorder %s69, %s70
      %p82 = scmp.eq.s32.totalorder %s18, 4
      %p83 = por %p81, %p82
      %p85 = scmp.ne.s32.totalorder %s70, %s84
      %p86 = scmp.eq.s32.totalorder %s18, 0
      %p87 = por %p85, %p86
      %p88 = scmp.le.s32.totalorder 1, %s12
      %p89 = scmp.lt.s32.totalorder %s12, 6
      %p90 = pnand %p88, %p89
      %p91 = pneg %p90
      // Predicated region
      $region9: #{linear_network_forward.1} parent=5 // pred_check
        _
      $region10: #{linear_network_forward.1} parent=5 // pred_check_branch
        %93 = sbr.rel (%p90) target = $region12
      $region11: #{linear_network_forward.1} parent=5 // pred_region
        %s94 = ssub.s32 %s12, 1
        // Predicated region
        $region13: #{linear_network_forward.1} parent=11 // pred_check
          %p95 = pneg %p33
        $region14: #{linear_network_forward.1} parent=11 // pred_check_branch
          %97 = sbr.rel (%p95) target = $region16
        $region15: #{linear_network_forward.1} parent=11 // pred_region
          _
        $region16: #{linear_network_forward.1} parent=11 // pred_fallthru
          _
      $region12: #{linear_network_forward.1} parent=5 // pred_fallthru
        _
      %p98 = scmp.lt.s32.totalorder %s12, 5
      // Predicated region
      $region17: #{linear_network_forward.1} parent=5 // pred_check
        %p99 = pneg %p98
      $region18: #{linear_network_forward.1} parent=5 // pred_check_branch
        %101 = sbr.rel (%p99) target = $region20
      $region19: #{linear_network_forward.1} parent=5 // pred_region
        // Predicated region
        $region21: #{linear_network_forward.1} parent=19 // pred_check
          %p102 = pneg %p53
        $region22: #{linear_network_forward.1} parent=19 // pred_check_branch
          %104 = sbr.rel (%p102) target = $region24
        $region23: #{linear_network_forward.1} parent=19 // pred_region
          %s105 = sand.u32 %s43, 1
          %s106 = scalar_lea.sflag [#allocation3], %s105
          %s107 = sand.u32 %s43, 1
          %s108 = smul.addr %s107, 2816
          %s109 = scalar_lea.vmem [#allocation2], %s108
          %s110 = smul.u32 22, %s12
          %112 = vsyncadd %s106, 0
          %s113 = smul.addr %s110, 16
          %s114 = smul.addr %s113, 8
          %s115 = scalar_lea.hbm %s1, %s114
          %s116 = sshll.u32 %s115, 4
          %s117 = int_to_ptr.hbm [resolvable:$true] %s116
          %s118 = sshll.u32 %s109, 4
          %s119 = int_to_ptr.vmem [resolvable:$true] %s118
          %124 = dma.hbm_to_vmem [thread:$0]  %s117, 45056, %s119, %s106, 128, 128, 8
        $region24: #{linear_network_forward.1} parent=19 // pred_fallthru
          _
      $region20: #{linear_network_forward.1} parent=5 // pred_fallthru
        _
      %p125 = scmp.le.s32.totalorder 1, %s12
      %p126 = scmp.lt.s32.totalorder %s12, 6
      %p127 = pnand %p125, %p126
      %p128 = pneg %p127
      // Predicated region
      $region25: #{linear_network_forward.1} parent=5 // pred_check
        _
      $region26: #{linear_network_forward.1} parent=5 // pred_check_branch
        %130 = sbr.rel (%p127) target = $region28
      $region27: #{linear_network_forward.1} parent=5 // pred_region
        %s131 = ssub.s32 %s12, 1
        %s132 = sand.u32 %s46, 1
        %s133 = scalar_lea.sflag [#allocation3], %s132
        %s134 = sand.u32 %s46, 1
        %s135 = smul.addr %s134, 2816
        %s136 = scalar_lea.vmem [#allocation2], %s135
        // Predicated region
        $region29: #{linear_network_forward.1} parent=27 // pred_check
          %p137 = pneg %p59
        $region30: #{linear_network_forward.1} parent=27 // pred_check_branch
          %139 = sbr.rel (%p137) target = $region32
        $region31: #{linear_network_forward.1} parent=27 // pred_region
          %141 = dma.done %s133, 45056
        $region32: #{linear_network_forward.1} parent=27 // pred_fallthru
          _
        %p142 = pneg %p33
        %p143 = pneg %p30
        %s144 = sand.u32 %s46, 1
        %s145 = scalar_lea.sflag [#allocation3], %s144
        %s146 = sand.u32 %s46, 1
        %s147 = smul.addr %s146, 2816
        %s148 = scalar_lea.vmem [#allocation2], %s147
        %p149 = pneg %p59
        %p150 = pneg %p56
        %p151 = pneg %p80
        %p152 = pneg %p77
        %s153 = smul.u32 22, %s17
        %p154 = scmp.eq.s32.totalorder %s17, 0
        // Predicated region
        $region33: #{linear_network_forward.1} parent=27 // pred_check
          %p155 = pneg %p154
        $region34: #{linear_network_forward.1} parent=27 // pred_check_branch
          %157 = sbr.rel (%p155) target = $region36
        $region35: #{linear_network_forward.1} parent=27 // pred_region
          %v158 = vld [vmem:[%s0] sm:$0xff]
          %159 = vst [vmem:[#allocation5] sm:$0xff] %v158
        $region36: #{linear_network_forward.1} parent=27 // pred_fallthru
          _
        %v160 = vld [vmem:[#allocation5] sm:$0xff]
        %v161 = vld [vmem:[%s136] sm:$0xff]
        %v162 = vld [vmem:[%s136 + $0x8] sm:$0xff]
        %v163 = vld [vmem:[%s136 + $0x10] sm:$0xff]
        %v164 = vld [vmem:[%s136 + $0x18] sm:$0xff]
        %v165 = vld [vmem:[%s136 + $0x20] sm:$0xff]
        %v166 = vld [vmem:[%s136 + $0x28] sm:$0xff]
        %v167 = vld [vmem:[%s136 + $0x30] sm:$0xff]
        %v168 = vld [vmem:[%s136 + $0x38] sm:$0xff]
        %v169 = vld [vmem:[%s136 + $0x40] sm:$0xff]
        %v170 = vld [vmem:[%s136 + $0x48] sm:$0xff]
        %v171 = vld [vmem:[%s136 + $0x50] sm:$0xff]
        %v172 = vld [vmem:[%s136 + $0x58] sm:$0xff]
        %v173 = vld [vmem:[%s136 + $0x60] sm:$0xff]
        %v174 = vld [vmem:[%s136 + $0x68] sm:$0xff]
        %v175 = vld [vmem:[%s136 + $0x70] sm:$0xff]
        %v176 = vld [vmem:[%s136 + $0x78] sm:$0xff]
        %v177 = vand.u32 %v176, 4294901760
        %178 = vmatpush.msra.mxu0 %v177
        %v179 = vand.u32 %v175, 4294901760
        %180 = vmatpush.msra.mxu0 %v179
        %v181 = vand.u32 %v174, 4294901760
        %182 = vmatpush.msra.mxu0 %v181
        %v183 = vand.u32 %v173, 4294901760
        %184 = vmatpush.msra.mxu0 %v183
        %v185 = vand.u32 %v172, 4294901760
        %186 = vmatpush.msra.mxu0 %v185
        %v187 = vand.u32 %v171, 4294901760
        %188 = vmatpush.msra.mxu0 %v187
        %v189 = vand.u32 %v170, 4294901760
        %190 = vmatpush.msra.mxu0 %v189
        %v191 = vand.u32 %v169, 4294901760
        %192 = vmatpush.msra.mxu0 %v191
        %v193 = vand.u32 %v168, 4294901760
        %194 = vmatpush.msra.mxu0 %v193
        %v195 = vand.u32 %v167, 4294901760
        %196 = vmatpush.msra.mxu0 %v195
        %v197 = vand.u32 %v166, 4294901760
        %198 = vmatpush.msra.mxu0 %v197
        %v199 = vand.u32 %v165, 4294901760
        %200 = vmatpush.msra.mxu0 %v199
        %v201 = vand.u32 %v164, 4294901760
        %202 = vmatpush.msra.mxu0 %v201
        %v203 = vand.u32 %v163, 4294901760
        %204 = vmatpush.msra.mxu0 %v203
        %v205 = vand.u32 %v162, 4294901760
        %206 = vmatpush.msra.mxu0 %v205
        %v207 = vand.u32 %v161, 4294901760
        %208 = vmatpush.msra.mxu0 %v207
        %v209 = vand.u32 %v160, 4294901760
        %v210 = vsub.f32 %v160, %v209
        %v211 = vand.u32 %v210, 4294901760
        %v212 = vsub.f32 %v210, %v211
        %v213 = vand.u32 %v212, 4294901760
        %214 = vmatmul.f32.gmra.mxu0 %v213
        %v215 = vpop.f32.mrf.mxu0
        %v216 = vadd.f32 0.0, %v215
        %217 = vdwg.mxu0
        %v218 = vand.u32 %v176, 4294901760
        %v219 = vsub.f32 %v176, %v218
        %v220 = vand.u32 %v219, 4294901760
        %v221 = vsub.f32 %v219, %v220
        %v222 = vand.u32 %v221, 4294901760
        %223 = vmatpush.msra.mxu0 %v222
        %v224 = vand.u32 %v175, 4294901760
        %v225 = vsub.f32 %v175, %v224
        %v226 = vand.u32 %v225, 4294901760
        %v227 = vsub.f32 %v225, %v226
        %v228 = vand.u32 %v227, 4294901760
        %229 = vmatpush.msra.mxu0 %v228
        %v230 = vand.u32 %v174, 4294901760
        %v231 = vsub.f32 %v174, %v230
        %v232 = vand.u32 %v231, 4294901760
        %v233 = vsub.f32 %v231, %v232
        %v234 = vand.u32 %v233, 4294901760
        %235 = vmatpush.msra.mxu0 %v234
        %v236 = vand.u32 %v173, 4294901760
        %v237 = vsub.f32 %v173, %v236
        %v238 = vand.u32 %v237, 4294901760
        %v239 = vsub.f32 %v237, %v238
        %v240 = vand.u32 %v239, 4294901760
        %241 = vmatpush.msra.mxu0 %v240
        %v242 = vand.u32 %v172, 4294901760
        %v243 = vsub.f32 %v172, %v242
        %v244 = vand.u32 %v243, 4294901760
        %v245 = vsub.f32 %v243, %v244
        %v246 = vand.u32 %v245, 4294901760
        %247 = vmatpush.msra.mxu0 %v246
        %v248 = vand.u32 %v171, 4294901760
        %v249 = vsub.f32 %v171, %v248
        %v250 = vand.u32 %v249, 4294901760
        %v251 = vsub.f32 %v249, %v250
        %v252 = vand.u32 %v251, 4294901760
        %253 = vmatpush.msra.mxu0 %v252
        %v254 = vand.u32 %v170, 4294901760
        %v255 = vsub.f32 %v170, %v254
        %v256 = vand.u32 %v255, 4294901760
        %v257 = vsub.f32 %v255, %v256
        %v258 = vand.u32 %v257, 4294901760
        %259 = vmatpush.msra.mxu0 %v258
        %v260 = vand.u32 %v169, 4294901760
        %v261 = vsub.f32 %v169, %v260
        %v262 = vand.u32 %v261, 4294901760
        %v263 = vsub.f32 %v261, %v262
        %v264 = vand.u32 %v263, 4294901760
        %265 = vmatpush.msra.mxu0 %v264
        %v266 = vand.u32 %v168, 4294901760
        %v267 = vsub.f32 %v168, %v266
        %v268 = vand.u32 %v267, 4294901760
        %v269 = vsub.f32 %v267, %v268
        %v270 = vand.u32 %v269, 4294901760
        %271 = vmatpush.msra.mxu0 %v270
        %v272 = vand.u32 %v167, 4294901760
        %v273 = vsub.f32 %v167, %v272
        %v274 = vand.u32 %v273, 4294901760
        %v275 = vsub.f32 %v273, %v274
        %v276 = vand.u32 %v275, 4294901760
        %277 = vmatpush.msra.mxu0 %v276
        %v278 = vand.u32 %v166, 4294901760
        %v279 = vsub.f32 %v166, %v278
        %v280 = vand.u32 %v279, 4294901760
        %v281 = vsub.f32 %v279, %v280
        %v282 = vand.u32 %v281, 4294901760
        %283 = vmatpush.msra.mxu0 %v282
        %v284 = vand.u32 %v165, 4294901760
        %v285 = vsub.f32 %v165, %v284
        %v286 = vand.u32 %v285, 4294901760
        %v287 = vsub.f32 %v285, %v286
        %v288 = vand.u32 %v287, 4294901760
        %289 = vmatpush.msra.mxu0 %v288
        %v290 = vand.u32 %v164, 4294901760
        %v291 = vsub.f32 %v164, %v290
        %v292 = vand.u32 %v291, 4294901760
        %v293 = vsub.f32 %v291, %v292
        %v294 = vand.u32 %v293, 4294901760
        %295 = vmatpush.msra.mxu0 %v294
        %v296 = vand.u32 %v163, 4294901760
        %v297 = vsub.f32 %v163, %v296
        %v298 = vand.u32 %v297, 4294901760
        %v299 = vsub.f32 %v297, %v298
        %v300 = vand.u32 %v299, 4294901760
        %301 = vmatpush.msra.mxu0 %v300
        %v302 = vand.u32 %v162, 4294901760
        %v303 = vsub.f32 %v162, %v302
        %v304 = vand.u32 %v303, 4294901760
        %v305 = vsub.f32 %v303, %v304
        %v306 = vand.u32 %v305, 4294901760
        %307 = vmatpush.msra.mxu0 %v306
        %v308 = vand.u32 %v161, 4294901760
        %v309 = vsub.f32 %v161, %v308
        %v310 = vand.u32 %v309, 4294901760
        %v311 = vsub.f32 %v309, %v310
        %v312 = vand.u32 %v311, 4294901760
        %313 = vmatpush.msra.mxu0 %v312
        %v314 = vand.u32 %v160, 4294901760
        %315 = vmatmul.f32.gmra.mxu0 %v314
        %v316 = vpop.f32.mrf.mxu0
        %v317 = vadd.f32 %v216, %v316
        %318 = vdwg.mxu0
        %v319 = vand.u32 %v176, 4294901760
        %v320 = vsub.f32 %v176, %v319
        %321 = vmatpush.msra.mxu0 %v320
        %v322 = vand.u32 %v175, 4294901760
        %v323 = vsub.f32 %v175, %v322
        %324 = vmatpush.msra.mxu0 %v323
        %v325 = vand.u32 %v174, 4294901760
        %v326 = vsub.f32 %v174, %v325
        %327 = vmatpush.msra.mxu0 %v326
        %v328 = vand.u32 %v173, 4294901760
        %v329 = vsub.f32 %v173, %v328
        %330 = vmatpush.msra.mxu0 %v329
        %v331 = vand.u32 %v172, 4294901760
        %v332 = vsub.f32 %v172, %v331
        %333 = vmatpush.msra.mxu0 %v332
        %v334 = vand.u32 %v171, 4294901760
        %v335 = vsub.f32 %v171, %v334
        %336 = vmatpush.msra.mxu0 %v335
        %v337 = vand.u32 %v170, 4294901760
        %v338 = vsub.f32 %v170, %v337
        %339 = vmatpush.msra.mxu0 %v338
        %v340 = vand.u32 %v169, 4294901760
        %v341 = vsub.f32 %v169, %v340
        %342 = vmatpush.msra.mxu0 %v341
        %v343 = vand.u32 %v168, 4294901760
        %v344 = vsub.f32 %v168, %v343
        %345 = vmatpush.msra.mxu0 %v344
        %v346 = vand.u32 %v167, 4294901760
        %v347 = vsub.f32 %v167, %v346
        %348 = vmatpush.msra.mxu0 %v347
        %v349 = vand.u32 %v166, 4294901760
        %v350 = vsub.f32 %v166, %v349
        %351 = vmatpush.msra.mxu0 %v350
        %v352 = vand.u32 %v165, 4294901760
        %v353 = vsub.f32 %v165, %v352
        %354 = vmatpush.msra.mxu0 %v353
        %v355 = vand.u32 %v164, 4294901760
        %v356 = vsub.f32 %v164, %v355
        %357 = vmatpush.msra.mxu0 %v356
        %v358 = vand.u32 %v163, 4294901760
        %v359 = vsub.f32 %v163, %v358
        %360 = vmatpush.msra.mxu0 %v359
        %v361 = vand.u32 %v162, 4294901760
        %v362 = vsub.f32 %v162, %v361
        %363 = vmatpush.msra.mxu0 %v362
        %v364 = vand.u32 %v161, 4294901760
        %v365 = vsub.f32 %v161, %v364
        %366 = vmatpush.msra.mxu0 %v365
        %v367 = vand.u32 %v160, 4294901760
        %v368 = vsub.f32 %v160, %v367
        %369 = vmatmul.f32.gmra.mxu0 %v368
        %v370 = vpop.f32.mrf.mxu0
        %v371 = vadd.f32 %v317, %v370
        %372 = vdwg.mxu0
        %v373 = vand.u32 %v176, 4294901760
        %374 = vmatpush.msra.mxu0 %v373
        %v375 = vand.u32 %v175, 4294901760
        %376 = vmatpush.msra.mxu0 %v375
        %v377 = vand.u32 %v174, 4294901760
        %378 = vmatpush.msra.mxu0 %v377
        %v379 = vand.u32 %v173, 4294901760
        %380 = vmatpush.msra.mxu0 %v379
        %v381 = vand.u32 %v172, 4294901760
        %382 = vmatpush.msra.mxu0 %v381
        %v383 = vand.u32 %v171, 4294901760
        %384 = vmatpush.msra.mxu0 %v383
        %v385 = vand.u32 %v170, 4294901760
        %386 = vmatpush.msra.mxu0 %v385
        %v387 = vand.u32 %v169, 4294901760
        %388 = vmatpush.msra.mxu0 %v387
        %v389 = vand.u32 %v168, 4294901760
        %390 = vmatpush.msra.mxu0 %v389
        %v391 = vand.u32 %v167, 4294901760
        %392 = vmatpush.msra.mxu0 %v391
        %v393 = vand.u32 %v166, 4294901760
        %394 = vmatpush.msra.mxu0 %v393
        %v395 = vand.u32 %v165, 4294901760
        %396 = vmatpush.msra.mxu0 %v395
        %v397 = vand.u32 %v164, 4294901760
        %398 = vmatpush.msra.mxu0 %v397
        %v399 = vand.u32 %v163, 4294901760
        %400 = vmatpush.msra.mxu0 %v399
        %v401 = vand.u32 %v162, 4294901760
        %402 = vmatpush.msra.mxu0 %v401
        %v403 = vand.u32 %v161, 4294901760
        %404 = vmatpush.msra.mxu0 %v403
        %v405 = vand.u32 %v160, 4294901760
        %v406 = vsub.f32 %v160, %v405
        %v407 = vand.u32 %v406, 4294901760
        %408 = vmatmul.f32.gmra.mxu0 %v407
        %v409 = vpop.f32.mrf.mxu0
        %v410 = vadd.f32 %v371, %v409
        %411 = vdwg.mxu0
        %v412 = vand.u32 %v176, 4294901760
        %v413 = vsub.f32 %v176, %v412
        %v414 = vand.u32 %v413, 4294901760
        %415 = vmatpush.msra.mxu0 %v414
        %v416 = vand.u32 %v175, 4294901760
        %v417 = vsub.f32 %v175, %v416
        %v418 = vand.u32 %v417, 4294901760
        %419 = vmatpush.msra.mxu0 %v418
        %v420 = vand.u32 %v174, 4294901760
        %v421 = vsub.f32 %v174, %v420
        %v422 = vand.u32 %v421, 4294901760
        %423 = vmatpush.msra.mxu0 %v422
        %v424 = vand.u32 %v173, 4294901760
        %v425 = vsub.f32 %v173, %v424
        %v426 = vand.u32 %v425, 4294901760
        %427 = vmatpush.msra.mxu0 %v426
        %v428 = vand.u32 %v172, 4294901760
        %v429 = vsub.f32 %v172, %v428
        %v430 = vand.u32 %v429, 4294901760
        %431 = vmatpush.msra.mxu0 %v430
        %v432 = vand.u32 %v171, 4294901760
        %v433 = vsub.f32 %v171, %v432
        %v434 = vand.u32 %v433, 4294901760
        %435 = vmatpush.msra.mxu0 %v434
        %v436 = vand.u32 %v170, 4294901760
        %v437 = vsub.f32 %v170, %v436
        %v438 = vand.u32 %v437, 4294901760
        %439 = vmatpush.msra.mxu0 %v438
        %v440 = vand.u32 %v169, 4294901760
        %v441 = vsub.f32 %v169, %v440
        %v442 = vand.u32 %v441, 4294901760
        %443 = vmatpush.msra.mxu0 %v442
        %v444 = vand.u32 %v168, 4294901760
        %v445 = vsub.f32 %v168, %v444
        %v446 = vand.u32 %v445, 4294901760
        %447 = vmatpush.msra.mxu0 %v446
        %v448 = vand.u32 %v167, 4294901760
        %v449 = vsub.f32 %v167, %v448
        %v450 = vand.u32 %v449, 4294901760
        %451 = vmatpush.msra.mxu0 %v450
        %v452 = vand.u32 %v166, 4294901760
        %v453 = vsub.f32 %v166, %v452
        %v454 = vand.u32 %v453, 4294901760
        %455 = vmatpush.msra.mxu0 %v454
        %v456 = vand.u32 %v165, 4294901760
        %v457 = vsub.f32 %v165, %v456
        %v458 = vand.u32 %v457, 4294901760
        %459 = vmatpush.msra.mxu0 %v458
        %v460 = vand.u32 %v164, 4294901760
        %v461 = vsub.f32 %v164, %v460
        %v462 = vand.u32 %v461, 4294901760
        %463 = vmatpush.msra.mxu0 %v462
        %v464 = vand.u32 %v163, 4294901760
        %v465 = vsub.f32 %v163, %v464
        %v466 = vand.u32 %v465, 4294901760
        %467 = vmatpush.msra.mxu0 %v466
        %v468 = vand.u32 %v162, 4294901760
        %v469 = vsub.f32 %v162, %v468
        %v470 = vand.u32 %v469, 4294901760
        %471 = vmatpush.msra.mxu0 %v470
        %v472 = vand.u32 %v161, 4294901760
        %v473 = vsub.f32 %v161, %v472
        %v474 = vand.u32 %v473, 4294901760
        %475 = vmatpush.msra.mxu0 %v474
        %v476 = vand.u32 %v160, 4294901760
        %477 = vmatmul.f32.gmra.mxu0 %v476
        %v478 = vpop.f32.mrf.mxu0
        %v479 = vadd.f32 %v410, %v478
        %480 = vdwg.mxu0
        %v481 = vand.u32 %v176, 4294901760
        %482 = vmatpush.msra.mxu0 %v481
        %v483 = vand.u32 %v175, 4294901760
        %484 = vmatpush.msra.mxu0 %v483
        %v485 = vand.u32 %v174, 4294901760
        %486 = vmatpush.msra.mxu0 %v485
        %v487 = vand.u32 %v173, 4294901760
        %488 = vmatpush.msra.mxu0 %v487
        %v489 = vand.u32 %v172, 4294901760
        %490 = vmatpush.msra.mxu0 %v489
        %v491 = vand.u32 %v171, 4294901760
        %492 = vmatpush.msra.mxu0 %v491
        %v493 = vand.u32 %v170, 4294901760
        %494 = vmatpush.msra.mxu0 %v493
        %v495 = vand.u32 %v169, 4294901760
        %496 = vmatpush.msra.mxu0 %v495
        %v497 = vand.u32 %v168, 4294901760
        %498 = vmatpush.msra.mxu0 %v497
        %v499 = vand.u32 %v167, 4294901760
        %500 = vmatpush.msra.mxu0 %v499
        %v501 = vand.u32 %v166, 4294901760
        %502 = vmatpush.msra.mxu0 %v501
        %v503 = vand.u32 %v165, 4294901760
        %504 = vmatpush.msra.mxu0 %v503
        %v505 = vand.u32 %v164, 4294901760
        %506 = vmatpush.msra.mxu0 %v505
        %v507 = vand.u32 %v163, 4294901760
        %508 = vmatpush.msra.mxu0 %v507
        %v509 = vand.u32 %v162, 4294901760
        %510 = vmatpush.msra.mxu0 %v509
        %v511 = vand.u32 %v161, 4294901760
        %512 = vmatpush.msra.mxu0 %v511
        %v513 = vand.u32 %v160, 4294901760
        %514 = vmatmul.f32.gmra.mxu0 %v513
        %v515 = vpop.f32.mrf.mxu0
        %v516 = vadd.f32 %v479, %v515
        %517 = vdwg.mxu0
        %s518 = scalar_lea.vmem %s136, 128 [#allocation2]
        %v519 = vld [vmem:[%s518] sm:$0xff]
        %v520 = vld [vmem:[%s518 + $0x8] sm:$0xff]
        %v521 = vld [vmem:[%s518 + $0x10] sm:$0xff]
        %v522 = vld [vmem:[%s518 + $0x18] sm:$0xff]
        %v523 = vld [vmem:[%s518 + $0x20] sm:$0xff]
        %v524 = vld [vmem:[%s518 + $0x28] sm:$0xff]
        %v525 = vld [vmem:[%s518 + $0x30] sm:$0xff]
        %v526 = vld [vmem:[%s518 + $0x38] sm:$0xff]
        %v527 = vld [vmem:[%s518 + $0x40] sm:$0xff]
        %v528 = vld [vmem:[%s518 + $0x48] sm:$0xff]
        %v529 = vld [vmem:[%s518 + $0x50] sm:$0xff]
        %v530 = vld [vmem:[%s518 + $0x58] sm:$0xff]
        %v531 = vld [vmem:[%s518 + $0x60] sm:$0xff]
        %v532 = vld [vmem:[%s518 + $0x68] sm:$0xff]
        %v533 = vld [vmem:[%s518 + $0x70] sm:$0xff]
        %v534 = vld [vmem:[%s518 + $0x78] sm:$0xff]
        %v535 = vand.u32 %v534, 4294901760
        %536 = vmatpush.msra.mxu0 %v535
        %v537 = vand.u32 %v533, 4294901760
        %538 = vmatpush.msra.mxu0 %v537
        %v539 = vand.u32 %v532, 4294901760
        %540 = vmatpush.msra.mxu0 %v539
        %v541 = vand.u32 %v531, 4294901760
        %542 = vmatpush.msra.mxu0 %v541
        %v543 = vand.u32 %v530, 4294901760
        %544 = vmatpush.msra.mxu0 %v543
        %v545 = vand.u32 %v529, 4294901760
        %546 = vmatpush.msra.mxu0 %v545
        %v547 = vand.u32 %v528, 4294901760
        %548 = vmatpush.msra.mxu0 %v547
        %v549 = vand.u32 %v527, 4294901760
        %550 = vmatpush.msra.mxu0 %v549
        %v551 = vand.u32 %v526, 4294901760
        %552 = vmatpush.msra.mxu0 %v551
        %v553 = vand.u32 %v525, 4294901760
        %554 = vmatpush.msra.mxu0 %v553
        %v555 = vand.u32 %v524, 4294901760
        %556 = vmatpush.msra.mxu0 %v555
        %v557 = vand.u32 %v523, 4294901760
        %558 = vmatpush.msra.mxu0 %v557
        %v559 = vand.u32 %v522, 4294901760
        %560 = vmatpush.msra.mxu0 %v559
        %v561 = vand.u32 %v521, 4294901760
        %562 = vmatpush.msra.mxu0 %v561
        %v563 = vand.u32 %v520, 4294901760
        %564 = vmatpush.msra.mxu0 %v563
        %v565 = vand.u32 %v519, 4294901760
        %566 = vmatpush.msra.mxu0 %v565
        %v567 = vand.u32 %v516, 4294901760
        %v568 = vsub.f32 %v516, %v567
        %v569 = vand.u32 %v568, 4294901760
        %v570 = vsub.f32 %v568, %v569
        %v571 = vand.u32 %v570, 4294901760
        %572 = vmatmul.f32.gmra.mxu0 %v571
        %v573 = vpop.f32.mrf.mxu0
        %v574 = vadd.f32 0.0, %v573
        %575 = vdwg.mxu0
        %v576 = vand.u32 %v534, 4294901760
        %v577 = vsub.f32 %v534, %v576
        %v578 = vand.u32 %v577, 4294901760
        %v579 = vsub.f32 %v577, %v578
        %v580 = vand.u32 %v579, 4294901760
        %581 = vmatpush.msra.mxu0 %v580
        %v582 = vand.u32 %v533, 4294901760
        %v583 = vsub.f32 %v533, %v582
        %v584 = vand.u32 %v583, 4294901760
        %v585 = vsub.f32 %v583, %v584
        %v586 = vand.u32 %v585, 4294901760
        %587 = vmatpush.msra.mxu0 %v586
        %v588 = vand.u32 %v532, 4294901760
        %v589 = vsub.f32 %v532, %v588
        %v590 = vand.u32 %v589, 4294901760
        %v591 = vsub.f32 %v589, %v590
        %v592 = vand.u32 %v591, 4294901760
        %593 = vmatpush.msra.mxu0 %v592
        %v594 = vand.u32 %v531, 4294901760
        %v595 = vsub.f32 %v531, %v594
        %v596 = vand.u32 %v595, 4294901760
        %v597 = vsub.f32 %v595, %v596
        %v598 = vand.u32 %v597, 4294901760
        %599 = vmatpush.msra.mxu0 %v598
        %v600 = vand.u32 %v530, 4294901760
        %v601 = vsub.f32 %v530, %v600
        %v602 = vand.u32 %v601, 4294901760
        %v603 = vsub.f32 %v601, %v602
        %v604 = vand.u32 %v603, 4294901760
        %605 = vmatpush.msra.mxu0 %v604
        %v606 = vand.u32 %v529, 4294901760
        %v607 = vsub.f32 %v529, %v606
        %v608 = vand.u32 %v607, 4294901760
        %v609 = vsub.f32 %v607, %v608
        %v610 = vand.u32 %v609, 4294901760
        %611 = vmatpush.msra.mxu0 %v610
        %v612 = vand.u32 %v528, 4294901760
        %v613 = vsub.f32 %v528, %v612
        %v614 = vand.u32 %v613, 4294901760
        %v615 = vsub.f32 %v613, %v614
        %v616 = vand.u32 %v615, 4294901760
        %617 = vmatpush.msra.mxu0 %v616
        %v618 = vand.u32 %v527, 4294901760
        %v619 = vsub.f32 %v527, %v618
        %v620 = vand.u32 %v619, 4294901760
        %v621 = vsub.f32 %v619, %v620
        %v622 = vand.u32 %v621, 4294901760
        %623 = vmatpush.msra.mxu0 %v622
        %v624 = vand.u32 %v526, 4294901760
        %v625 = vsub.f32 %v526, %v624
        %v626 = vand.u32 %v625, 4294901760
        %v627 = vsub.f32 %v625, %v626
        %v628 = vand.u32 %v627, 4294901760
        %629 = vmatpush.msra.mxu0 %v628
        %v630 = vand.u32 %v525, 4294901760
        %v631 = vsub.f32 %v525, %v630
        %v632 = vand.u32 %v631, 4294901760
        %v633 = vsub.f32 %v631, %v632
        %v634 = vand.u32 %v633, 4294901760
        %635 = vmatpush.msra.mxu0 %v634
        %v636 = vand.u32 %v524, 4294901760
        %v637 = vsub.f32 %v524, %v636
        %v638 = vand.u32 %v637, 4294901760
        %v639 = vsub.f32 %v637, %v638
        %v640 = vand.u32 %v639, 4294901760
        %641 = vmatpush.msra.mxu0 %v640
        %v642 = vand.u32 %v523, 4294901760
        %v643 = vsub.f32 %v523, %v642
        %v644 = vand.u32 %v643, 4294901760
        %v645 = vsub.f32 %v643, %v644
        %v646 = vand.u32 %v645, 4294901760
        %647 = vmatpush.msra.mxu0 %v646
        %v648 = vand.u32 %v522, 4294901760
        %v649 = vsub.f32 %v522, %v648
        %v650 = vand.u32 %v649, 4294901760
        %v651 = vsub.f32 %v649, %v650
        %v652 = vand.u32 %v651, 4294901760
        %653 = vmatpush.msra.mxu0 %v652
        %v654 = vand.u32 %v521, 4294901760
        %v655 = vsub.f32 %v521, %v654
        %v656 = vand.u32 %v655, 4294901760
        %v657 = vsub.f32 %v655, %v656
        %v658 = vand.u32 %v657, 4294901760
        %659 = vmatpush.msra.mxu0 %v658
        %v660 = vand.u32 %v520, 4294901760
        %v661 = vsub.f32 %v520, %v660
        %v662 = vand.u32 %v661, 4294901760
        %v663 = vsub.f32 %v661, %v662
        %v664 = vand.u32 %v663, 4294901760
        %665 = vmatpush.msra.mxu0 %v664
        %v666 = vand.u32 %v519, 4294901760
        %v667 = vsub.f32 %v519, %v666
        %v668 = vand.u32 %v667, 4294901760
        %v669 = vsub.f32 %v667, %v668
        %v670 = vand.u32 %v669, 4294901760
        %671 = vmatpush.msra.mxu0 %v670
        %v672 = vand.u32 %v516, 4294901760
        %673 = vmatmul.f32.gmra.mxu0 %v672
        %v674 = vpop.f32.mrf.mxu0
        %v675 = vadd.f32 %v574, %v674
        %676 = vdwg.mxu0
        %v677 = vand.u32 %v534, 4294901760
        %v678 = vsub.f32 %v534, %v677
        %679 = vmatpush.msra.mxu0 %v678
        %v680 = vand.u32 %v533, 4294901760
        %v681 = vsub.f32 %v533, %v680
        %682 = vmatpush.msra.mxu0 %v681
        %v683 = vand.u32 %v532, 4294901760
        %v684 = vsub.f32 %v532, %v683
        %685 = vmatpush.msra.mxu0 %v684
        %v686 = vand.u32 %v531, 4294901760
        %v687 = vsub.f32 %v531, %v686
        %688 = vmatpush.msra.mxu0 %v687
        %v689 = vand.u32 %v530, 4294901760
        %v690 = vsub.f32 %v530, %v689
        %691 = vmatpush.msra.mxu0 %v690
        %v692 = vand.u32 %v529, 4294901760
        %v693 = vsub.f32 %v529, %v692
        %694 = vmatpush.msra.mxu0 %v693
        %v695 = vand.u32 %v528, 4294901760
        %v696 = vsub.f32 %v528, %v695
        %697 = vmatpush.msra.mxu0 %v696
        %v698 = vand.u32 %v527, 4294901760
        %v699 = vsub.f32 %v527, %v698
        %700 = vmatpush.msra.mxu0 %v699
        %v701 = vand.u32 %v526, 4294901760
        %v702 = vsub.f32 %v526, %v701
        %703 = vmatpush.msra.mxu0 %v702
        %v704 = vand.u32 %v525, 4294901760
        %v705 = vsub.f32 %v525, %v704
        %706 = vmatpush.msra.mxu0 %v705
        %v707 = vand.u32 %v524, 4294901760
        %v708 = vsub.f32 %v524, %v707
        %709 = vmatpush.msra.mxu0 %v708
        %v710 = vand.u32 %v523, 4294901760
        %v711 = vsub.f32 %v523, %v710
        %712 = vmatpush.msra.mxu0 %v711
        %v713 = vand.u32 %v522, 4294901760
        %v714 = vsub.f32 %v522, %v713
        %715 = vmatpush.msra.mxu0 %v714
        %v716 = vand.u32 %v521, 4294901760
        %v717 = vsub.f32 %v521, %v716
        %718 = vmatpush.msra.mxu0 %v717
        %v719 = vand.u32 %v520, 4294901760
        %v720 = vsub.f32 %v520, %v719
        %721 = vmatpush.msra.mxu0 %v720
        %v722 = vand.u32 %v519, 4294901760
        %v723 = vsub.f32 %v519, %v722
        %724 = vmatpush.msra.mxu0 %v723
        %v725 = vand.u32 %v516, 4294901760
        %v726 = vsub.f32 %v516, %v725
        %727 = vmatmul.f32.gmra.mxu0 %v726
        %v728 = vpop.f32.mrf.mxu0
        %v729 = vadd.f32 %v675, %v728
        %730 = vdwg.mxu0
        %v731 = vand.u32 %v534, 4294901760
        %732 = vmatpush.msra.mxu0 %v731
        %v733 = vand.u32 %v533, 4294901760
        %734 = vmatpush.msra.mxu0 %v733
        %v735 = vand.u32 %v532, 4294901760
        %736 = vmatpush.msra.mxu0 %v735
        %v737 = vand.u32 %v531, 4294901760
        %738 = vmatpush.msra.mxu0 %v737
        %v739 = vand.u32 %v530, 4294901760
        %740 = vmatpush.msra.mxu0 %v739
        %v741 = vand.u32 %v529, 4294901760
        %742 = vmatpush.msra.mxu0 %v741
        %v743 = vand.u32 %v528, 4294901760
        %744 = vmatpush.msra.mxu0 %v743
        %v745 = vand.u32 %v527, 4294901760
        %746 = vmatpush.msra.mxu0 %v745
        %v747 = vand.u32 %v526, 4294901760
        %748 = vmatpush.msra.mxu0 %v747
        %v749 = vand.u32 %v525, 4294901760
        %750 = vmatpush.msra.mxu0 %v749
        %v751 = vand.u32 %v524, 4294901760
        %752 = vmatpush.msra.mxu0 %v751
        %v753 = vand.u32 %v523, 4294901760
        %754 = vmatpush.msra.mxu0 %v753
        %v755 = vand.u32 %v522, 4294901760
        %756 = vmatpush.msra.mxu0 %v755
        %v757 = vand.u32 %v521, 4294901760
        %758 = vmatpush.msra.mxu0 %v757
        %v759 = vand.u32 %v520, 4294901760
        %760 = vmatpush.msra.mxu0 %v759
        %v761 = vand.u32 %v519, 4294901760
        %762 = vmatpush.msra.mxu0 %v761
        %v763 = vand.u32 %v516, 4294901760
        %v764 = vsub.f32 %v516, %v763
        %v765 = vand.u32 %v764, 4294901760
        %766 = vmatmul.f32.gmra.mxu0 %v765
        %v767 = vpop.f32.mrf.mxu0
        %v768 = vadd.f32 %v729, %v767
        %769 = vdwg.mxu0
        %v770 = vand.u32 %v534, 4294901760
        %v771 = vsub.f32 %v534, %v770
        %v772 = vand.u32 %v771, 4294901760
        %773 = vmatpush.msra.mxu0 %v772
        %v774 = vand.u32 %v533, 4294901760
        %v775 = vsub.f32 %v533, %v774
        %v776 = vand.u32 %v775, 4294901760
        %777 = vmatpush.msra.mxu0 %v776
        %v778 = vand.u32 %v532, 4294901760
        %v779 = vsub.f32 %v532, %v778
        %v780 = vand.u32 %v779, 4294901760
        %781 = vmatpush.msra.mxu0 %v780
        %v782 = vand.u32 %v531, 4294901760
        %v783 = vsub.f32 %v531, %v782
        %v784 = vand.u32 %v783, 4294901760
        %785 = vmatpush.msra.mxu0 %v784
        %v786 = vand.u32 %v530, 4294901760
        %v787 = vsub.f32 %v530, %v786
        %v788 = vand.u32 %v787, 4294901760
        %789 = vmatpush.msra.mxu0 %v788
        %v790 = vand.u32 %v529, 4294901760
        %v791 = vsub.f32 %v529, %v790
        %v792 = vand.u32 %v791, 4294901760
        %793 = vmatpush.msra.mxu0 %v792
        %v794 = vand.u32 %v528, 4294901760
        %v795 = vsub.f32 %v528, %v794
        %v796 = vand.u32 %v795, 4294901760
        %797 = vmatpush.msra.mxu0 %v796
        %v798 = vand.u32 %v527, 4294901760
        %v799 = vsub.f32 %v527, %v798
        %v800 = vand.u32 %v799, 4294901760
        %801 = vmatpush.msra.mxu0 %v800
        %v802 = vand.u32 %v526, 4294901760
        %v803 = vsub.f32 %v526, %v802
        %v804 = vand.u32 %v803, 4294901760
        %805 = vmatpush.msra.mxu0 %v804
        %v806 = vand.u32 %v525, 4294901760
        %v807 = vsub.f32 %v525, %v806
        %v808 = vand.u32 %v807, 4294901760
        %809 = vmatpush.msra.mxu0 %v808
        %v810 = vand.u32 %v524, 4294901760
        %v811 = vsub.f32 %v524, %v810
        %v812 = vand.u32 %v811, 4294901760
        %813 = vmatpush.msra.mxu0 %v812
        %v814 = vand.u32 %v523, 4294901760
        %v815 = vsub.f32 %v523, %v814
        %v816 = vand.u32 %v815, 4294901760
        %817 = vmatpush.msra.mxu0 %v816
        %v818 = vand.u32 %v522, 4294901760
        %v819 = vsub.f32 %v522, %v818
        %v820 = vand.u32 %v819, 4294901760
        %821 = vmatpush.msra.mxu0 %v820
        %v822 = vand.u32 %v521, 4294901760
        %v823 = vsub.f32 %v521, %v822
        %v824 = vand.u32 %v823, 4294901760
        %825 = vmatpush.msra.mxu0 %v824
        %v826 = vand.u32 %v520, 4294901760
        %v827 = vsub.f32 %v520, %v826
        %v828 = vand.u32 %v827, 4294901760
        %829 = vmatpush.msra.mxu0 %v828
        %v830 = vand.u32 %v519, 4294901760
        %v831 = vsub.f32 %v519, %v830
        %v832 = vand.u32 %v831, 4294901760
        %833 = vmatpush.msra.mxu0 %v832
        %v834 = vand.u32 %v516, 4294901760
        %835 = vmatmul.f32.gmra.mxu0 %v834
        %v836 = vpop.f32.mrf.mxu0
        %v837 = vadd.f32 %v768, %v836
        %838 = vdwg.mxu0
        %v839 = vand.u32 %v534, 4294901760
        %840 = vmatpush.msra.mxu0 %v839
        %v841 = vand.u32 %v533, 4294901760
        %842 = vmatpush.msra.mxu0 %v841
        %v843 = vand.u32 %v532, 4294901760
        %844 = vmatpush.msra.mxu0 %v843
        %v845 = vand.u32 %v531, 4294901760
        %846 = vmatpush.msra.mxu0 %v845
        %v847 = vand.u32 %v530, 4294901760
        %848 = vmatpush.msra.mxu0 %v847
        %v849 = vand.u32 %v529, 4294901760
        %850 = vmatpush.msra.mxu0 %v849
        %v851 = vand.u32 %v528, 4294901760
        %852 = vmatpush.msra.mxu0 %v851
        %v853 = vand.u32 %v527, 4294901760
        %854 = vmatpush.msra.mxu0 %v853
        %v855 = vand.u32 %v526, 4294901760
        %856 = vmatpush.msra.mxu0 %v855
        %v857 = vand.u32 %v525, 4294901760
        %858 = vmatpush.msra.mxu0 %v857
        %v859 = vand.u32 %v524, 4294901760
        %860 = vmatpush.msra.mxu0 %v859
        %v861 = vand.u32 %v523, 4294901760
        %862 = vmatpush.msra.mxu0 %v861
        %v863 = vand.u32 %v522, 4294901760
        %864 = vmatpush.msra.mxu0 %v863
        %v865 = vand.u32 %v521, 4294901760
        %866 = vmatpush.msra.mxu0 %v865
        %v867 = vand.u32 %v520, 4294901760
        %868 = vmatpush.msra.mxu0 %v867
        %v869 = vand.u32 %v519, 4294901760
        %870 = vmatpush.msra.mxu0 %v869
        %v871 = vand.u32 %v516, 4294901760
        %872 = vmatmul.f32.gmra.mxu0 %v871
        %v873 = vpop.f32.mrf.mxu0
        %v874 = vadd.f32 %v837, %v873
        %875 = vdwg.mxu0
        %s876 = scalar_lea.vmem %s136, 256 [#allocation2]
        %v877 = vld [vmem:[%s876] sm:$0xff]
        %v878 = vld [vmem:[%s876 + $0x8] sm:$0xff]
        %v879 = vld [vmem:[%s876 + $0x10] sm:$0xff]
        %v880 = vld [vmem:[%s876 + $0x18] sm:$0xff]
        %v881 = vld [vmem:[%s876 + $0x20] sm:$0xff]
        %v882 = vld [vmem:[%s876 + $0x28] sm:$0xff]
        %v883 = vld [vmem:[%s876 + $0x30] sm:$0xff]
        %v884 = vld [vmem:[%s876 + $0x38] sm:$0xff]
        %v885 = vld [vmem:[%s876 + $0x40] sm:$0xff]
        %v886 = vld [vmem:[%s876 + $0x48] sm:$0xff]
        %v887 = vld [vmem:[%s876 + $0x50] sm:$0xff]
        %v888 = vld [vmem:[%s876 + $0x58] sm:$0xff]
        %v889 = vld [vmem:[%s876 + $0x60] sm:$0xff]
        %v890 = vld [vmem:[%s876 + $0x68] sm:$0xff]
        %v891 = vld [vmem:[%s876 + $0x70] sm:$0xff]
        %v892 = vld [vmem:[%s876 + $0x78] sm:$0xff]
        %v893 = vand.u32 %v892, 4294901760
        %894 = vmatpush.msra.mxu0 %v893
        %v895 = vand.u32 %v891, 4294901760
        %896 = vmatpush.msra.mxu0 %v895
        %v897 = vand.u32 %v890, 4294901760
        %898 = vmatpush.msra.mxu0 %v897
        %v899 = vand.u32 %v889, 4294901760
        %900 = vmatpush.msra.mxu0 %v899
        %v901 = vand.u32 %v888, 4294901760
        %902 = vmatpush.msra.mxu0 %v901
        %v903 = vand.u32 %v887, 4294901760
        %904 = vmatpush.msra.mxu0 %v903
        %v905 = vand.u32 %v886, 4294901760
        %906 = vmatpush.msra.mxu0 %v905
        %v907 = vand.u32 %v885, 4294901760
        %908 = vmatpush.msra.mxu0 %v907
        %v909 = vand.u32 %v884, 4294901760
        %910 = vmatpush.msra.mxu0 %v909
        %v911 = vand.u32 %v883, 4294901760
        %912 = vmatpush.msra.mxu0 %v911
        %v913 = vand.u32 %v882, 4294901760
        %914 = vmatpush.msra.mxu0 %v913
        %v915 = vand.u32 %v881, 4294901760
        %916 = vmatpush.msra.mxu0 %v915
        %v917 = vand.u32 %v880, 4294901760
        %918 = vmatpush.msra.mxu0 %v917
        %v919 = vand.u32 %v879, 4294901760
        %920 = vmatpush.msra.mxu0 %v919
        %v921 = vand.u32 %v878, 4294901760
        %922 = vmatpush.msra.mxu0 %v921
        %v923 = vand.u32 %v877, 4294901760
        %924 = vmatpush.msra.mxu0 %v923
        %v925 = vand.u32 %v874, 4294901760
        %v926 = vsub.f32 %v874, %v925
        %v927 = vand.u32 %v926, 4294901760
        %v928 = vsub.f32 %v926, %v927
        %v929 = vand.u32 %v928, 4294901760
        %930 = vmatmul.f32.gmra.mxu0 %v929
        %v931 = vpop.f32.mrf.mxu0
        %v932 = vadd.f32 0.0, %v931
        %933 = vdwg.mxu0
        %v934 = vand.u32 %v892, 4294901760
        %v935 = vsub.f32 %v892, %v934
        %v936 = vand.u32 %v935, 4294901760
        %v937 = vsub.f32 %v935, %v936
        %v938 = vand.u32 %v937, 4294901760
        %939 = vmatpush.msra.mxu0 %v938
        %v940 = vand.u32 %v891, 4294901760
        %v941 = vsub.f32 %v891, %v940
        %v942 = vand.u32 %v941, 4294901760
        %v943 = vsub.f32 %v941, %v942
        %v944 = vand.u32 %v943, 4294901760
        %945 = vmatpush.msra.mxu0 %v944
        %v946 = vand.u32 %v890, 4294901760
        %v947 = vsub.f32 %v890, %v946
        %v948 = vand.u32 %v947, 4294901760
        %v949 = vsub.f32 %v947, %v948
        %v950 = vand.u32 %v949, 4294901760
        %951 = vmatpush.msra.mxu0 %v950
        %v952 = vand.u32 %v889, 4294901760
        %v953 = vsub.f32 %v889, %v952
        %v954 = vand.u32 %v953, 4294901760
        %v955 = vsub.f32 %v953, %v954
        %v956 = vand.u32 %v955, 4294901760
        %957 = vmatpush.msra.mxu0 %v956
        %v958 = vand.u32 %v888, 4294901760
        %v959 = vsub.f32 %v888, %v958
        %v960 = vand.u32 %v959, 4294901760
        %v961 = vsub.f32 %v959, %v960
        %v962 = vand.u32 %v961, 4294901760
        %963 = vmatpush.msra.mxu0 %v962
        %v964 = vand.u32 %v887, 4294901760
        %v965 = vsub.f32 %v887, %v964
        %v966 = vand.u32 %v965, 4294901760
        %v967 = vsub.f32 %v965, %v966
        %v968 = vand.u32 %v967, 4294901760
        %969 = vmatpush.msra.mxu0 %v968
        %v970 = vand.u32 %v886, 4294901760
        %v971 = vsub.f32 %v886, %v970
        %v972 = vand.u32 %v971, 4294901760
        %v973 = vsub.f32 %v971, %v972
        %v974 = vand.u32 %v973, 4294901760
        %975 = vmatpush.msra.mxu0 %v974
        %v976 = vand.u32 %v885, 4294901760
        %v977 = vsub.f32 %v885, %v976
        %v978 = vand.u32 %v977, 4294901760
        %v979 = vsub.f32 %v977, %v978
        %v980 = vand.u32 %v979, 4294901760
        %981 = vmatpush.msra.mxu0 %v980
        %v982 = vand.u32 %v884, 4294901760
        %v983 = vsub.f32 %v884, %v982
        %v984 = vand.u32 %v983, 4294901760
        %v985 = vsub.f32 %v983, %v984
        %v986 = vand.u32 %v985, 4294901760
        %987 = vmatpush.msra.mxu0 %v986
        %v988 = vand.u32 %v883, 4294901760
        %v989 = vsub.f32 %v883, %v988
        %v990 = vand.u32 %v989, 4294901760
        %v991 = vsub.f32 %v989, %v990
        %v992 = vand.u32 %v991, 4294901760
        %993 = vmatpush.msra.mxu0 %v992
        %v994 = vand.u32 %v882, 4294901760
        %v995 = vsub.f32 %v882, %v994
        %v996 = vand.u32 %v995, 4294901760
        %v997 = vsub.f32 %v995, %v996
        %v998 = vand.u32 %v997, 4294901760
        %999 = vmatpush.msra.mxu0 %v998
        %v1000 = vand.u32 %v881, 4294901760
        %v1001 = vsub.f32 %v881, %v1000
        %v1002 = vand.u32 %v1001, 4294901760
        %v1003 = vsub.f32 %v1001, %v1002
        %v1004 = vand.u32 %v1003, 4294901760
        %1005 = vmatpush.msra.mxu0 %v1004
        %v1006 = vand.u32 %v880, 4294901760
        %v1007 = vsub.f32 %v880, %v1006
        %v1008 = vand.u32 %v1007, 4294901760
        %v1009 = vsub.f32 %v1007, %v1008
        %v1010 = vand.u32 %v1009, 4294901760
        %1011 = vmatpush.msra.mxu0 %v1010
        %v1012 = vand.u32 %v879, 4294901760
        %v1013 = vsub.f32 %v879, %v1012
        %v1014 = vand.u32 %v1013, 4294901760
        %v1015 = vsub.f32 %v1013, %v1014
        %v1016 = vand.u32 %v1015, 4294901760
        %1017 = vmatpush.msra.mxu0 %v1016
        %v1018 = vand.u32 %v878, 4294901760
        %v1019 = vsub.f32 %v878, %v1018
        %v1020 = vand.u32 %v1019, 4294901760
        %v1021 = vsub.f32 %v1019, %v1020
        %v1022 = vand.u32 %v1021, 4294901760
        %1023 = vmatpush.msra.mxu0 %v1022
        %v1024 = vand.u32 %v877, 4294901760
        %v1025 = vsub.f32 %v877, %v1024
        %v1026 = vand.u32 %v1025, 4294901760
        %v1027 = vsub.f32 %v1025, %v1026
        %v1028 = vand.u32 %v1027, 4294901760
        %1029 = vmatpush.msra.mxu0 %v1028
        %v1030 = vand.u32 %v874, 4294901760
        %1031 = vmatmul.f32.gmra.mxu0 %v1030
        %v1032 = vpop.f32.mrf.mxu0
        %v1033 = vadd.f32 %v932, %v1032
        %1034 = vdwg.mxu0
        %v1035 = vand.u32 %v892, 4294901760
        %v1036 = vsub.f32 %v892, %v1035
        %1037 = vmatpush.msra.mxu0 %v1036
        %v1038 = vand.u32 %v891, 4294901760
        %v1039 = vsub.f32 %v891, %v1038
        %1040 = vmatpush.msra.mxu0 %v1039
        %v1041 = vand.u32 %v890, 4294901760
        %v1042 = vsub.f32 %v890, %v1041
        %1043 = vmatpush.msra.mxu0 %v1042
        %v1044 = vand.u32 %v889, 4294901760
        %v1045 = vsub.f32 %v889, %v1044
        %1046 = vmatpush.msra.mxu0 %v1045
        %v1047 = vand.u32 %v888, 4294901760
        %v1048 = vsub.f32 %v888, %v1047
        %1049 = vmatpush.msra.mxu0 %v1048
        %v1050 = vand.u32 %v887, 4294901760
        %v1051 = vsub.f32 %v887, %v1050
        %1052 = vmatpush.msra.mxu0 %v1051
        %v1053 = vand.u32 %v886, 4294901760
        %v1054 = vsub.f32 %v886, %v1053
        %1055 = vmatpush.msra.mxu0 %v1054
        %v1056 = vand.u32 %v885, 4294901760
        %v1057 = vsub.f32 %v885, %v1056
        %1058 = vmatpush.msra.mxu0 %v1057
        %v1059 = vand.u32 %v884, 4294901760
        %v1060 = vsub.f32 %v884, %v1059
        %1061 = vmatpush.msra.mxu0 %v1060
        %v1062 = vand.u32 %v883, 4294901760
        %v1063 = vsub.f32 %v883, %v1062
        %1064 = vmatpush.msra.mxu0 %v1063
        %v1065 = vand.u32 %v882, 4294901760
        %v1066 = vsub.f32 %v882, %v1065
        %1067 = vmatpush.msra.mxu0 %v1066
        %v1068 = vand.u32 %v881, 4294901760
        %v1069 = vsub.f32 %v881, %v1068
        %1070 = vmatpush.msra.mxu0 %v1069
        %v1071 = vand.u32 %v880, 4294901760
        %v1072 = vsub.f32 %v880, %v1071
        %1073 = vmatpush.msra.mxu0 %v1072
        %v1074 = vand.u32 %v879, 4294901760
        %v1075 = vsub.f32 %v879, %v1074
        %1076 = vmatpush.msra.mxu0 %v1075
        %v1077 = vand.u32 %v878, 4294901760
        %v1078 = vsub.f32 %v878, %v1077
        %1079 = vmatpush.msra.mxu0 %v1078
        %v1080 = vand.u32 %v877, 4294901760
        %v1081 = vsub.f32 %v877, %v1080
        %1082 = vmatpush.msra.mxu0 %v1081
        %v1083 = vand.u32 %v874, 4294901760
        %v1084 = vsub.f32 %v874, %v1083
        %1085 = vmatmul.f32.gmra.mxu0 %v1084
        %v1086 = vpop.f32.mrf.mxu0
        %v1087 = vadd.f32 %v1033, %v1086
        %1088 = vdwg.mxu0
        %v1089 = vand.u32 %v892, 4294901760
        %1090 = vmatpush.msra.mxu0 %v1089
        %v1091 = vand.u32 %v891, 4294901760
        %1092 = vmatpush.msra.mxu0 %v1091
        %v1093 = vand.u32 %v890, 4294901760
        %1094 = vmatpush.msra.mxu0 %v1093
        %v1095 = vand.u32 %v889, 4294901760
        %1096 = vmatpush.msra.mxu0 %v1095
        %v1097 = vand.u32 %v888, 4294901760
        %1098 = vmatpush.msra.mxu0 %v1097
        %v1099 = vand.u32 %v887, 4294901760
        %1100 = vmatpush.msra.mxu0 %v1099
        %v1101 = vand.u32 %v886, 4294901760
        %1102 = vmatpush.msra.mxu0 %v1101
        %v1103 = vand.u32 %v885, 4294901760
        %1104 = vmatpush.msra.mxu0 %v1103
        %v1105 = vand.u32 %v884, 4294901760
        %1106 = vmatpush.msra.mxu0 %v1105
        %v1107 = vand.u32 %v883, 4294901760
        %1108 = vmatpush.msra.mxu0 %v1107
        %v1109 = vand.u32 %v882, 4294901760
        %1110 = vmatpush.msra.mxu0 %v1109
        %v1111 = vand.u32 %v881, 4294901760
        %1112 = vmatpush.msra.mxu0 %v1111
        %v1113 = vand.u32 %v880, 4294901760
        %1114 = vmatpush.msra.mxu0 %v1113
        %v1115 = vand.u32 %v879, 4294901760
        %1116 = vmatpush.msra.mxu0 %v1115
        %v1117 = vand.u32 %v878, 4294901760
        %1118 = vmatpush.msra.mxu0 %v1117
        %v1119 = vand.u32 %v877, 4294901760
        %1120 = vmatpush.msra.mxu0 %v1119
        %v1121 = vand.u32 %v874, 4294901760
        %v1122 = vsub.f32 %v874, %v1121
        %v1123 = vand.u32 %v1122, 4294901760
        %1124 = vmatmul.f32.gmra.mxu0 %v1123
        %v1125 = vpop.f32.mrf.mxu0
        %v1126 = vadd.f32 %v1087, %v1125
        %1127 = vdwg.mxu0
        %v1128 = vand.u32 %v892, 4294901760
        %v1129 = vsub.f32 %v892, %v1128
        %v1130 = vand.u32 %v1129, 4294901760
        %1131 = vmatpush.msra.mxu0 %v1130
        %v1132 = vand.u32 %v891, 4294901760
        %v1133 = vsub.f32 %v891, %v1132
        %v1134 = vand.u32 %v1133, 4294901760
        %1135 = vmatpush.msra.mxu0 %v1134
        %v1136 = vand.u32 %v890, 4294901760
        %v1137 = vsub.f32 %v890, %v1136
        %v1138 = vand.u32 %v1137, 4294901760
        %1139 = vmatpush.msra.mxu0 %v1138
        %v1140 = vand.u32 %v889, 4294901760
        %v1141 = vsub.f32 %v889, %v1140
        %v1142 = vand.u32 %v1141, 4294901760
        %1143 = vmatpush.msra.mxu0 %v1142
        %v1144 = vand.u32 %v888, 4294901760
        %v1145 = vsub.f32 %v888, %v1144
        %v1146 = vand.u32 %v1145, 4294901760
        %1147 = vmatpush.msra.mxu0 %v1146
        %v1148 = vand.u32 %v887, 4294901760
        %v1149 = vsub.f32 %v887, %v1148
        %v1150 = vand.u32 %v1149, 4294901760
        %1151 = vmatpush.msra.mxu0 %v1150
        %v1152 = vand.u32 %v886, 4294901760
        %v1153 = vsub.f32 %v886, %v1152
        %v1154 = vand.u32 %v1153, 4294901760
        %1155 = vmatpush.msra.mxu0 %v1154
        %v1156 = vand.u32 %v885, 4294901760
        %v1157 = vsub.f32 %v885, %v1156
        %v1158 = vand.u32 %v1157, 4294901760
        %1159 = vmatpush.msra.mxu0 %v1158
        %v1160 = vand.u32 %v884, 4294901760
        %v1161 = vsub.f32 %v884, %v1160
        %v1162 = vand.u32 %v1161, 4294901760
        %1163 = vmatpush.msra.mxu0 %v1162
        %v1164 = vand.u32 %v883, 4294901760
        %v1165 = vsub.f32 %v883, %v1164
        %v1166 = vand.u32 %v1165, 4294901760
        %1167 = vmatpush.msra.mxu0 %v1166
        %v1168 = vand.u32 %v882, 4294901760
        %v1169 = vsub.f32 %v882, %v1168
        %v1170 = vand.u32 %v1169, 4294901760
        %1171 = vmatpush.msra.mxu0 %v1170
        %v1172 = vand.u32 %v881, 4294901760
        %v1173 = vsub.f32 %v881, %v1172
        %v1174 = vand.u32 %v1173, 4294901760
        %1175 = vmatpush.msra.mxu0 %v1174
        %v1176 = vand.u32 %v880, 4294901760
        %v1177 = vsub.f32 %v880, %v1176
        %v1178 = vand.u32 %v1177, 4294901760
        %1179 = vmatpush.msra.mxu0 %v1178
        %v1180 = vand.u32 %v879, 4294901760
        %v1181 = vsub.f32 %v879, %v1180
        %v1182 = vand.u32 %v1181, 4294901760
        %1183 = vmatpush.msra.mxu0 %v1182
        %v1184 = vand.u32 %v878, 4294901760
        %v1185 = vsub.f32 %v878, %v1184
        %v1186 = vand.u32 %v1185, 4294901760
        %1187 = vmatpush.msra.mxu0 %v1186
        %v1188 = vand.u32 %v877, 4294901760
        %v1189 = vsub.f32 %v877, %v1188
        %v1190 = vand.u32 %v1189, 4294901760
        %1191 = vmatpush.msra.mxu0 %v1190
        %v1192 = vand.u32 %v874, 4294901760
        %1193 = vmatmul.f32.gmra.mxu0 %v1192
        %v1194 = vpop.f32.mrf.mxu0
        %v1195 = vadd.f32 %v1126, %v1194
        %1196 = vdwg.mxu0
        %v1197 = vand.u32 %v892, 4294901760
        %1198 = vmatpush.msra.mxu0 %v1197
        %v1199 = vand.u32 %v891, 4294901760
        %1200 = vmatpush.msra.mxu0 %v1199
        %v1201 = vand.u32 %v890, 4294901760
        %1202 = vmatpush.msra.mxu0 %v1201
        %v1203 = vand.u32 %v889, 4294901760
        %1204 = vmatpush.msra.mxu0 %v1203
        %v1205 = vand.u32 %v888, 4294901760
        %1206 = vmatpush.msra.mxu0 %v1205
        %v1207 = vand.u32 %v887, 4294901760
        %1208 = vmatpush.msra.mxu0 %v1207
        %v1209 = vand.u32 %v886, 4294901760
        %1210 = vmatpush.msra.mxu0 %v1209
        %v1211 = vand.u32 %v885, 4294901760
        %1212 = vmatpush.msra.mxu0 %v1211
        %v1213 = vand.u32 %v884, 4294901760
        %1214 = vmatpush.msra.mxu0 %v1213
        %v1215 = vand.u32 %v883, 4294901760
        %1216 = vmatpush.msra.mxu0 %v1215
        %v1217 = vand.u32 %v882, 4294901760
        %1218 = vmatpush.msra.mxu0 %v1217
        %v1219 = vand.u32 %v881, 4294901760
        %1220 = vmatpush.msra.mxu0 %v1219
        %v1221 = vand.u32 %v880, 4294901760
        %1222 = vmatpush.msra.mxu0 %v1221
        %v1223 = vand.u32 %v879, 4294901760
        %1224 = vmatpush.msra.mxu0 %v1223
        %v1225 = vand.u32 %v878, 4294901760
        %1226 = vmatpush.msra.mxu0 %v1225
        %v1227 = vand.u32 %v877, 4294901760
        %1228 = vmatpush.msra.mxu0 %v1227
        %v1229 = vand.u32 %v874, 4294901760
        %1230 = vmatmul.f32.gmra.mxu0 %v1229
        %v1231 = vpop.f32.mrf.mxu0
        %v1232 = vadd.f32 %v1195, %v1231
        %1233 = vdwg.mxu0
        %s1234 = scalar_lea.vmem %s136, 384 [#allocation2]
        %v1235 = vld [vmem:[%s1234] sm:$0xff]
        %v1236 = vld [vmem:[%s1234 + $0x8] sm:$0xff]
        %v1237 = vld [vmem:[%s1234 + $0x10] sm:$0xff]
        %v1238 = vld [vmem:[%s1234 + $0x18] sm:$0xff]
        %v1239 = vld [vmem:[%s1234 + $0x20] sm:$0xff]
        %v1240 = vld [vmem:[%s1234 + $0x28] sm:$0xff]
        %v1241 = vld [vmem:[%s1234 + $0x30] sm:$0xff]
        %v1242 = vld [vmem:[%s1234 + $0x38] sm:$0xff]
        %v1243 = vld [vmem:[%s1234 + $0x40] sm:$0xff]
        %v1244 = vld [vmem:[%s1234 + $0x48] sm:$0xff]
        %v1245 = vld [vmem:[%s1234 + $0x50] sm:$0xff]
        %v1246 = vld [vmem:[%s1234 + $0x58] sm:$0xff]
        %v1247 = vld [vmem:[%s1234 + $0x60] sm:$0xff]
        %v1248 = vld [vmem:[%s1234 + $0x68] sm:$0xff]
        %v1249 = vld [vmem:[%s1234 + $0x70] sm:$0xff]
        %v1250 = vld [vmem:[%s1234 + $0x78] sm:$0xff]
        %v1251 = vand.u32 %v1250, 4294901760
        %1252 = vmatpush.msra.mxu0 %v1251
        %v1253 = vand.u32 %v1249, 4294901760
        %1254 = vmatpush.msra.mxu0 %v1253
        %v1255 = vand.u32 %v1248, 4294901760
        %1256 = vmatpush.msra.mxu0 %v1255
        %v1257 = vand.u32 %v1247, 4294901760
        %1258 = vmatpush.msra.mxu0 %v1257
        %v1259 = vand.u32 %v1246, 4294901760
        %1260 = vmatpush.msra.mxu0 %v1259
        %v1261 = vand.u32 %v1245, 4294901760
        %1262 = vmatpush.msra.mxu0 %v1261
        %v1263 = vand.u32 %v1244, 4294901760
        %1264 = vmatpush.msra.mxu0 %v1263
        %v1265 = vand.u32 %v1243, 4294901760
        %1266 = vmatpush.msra.mxu0 %v1265
        %v1267 = vand.u32 %v1242, 4294901760
        %1268 = vmatpush.msra.mxu0 %v1267
        %v1269 = vand.u32 %v1241, 4294901760
        %1270 = vmatpush.msra.mxu0 %v1269
        %v1271 = vand.u32 %v1240, 4294901760
        %1272 = vmatpush.msra.mxu0 %v1271
        %v1273 = vand.u32 %v1239, 4294901760
        %1274 = vmatpush.msra.mxu0 %v1273
        %v1275 = vand.u32 %v1238, 4294901760
        %1276 = vmatpush.msra.mxu0 %v1275
        %v1277 = vand.u32 %v1237, 4294901760
        %1278 = vmatpush.msra.mxu0 %v1277
        %v1279 = vand.u32 %v1236, 4294901760
        %1280 = vmatpush.msra.mxu0 %v1279
        %v1281 = vand.u32 %v1235, 4294901760
        %1282 = vmatpush.msra.mxu0 %v1281
        %v1283 = vand.u32 %v1232, 4294901760
        %v1284 = vsub.f32 %v1232, %v1283
        %v1285 = vand.u32 %v1284, 4294901760
        %v1286 = vsub.f32 %v1284, %v1285
        %v1287 = vand.u32 %v1286, 4294901760
        %1288 = vmatmul.f32.gmra.mxu0 %v1287
        %v1289 = vpop.f32.mrf.mxu0
        %v1290 = vadd.f32 0.0, %v1289
        %1291 = vdwg.mxu0
        %v1292 = vand.u32 %v1250, 4294901760
        %v1293 = vsub.f32 %v1250, %v1292
        %v1294 = vand.u32 %v1293, 4294901760
        %v1295 = vsub.f32 %v1293, %v1294
        %v1296 = vand.u32 %v1295, 4294901760
        %1297 = vmatpush.msra.mxu0 %v1296
        %v1298 = vand.u32 %v1249, 4294901760
        %v1299 = vsub.f32 %v1249, %v1298
        %v1300 = vand.u32 %v1299, 4294901760
        %v1301 = vsub.f32 %v1299, %v1300
        %v1302 = vand.u32 %v1301, 4294901760
        %1303 = vmatpush.msra.mxu0 %v1302
        %v1304 = vand.u32 %v1248, 4294901760
        %v1305 = vsub.f32 %v1248, %v1304
        %v1306 = vand.u32 %v1305, 4294901760
        %v1307 = vsub.f32 %v1305, %v1306
        %v1308 = vand.u32 %v1307, 4294901760
        %1309 = vmatpush.msra.mxu0 %v1308
        %v1310 = vand.u32 %v1247, 4294901760
        %v1311 = vsub.f32 %v1247, %v1310
        %v1312 = vand.u32 %v1311, 4294901760
        %v1313 = vsub.f32 %v1311, %v1312
        %v1314 = vand.u32 %v1313, 4294901760
        %1315 = vmatpush.msra.mxu0 %v1314
        %v1316 = vand.u32 %v1246, 4294901760
        %v1317 = vsub.f32 %v1246, %v1316
        %v1318 = vand.u32 %v1317, 4294901760
        %v1319 = vsub.f32 %v1317, %v1318
        %v1320 = vand.u32 %v1319, 4294901760
        %1321 = vmatpush.msra.mxu0 %v1320
        %v1322 = vand.u32 %v1245, 4294901760
        %v1323 = vsub.f32 %v1245, %v1322
        %v1324 = vand.u32 %v1323, 4294901760
        %v1325 = vsub.f32 %v1323, %v1324
        %v1326 = vand.u32 %v1325, 4294901760
        %1327 = vmatpush.msra.mxu0 %v1326
        %v1328 = vand.u32 %v1244, 4294901760
        %v1329 = vsub.f32 %v1244, %v1328
        %v1330 = vand.u32 %v1329, 4294901760
        %v1331 = vsub.f32 %v1329, %v1330
        %v1332 = vand.u32 %v1331, 4294901760
        %1333 = vmatpush.msra.mxu0 %v1332
        %v1334 = vand.u32 %v1243, 4294901760
        %v1335 = vsub.f32 %v1243, %v1334
        %v1336 = vand.u32 %v1335, 4294901760
        %v1337 = vsub.f32 %v1335, %v1336
        %v1338 = vand.u32 %v1337, 4294901760
        %1339 = vmatpush.msra.mxu0 %v1338
        %v1340 = vand.u32 %v1242, 4294901760
        %v1341 = vsub.f32 %v1242, %v1340
        %v1342 = vand.u32 %v1341, 4294901760
        %v1343 = vsub.f32 %v1341, %v1342
        %v1344 = vand.u32 %v1343, 4294901760
        %1345 = vmatpush.msra.mxu0 %v1344
        %v1346 = vand.u32 %v1241, 4294901760
        %v1347 = vsub.f32 %v1241, %v1346
        %v1348 = vand.u32 %v1347, 4294901760
        %v1349 = vsub.f32 %v1347, %v1348
        %v1350 = vand.u32 %v1349, 4294901760
        %1351 = vmatpush.msra.mxu0 %v1350
        %v1352 = vand.u32 %v1240, 4294901760
        %v1353 = vsub.f32 %v1240, %v1352
        %v1354 = vand.u32 %v1353, 4294901760
        %v1355 = vsub.f32 %v1353, %v1354
        %v1356 = vand.u32 %v1355, 4294901760
        %1357 = vmatpush.msra.mxu0 %v1356
        %v1358 = vand.u32 %v1239, 4294901760
        %v1359 = vsub.f32 %v1239, %v1358
        %v1360 = vand.u32 %v1359, 4294901760
        %v1361 = vsub.f32 %v1359, %v1360
        %v1362 = vand.u32 %v1361, 4294901760
        %1363 = vmatpush.msra.mxu0 %v1362
        %v1364 = vand.u32 %v1238, 4294901760
        %v1365 = vsub.f32 %v1238, %v1364
        %v1366 = vand.u32 %v1365, 4294901760
        %v1367 = vsub.f32 %v1365, %v1366
        %v1368 = vand.u32 %v1367, 4294901760
        %1369 = vmatpush.msra.mxu0 %v1368
        %v1370 = vand.u32 %v1237, 4294901760
        %v1371 = vsub.f32 %v1237, %v1370
        %v1372 = vand.u32 %v1371, 4294901760
        %v1373 = vsub.f32 %v1371, %v1372
        %v1374 = vand.u32 %v1373, 4294901760
        %1375 = vmatpush.msra.mxu0 %v1374
        %v1376 = vand.u32 %v1236, 4294901760
        %v1377 = vsub.f32 %v1236, %v1376
        %v1378 = vand.u32 %v1377, 4294901760
        %v1379 = vsub.f32 %v1377, %v1378
        %v1380 = vand.u32 %v1379, 4294901760
        %1381 = vmatpush.msra.mxu0 %v1380
        %v1382 = vand.u32 %v1235, 4294901760
        %v1383 = vsub.f32 %v1235, %v1382
        %v1384 = vand.u32 %v1383, 4294901760
        %v1385 = vsub.f32 %v1383, %v1384
        %v1386 = vand.u32 %v1385, 4294901760
        %1387 = vmatpush.msra.mxu0 %v1386
        %v1388 = vand.u32 %v1232, 4294901760
        %1389 = vmatmul.f32.gmra.mxu0 %v1388
        %v1390 = vpop.f32.mrf.mxu0
        %v1391 = vadd.f32 %v1290, %v1390
        %1392 = vdwg.mxu0
        %v1393 = vand.u32 %v1250, 4294901760
        %v1394 = vsub.f32 %v1250, %v1393
        %1395 = vmatpush.msra.mxu0 %v1394
        %v1396 = vand.u32 %v1249, 4294901760
        %v1397 = vsub.f32 %v1249, %v1396
        %1398 = vmatpush.msra.mxu0 %v1397
        %v1399 = vand.u32 %v1248, 4294901760
        %v1400 = vsub.f32 %v1248, %v1399
        %1401 = vmatpush.msra.mxu0 %v1400
        %v1402 = vand.u32 %v1247, 4294901760
        %v1403 = vsub.f32 %v1247, %v1402
        %1404 = vmatpush.msra.mxu0 %v1403
        %v1405 = vand.u32 %v1246, 4294901760
        %v1406 = vsub.f32 %v1246, %v1405
        %1407 = vmatpush.msra.mxu0 %v1406
        %v1408 = vand.u32 %v1245, 4294901760
        %v1409 = vsub.f32 %v1245, %v1408
        %1410 = vmatpush.msra.mxu0 %v1409
        %v1411 = vand.u32 %v1244, 4294901760
        %v1412 = vsub.f32 %v1244, %v1411
        %1413 = vmatpush.msra.mxu0 %v1412
        %v1414 = vand.u32 %v1243, 4294901760
        %v1415 = vsub.f32 %v1243, %v1414
        %1416 = vmatpush.msra.mxu0 %v1415
        %v1417 = vand.u32 %v1242, 4294901760
        %v1418 = vsub.f32 %v1242, %v1417
        %1419 = vmatpush.msra.mxu0 %v1418
        %v1420 = vand.u32 %v1241, 4294901760
        %v1421 = vsub.f32 %v1241, %v1420
        %1422 = vmatpush.msra.mxu0 %v1421
        %v1423 = vand.u32 %v1240, 4294901760
        %v1424 = vsub.f32 %v1240, %v1423
        %1425 = vmatpush.msra.mxu0 %v1424
        %v1426 = vand.u32 %v1239, 4294901760
        %v1427 = vsub.f32 %v1239, %v1426
        %1428 = vmatpush.msra.mxu0 %v1427
        %v1429 = vand.u32 %v1238, 4294901760
        %v1430 = vsub.f32 %v1238, %v1429
        %1431 = vmatpush.msra.mxu0 %v1430
        %v1432 = vand.u32 %v1237, 4294901760
        %v1433 = vsub.f32 %v1237, %v1432
        %1434 = vmatpush.msra.mxu0 %v1433
        %v1435 = vand.u32 %v1236, 4294901760
        %v1436 = vsub.f32 %v1236, %v1435
        %1437 = vmatpush.msra.mxu0 %v1436
        %v1438 = vand.u32 %v1235, 4294901760
        %v1439 = vsub.f32 %v1235, %v1438
        %1440 = vmatpush.msra.mxu0 %v1439
        %v1441 = vand.u32 %v1232, 4294901760
        %v1442 = vsub.f32 %v1232, %v1441
        %1443 = vmatmul.f32.gmra.mxu0 %v1442
        %v1444 = vpop.f32.mrf.mxu0
        %v1445 = vadd.f32 %v1391, %v1444
        %1446 = vdwg.mxu0
        %v1447 = vand.u32 %v1250, 4294901760
        %1448 = vmatpush.msra.mxu0 %v1447
        %v1449 = vand.u32 %v1249, 4294901760
        %1450 = vmatpush.msra.mxu0 %v1449
        %v1451 = vand.u32 %v1248, 4294901760
        %1452 = vmatpush.msra.mxu0 %v1451
        %v1453 = vand.u32 %v1247, 4294901760
        %1454 = vmatpush.msra.mxu0 %v1453
        %v1455 = vand.u32 %v1246, 4294901760
        %1456 = vmatpush.msra.mxu0 %v1455
        %v1457 = vand.u32 %v1245, 4294901760
        %1458 = vmatpush.msra.mxu0 %v1457
        %v1459 = vand.u32 %v1244, 4294901760
        %1460 = vmatpush.msra.mxu0 %v1459
        %v1461 = vand.u32 %v1243, 4294901760
        %1462 = vmatpush.msra.mxu0 %v1461
        %v1463 = vand.u32 %v1242, 4294901760
        %1464 = vmatpush.msra.mxu0 %v1463
        %v1465 = vand.u32 %v1241, 4294901760
        %1466 = vmatpush.msra.mxu0 %v1465
        %v1467 = vand.u32 %v1240, 4294901760
        %1468 = vmatpush.msra.mxu0 %v1467
        %v1469 = vand.u32 %v1239, 4294901760
        %1470 = vmatpush.msra.mxu0 %v1469
        %v1471 = vand.u32 %v1238, 4294901760
        %1472 = vmatpush.msra.mxu0 %v1471
        %v1473 = vand.u32 %v1237, 4294901760
        %1474 = vmatpush.msra.mxu0 %v1473
        %v1475 = vand.u32 %v1236, 4294901760
        %1476 = vmatpush.msra.mxu0 %v1475
        %v1477 = vand.u32 %v1235, 4294901760
        %1478 = vmatpush.msra.mxu0 %v1477
        %v1479 = vand.u32 %v1232, 4294901760
        %v1480 = vsub.f32 %v1232, %v1479
        %v1481 = vand.u32 %v1480, 4294901760
        %1482 = vmatmul.f32.gmra.mxu0 %v1481
        %v1483 = vpop.f32.mrf.mxu0
        %v1484 = vadd.f32 %v1445, %v1483
        %1485 = vdwg.mxu0
        %v1486 = vand.u32 %v1250, 4294901760
        %v1487 = vsub.f32 %v1250, %v1486
        %v1488 = vand.u32 %v1487, 4294901760
        %1489 = vmatpush.msra.mxu0 %v1488
        %v1490 = vand.u32 %v1249, 4294901760
        %v1491 = vsub.f32 %v1249, %v1490
        %v1492 = vand.u32 %v1491, 4294901760
        %1493 = vmatpush.msra.mxu0 %v1492
        %v1494 = vand.u32 %v1248, 4294901760
        %v1495 = vsub.f32 %v1248, %v1494
        %v1496 = vand.u32 %v1495, 4294901760
        %1497 = vmatpush.msra.mxu0 %v1496
        %v1498 = vand.u32 %v1247, 4294901760
        %v1499 = vsub.f32 %v1247, %v1498
        %v1500 = vand.u32 %v1499, 4294901760
        %1501 = vmatpush.msra.mxu0 %v1500
        %v1502 = vand.u32 %v1246, 4294901760
        %v1503 = vsub.f32 %v1246, %v1502
        %v1504 = vand.u32 %v1503, 4294901760
        %1505 = vmatpush.msra.mxu0 %v1504
        %v1506 = vand.u32 %v1245, 4294901760
        %v1507 = vsub.f32 %v1245, %v1506
        %v1508 = vand.u32 %v1507, 4294901760
        %1509 = vmatpush.msra.mxu0 %v1508
        %v1510 = vand.u32 %v1244, 4294901760
        %v1511 = vsub.f32 %v1244, %v1510
        %v1512 = vand.u32 %v1511, 4294901760
        %1513 = vmatpush.msra.mxu0 %v1512
        %v1514 = vand.u32 %v1243, 4294901760
        %v1515 = vsub.f32 %v1243, %v1514
        %v1516 = vand.u32 %v1515, 4294901760
        %1517 = vmatpush.msra.mxu0 %v1516
        %v1518 = vand.u32 %v1242, 4294901760
        %v1519 = vsub.f32 %v1242, %v1518
        %v1520 = vand.u32 %v1519, 4294901760
        %1521 = vmatpush.msra.mxu0 %v1520
        %v1522 = vand.u32 %v1241, 4294901760
        %v1523 = vsub.f32 %v1241, %v1522
        %v1524 = vand.u32 %v1523, 4294901760
        %1525 = vmatpush.msra.mxu0 %v1524
        %v1526 = vand.u32 %v1240, 4294901760
        %v1527 = vsub.f32 %v1240, %v1526
        %v1528 = vand.u32 %v1527, 4294901760
        %1529 = vmatpush.msra.mxu0 %v1528
        %v1530 = vand.u32 %v1239, 4294901760
        %v1531 = vsub.f32 %v1239, %v1530
        %v1532 = vand.u32 %v1531, 4294901760
        %1533 = vmatpush.msra.mxu0 %v1532
        %v1534 = vand.u32 %v1238, 4294901760
        %v1535 = vsub.f32 %v1238, %v1534
        %v1536 = vand.u32 %v1535, 4294901760
        %1537 = vmatpush.msra.mxu0 %v1536
        %v1538 = vand.u32 %v1237, 4294901760
        %v1539 = vsub.f32 %v1237, %v1538
        %v1540 = vand.u32 %v1539, 4294901760
        %1541 = vmatpush.msra.mxu0 %v1540
        %v1542 = vand.u32 %v1236, 4294901760
        %v1543 = vsub.f32 %v1236, %v1542
        %v1544 = vand.u32 %v1543, 4294901760
        %1545 = vmatpush.msra.mxu0 %v1544
        %v1546 = vand.u32 %v1235, 4294901760
        %v1547 = vsub.f32 %v1235, %v1546
        %v1548 = vand.u32 %v1547, 4294901760
        %1549 = vmatpush.msra.mxu0 %v1548
        %v1550 = vand.u32 %v1232, 4294901760
        %1551 = vmatmul.f32.gmra.mxu0 %v1550
        %v1552 = vpop.f32.mrf.mxu0
        %v1553 = vadd.f32 %v1484, %v1552
        %1554 = vdwg.mxu0
        %v1555 = vand.u32 %v1250, 4294901760
        %1556 = vmatpush.msra.mxu0 %v1555
        %v1557 = vand.u32 %v1249, 4294901760
        %1558 = vmatpush.msra.mxu0 %v1557
        %v1559 = vand.u32 %v1248, 4294901760
        %1560 = vmatpush.msra.mxu0 %v1559
        %v1561 = vand.u32 %v1247, 4294901760
        %1562 = vmatpush.msra.mxu0 %v1561
        %v1563 = vand.u32 %v1246, 4294901760
        %1564 = vmatpush.msra.mxu0 %v1563
        %v1565 = vand.u32 %v1245, 4294901760
        %1566 = vmatpush.msra.mxu0 %v1565
        %v1567 = vand.u32 %v1244, 4294901760
        %1568 = vmatpush.msra.mxu0 %v1567
        %v1569 = vand.u32 %v1243, 4294901760
        %1570 = vmatpush.msra.mxu0 %v1569
        %v1571 = vand.u32 %v1242, 4294901760
        %1572 = vmatpush.msra.mxu0 %v1571
        %v1573 = vand.u32 %v1241, 4294901760
        %1574 = vmatpush.msra.mxu0 %v1573
        %v1575 = vand.u32 %v1240, 4294901760
        %1576 = vmatpush.msra.mxu0 %v1575
        %v1577 = vand.u32 %v1239, 4294901760
        %1578 = vmatpush.msra.mxu0 %v1577
        %v1579 = vand.u32 %v1238, 4294901760
        %1580 = vmatpush.msra.mxu0 %v1579
        %v1581 = vand.u32 %v1237, 4294901760
        %1582 = vmatpush.msra.mxu0 %v1581
        %v1583 = vand.u32 %v1236, 4294901760
        %1584 = vmatpush.msra.mxu0 %v1583
        %v1585 = vand.u32 %v1235, 4294901760
        %1586 = vmatpush.msra.mxu0 %v1585
        %v1587 = vand.u32 %v1232, 4294901760
        %1588 = vmatmul.f32.gmra.mxu0 %v1587
        %v1589 = vpop.f32.mrf.mxu0
        %v1590 = vadd.f32 %v1553, %v1589
        %1591 = vdwg.mxu0
        %s1592 = scalar_lea.vmem %s136, 512 [#allocation2]
        %v1593 = vld [vmem:[%s1592] sm:$0xff]
        %v1594 = vld [vmem:[%s1592 + $0x8] sm:$0xff]
        %v1595 = vld [vmem:[%s1592 + $0x10] sm:$0xff]
        %v1596 = vld [vmem:[%s1592 + $0x18] sm:$0xff]
        %v1597 = vld [vmem:[%s1592 + $0x20] sm:$0xff]
        %v1598 = vld [vmem:[%s1592 + $0x28] sm:$0xff]
        %v1599 = vld [vmem:[%s1592 + $0x30] sm:$0xff]
        %v1600 = vld [vmem:[%s1592 + $0x38] sm:$0xff]
        %v1601 = vld [vmem:[%s1592 + $0x40] sm:$0xff]
        %v1602 = vld [vmem:[%s1592 + $0x48] sm:$0xff]
        %v1603 = vld [vmem:[%s1592 + $0x50] sm:$0xff]
        %v1604 = vld [vmem:[%s1592 + $0x58] sm:$0xff]
        %v1605 = vld [vmem:[%s1592 + $0x60] sm:$0xff]
        %v1606 = vld [vmem:[%s1592 + $0x68] sm:$0xff]
        %v1607 = vld [vmem:[%s1592 + $0x70] sm:$0xff]
        %v1608 = vld [vmem:[%s1592 + $0x78] sm:$0xff]
        %v1609 = vand.u32 %v1608, 4294901760
        %1610 = vmatpush.msra.mxu0 %v1609
        %v1611 = vand.u32 %v1607, 4294901760
        %1612 = vmatpush.msra.mxu0 %v1611
        %v1613 = vand.u32 %v1606, 4294901760
        %1614 = vmatpush.msra.mxu0 %v1613
        %v1615 = vand.u32 %v1605, 4294901760
        %1616 = vmatpush.msra.mxu0 %v1615
        %v1617 = vand.u32 %v1604, 4294901760
        %1618 = vmatpush.msra.mxu0 %v1617
        %v1619 = vand.u32 %v1603, 4294901760
        %1620 = vmatpush.msra.mxu0 %v1619
        %v1621 = vand.u32 %v1602, 4294901760
        %1622 = vmatpush.msra.mxu0 %v1621
        %v1623 = vand.u32 %v1601, 4294901760
        %1624 = vmatpush.msra.mxu0 %v1623
        %v1625 = vand.u32 %v1600, 4294901760
        %1626 = vmatpush.msra.mxu0 %v1625
        %v1627 = vand.u32 %v1599, 4294901760
        %1628 = vmatpush.msra.mxu0 %v1627
        %v1629 = vand.u32 %v1598, 4294901760
        %1630 = vmatpush.msra.mxu0 %v1629
        %v1631 = vand.u32 %v1597, 4294901760
        %1632 = vmatpush.msra.mxu0 %v1631
        %v1633 = vand.u32 %v1596, 4294901760
        %1634 = vmatpush.msra.mxu0 %v1633
        %v1635 = vand.u32 %v1595, 4294901760
        %1636 = vmatpush.msra.mxu0 %v1635
        %v1637 = vand.u32 %v1594, 4294901760
        %1638 = vmatpush.msra.mxu0 %v1637
        %v1639 = vand.u32 %v1593, 4294901760
        %1640 = vmatpush.msra.mxu0 %v1639
        %v1641 = vand.u32 %v1590, 4294901760
        %v1642 = vsub.f32 %v1590, %v1641
        %v1643 = vand.u32 %v1642, 4294901760
        %v1644 = vsub.f32 %v1642, %v1643
        %v1645 = vand.u32 %v1644, 4294901760
        %1646 = vmatmul.f32.gmra.mxu0 %v1645
        %v1647 = vpop.f32.mrf.mxu0
        %v1648 = vadd.f32 0.0, %v1647
        %1649 = vdwg.mxu0
        %v1650 = vand.u32 %v1608, 4294901760
        %v1651 = vsub.f32 %v1608, %v1650
        %v1652 = vand.u32 %v1651, 4294901760
        %v1653 = vsub.f32 %v1651, %v1652
        %v1654 = vand.u32 %v1653, 4294901760
        %1655 = vmatpush.msra.mxu0 %v1654
        %v1656 = vand.u32 %v1607, 4294901760
        %v1657 = vsub.f32 %v1607, %v1656
        %v1658 = vand.u32 %v1657, 4294901760
        %v1659 = vsub.f32 %v1657, %v1658
        %v1660 = vand.u32 %v1659, 4294901760
        %1661 = vmatpush.msra.mxu0 %v1660
        %v1662 = vand.u32 %v1606, 4294901760
        %v1663 = vsub.f32 %v1606, %v1662
        %v1664 = vand.u32 %v1663, 4294901760
        %v1665 = vsub.f32 %v1663, %v1664
        %v1666 = vand.u32 %v1665, 4294901760
        %1667 = vmatpush.msra.mxu0 %v1666
        %v1668 = vand.u32 %v1605, 4294901760
        %v1669 = vsub.f32 %v1605, %v1668
        %v1670 = vand.u32 %v1669, 4294901760
        %v1671 = vsub.f32 %v1669, %v1670
        %v1672 = vand.u32 %v1671, 4294901760
        %1673 = vmatpush.msra.mxu0 %v1672
        %v1674 = vand.u32 %v1604, 4294901760
        %v1675 = vsub.f32 %v1604, %v1674
        %v1676 = vand.u32 %v1675, 4294901760
        %v1677 = vsub.f32 %v1675, %v1676
        %v1678 = vand.u32 %v1677, 4294901760
        %1679 = vmatpush.msra.mxu0 %v1678
        %v1680 = vand.u32 %v1603, 4294901760
        %v1681 = vsub.f32 %v1603, %v1680
        %v1682 = vand.u32 %v1681, 4294901760
        %v1683 = vsub.f32 %v1681, %v1682
        %v1684 = vand.u32 %v1683, 4294901760
        %1685 = vmatpush.msra.mxu0 %v1684
        %v1686 = vand.u32 %v1602, 4294901760
        %v1687 = vsub.f32 %v1602, %v1686
        %v1688 = vand.u32 %v1687, 4294901760
        %v1689 = vsub.f32 %v1687, %v1688
        %v1690 = vand.u32 %v1689, 4294901760
        %1691 = vmatpush.msra.mxu0 %v1690
        %v1692 = vand.u32 %v1601, 4294901760
        %v1693 = vsub.f32 %v1601, %v1692
        %v1694 = vand.u32 %v1693, 4294901760
        %v1695 = vsub.f32 %v1693, %v1694
        %v1696 = vand.u32 %v1695, 4294901760
        %1697 = vmatpush.msra.mxu0 %v1696
        %v1698 = vand.u32 %v1600, 4294901760
        %v1699 = vsub.f32 %v1600, %v1698
        %v1700 = vand.u32 %v1699, 4294901760
        %v1701 = vsub.f32 %v1699, %v1700
        %v1702 = vand.u32 %v1701, 4294901760
        %1703 = vmatpush.msra.mxu0 %v1702
        %v1704 = vand.u32 %v1599, 4294901760
        %v1705 = vsub.f32 %v1599, %v1704
        %v1706 = vand.u32 %v1705, 4294901760
        %v1707 = vsub.f32 %v1705, %v1706
        %v1708 = vand.u32 %v1707, 4294901760
        %1709 = vmatpush.msra.mxu0 %v1708
        %v1710 = vand.u32 %v1598, 4294901760
        %v1711 = vsub.f32 %v1598, %v1710
        %v1712 = vand.u32 %v1711, 4294901760
        %v1713 = vsub.f32 %v1711, %v1712
        %v1714 = vand.u32 %v1713, 4294901760
        %1715 = vmatpush.msra.mxu0 %v1714
        %v1716 = vand.u32 %v1597, 4294901760
        %v1717 = vsub.f32 %v1597, %v1716
        %v1718 = vand.u32 %v1717, 4294901760
        %v1719 = vsub.f32 %v1717, %v1718
        %v1720 = vand.u32 %v1719, 4294901760
        %1721 = vmatpush.msra.mxu0 %v1720
        %v1722 = vand.u32 %v1596, 4294901760
        %v1723 = vsub.f32 %v1596, %v1722
        %v1724 = vand.u32 %v1723, 4294901760
        %v1725 = vsub.f32 %v1723, %v1724
        %v1726 = vand.u32 %v1725, 4294901760
        %1727 = vmatpush.msra.mxu0 %v1726
        %v1728 = vand.u32 %v1595, 4294901760
        %v1729 = vsub.f32 %v1595, %v1728
        %v1730 = vand.u32 %v1729, 4294901760
        %v1731 = vsub.f32 %v1729, %v1730
        %v1732 = vand.u32 %v1731, 4294901760
        %1733 = vmatpush.msra.mxu0 %v1732
        %v1734 = vand.u32 %v1594, 4294901760
        %v1735 = vsub.f32 %v1594, %v1734
        %v1736 = vand.u32 %v1735, 4294901760
        %v1737 = vsub.f32 %v1735, %v1736
        %v1738 = vand.u32 %v1737, 4294901760
        %1739 = vmatpush.msra.mxu0 %v1738
        %v1740 = vand.u32 %v1593, 4294901760
        %v1741 = vsub.f32 %v1593, %v1740
        %v1742 = vand.u32 %v1741, 4294901760
        %v1743 = vsub.f32 %v1741, %v1742
        %v1744 = vand.u32 %v1743, 4294901760
        %1745 = vmatpush.msra.mxu0 %v1744
        %v1746 = vand.u32 %v1590, 4294901760
        %1747 = vmatmul.f32.gmra.mxu0 %v1746
        %v1748 = vpop.f32.mrf.mxu0
        %v1749 = vadd.f32 %v1648, %v1748
        %1750 = vdwg.mxu0
        %v1751 = vand.u32 %v1608, 4294901760
        %v1752 = vsub.f32 %v1608, %v1751
        %1753 = vmatpush.msra.mxu0 %v1752
        %v1754 = vand.u32 %v1607, 4294901760
        %v1755 = vsub.f32 %v1607, %v1754
        %1756 = vmatpush.msra.mxu0 %v1755
        %v1757 = vand.u32 %v1606, 4294901760
        %v1758 = vsub.f32 %v1606, %v1757
        %1759 = vmatpush.msra.mxu0 %v1758
        %v1760 = vand.u32 %v1605, 4294901760
        %v1761 = vsub.f32 %v1605, %v1760
        %1762 = vmatpush.msra.mxu0 %v1761
        %v1763 = vand.u32 %v1604, 4294901760
        %v1764 = vsub.f32 %v1604, %v1763
        %1765 = vmatpush.msra.mxu0 %v1764
        %v1766 = vand.u32 %v1603, 4294901760
        %v1767 = vsub.f32 %v1603, %v1766
        %1768 = vmatpush.msra.mxu0 %v1767
        %v1769 = vand.u32 %v1602, 4294901760
        %v1770 = vsub.f32 %v1602, %v1769
        %1771 = vmatpush.msra.mxu0 %v1770
        %v1772 = vand.u32 %v1601, 4294901760
        %v1773 = vsub.f32 %v1601, %v1772
        %1774 = vmatpush.msra.mxu0 %v1773
        %v1775 = vand.u32 %v1600, 4294901760
        %v1776 = vsub.f32 %v1600, %v1775
        %1777 = vmatpush.msra.mxu0 %v1776
        %v1778 = vand.u32 %v1599, 4294901760
        %v1779 = vsub.f32 %v1599, %v1778
        %1780 = vmatpush.msra.mxu0 %v1779
        %v1781 = vand.u32 %v1598, 4294901760
        %v1782 = vsub.f32 %v1598, %v1781
        %1783 = vmatpush.msra.mxu0 %v1782
        %v1784 = vand.u32 %v1597, 4294901760
        %v1785 = vsub.f32 %v1597, %v1784
        %1786 = vmatpush.msra.mxu0 %v1785
        %v1787 = vand.u32 %v1596, 4294901760
        %v1788 = vsub.f32 %v1596, %v1787
        %1789 = vmatpush.msra.mxu0 %v1788
        %v1790 = vand.u32 %v1595, 4294901760
        %v1791 = vsub.f32 %v1595, %v1790
        %1792 = vmatpush.msra.mxu0 %v1791
        %v1793 = vand.u32 %v1594, 4294901760
        %v1794 = vsub.f32 %v1594, %v1793
        %1795 = vmatpush.msra.mxu0 %v1794
        %v1796 = vand.u32 %v1593, 4294901760
        %v1797 = vsub.f32 %v1593, %v1796
        %1798 = vmatpush.msra.mxu0 %v1797
        %v1799 = vand.u32 %v1590, 4294901760
        %v1800 = vsub.f32 %v1590, %v1799
        %1801 = vmatmul.f32.gmra.mxu0 %v1800
        %v1802 = vpop.f32.mrf.mxu0
        %v1803 = vadd.f32 %v1749, %v1802
        %1804 = vdwg.mxu0
        %v1805 = vand.u32 %v1608, 4294901760
        %1806 = vmatpush.msra.mxu0 %v1805
        %v1807 = vand.u32 %v1607, 4294901760
        %1808 = vmatpush.msra.mxu0 %v1807
        %v1809 = vand.u32 %v1606, 4294901760
        %1810 = vmatpush.msra.mxu0 %v1809
        %v1811 = vand.u32 %v1605, 4294901760
        %1812 = vmatpush.msra.mxu0 %v1811
        %v1813 = vand.u32 %v1604, 4294901760
        %1814 = vmatpush.msra.mxu0 %v1813
        %v1815 = vand.u32 %v1603, 4294901760
        %1816 = vmatpush.msra.mxu0 %v1815
        %v1817 = vand.u32 %v1602, 4294901760
        %1818 = vmatpush.msra.mxu0 %v1817
        %v1819 = vand.u32 %v1601, 4294901760
        %1820 = vmatpush.msra.mxu0 %v1819
        %v1821 = vand.u32 %v1600, 4294901760
        %1822 = vmatpush.msra.mxu0 %v1821
        %v1823 = vand.u32 %v1599, 4294901760
        %1824 = vmatpush.msra.mxu0 %v1823
        %v1825 = vand.u32 %v1598, 4294901760
        %1826 = vmatpush.msra.mxu0 %v1825
        %v1827 = vand.u32 %v1597, 4294901760
        %1828 = vmatpush.msra.mxu0 %v1827
        %v1829 = vand.u32 %v1596, 4294901760
        %1830 = vmatpush.msra.mxu0 %v1829
        %v1831 = vand.u32 %v1595, 4294901760
        %1832 = vmatpush.msra.mxu0 %v1831
        %v1833 = vand.u32 %v1594, 4294901760
        %1834 = vmatpush.msra.mxu0 %v1833
        %v1835 = vand.u32 %v1593, 4294901760
        %1836 = vmatpush.msra.mxu0 %v1835
        %v1837 = vand.u32 %v1590, 4294901760
        %v1838 = vsub.f32 %v1590, %v1837
        %v1839 = vand.u32 %v1838, 4294901760
        %1840 = vmatmul.f32.gmra.mxu0 %v1839
        %v1841 = vpop.f32.mrf.mxu0
        %v1842 = vadd.f32 %v1803, %v1841
        %1843 = vdwg.mxu0
        %v1844 = vand.u32 %v1608, 4294901760
        %v1845 = vsub.f32 %v1608, %v1844
        %v1846 = vand.u32 %v1845, 4294901760
        %1847 = vmatpush.msra.mxu0 %v1846
        %v1848 = vand.u32 %v1607, 4294901760
        %v1849 = vsub.f32 %v1607, %v1848
        %v1850 = vand.u32 %v1849, 4294901760
        %1851 = vmatpush.msra.mxu0 %v1850
        %v1852 = vand.u32 %v1606, 4294901760
        %v1853 = vsub.f32 %v1606, %v1852
        %v1854 = vand.u32 %v1853, 4294901760
        %1855 = vmatpush.msra.mxu0 %v1854
        %v1856 = vand.u32 %v1605, 4294901760
        %v1857 = vsub.f32 %v1605, %v1856
        %v1858 = vand.u32 %v1857, 4294901760
        %1859 = vmatpush.msra.mxu0 %v1858
        %v1860 = vand.u32 %v1604, 4294901760
        %v1861 = vsub.f32 %v1604, %v1860
        %v1862 = vand.u32 %v1861, 4294901760
        %1863 = vmatpush.msra.mxu0 %v1862
        %v1864 = vand.u32 %v1603, 4294901760
        %v1865 = vsub.f32 %v1603, %v1864
        %v1866 = vand.u32 %v1865, 4294901760
        %1867 = vmatpush.msra.mxu0 %v1866
        %v1868 = vand.u32 %v1602, 4294901760
        %v1869 = vsub.f32 %v1602, %v1868
        %v1870 = vand.u32 %v1869, 4294901760
        %1871 = vmatpush.msra.mxu0 %v1870
        %v1872 = vand.u32 %v1601, 4294901760
        %v1873 = vsub.f32 %v1601, %v1872
        %v1874 = vand.u32 %v1873, 4294901760
        %1875 = vmatpush.msra.mxu0 %v1874
        %v1876 = vand.u32 %v1600, 4294901760
        %v1877 = vsub.f32 %v1600, %v1876
        %v1878 = vand.u32 %v1877, 4294901760
        %1879 = vmatpush.msra.mxu0 %v1878
        %v1880 = vand.u32 %v1599, 4294901760
        %v1881 = vsub.f32 %v1599, %v1880
        %v1882 = vand.u32 %v1881, 4294901760
        %1883 = vmatpush.msra.mxu0 %v1882
        %v1884 = vand.u32 %v1598, 4294901760
        %v1885 = vsub.f32 %v1598, %v1884
        %v1886 = vand.u32 %v1885, 4294901760
        %1887 = vmatpush.msra.mxu0 %v1886
        %v1888 = vand.u32 %v1597, 4294901760
        %v1889 = vsub.f32 %v1597, %v1888
        %v1890 = vand.u32 %v1889, 4294901760
        %1891 = vmatpush.msra.mxu0 %v1890
        %v1892 = vand.u32 %v1596, 4294901760
        %v1893 = vsub.f32 %v1596, %v1892
        %v1894 = vand.u32 %v1893, 4294901760
        %1895 = vmatpush.msra.mxu0 %v1894
        %v1896 = vand.u32 %v1595, 4294901760
        %v1897 = vsub.f32 %v1595, %v1896
        %v1898 = vand.u32 %v1897, 4294901760
        %1899 = vmatpush.msra.mxu0 %v1898
        %v1900 = vand.u32 %v1594, 4294901760
        %v1901 = vsub.f32 %v1594, %v1900
        %v1902 = vand.u32 %v1901, 4294901760
        %1903 = vmatpush.msra.mxu0 %v1902
        %v1904 = vand.u32 %v1593, 4294901760
        %v1905 = vsub.f32 %v1593, %v1904
        %v1906 = vand.u32 %v1905, 4294901760
        %1907 = vmatpush.msra.mxu0 %v1906
        %v1908 = vand.u32 %v1590, 4294901760
        %1909 = vmatmul.f32.gmra.mxu0 %v1908
        %v1910 = vpop.f32.mrf.mxu0
        %v1911 = vadd.f32 %v1842, %v1910
        %1912 = vdwg.mxu0
        %v1913 = vand.u32 %v1608, 4294901760
        %1914 = vmatpush.msra.mxu0 %v1913
        %v1915 = vand.u32 %v1607, 4294901760
        %1916 = vmatpush.msra.mxu0 %v1915
        %v1917 = vand.u32 %v1606, 4294901760
        %1918 = vmatpush.msra.mxu0 %v1917
        %v1919 = vand.u32 %v1605, 4294901760
        %1920 = vmatpush.msra.mxu0 %v1919
        %v1921 = vand.u32 %v1604, 4294901760
        %1922 = vmatpush.msra.mxu0 %v1921
        %v1923 = vand.u32 %v1603, 4294901760
        %1924 = vmatpush.msra.mxu0 %v1923
        %v1925 = vand.u32 %v1602, 4294901760
        %1926 = vmatpush.msra.mxu0 %v1925
        %v1927 = vand.u32 %v1601, 4294901760
        %1928 = vmatpush.msra.mxu0 %v1927
        %v1929 = vand.u32 %v1600, 4294901760
        %1930 = vmatpush.msra.mxu0 %v1929
        %v1931 = vand.u32 %v1599, 4294901760
        %1932 = vmatpush.msra.mxu0 %v1931
        %v1933 = vand.u32 %v1598, 4294901760
        %1934 = vmatpush.msra.mxu0 %v1933
        %v1935 = vand.u32 %v1597, 4294901760
        %1936 = vmatpush.msra.mxu0 %v1935
        %v1937 = vand.u32 %v1596, 4294901760
        %1938 = vmatpush.msra.mxu0 %v1937
        %v1939 = vand.u32 %v1595, 4294901760
        %1940 = vmatpush.msra.mxu0 %v1939
        %v1941 = vand.u32 %v1594, 4294901760
        %1942 = vmatpush.msra.mxu0 %v1941
        %v1943 = vand.u32 %v1593, 4294901760
        %1944 = vmatpush.msra.mxu0 %v1943
        %v1945 = vand.u32 %v1590, 4294901760
        %1946 = vmatmul.f32.gmra.mxu0 %v1945
        %v1947 = vpop.f32.mrf.mxu0
        %v1948 = vadd.f32 %v1911, %v1947
        %1949 = vdwg.mxu0
        %s1950 = scalar_lea.vmem %s136, 640 [#allocation2]
        %v1951 = vld [vmem:[%s1950] sm:$0xff]
        %v1952 = vld [vmem:[%s1950 + $0x8] sm:$0xff]
        %v1953 = vld [vmem:[%s1950 + $0x10] sm:$0xff]
        %v1954 = vld [vmem:[%s1950 + $0x18] sm:$0xff]
        %v1955 = vld [vmem:[%s1950 + $0x20] sm:$0xff]
        %v1956 = vld [vmem:[%s1950 + $0x28] sm:$0xff]
        %v1957 = vld [vmem:[%s1950 + $0x30] sm:$0xff]
        %v1958 = vld [vmem:[%s1950 + $0x38] sm:$0xff]
        %v1959 = vld [vmem:[%s1950 + $0x40] sm:$0xff]
        %v1960 = vld [vmem:[%s1950 + $0x48] sm:$0xff]
        %v1961 = vld [vmem:[%s1950 + $0x50] sm:$0xff]
        %v1962 = vld [vmem:[%s1950 + $0x58] sm:$0xff]
        %v1963 = vld [vmem:[%s1950 + $0x60] sm:$0xff]
        %v1964 = vld [vmem:[%s1950 + $0x68] sm:$0xff]
        %v1965 = vld [vmem:[%s1950 + $0x70] sm:$0xff]
        %v1966 = vld [vmem:[%s1950 + $0x78] sm:$0xff]
        %v1967 = vand.u32 %v1966, 4294901760
        %1968 = vmatpush.msra.mxu0 %v1967
        %v1969 = vand.u32 %v1965, 4294901760
        %1970 = vmatpush.msra.mxu0 %v1969
        %v1971 = vand.u32 %v1964, 4294901760
        %1972 = vmatpush.msra.mxu0 %v1971
        %v1973 = vand.u32 %v1963, 4294901760
        %1974 = vmatpush.msra.mxu0 %v1973
        %v1975 = vand.u32 %v1962, 4294901760
        %1976 = vmatpush.msra.mxu0 %v1975
        %v1977 = vand.u32 %v1961, 4294901760
        %1978 = vmatpush.msra.mxu0 %v1977
        %v1979 = vand.u32 %v1960, 4294901760
        %1980 = vmatpush.msra.mxu0 %v1979
        %v1981 = vand.u32 %v1959, 4294901760
        %1982 = vmatpush.msra.mxu0 %v1981
        %v1983 = vand.u32 %v1958, 4294901760
        %1984 = vmatpush.msra.mxu0 %v1983
        %v1985 = vand.u32 %v1957, 4294901760
        %1986 = vmatpush.msra.mxu0 %v1985
        %v1987 = vand.u32 %v1956, 4294901760
        %1988 = vmatpush.msra.mxu0 %v1987
        %v1989 = vand.u32 %v1955, 4294901760
        %1990 = vmatpush.msra.mxu0 %v1989
        %v1991 = vand.u32 %v1954, 4294901760
        %1992 = vmatpush.msra.mxu0 %v1991
        %v1993 = vand.u32 %v1953, 4294901760
        %1994 = vmatpush.msra.mxu0 %v1993
        %v1995 = vand.u32 %v1952, 4294901760
        %1996 = vmatpush.msra.mxu0 %v1995
        %v1997 = vand.u32 %v1951, 4294901760
        %1998 = vmatpush.msra.mxu0 %v1997
        %v1999 = vand.u32 %v1948, 4294901760
        %v2000 = vsub.f32 %v1948, %v1999
        %v2001 = vand.u32 %v2000, 4294901760
        %v2002 = vsub.f32 %v2000, %v2001
        %v2003 = vand.u32 %v2002, 4294901760
        %2004 = vmatmul.f32.gmra.mxu0 %v2003
        %v2005 = vpop.f32.mrf.mxu0
        %v2006 = vadd.f32 0.0, %v2005
        %2007 = vdwg.mxu0
        %v2008 = vand.u32 %v1966, 4294901760
        %v2009 = vsub.f32 %v1966, %v2008
        %v2010 = vand.u32 %v2009, 4294901760
        %v2011 = vsub.f32 %v2009, %v2010
        %v2012 = vand.u32 %v2011, 4294901760
        %2013 = vmatpush.msra.mxu0 %v2012
        %v2014 = vand.u32 %v1965, 4294901760
        %v2015 = vsub.f32 %v1965, %v2014
        %v2016 = vand.u32 %v2015, 4294901760
        %v2017 = vsub.f32 %v2015, %v2016
        %v2018 = vand.u32 %v2017, 4294901760
        %2019 = vmatpush.msra.mxu0 %v2018
        %v2020 = vand.u32 %v1964, 4294901760
        %v2021 = vsub.f32 %v1964, %v2020
        %v2022 = vand.u32 %v2021, 4294901760
        %v2023 = vsub.f32 %v2021, %v2022
        %v2024 = vand.u32 %v2023, 4294901760
        %2025 = vmatpush.msra.mxu0 %v2024
        %v2026 = vand.u32 %v1963, 4294901760
        %v2027 = vsub.f32 %v1963, %v2026
        %v2028 = vand.u32 %v2027, 4294901760
        %v2029 = vsub.f32 %v2027, %v2028
        %v2030 = vand.u32 %v2029, 4294901760
        %2031 = vmatpush.msra.mxu0 %v2030
        %v2032 = vand.u32 %v1962, 4294901760
        %v2033 = vsub.f32 %v1962, %v2032
        %v2034 = vand.u32 %v2033, 4294901760
        %v2035 = vsub.f32 %v2033, %v2034
        %v2036 = vand.u32 %v2035, 4294901760
        %2037 = vmatpush.msra.mxu0 %v2036
        %v2038 = vand.u32 %v1961, 4294901760
        %v2039 = vsub.f32 %v1961, %v2038
        %v2040 = vand.u32 %v2039, 4294901760
        %v2041 = vsub.f32 %v2039, %v2040
        %v2042 = vand.u32 %v2041, 4294901760
        %2043 = vmatpush.msra.mxu0 %v2042
        %v2044 = vand.u32 %v1960, 4294901760
        %v2045 = vsub.f32 %v1960, %v2044
        %v2046 = vand.u32 %v2045, 4294901760
        %v2047 = vsub.f32 %v2045, %v2046
        %v2048 = vand.u32 %v2047, 4294901760
        %2049 = vmatpush.msra.mxu0 %v2048
        %v2050 = vand.u32 %v1959, 4294901760
        %v2051 = vsub.f32 %v1959, %v2050
        %v2052 = vand.u32 %v2051, 4294901760
        %v2053 = vsub.f32 %v2051, %v2052
        %v2054 = vand.u32 %v2053, 4294901760
        %2055 = vmatpush.msra.mxu0 %v2054
        %v2056 = vand.u32 %v1958, 4294901760
        %v2057 = vsub.f32 %v1958, %v2056
        %v2058 = vand.u32 %v2057, 4294901760
        %v2059 = vsub.f32 %v2057, %v2058
        %v2060 = vand.u32 %v2059, 4294901760
        %2061 = vmatpush.msra.mxu0 %v2060
        %v2062 = vand.u32 %v1957, 4294901760
        %v2063 = vsub.f32 %v1957, %v2062
        %v2064 = vand.u32 %v2063, 4294901760
        %v2065 = vsub.f32 %v2063, %v2064
        %v2066 = vand.u32 %v2065, 4294901760
        %2067 = vmatpush.msra.mxu0 %v2066
        %v2068 = vand.u32 %v1956, 4294901760
        %v2069 = vsub.f32 %v1956, %v2068
        %v2070 = vand.u32 %v2069, 4294901760
        %v2071 = vsub.f32 %v2069, %v2070
        %v2072 = vand.u32 %v2071, 4294901760
        %2073 = vmatpush.msra.mxu0 %v2072
        %v2074 = vand.u32 %v1955, 4294901760
        %v2075 = vsub.f32 %v1955, %v2074
        %v2076 = vand.u32 %v2075, 4294901760
        %v2077 = vsub.f32 %v2075, %v2076
        %v2078 = vand.u32 %v2077, 4294901760
        %2079 = vmatpush.msra.mxu0 %v2078
        %v2080 = vand.u32 %v1954, 4294901760
        %v2081 = vsub.f32 %v1954, %v2080
        %v2082 = vand.u32 %v2081, 4294901760
        %v2083 = vsub.f32 %v2081, %v2082
        %v2084 = vand.u32 %v2083, 4294901760
        %2085 = vmatpush.msra.mxu0 %v2084
        %v2086 = vand.u32 %v1953, 4294901760
        %v2087 = vsub.f32 %v1953, %v2086
        %v2088 = vand.u32 %v2087, 4294901760
        %v2089 = vsub.f32 %v2087, %v2088
        %v2090 = vand.u32 %v2089, 4294901760
        %2091 = vmatpush.msra.mxu0 %v2090
        %v2092 = vand.u32 %v1952, 4294901760
        %v2093 = vsub.f32 %v1952, %v2092
        %v2094 = vand.u32 %v2093, 4294901760
        %v2095 = vsub.f32 %v2093, %v2094
        %v2096 = vand.u32 %v2095, 4294901760
        %2097 = vmatpush.msra.mxu0 %v2096
        %v2098 = vand.u32 %v1951, 4294901760
        %v2099 = vsub.f32 %v1951, %v2098
        %v2100 = vand.u32 %v2099, 4294901760
        %v2101 = vsub.f32 %v2099, %v2100
        %v2102 = vand.u32 %v2101, 4294901760
        %2103 = vmatpush.msra.mxu0 %v2102
        %v2104 = vand.u32 %v1948, 4294901760
        %2105 = vmatmul.f32.gmra.mxu0 %v2104
        %v2106 = vpop.f32.mrf.mxu0
        %v2107 = vadd.f32 %v2006, %v2106
        %2108 = vdwg.mxu0
        %v2109 = vand.u32 %v1966, 4294901760
        %v2110 = vsub.f32 %v1966, %v2109
        %2111 = vmatpush.msra.mxu0 %v2110
        %v2112 = vand.u32 %v1965, 4294901760
        %v2113 = vsub.f32 %v1965, %v2112
        %2114 = vmatpush.msra.mxu0 %v2113
        %v2115 = vand.u32 %v1964, 4294901760
        %v2116 = vsub.f32 %v1964, %v2115
        %2117 = vmatpush.msra.mxu0 %v2116
        %v2118 = vand.u32 %v1963, 4294901760
        %v2119 = vsub.f32 %v1963, %v2118
        %2120 = vmatpush.msra.mxu0 %v2119
        %v2121 = vand.u32 %v1962, 4294901760
        %v2122 = vsub.f32 %v1962, %v2121
        %2123 = vmatpush.msra.mxu0 %v2122
        %v2124 = vand.u32 %v1961, 4294901760
        %v2125 = vsub.f32 %v1961, %v2124
        %2126 = vmatpush.msra.mxu0 %v2125
        %v2127 = vand.u32 %v1960, 4294901760
        %v2128 = vsub.f32 %v1960, %v2127
        %2129 = vmatpush.msra.mxu0 %v2128
        %v2130 = vand.u32 %v1959, 4294901760
        %v2131 = vsub.f32 %v1959, %v2130
        %2132 = vmatpush.msra.mxu0 %v2131
        %v2133 = vand.u32 %v1958, 4294901760
        %v2134 = vsub.f32 %v1958, %v2133
        %2135 = vmatpush.msra.mxu0 %v2134
        %v2136 = vand.u32 %v1957, 4294901760
        %v2137 = vsub.f32 %v1957, %v2136
        %2138 = vmatpush.msra.mxu0 %v2137
        %v2139 = vand.u32 %v1956, 4294901760
        %v2140 = vsub.f32 %v1956, %v2139
        %2141 = vmatpush.msra.mxu0 %v2140
        %v2142 = vand.u32 %v1955, 4294901760
        %v2143 = vsub.f32 %v1955, %v2142
        %2144 = vmatpush.msra.mxu0 %v2143
        %v2145 = vand.u32 %v1954, 4294901760
        %v2146 = vsub.f32 %v1954, %v2145
        %2147 = vmatpush.msra.mxu0 %v2146
        %v2148 = vand.u32 %v1953, 4294901760
        %v2149 = vsub.f32 %v1953, %v2148
        %2150 = vmatpush.msra.mxu0 %v2149
        %v2151 = vand.u32 %v1952, 4294901760
        %v2152 = vsub.f32 %v1952, %v2151
        %2153 = vmatpush.msra.mxu0 %v2152
        %v2154 = vand.u32 %v1951, 4294901760
        %v2155 = vsub.f32 %v1951, %v2154
        %2156 = vmatpush.msra.mxu0 %v2155
        %v2157 = vand.u32 %v1948, 4294901760
        %v2158 = vsub.f32 %v1948, %v2157
        %2159 = vmatmul.f32.gmra.mxu0 %v2158
        %v2160 = vpop.f32.mrf.mxu0
        %v2161 = vadd.f32 %v2107, %v2160
        %2162 = vdwg.mxu0
        %v2163 = vand.u32 %v1966, 4294901760
        %2164 = vmatpush.msra.mxu0 %v2163
        %v2165 = vand.u32 %v1965, 4294901760
        %2166 = vmatpush.msra.mxu0 %v2165
        %v2167 = vand.u32 %v1964, 4294901760
        %2168 = vmatpush.msra.mxu0 %v2167
        %v2169 = vand.u32 %v1963, 4294901760
        %2170 = vmatpush.msra.mxu0 %v2169
        %v2171 = vand.u32 %v1962, 4294901760
        %2172 = vmatpush.msra.mxu0 %v2171
        %v2173 = vand.u32 %v1961, 4294901760
        %2174 = vmatpush.msra.mxu0 %v2173
        %v2175 = vand.u32 %v1960, 4294901760
        %2176 = vmatpush.msra.mxu0 %v2175
        %v2177 = vand.u32 %v1959, 4294901760
        %2178 = vmatpush.msra.mxu0 %v2177
        %v2179 = vand.u32 %v1958, 4294901760
        %2180 = vmatpush.msra.mxu0 %v2179
        %v2181 = vand.u32 %v1957, 4294901760
        %2182 = vmatpush.msra.mxu0 %v2181
        %v2183 = vand.u32 %v1956, 4294901760
        %2184 = vmatpush.msra.mxu0 %v2183
        %v2185 = vand.u32 %v1955, 4294901760
        %2186 = vmatpush.msra.mxu0 %v2185
        %v2187 = vand.u32 %v1954, 4294901760
        %2188 = vmatpush.msra.mxu0 %v2187
        %v2189 = vand.u32 %v1953, 4294901760
        %2190 = vmatpush.msra.mxu0 %v2189
        %v2191 = vand.u32 %v1952, 4294901760
        %2192 = vmatpush.msra.mxu0 %v2191
        %v2193 = vand.u32 %v1951, 4294901760
        %2194 = vmatpush.msra.mxu0 %v2193
        %v2195 = vand.u32 %v1948, 4294901760
        %v2196 = vsub.f32 %v1948, %v2195
        %v2197 = vand.u32 %v2196, 4294901760
        %2198 = vmatmul.f32.gmra.mxu0 %v2197
        %v2199 = vpop.f32.mrf.mxu0
        %v2200 = vadd.f32 %v2161, %v2199
        %2201 = vdwg.mxu0
        %v2202 = vand.u32 %v1966, 4294901760
        %v2203 = vsub.f32 %v1966, %v2202
        %v2204 = vand.u32 %v2203, 4294901760
        %2205 = vmatpush.msra.mxu0 %v2204
        %v2206 = vand.u32 %v1965, 4294901760
        %v2207 = vsub.f32 %v1965, %v2206
        %v2208 = vand.u32 %v2207, 4294901760
        %2209 = vmatpush.msra.mxu0 %v2208
        %v2210 = vand.u32 %v1964, 4294901760
        %v2211 = vsub.f32 %v1964, %v2210
        %v2212 = vand.u32 %v2211, 4294901760
        %2213 = vmatpush.msra.mxu0 %v2212
        %v2214 = vand.u32 %v1963, 4294901760
        %v2215 = vsub.f32 %v1963, %v2214
        %v2216 = vand.u32 %v2215, 4294901760
        %2217 = vmatpush.msra.mxu0 %v2216
        %v2218 = vand.u32 %v1962, 4294901760
        %v2219 = vsub.f32 %v1962, %v2218
        %v2220 = vand.u32 %v2219, 4294901760
        %2221 = vmatpush.msra.mxu0 %v2220
        %v2222 = vand.u32 %v1961, 4294901760
        %v2223 = vsub.f32 %v1961, %v2222
        %v2224 = vand.u32 %v2223, 4294901760
        %2225 = vmatpush.msra.mxu0 %v2224
        %v2226 = vand.u32 %v1960, 4294901760
        %v2227 = vsub.f32 %v1960, %v2226
        %v2228 = vand.u32 %v2227, 4294901760
        %2229 = vmatpush.msra.mxu0 %v2228
        %v2230 = vand.u32 %v1959, 4294901760
        %v2231 = vsub.f32 %v1959, %v2230
        %v2232 = vand.u32 %v2231, 4294901760
        %2233 = vmatpush.msra.mxu0 %v2232
        %v2234 = vand.u32 %v1958, 4294901760
        %v2235 = vsub.f32 %v1958, %v2234
        %v2236 = vand.u32 %v2235, 4294901760
        %2237 = vmatpush.msra.mxu0 %v2236
        %v2238 = vand.u32 %v1957, 4294901760
        %v2239 = vsub.f32 %v1957, %v2238
        %v2240 = vand.u32 %v2239, 4294901760
        %2241 = vmatpush.msra.mxu0 %v2240
        %v2242 = vand.u32 %v1956, 4294901760
        %v2243 = vsub.f32 %v1956, %v2242
        %v2244 = vand.u32 %v2243, 4294901760
        %2245 = vmatpush.msra.mxu0 %v2244
        %v2246 = vand.u32 %v1955, 4294901760
        %v2247 = vsub.f32 %v1955, %v2246
        %v2248 = vand.u32 %v2247, 4294901760
        %2249 = vmatpush.msra.mxu0 %v2248
        %v2250 = vand.u32 %v1954, 4294901760
        %v2251 = vsub.f32 %v1954, %v2250
        %v2252 = vand.u32 %v2251, 4294901760
        %2253 = vmatpush.msra.mxu0 %v2252
        %v2254 = vand.u32 %v1953, 4294901760
        %v2255 = vsub.f32 %v1953, %v2254
        %v2256 = vand.u32 %v2255, 4294901760
        %2257 = vmatpush.msra.mxu0 %v2256
        %v2258 = vand.u32 %v1952, 4294901760
        %v2259 = vsub.f32 %v1952, %v2258
        %v2260 = vand.u32 %v2259, 4294901760
        %2261 = vmatpush.msra.mxu0 %v2260
        %v2262 = vand.u32 %v1951, 4294901760
        %v2263 = vsub.f32 %v1951, %v2262
        %v2264 = vand.u32 %v2263, 4294901760
        %2265 = vmatpush.msra.mxu0 %v2264
        %v2266 = vand.u32 %v1948, 4294901760
        %2267 = vmatmul.f32.gmra.mxu0 %v2266
        %v2268 = vpop.f32.mrf.mxu0
        %v2269 = vadd.f32 %v2200, %v2268
        %2270 = vdwg.mxu0
        %v2271 = vand.u32 %v1966, 4294901760
        %2272 = vmatpush.msra.mxu0 %v2271
        %v2273 = vand.u32 %v1965, 4294901760
        %2274 = vmatpush.msra.mxu0 %v2273
        %v2275 = vand.u32 %v1964, 4294901760
        %2276 = vmatpush.msra.mxu0 %v2275
        %v2277 = vand.u32 %v1963, 4294901760
        %2278 = vmatpush.msra.mxu0 %v2277
        %v2279 = vand.u32 %v1962, 4294901760
        %2280 = vmatpush.msra.mxu0 %v2279
        %v2281 = vand.u32 %v1961, 4294901760
        %2282 = vmatpush.msra.mxu0 %v2281
        %v2283 = vand.u32 %v1960, 4294901760
        %2284 = vmatpush.msra.mxu0 %v2283
        %v2285 = vand.u32 %v1959, 4294901760
        %2286 = vmatpush.msra.mxu0 %v2285
        %v2287 = vand.u32 %v1958, 4294901760
        %2288 = vmatpush.msra.mxu0 %v2287
        %v2289 = vand.u32 %v1957, 4294901760
        %2290 = vmatpush.msra.mxu0 %v2289
        %v2291 = vand.u32 %v1956, 4294901760
        %2292 = vmatpush.msra.mxu0 %v2291
        %v2293 = vand.u32 %v1955, 4294901760
        %2294 = vmatpush.msra.mxu0 %v2293
        %v2295 = vand.u32 %v1954, 4294901760
        %2296 = vmatpush.msra.mxu0 %v2295
        %v2297 = vand.u32 %v1953, 4294901760
        %2298 = vmatpush.msra.mxu0 %v2297
        %v2299 = vand.u32 %v1952, 4294901760
        %2300 = vmatpush.msra.mxu0 %v2299
        %v2301 = vand.u32 %v1951, 4294901760
        %2302 = vmatpush.msra.mxu0 %v2301
        %v2303 = vand.u32 %v1948, 4294901760
        %2304 = vmatmul.f32.gmra.mxu0 %v2303
        %v2305 = vpop.f32.mrf.mxu0
        %v2306 = vadd.f32 %v2269, %v2305
        %2307 = vdwg.mxu0
        %s2308 = scalar_lea.vmem %s136, 768 [#allocation2]
        %v2309 = vld [vmem:[%s2308] sm:$0xff]
        %v2310 = vld [vmem:[%s2308 + $0x8] sm:$0xff]
        %v2311 = vld [vmem:[%s2308 + $0x10] sm:$0xff]
        %v2312 = vld [vmem:[%s2308 + $0x18] sm:$0xff]
        %v2313 = vld [vmem:[%s2308 + $0x20] sm:$0xff]
        %v2314 = vld [vmem:[%s2308 + $0x28] sm:$0xff]
        %v2315 = vld [vmem:[%s2308 + $0x30] sm:$0xff]
        %v2316 = vld [vmem:[%s2308 + $0x38] sm:$0xff]
        %v2317 = vld [vmem:[%s2308 + $0x40] sm:$0xff]
        %v2318 = vld [vmem:[%s2308 + $0x48] sm:$0xff]
        %v2319 = vld [vmem:[%s2308 + $0x50] sm:$0xff]
        %v2320 = vld [vmem:[%s2308 + $0x58] sm:$0xff]
        %v2321 = vld [vmem:[%s2308 + $0x60] sm:$0xff]
        %v2322 = vld [vmem:[%s2308 + $0x68] sm:$0xff]
        %v2323 = vld [vmem:[%s2308 + $0x70] sm:$0xff]
        %v2324 = vld [vmem:[%s2308 + $0x78] sm:$0xff]
        %v2325 = vand.u32 %v2324, 4294901760
        %2326 = vmatpush.msra.mxu0 %v2325
        %v2327 = vand.u32 %v2323, 4294901760
        %2328 = vmatpush.msra.mxu0 %v2327
        %v2329 = vand.u32 %v2322, 4294901760
        %2330 = vmatpush.msra.mxu0 %v2329
        %v2331 = vand.u32 %v2321, 4294901760
        %2332 = vmatpush.msra.mxu0 %v2331
        %v2333 = vand.u32 %v2320, 4294901760
        %2334 = vmatpush.msra.mxu0 %v2333
        %v2335 = vand.u32 %v2319, 4294901760
        %2336 = vmatpush.msra.mxu0 %v2335
        %v2337 = vand.u32 %v2318, 4294901760
        %2338 = vmatpush.msra.mxu0 %v2337
        %v2339 = vand.u32 %v2317, 4294901760
        %2340 = vmatpush.msra.mxu0 %v2339
        %v2341 = vand.u32 %v2316, 4294901760
        %2342 = vmatpush.msra.mxu0 %v2341
        %v2343 = vand.u32 %v2315, 4294901760
        %2344 = vmatpush.msra.mxu0 %v2343
        %v2345 = vand.u32 %v2314, 4294901760
        %2346 = vmatpush.msra.mxu0 %v2345
        %v2347 = vand.u32 %v2313, 4294901760
        %2348 = vmatpush.msra.mxu0 %v2347
        %v2349 = vand.u32 %v2312, 4294901760
        %2350 = vmatpush.msra.mxu0 %v2349
        %v2351 = vand.u32 %v2311, 4294901760
        %2352 = vmatpush.msra.mxu0 %v2351
        %v2353 = vand.u32 %v2310, 4294901760
        %2354 = vmatpush.msra.mxu0 %v2353
        %v2355 = vand.u32 %v2309, 4294901760
        %2356 = vmatpush.msra.mxu0 %v2355
        %v2357 = vand.u32 %v2306, 4294901760
        %v2358 = vsub.f32 %v2306, %v2357
        %v2359 = vand.u32 %v2358, 4294901760
        %v2360 = vsub.f32 %v2358, %v2359
        %v2361 = vand.u32 %v2360, 4294901760
        %2362 = vmatmul.f32.gmra.mxu0 %v2361
        %v2363 = vpop.f32.mrf.mxu0
        %v2364 = vadd.f32 0.0, %v2363
        %2365 = vdwg.mxu0
        %v2366 = vand.u32 %v2324, 4294901760
        %v2367 = vsub.f32 %v2324, %v2366
        %v2368 = vand.u32 %v2367, 4294901760
        %v2369 = vsub.f32 %v2367, %v2368
        %v2370 = vand.u32 %v2369, 4294901760
        %2371 = vmatpush.msra.mxu0 %v2370
        %v2372 = vand.u32 %v2323, 4294901760
        %v2373 = vsub.f32 %v2323, %v2372
        %v2374 = vand.u32 %v2373, 4294901760
        %v2375 = vsub.f32 %v2373, %v2374
        %v2376 = vand.u32 %v2375, 4294901760
        %2377 = vmatpush.msra.mxu0 %v2376
        %v2378 = vand.u32 %v2322, 4294901760
        %v2379 = vsub.f32 %v2322, %v2378
        %v2380 = vand.u32 %v2379, 4294901760
        %v2381 = vsub.f32 %v2379, %v2380
        %v2382 = vand.u32 %v2381, 4294901760
        %2383 = vmatpush.msra.mxu0 %v2382
        %v2384 = vand.u32 %v2321, 4294901760
        %v2385 = vsub.f32 %v2321, %v2384
        %v2386 = vand.u32 %v2385, 4294901760
        %v2387 = vsub.f32 %v2385, %v2386
        %v2388 = vand.u32 %v2387, 4294901760
        %2389 = vmatpush.msra.mxu0 %v2388
        %v2390 = vand.u32 %v2320, 4294901760
        %v2391 = vsub.f32 %v2320, %v2390
        %v2392 = vand.u32 %v2391, 4294901760
        %v2393 = vsub.f32 %v2391, %v2392
        %v2394 = vand.u32 %v2393, 4294901760
        %2395 = vmatpush.msra.mxu0 %v2394
        %v2396 = vand.u32 %v2319, 4294901760
        %v2397 = vsub.f32 %v2319, %v2396
        %v2398 = vand.u32 %v2397, 4294901760
        %v2399 = vsub.f32 %v2397, %v2398
        %v2400 = vand.u32 %v2399, 4294901760
        %2401 = vmatpush.msra.mxu0 %v2400
        %v2402 = vand.u32 %v2318, 4294901760
        %v2403 = vsub.f32 %v2318, %v2402
        %v2404 = vand.u32 %v2403, 4294901760
        %v2405 = vsub.f32 %v2403, %v2404
        %v2406 = vand.u32 %v2405, 4294901760
        %2407 = vmatpush.msra.mxu0 %v2406
        %v2408 = vand.u32 %v2317, 4294901760
        %v2409 = vsub.f32 %v2317, %v2408
        %v2410 = vand.u32 %v2409, 4294901760
        %v2411 = vsub.f32 %v2409, %v2410
        %v2412 = vand.u32 %v2411, 4294901760
        %2413 = vmatpush.msra.mxu0 %v2412
        %v2414 = vand.u32 %v2316, 4294901760
        %v2415 = vsub.f32 %v2316, %v2414
        %v2416 = vand.u32 %v2415, 4294901760
        %v2417 = vsub.f32 %v2415, %v2416
        %v2418 = vand.u32 %v2417, 4294901760
        %2419 = vmatpush.msra.mxu0 %v2418
        %v2420 = vand.u32 %v2315, 4294901760
        %v2421 = vsub.f32 %v2315, %v2420
        %v2422 = vand.u32 %v2421, 4294901760
        %v2423 = vsub.f32 %v2421, %v2422
        %v2424 = vand.u32 %v2423, 4294901760
        %2425 = vmatpush.msra.mxu0 %v2424
        %v2426 = vand.u32 %v2314, 4294901760
        %v2427 = vsub.f32 %v2314, %v2426
        %v2428 = vand.u32 %v2427, 4294901760
        %v2429 = vsub.f32 %v2427, %v2428
        %v2430 = vand.u32 %v2429, 4294901760
        %2431 = vmatpush.msra.mxu0 %v2430
        %v2432 = vand.u32 %v2313, 4294901760
        %v2433 = vsub.f32 %v2313, %v2432
        %v2434 = vand.u32 %v2433, 4294901760
        %v2435 = vsub.f32 %v2433, %v2434
        %v2436 = vand.u32 %v2435, 4294901760
        %2437 = vmatpush.msra.mxu0 %v2436
        %v2438 = vand.u32 %v2312, 4294901760
        %v2439 = vsub.f32 %v2312, %v2438
        %v2440 = vand.u32 %v2439, 4294901760
        %v2441 = vsub.f32 %v2439, %v2440
        %v2442 = vand.u32 %v2441, 4294901760
        %2443 = vmatpush.msra.mxu0 %v2442
        %v2444 = vand.u32 %v2311, 4294901760
        %v2445 = vsub.f32 %v2311, %v2444
        %v2446 = vand.u32 %v2445, 4294901760
        %v2447 = vsub.f32 %v2445, %v2446
        %v2448 = vand.u32 %v2447, 4294901760
        %2449 = vmatpush.msra.mxu0 %v2448
        %v2450 = vand.u32 %v2310, 4294901760
        %v2451 = vsub.f32 %v2310, %v2450
        %v2452 = vand.u32 %v2451, 4294901760
        %v2453 = vsub.f32 %v2451, %v2452
        %v2454 = vand.u32 %v2453, 4294901760
        %2455 = vmatpush.msra.mxu0 %v2454
        %v2456 = vand.u32 %v2309, 4294901760
        %v2457 = vsub.f32 %v2309, %v2456
        %v2458 = vand.u32 %v2457, 4294901760
        %v2459 = vsub.f32 %v2457, %v2458
        %v2460 = vand.u32 %v2459, 4294901760
        %2461 = vmatpush.msra.mxu0 %v2460
        %v2462 = vand.u32 %v2306, 4294901760
        %2463 = vmatmul.f32.gmra.mxu0 %v2462
        %v2464 = vpop.f32.mrf.mxu0
        %v2465 = vadd.f32 %v2364, %v2464
        %2466 = vdwg.mxu0
        %v2467 = vand.u32 %v2324, 4294901760
        %v2468 = vsub.f32 %v2324, %v2467
        %2469 = vmatpush.msra.mxu0 %v2468
        %v2470 = vand.u32 %v2323, 4294901760
        %v2471 = vsub.f32 %v2323, %v2470
        %2472 = vmatpush.msra.mxu0 %v2471
        %v2473 = vand.u32 %v2322, 4294901760
        %v2474 = vsub.f32 %v2322, %v2473
        %2475 = vmatpush.msra.mxu0 %v2474
        %v2476 = vand.u32 %v2321, 4294901760
        %v2477 = vsub.f32 %v2321, %v2476
        %2478 = vmatpush.msra.mxu0 %v2477
        %v2479 = vand.u32 %v2320, 4294901760
        %v2480 = vsub.f32 %v2320, %v2479
        %2481 = vmatpush.msra.mxu0 %v2480
        %v2482 = vand.u32 %v2319, 4294901760
        %v2483 = vsub.f32 %v2319, %v2482
        %2484 = vmatpush.msra.mxu0 %v2483
        %v2485 = vand.u32 %v2318, 4294901760
        %v2486 = vsub.f32 %v2318, %v2485
        %2487 = vmatpush.msra.mxu0 %v2486
        %v2488 = vand.u32 %v2317, 4294901760
        %v2489 = vsub.f32 %v2317, %v2488
        %2490 = vmatpush.msra.mxu0 %v2489
        %v2491 = vand.u32 %v2316, 4294901760
        %v2492 = vsub.f32 %v2316, %v2491
        %2493 = vmatpush.msra.mxu0 %v2492
        %v2494 = vand.u32 %v2315, 4294901760
        %v2495 = vsub.f32 %v2315, %v2494
        %2496 = vmatpush.msra.mxu0 %v2495
        %v2497 = vand.u32 %v2314, 4294901760
        %v2498 = vsub.f32 %v2314, %v2497
        %2499 = vmatpush.msra.mxu0 %v2498
        %v2500 = vand.u32 %v2313, 4294901760
        %v2501 = vsub.f32 %v2313, %v2500
        %2502 = vmatpush.msra.mxu0 %v2501
        %v2503 = vand.u32 %v2312, 4294901760
        %v2504 = vsub.f32 %v2312, %v2503
        %2505 = vmatpush.msra.mxu0 %v2504
        %v2506 = vand.u32 %v2311, 4294901760
        %v2507 = vsub.f32 %v2311, %v2506
        %2508 = vmatpush.msra.mxu0 %v2507
        %v2509 = vand.u32 %v2310, 4294901760
        %v2510 = vsub.f32 %v2310, %v2509
        %2511 = vmatpush.msra.mxu0 %v2510
        %v2512 = vand.u32 %v2309, 4294901760
        %v2513 = vsub.f32 %v2309, %v2512
        %2514 = vmatpush.msra.mxu0 %v2513
        %v2515 = vand.u32 %v2306, 4294901760
        %v2516 = vsub.f32 %v2306, %v2515
        %2517 = vmatmul.f32.gmra.mxu0 %v2516
        %v2518 = vpop.f32.mrf.mxu0
        %v2519 = vadd.f32 %v2465, %v2518
        %2520 = vdwg.mxu0
        %v2521 = vand.u32 %v2324, 4294901760
        %2522 = vmatpush.msra.mxu0 %v2521
        %v2523 = vand.u32 %v2323, 4294901760
        %2524 = vmatpush.msra.mxu0 %v2523
        %v2525 = vand.u32 %v2322, 4294901760
        %2526 = vmatpush.msra.mxu0 %v2525
        %v2527 = vand.u32 %v2321, 4294901760
        %2528 = vmatpush.msra.mxu0 %v2527
        %v2529 = vand.u32 %v2320, 4294901760
        %2530 = vmatpush.msra.mxu0 %v2529
        %v2531 = vand.u32 %v2319, 4294901760
        %2532 = vmatpush.msra.mxu0 %v2531
        %v2533 = vand.u32 %v2318, 4294901760
        %2534 = vmatpush.msra.mxu0 %v2533
        %v2535 = vand.u32 %v2317, 4294901760
        %2536 = vmatpush.msra.mxu0 %v2535
        %v2537 = vand.u32 %v2316, 4294901760
        %2538 = vmatpush.msra.mxu0 %v2537
        %v2539 = vand.u32 %v2315, 4294901760
        %2540 = vmatpush.msra.mxu0 %v2539
        %v2541 = vand.u32 %v2314, 4294901760
        %2542 = vmatpush.msra.mxu0 %v2541
        %v2543 = vand.u32 %v2313, 4294901760
        %2544 = vmatpush.msra.mxu0 %v2543
        %v2545 = vand.u32 %v2312, 4294901760
        %2546 = vmatpush.msra.mxu0 %v2545
        %v2547 = vand.u32 %v2311, 4294901760
        %2548 = vmatpush.msra.mxu0 %v2547
        %v2549 = vand.u32 %v2310, 4294901760
        %2550 = vmatpush.msra.mxu0 %v2549
        %v2551 = vand.u32 %v2309, 4294901760
        %2552 = vmatpush.msra.mxu0 %v2551
        %v2553 = vand.u32 %v2306, 4294901760
        %v2554 = vsub.f32 %v2306, %v2553
        %v2555 = vand.u32 %v2554, 4294901760
        %2556 = vmatmul.f32.gmra.mxu0 %v2555
        %v2557 = vpop.f32.mrf.mxu0
        %v2558 = vadd.f32 %v2519, %v2557
        %2559 = vdwg.mxu0
        %v2560 = vand.u32 %v2324, 4294901760
        %v2561 = vsub.f32 %v2324, %v2560
        %v2562 = vand.u32 %v2561, 4294901760
        %2563 = vmatpush.msra.mxu0 %v2562
        %v2564 = vand.u32 %v2323, 4294901760
        %v2565 = vsub.f32 %v2323, %v2564
        %v2566 = vand.u32 %v2565, 4294901760
        %2567 = vmatpush.msra.mxu0 %v2566
        %v2568 = vand.u32 %v2322, 4294901760
        %v2569 = vsub.f32 %v2322, %v2568
        %v2570 = vand.u32 %v2569, 4294901760
        %2571 = vmatpush.msra.mxu0 %v2570
        %v2572 = vand.u32 %v2321, 4294901760
        %v2573 = vsub.f32 %v2321, %v2572
        %v2574 = vand.u32 %v2573, 4294901760
        %2575 = vmatpush.msra.mxu0 %v2574
        %v2576 = vand.u32 %v2320, 4294901760
        %v2577 = vsub.f32 %v2320, %v2576
        %v2578 = vand.u32 %v2577, 4294901760
        %2579 = vmatpush.msra.mxu0 %v2578
        %v2580 = vand.u32 %v2319, 4294901760
        %v2581 = vsub.f32 %v2319, %v2580
        %v2582 = vand.u32 %v2581, 4294901760
        %2583 = vmatpush.msra.mxu0 %v2582
        %v2584 = vand.u32 %v2318, 4294901760
        %v2585 = vsub.f32 %v2318, %v2584
        %v2586 = vand.u32 %v2585, 4294901760
        %2587 = vmatpush.msra.mxu0 %v2586
        %v2588 = vand.u32 %v2317, 4294901760
        %v2589 = vsub.f32 %v2317, %v2588
        %v2590 = vand.u32 %v2589, 4294901760
        %2591 = vmatpush.msra.mxu0 %v2590
        %v2592 = vand.u32 %v2316, 4294901760
        %v2593 = vsub.f32 %v2316, %v2592
        %v2594 = vand.u32 %v2593, 4294901760
        %2595 = vmatpush.msra.mxu0 %v2594
        %v2596 = vand.u32 %v2315, 4294901760
        %v2597 = vsub.f32 %v2315, %v2596
        %v2598 = vand.u32 %v2597, 4294901760
        %2599 = vmatpush.msra.mxu0 %v2598
        %v2600 = vand.u32 %v2314, 4294901760
        %v2601 = vsub.f32 %v2314, %v2600
        %v2602 = vand.u32 %v2601, 4294901760
        %2603 = vmatpush.msra.mxu0 %v2602
        %v2604 = vand.u32 %v2313, 4294901760
        %v2605 = vsub.f32 %v2313, %v2604
        %v2606 = vand.u32 %v2605, 4294901760
        %2607 = vmatpush.msra.mxu0 %v2606
        %v2608 = vand.u32 %v2312, 4294901760
        %v2609 = vsub.f32 %v2312, %v2608
        %v2610 = vand.u32 %v2609, 4294901760
        %2611 = vmatpush.msra.mxu0 %v2610
        %v2612 = vand.u32 %v2311, 4294901760
        %v2613 = vsub.f32 %v2311, %v2612
        %v2614 = vand.u32 %v2613, 4294901760
        %2615 = vmatpush.msra.mxu0 %v2614
        %v2616 = vand.u32 %v2310, 4294901760
        %v2617 = vsub.f32 %v2310, %v2616
        %v2618 = vand.u32 %v2617, 4294901760
        %2619 = vmatpush.msra.mxu0 %v2618
        %v2620 = vand.u32 %v2309, 4294901760
        %v2621 = vsub.f32 %v2309, %v2620
        %v2622 = vand.u32 %v2621, 4294901760
        %2623 = vmatpush.msra.mxu0 %v2622
        %v2624 = vand.u32 %v2306, 4294901760
        %2625 = vmatmul.f32.gmra.mxu0 %v2624
        %v2626 = vpop.f32.mrf.mxu0
        %v2627 = vadd.f32 %v2558, %v2626
        %2628 = vdwg.mxu0
        %v2629 = vand.u32 %v2324, 4294901760
        %2630 = vmatpush.msra.mxu0 %v2629
        %v2631 = vand.u32 %v2323, 4294901760
        %2632 = vmatpush.msra.mxu0 %v2631
        %v2633 = vand.u32 %v2322, 4294901760
        %2634 = vmatpush.msra.mxu0 %v2633
        %v2635 = vand.u32 %v2321, 4294901760
        %2636 = vmatpush.msra.mxu0 %v2635
        %v2637 = vand.u32 %v2320, 4294901760
        %2638 = vmatpush.msra.mxu0 %v2637
        %v2639 = vand.u32 %v2319, 4294901760
        %2640 = vmatpush.msra.mxu0 %v2639
        %v2641 = vand.u32 %v2318, 4294901760
        %2642 = vmatpush.msra.mxu0 %v2641
        %v2643 = vand.u32 %v2317, 4294901760
        %2644 = vmatpush.msra.mxu0 %v2643
        %v2645 = vand.u32 %v2316, 4294901760
        %2646 = vmatpush.msra.mxu0 %v2645
        %v2647 = vand.u32 %v2315, 4294901760
        %2648 = vmatpush.msra.mxu0 %v2647
        %v2649 = vand.u32 %v2314, 4294901760
        %2650 = vmatpush.msra.mxu0 %v2649
        %v2651 = vand.u32 %v2313, 4294901760
        %2652 = vmatpush.msra.mxu0 %v2651
        %v2653 = vand.u32 %v2312, 4294901760
        %2654 = vmatpush.msra.mxu0 %v2653
        %v2655 = vand.u32 %v2311, 4294901760
        %2656 = vmatpush.msra.mxu0 %v2655
        %v2657 = vand.u32 %v2310, 4294901760
        %2658 = vmatpush.msra.mxu0 %v2657
        %v2659 = vand.u32 %v2309, 4294901760
        %2660 = vmatpush.msra.mxu0 %v2659
        %v2661 = vand.u32 %v2306, 4294901760
        %2662 = vmatmul.f32.gmra.mxu0 %v2661
        %v2663 = vpop.f32.mrf.mxu0
        %v2664 = vadd.f32 %v2627, %v2663
        %2665 = vdwg.mxu0
        %s2666 = scalar_lea.vmem %s136, 896 [#allocation2]
        %v2667 = vld [vmem:[%s2666] sm:$0xff]
        %v2668 = vld [vmem:[%s2666 + $0x8] sm:$0xff]
        %v2669 = vld [vmem:[%s2666 + $0x10] sm:$0xff]
        %v2670 = vld [vmem:[%s2666 + $0x18] sm:$0xff]
        %v2671 = vld [vmem:[%s2666 + $0x20] sm:$0xff]
        %v2672 = vld [vmem:[%s2666 + $0x28] sm:$0xff]
        %v2673 = vld [vmem:[%s2666 + $0x30] sm:$0xff]
        %v2674 = vld [vmem:[%s2666 + $0x38] sm:$0xff]
        %v2675 = vld [vmem:[%s2666 + $0x40] sm:$0xff]
        %v2676 = vld [vmem:[%s2666 + $0x48] sm:$0xff]
        %v2677 = vld [vmem:[%s2666 + $0x50] sm:$0xff]
        %v2678 = vld [vmem:[%s2666 + $0x58] sm:$0xff]
        %v2679 = vld [vmem:[%s2666 + $0x60] sm:$0xff]
        %v2680 = vld [vmem:[%s2666 + $0x68] sm:$0xff]
        %v2681 = vld [vmem:[%s2666 + $0x70] sm:$0xff]
        %v2682 = vld [vmem:[%s2666 + $0x78] sm:$0xff]
        %v2683 = vand.u32 %v2682, 4294901760
        %2684 = vmatpush.msra.mxu0 %v2683
        %v2685 = vand.u32 %v2681, 4294901760
        %2686 = vmatpush.msra.mxu0 %v2685
        %v2687 = vand.u32 %v2680, 4294901760
        %2688 = vmatpush.msra.mxu0 %v2687
        %v2689 = vand.u32 %v2679, 4294901760
        %2690 = vmatpush.msra.mxu0 %v2689
        %v2691 = vand.u32 %v2678, 4294901760
        %2692 = vmatpush.msra.mxu0 %v2691
        %v2693 = vand.u32 %v2677, 4294901760
        %2694 = vmatpush.msra.mxu0 %v2693
        %v2695 = vand.u32 %v2676, 4294901760
        %2696 = vmatpush.msra.mxu0 %v2695
        %v2697 = vand.u32 %v2675, 4294901760
        %2698 = vmatpush.msra.mxu0 %v2697
        %v2699 = vand.u32 %v2674, 4294901760
        %2700 = vmatpush.msra.mxu0 %v2699
        %v2701 = vand.u32 %v2673, 4294901760
        %2702 = vmatpush.msra.mxu0 %v2701
        %v2703 = vand.u32 %v2672, 4294901760
        %2704 = vmatpush.msra.mxu0 %v2703
        %v2705 = vand.u32 %v2671, 4294901760
        %2706 = vmatpush.msra.mxu0 %v2705
        %v2707 = vand.u32 %v2670, 4294901760
        %2708 = vmatpush.msra.mxu0 %v2707
        %v2709 = vand.u32 %v2669, 4294901760
        %2710 = vmatpush.msra.mxu0 %v2709
        %v2711 = vand.u32 %v2668, 4294901760
        %2712 = vmatpush.msra.mxu0 %v2711
        %v2713 = vand.u32 %v2667, 4294901760
        %2714 = vmatpush.msra.mxu0 %v2713
        %v2715 = vand.u32 %v2664, 4294901760
        %v2716 = vsub.f32 %v2664, %v2715
        %v2717 = vand.u32 %v2716, 4294901760
        %v2718 = vsub.f32 %v2716, %v2717
        %v2719 = vand.u32 %v2718, 4294901760
        %2720 = vmatmul.f32.gmra.mxu0 %v2719
        %v2721 = vpop.f32.mrf.mxu0
        %v2722 = vadd.f32 0.0, %v2721
        %2723 = vdwg.mxu0
        %v2724 = vand.u32 %v2682, 4294901760
        %v2725 = vsub.f32 %v2682, %v2724
        %v2726 = vand.u32 %v2725, 4294901760
        %v2727 = vsub.f32 %v2725, %v2726
        %v2728 = vand.u32 %v2727, 4294901760
        %2729 = vmatpush.msra.mxu0 %v2728
        %v2730 = vand.u32 %v2681, 4294901760
        %v2731 = vsub.f32 %v2681, %v2730
        %v2732 = vand.u32 %v2731, 4294901760
        %v2733 = vsub.f32 %v2731, %v2732
        %v2734 = vand.u32 %v2733, 4294901760
        %2735 = vmatpush.msra.mxu0 %v2734
        %v2736 = vand.u32 %v2680, 4294901760
        %v2737 = vsub.f32 %v2680, %v2736
        %v2738 = vand.u32 %v2737, 4294901760
        %v2739 = vsub.f32 %v2737, %v2738
        %v2740 = vand.u32 %v2739, 4294901760
        %2741 = vmatpush.msra.mxu0 %v2740
        %v2742 = vand.u32 %v2679, 4294901760
        %v2743 = vsub.f32 %v2679, %v2742
        %v2744 = vand.u32 %v2743, 4294901760
        %v2745 = vsub.f32 %v2743, %v2744
        %v2746 = vand.u32 %v2745, 4294901760
        %2747 = vmatpush.msra.mxu0 %v2746
        %v2748 = vand.u32 %v2678, 4294901760
        %v2749 = vsub.f32 %v2678, %v2748
        %v2750 = vand.u32 %v2749, 4294901760
        %v2751 = vsub.f32 %v2749, %v2750
        %v2752 = vand.u32 %v2751, 4294901760
        %2753 = vmatpush.msra.mxu0 %v2752
        %v2754 = vand.u32 %v2677, 4294901760
        %v2755 = vsub.f32 %v2677, %v2754
        %v2756 = vand.u32 %v2755, 4294901760
        %v2757 = vsub.f32 %v2755, %v2756
        %v2758 = vand.u32 %v2757, 4294901760
        %2759 = vmatpush.msra.mxu0 %v2758
        %v2760 = vand.u32 %v2676, 4294901760
        %v2761 = vsub.f32 %v2676, %v2760
        %v2762 = vand.u32 %v2761, 4294901760
        %v2763 = vsub.f32 %v2761, %v2762
        %v2764 = vand.u32 %v2763, 4294901760
        %2765 = vmatpush.msra.mxu0 %v2764
        %v2766 = vand.u32 %v2675, 4294901760
        %v2767 = vsub.f32 %v2675, %v2766
        %v2768 = vand.u32 %v2767, 4294901760
        %v2769 = vsub.f32 %v2767, %v2768
        %v2770 = vand.u32 %v2769, 4294901760
        %2771 = vmatpush.msra.mxu0 %v2770
        %v2772 = vand.u32 %v2674, 4294901760
        %v2773 = vsub.f32 %v2674, %v2772
        %v2774 = vand.u32 %v2773, 4294901760
        %v2775 = vsub.f32 %v2773, %v2774
        %v2776 = vand.u32 %v2775, 4294901760
        %2777 = vmatpush.msra.mxu0 %v2776
        %v2778 = vand.u32 %v2673, 4294901760
        %v2779 = vsub.f32 %v2673, %v2778
        %v2780 = vand.u32 %v2779, 4294901760
        %v2781 = vsub.f32 %v2779, %v2780
        %v2782 = vand.u32 %v2781, 4294901760
        %2783 = vmatpush.msra.mxu0 %v2782
        %v2784 = vand.u32 %v2672, 4294901760
        %v2785 = vsub.f32 %v2672, %v2784
        %v2786 = vand.u32 %v2785, 4294901760
        %v2787 = vsub.f32 %v2785, %v2786
        %v2788 = vand.u32 %v2787, 4294901760
        %2789 = vmatpush.msra.mxu0 %v2788
        %v2790 = vand.u32 %v2671, 4294901760
        %v2791 = vsub.f32 %v2671, %v2790
        %v2792 = vand.u32 %v2791, 4294901760
        %v2793 = vsub.f32 %v2791, %v2792
        %v2794 = vand.u32 %v2793, 4294901760
        %2795 = vmatpush.msra.mxu0 %v2794
        %v2796 = vand.u32 %v2670, 4294901760
        %v2797 = vsub.f32 %v2670, %v2796
        %v2798 = vand.u32 %v2797, 4294901760
        %v2799 = vsub.f32 %v2797, %v2798
        %v2800 = vand.u32 %v2799, 4294901760
        %2801 = vmatpush.msra.mxu0 %v2800
        %v2802 = vand.u32 %v2669, 4294901760
        %v2803 = vsub.f32 %v2669, %v2802
        %v2804 = vand.u32 %v2803, 4294901760
        %v2805 = vsub.f32 %v2803, %v2804
        %v2806 = vand.u32 %v2805, 4294901760
        %2807 = vmatpush.msra.mxu0 %v2806
        %v2808 = vand.u32 %v2668, 4294901760
        %v2809 = vsub.f32 %v2668, %v2808
        %v2810 = vand.u32 %v2809, 4294901760
        %v2811 = vsub.f32 %v2809, %v2810
        %v2812 = vand.u32 %v2811, 4294901760
        %2813 = vmatpush.msra.mxu0 %v2812
        %v2814 = vand.u32 %v2667, 4294901760
        %v2815 = vsub.f32 %v2667, %v2814
        %v2816 = vand.u32 %v2815, 4294901760
        %v2817 = vsub.f32 %v2815, %v2816
        %v2818 = vand.u32 %v2817, 4294901760
        %2819 = vmatpush.msra.mxu0 %v2818
        %v2820 = vand.u32 %v2664, 4294901760
        %2821 = vmatmul.f32.gmra.mxu0 %v2820
        %v2822 = vpop.f32.mrf.mxu0
        %v2823 = vadd.f32 %v2722, %v2822
        %2824 = vdwg.mxu0
        %v2825 = vand.u32 %v2682, 4294901760
        %v2826 = vsub.f32 %v2682, %v2825
        %2827 = vmatpush.msra.mxu0 %v2826
        %v2828 = vand.u32 %v2681, 4294901760
        %v2829 = vsub.f32 %v2681, %v2828
        %2830 = vmatpush.msra.mxu0 %v2829
        %v2831 = vand.u32 %v2680, 4294901760
        %v2832 = vsub.f32 %v2680, %v2831
        %2833 = vmatpush.msra.mxu0 %v2832
        %v2834 = vand.u32 %v2679, 4294901760
        %v2835 = vsub.f32 %v2679, %v2834
        %2836 = vmatpush.msra.mxu0 %v2835
        %v2837 = vand.u32 %v2678, 4294901760
        %v2838 = vsub.f32 %v2678, %v2837
        %2839 = vmatpush.msra.mxu0 %v2838
        %v2840 = vand.u32 %v2677, 4294901760
        %v2841 = vsub.f32 %v2677, %v2840
        %2842 = vmatpush.msra.mxu0 %v2841
        %v2843 = vand.u32 %v2676, 4294901760
        %v2844 = vsub.f32 %v2676, %v2843
        %2845 = vmatpush.msra.mxu0 %v2844
        %v2846 = vand.u32 %v2675, 4294901760
        %v2847 = vsub.f32 %v2675, %v2846
        %2848 = vmatpush.msra.mxu0 %v2847
        %v2849 = vand.u32 %v2674, 4294901760
        %v2850 = vsub.f32 %v2674, %v2849
        %2851 = vmatpush.msra.mxu0 %v2850
        %v2852 = vand.u32 %v2673, 4294901760
        %v2853 = vsub.f32 %v2673, %v2852
        %2854 = vmatpush.msra.mxu0 %v2853
        %v2855 = vand.u32 %v2672, 4294901760
        %v2856 = vsub.f32 %v2672, %v2855
        %2857 = vmatpush.msra.mxu0 %v2856
        %v2858 = vand.u32 %v2671, 4294901760
        %v2859 = vsub.f32 %v2671, %v2858
        %2860 = vmatpush.msra.mxu0 %v2859
        %v2861 = vand.u32 %v2670, 4294901760
        %v2862 = vsub.f32 %v2670, %v2861
        %2863 = vmatpush.msra.mxu0 %v2862
        %v2864 = vand.u32 %v2669, 4294901760
        %v2865 = vsub.f32 %v2669, %v2864
        %2866 = vmatpush.msra.mxu0 %v2865
        %v2867 = vand.u32 %v2668, 4294901760
        %v2868 = vsub.f32 %v2668, %v2867
        %2869 = vmatpush.msra.mxu0 %v2868
        %v2870 = vand.u32 %v2667, 4294901760
        %v2871 = vsub.f32 %v2667, %v2870
        %2872 = vmatpush.msra.mxu0 %v2871
        %v2873 = vand.u32 %v2664, 4294901760
        %v2874 = vsub.f32 %v2664, %v2873
        %2875 = vmatmul.f32.gmra.mxu0 %v2874
        %v2876 = vpop.f32.mrf.mxu0
        %v2877 = vadd.f32 %v2823, %v2876
        %2878 = vdwg.mxu0
        %v2879 = vand.u32 %v2682, 4294901760
        %2880 = vmatpush.msra.mxu0 %v2879
        %v2881 = vand.u32 %v2681, 4294901760
        %2882 = vmatpush.msra.mxu0 %v2881
        %v2883 = vand.u32 %v2680, 4294901760
        %2884 = vmatpush.msra.mxu0 %v2883
        %v2885 = vand.u32 %v2679, 4294901760
        %2886 = vmatpush.msra.mxu0 %v2885
        %v2887 = vand.u32 %v2678, 4294901760
        %2888 = vmatpush.msra.mxu0 %v2887
        %v2889 = vand.u32 %v2677, 4294901760
        %2890 = vmatpush.msra.mxu0 %v2889
        %v2891 = vand.u32 %v2676, 4294901760
        %2892 = vmatpush.msra.mxu0 %v2891
        %v2893 = vand.u32 %v2675, 4294901760
        %2894 = vmatpush.msra.mxu0 %v2893
        %v2895 = vand.u32 %v2674, 4294901760
        %2896 = vmatpush.msra.mxu0 %v2895
        %v2897 = vand.u32 %v2673, 4294901760
        %2898 = vmatpush.msra.mxu0 %v2897
        %v2899 = vand.u32 %v2672, 4294901760
        %2900 = vmatpush.msra.mxu0 %v2899
        %v2901 = vand.u32 %v2671, 4294901760
        %2902 = vmatpush.msra.mxu0 %v2901
        %v2903 = vand.u32 %v2670, 4294901760
        %2904 = vmatpush.msra.mxu0 %v2903
        %v2905 = vand.u32 %v2669, 4294901760
        %2906 = vmatpush.msra.mxu0 %v2905
        %v2907 = vand.u32 %v2668, 4294901760
        %2908 = vmatpush.msra.mxu0 %v2907
        %v2909 = vand.u32 %v2667, 4294901760
        %2910 = vmatpush.msra.mxu0 %v2909
        %v2911 = vand.u32 %v2664, 4294901760
        %v2912 = vsub.f32 %v2664, %v2911
        %v2913 = vand.u32 %v2912, 4294901760
        %2914 = vmatmul.f32.gmra.mxu0 %v2913
        %v2915 = vpop.f32.mrf.mxu0
        %v2916 = vadd.f32 %v2877, %v2915
        %2917 = vdwg.mxu0
        %v2918 = vand.u32 %v2682, 4294901760
        %v2919 = vsub.f32 %v2682, %v2918
        %v2920 = vand.u32 %v2919, 4294901760
        %2921 = vmatpush.msra.mxu0 %v2920
        %v2922 = vand.u32 %v2681, 4294901760
        %v2923 = vsub.f32 %v2681, %v2922
        %v2924 = vand.u32 %v2923, 4294901760
        %2925 = vmatpush.msra.mxu0 %v2924
        %v2926 = vand.u32 %v2680, 4294901760
        %v2927 = vsub.f32 %v2680, %v2926
        %v2928 = vand.u32 %v2927, 4294901760
        %2929 = vmatpush.msra.mxu0 %v2928
        %v2930 = vand.u32 %v2679, 4294901760
        %v2931 = vsub.f32 %v2679, %v2930
        %v2932 = vand.u32 %v2931, 4294901760
        %2933 = vmatpush.msra.mxu0 %v2932
        %v2934 = vand.u32 %v2678, 4294901760
        %v2935 = vsub.f32 %v2678, %v2934
        %v2936 = vand.u32 %v2935, 4294901760
        %2937 = vmatpush.msra.mxu0 %v2936
        %v2938 = vand.u32 %v2677, 4294901760
        %v2939 = vsub.f32 %v2677, %v2938
        %v2940 = vand.u32 %v2939, 4294901760
        %2941 = vmatpush.msra.mxu0 %v2940
        %v2942 = vand.u32 %v2676, 4294901760
        %v2943 = vsub.f32 %v2676, %v2942
        %v2944 = vand.u32 %v2943, 4294901760
        %2945 = vmatpush.msra.mxu0 %v2944
        %v2946 = vand.u32 %v2675, 4294901760
        %v2947 = vsub.f32 %v2675, %v2946
        %v2948 = vand.u32 %v2947, 4294901760
        %2949 = vmatpush.msra.mxu0 %v2948
        %v2950 = vand.u32 %v2674, 4294901760
        %v2951 = vsub.f32 %v2674, %v2950
        %v2952 = vand.u32 %v2951, 4294901760
        %2953 = vmatpush.msra.mxu0 %v2952
        %v2954 = vand.u32 %v2673, 4294901760
        %v2955 = vsub.f32 %v2673, %v2954
        %v2956 = vand.u32 %v2955, 4294901760
        %2957 = vmatpush.msra.mxu0 %v2956
        %v2958 = vand.u32 %v2672, 4294901760
        %v2959 = vsub.f32 %v2672, %v2958
        %v2960 = vand.u32 %v2959, 4294901760
        %2961 = vmatpush.msra.mxu0 %v2960
        %v2962 = vand.u32 %v2671, 4294901760
        %v2963 = vsub.f32 %v2671, %v2962
        %v2964 = vand.u32 %v2963, 4294901760
        %2965 = vmatpush.msra.mxu0 %v2964
        %v2966 = vand.u32 %v2670, 4294901760
        %v2967 = vsub.f32 %v2670, %v2966
        %v2968 = vand.u32 %v2967, 4294901760
        %2969 = vmatpush.msra.mxu0 %v2968
        %v2970 = vand.u32 %v2669, 4294901760
        %v2971 = vsub.f32 %v2669, %v2970
        %v2972 = vand.u32 %v2971, 4294901760
        %2973 = vmatpush.msra.mxu0 %v2972
        %v2974 = vand.u32 %v2668, 4294901760
        %v2975 = vsub.f32 %v2668, %v2974
        %v2976 = vand.u32 %v2975, 4294901760
        %2977 = vmatpush.msra.mxu0 %v2976
        %v2978 = vand.u32 %v2667, 4294901760
        %v2979 = vsub.f32 %v2667, %v2978
        %v2980 = vand.u32 %v2979, 4294901760
        %2981 = vmatpush.msra.mxu0 %v2980
        %v2982 = vand.u32 %v2664, 4294901760
        %2983 = vmatmul.f32.gmra.mxu0 %v2982
        %v2984 = vpop.f32.mrf.mxu0
        %v2985 = vadd.f32 %v2916, %v2984
        %2986 = vdwg.mxu0
        %v2987 = vand.u32 %v2682, 4294901760
        %2988 = vmatpush.msra.mxu0 %v2987
        %v2989 = vand.u32 %v2681, 4294901760
        %2990 = vmatpush.msra.mxu0 %v2989
        %v2991 = vand.u32 %v2680, 4294901760
        %2992 = vmatpush.msra.mxu0 %v2991
        %v2993 = vand.u32 %v2679, 4294901760
        %2994 = vmatpush.msra.mxu0 %v2993
        %v2995 = vand.u32 %v2678, 4294901760
        %2996 = vmatpush.msra.mxu0 %v2995
        %v2997 = vand.u32 %v2677, 4294901760
        %2998 = vmatpush.msra.mxu0 %v2997
        %v2999 = vand.u32 %v2676, 4294901760
        %3000 = vmatpush.msra.mxu0 %v2999
        %v3001 = vand.u32 %v2675, 4294901760
        %3002 = vmatpush.msra.mxu0 %v3001
        %v3003 = vand.u32 %v2674, 4294901760
        %3004 = vmatpush.msra.mxu0 %v3003
        %v3005 = vand.u32 %v2673, 4294901760
        %3006 = vmatpush.msra.mxu0 %v3005
        %v3007 = vand.u32 %v2672, 4294901760
        %3008 = vmatpush.msra.mxu0 %v3007
        %v3009 = vand.u32 %v2671, 4294901760
        %3010 = vmatpush.msra.mxu0 %v3009
        %v3011 = vand.u32 %v2670, 4294901760
        %3012 = vmatpush.msra.mxu0 %v3011
        %v3013 = vand.u32 %v2669, 4294901760
        %3014 = vmatpush.msra.mxu0 %v3013
        %v3015 = vand.u32 %v2668, 4294901760
        %3016 = vmatpush.msra.mxu0 %v3015
        %v3017 = vand.u32 %v2667, 4294901760
        %3018 = vmatpush.msra.mxu0 %v3017
        %v3019 = vand.u32 %v2664, 4294901760
        %3020 = vmatmul.f32.gmra.mxu0 %v3019
        %v3021 = vpop.f32.mrf.mxu0
        %v3022 = vadd.f32 %v2985, %v3021
        %3023 = vdwg.mxu0
        %s3024 = scalar_lea.vmem %s136, 1024 [#allocation2]
        %v3025 = vld [vmem:[%s3024] sm:$0xff]
        %v3026 = vld [vmem:[%s3024 + $0x8] sm:$0xff]
        %v3027 = vld [vmem:[%s3024 + $0x10] sm:$0xff]
        %v3028 = vld [vmem:[%s3024 + $0x18] sm:$0xff]
        %v3029 = vld [vmem:[%s3024 + $0x20] sm:$0xff]
        %v3030 = vld [vmem:[%s3024 + $0x28] sm:$0xff]
        %v3031 = vld [vmem:[%s3024 + $0x30] sm:$0xff]
        %v3032 = vld [vmem:[%s3024 + $0x38] sm:$0xff]
        %v3033 = vld [vmem:[%s3024 + $0x40] sm:$0xff]
        %v3034 = vld [vmem:[%s3024 + $0x48] sm:$0xff]
        %v3035 = vld [vmem:[%s3024 + $0x50] sm:$0xff]
        %v3036 = vld [vmem:[%s3024 + $0x58] sm:$0xff]
        %v3037 = vld [vmem:[%s3024 + $0x60] sm:$0xff]
        %v3038 = vld [vmem:[%s3024 + $0x68] sm:$0xff]
        %v3039 = vld [vmem:[%s3024 + $0x70] sm:$0xff]
        %v3040 = vld [vmem:[%s3024 + $0x78] sm:$0xff]
        %v3041 = vand.u32 %v3040, 4294901760
        %3042 = vmatpush.msra.mxu0 %v3041
        %v3043 = vand.u32 %v3039, 4294901760
        %3044 = vmatpush.msra.mxu0 %v3043
        %v3045 = vand.u32 %v3038, 4294901760
        %3046 = vmatpush.msra.mxu0 %v3045
        %v3047 = vand.u32 %v3037, 4294901760
        %3048 = vmatpush.msra.mxu0 %v3047
        %v3049 = vand.u32 %v3036, 4294901760
        %3050 = vmatpush.msra.mxu0 %v3049
        %v3051 = vand.u32 %v3035, 4294901760
        %3052 = vmatpush.msra.mxu0 %v3051
        %v3053 = vand.u32 %v3034, 4294901760
        %3054 = vmatpush.msra.mxu0 %v3053
        %v3055 = vand.u32 %v3033, 4294901760
        %3056 = vmatpush.msra.mxu0 %v3055
        %v3057 = vand.u32 %v3032, 4294901760
        %3058 = vmatpush.msra.mxu0 %v3057
        %v3059 = vand.u32 %v3031, 4294901760
        %3060 = vmatpush.msra.mxu0 %v3059
        %v3061 = vand.u32 %v3030, 4294901760
        %3062 = vmatpush.msra.mxu0 %v3061
        %v3063 = vand.u32 %v3029, 4294901760
        %3064 = vmatpush.msra.mxu0 %v3063
        %v3065 = vand.u32 %v3028, 4294901760
        %3066 = vmatpush.msra.mxu0 %v3065
        %v3067 = vand.u32 %v3027, 4294901760
        %3068 = vmatpush.msra.mxu0 %v3067
        %v3069 = vand.u32 %v3026, 4294901760
        %3070 = vmatpush.msra.mxu0 %v3069
        %v3071 = vand.u32 %v3025, 4294901760
        %3072 = vmatpush.msra.mxu0 %v3071
        %v3073 = vand.u32 %v3022, 4294901760
        %v3074 = vsub.f32 %v3022, %v3073
        %v3075 = vand.u32 %v3074, 4294901760
        %v3076 = vsub.f32 %v3074, %v3075
        %v3077 = vand.u32 %v3076, 4294901760
        %3078 = vmatmul.f32.gmra.mxu0 %v3077
        %v3079 = vpop.f32.mrf.mxu0
        %v3080 = vadd.f32 0.0, %v3079
        %3081 = vdwg.mxu0
        %v3082 = vand.u32 %v3040, 4294901760
        %v3083 = vsub.f32 %v3040, %v3082
        %v3084 = vand.u32 %v3083, 4294901760
        %v3085 = vsub.f32 %v3083, %v3084
        %v3086 = vand.u32 %v3085, 4294901760
        %3087 = vmatpush.msra.mxu0 %v3086
        %v3088 = vand.u32 %v3039, 4294901760
        %v3089 = vsub.f32 %v3039, %v3088
        %v3090 = vand.u32 %v3089, 4294901760
        %v3091 = vsub.f32 %v3089, %v3090
        %v3092 = vand.u32 %v3091, 4294901760
        %3093 = vmatpush.msra.mxu0 %v3092
        %v3094 = vand.u32 %v3038, 4294901760
        %v3095 = vsub.f32 %v3038, %v3094
        %v3096 = vand.u32 %v3095, 4294901760
        %v3097 = vsub.f32 %v3095, %v3096
        %v3098 = vand.u32 %v3097, 4294901760
        %3099 = vmatpush.msra.mxu0 %v3098
        %v3100 = vand.u32 %v3037, 4294901760
        %v3101 = vsub.f32 %v3037, %v3100
        %v3102 = vand.u32 %v3101, 4294901760
        %v3103 = vsub.f32 %v3101, %v3102
        %v3104 = vand.u32 %v3103, 4294901760
        %3105 = vmatpush.msra.mxu0 %v3104
        %v3106 = vand.u32 %v3036, 4294901760
        %v3107 = vsub.f32 %v3036, %v3106
        %v3108 = vand.u32 %v3107, 4294901760
        %v3109 = vsub.f32 %v3107, %v3108
        %v3110 = vand.u32 %v3109, 4294901760
        %3111 = vmatpush.msra.mxu0 %v3110
        %v3112 = vand.u32 %v3035, 4294901760
        %v3113 = vsub.f32 %v3035, %v3112
        %v3114 = vand.u32 %v3113, 4294901760
        %v3115 = vsub.f32 %v3113, %v3114
        %v3116 = vand.u32 %v3115, 4294901760
        %3117 = vmatpush.msra.mxu0 %v3116
        %v3118 = vand.u32 %v3034, 4294901760
        %v3119 = vsub.f32 %v3034, %v3118
        %v3120 = vand.u32 %v3119, 4294901760
        %v3121 = vsub.f32 %v3119, %v3120
        %v3122 = vand.u32 %v3121, 4294901760
        %3123 = vmatpush.msra.mxu0 %v3122
        %v3124 = vand.u32 %v3033, 4294901760
        %v3125 = vsub.f32 %v3033, %v3124
        %v3126 = vand.u32 %v3125, 4294901760
        %v3127 = vsub.f32 %v3125, %v3126
        %v3128 = vand.u32 %v3127, 4294901760
        %3129 = vmatpush.msra.mxu0 %v3128
        %v3130 = vand.u32 %v3032, 4294901760
        %v3131 = vsub.f32 %v3032, %v3130
        %v3132 = vand.u32 %v3131, 4294901760
        %v3133 = vsub.f32 %v3131, %v3132
        %v3134 = vand.u32 %v3133, 4294901760
        %3135 = vmatpush.msra.mxu0 %v3134
        %v3136 = vand.u32 %v3031, 4294901760
        %v3137 = vsub.f32 %v3031, %v3136
        %v3138 = vand.u32 %v3137, 4294901760
        %v3139 = vsub.f32 %v3137, %v3138
        %v3140 = vand.u32 %v3139, 4294901760
        %3141 = vmatpush.msra.mxu0 %v3140
        %v3142 = vand.u32 %v3030, 4294901760
        %v3143 = vsub.f32 %v3030, %v3142
        %v3144 = vand.u32 %v3143, 4294901760
        %v3145 = vsub.f32 %v3143, %v3144
        %v3146 = vand.u32 %v3145, 4294901760
        %3147 = vmatpush.msra.mxu0 %v3146
        %v3148 = vand.u32 %v3029, 4294901760
        %v3149 = vsub.f32 %v3029, %v3148
        %v3150 = vand.u32 %v3149, 4294901760
        %v3151 = vsub.f32 %v3149, %v3150
        %v3152 = vand.u32 %v3151, 4294901760
        %3153 = vmatpush.msra.mxu0 %v3152
        %v3154 = vand.u32 %v3028, 4294901760
        %v3155 = vsub.f32 %v3028, %v3154
        %v3156 = vand.u32 %v3155, 4294901760
        %v3157 = vsub.f32 %v3155, %v3156
        %v3158 = vand.u32 %v3157, 4294901760
        %3159 = vmatpush.msra.mxu0 %v3158
        %v3160 = vand.u32 %v3027, 4294901760
        %v3161 = vsub.f32 %v3027, %v3160
        %v3162 = vand.u32 %v3161, 4294901760
        %v3163 = vsub.f32 %v3161, %v3162
        %v3164 = vand.u32 %v3163, 4294901760
        %3165 = vmatpush.msra.mxu0 %v3164
        %v3166 = vand.u32 %v3026, 4294901760
        %v3167 = vsub.f32 %v3026, %v3166
        %v3168 = vand.u32 %v3167, 4294901760
        %v3169 = vsub.f32 %v3167, %v3168
        %v3170 = vand.u32 %v3169, 4294901760
        %3171 = vmatpush.msra.mxu0 %v3170
        %v3172 = vand.u32 %v3025, 4294901760
        %v3173 = vsub.f32 %v3025, %v3172
        %v3174 = vand.u32 %v3173, 4294901760
        %v3175 = vsub.f32 %v3173, %v3174
        %v3176 = vand.u32 %v3175, 4294901760
        %3177 = vmatpush.msra.mxu0 %v3176
        %v3178 = vand.u32 %v3022, 4294901760
        %3179 = vmatmul.f32.gmra.mxu0 %v3178
        %v3180 = vpop.f32.mrf.mxu0
        %v3181 = vadd.f32 %v3080, %v3180
        %3182 = vdwg.mxu0
        %v3183 = vand.u32 %v3040, 4294901760
        %v3184 = vsub.f32 %v3040, %v3183
        %3185 = vmatpush.msra.mxu0 %v3184
        %v3186 = vand.u32 %v3039, 4294901760
        %v3187 = vsub.f32 %v3039, %v3186
        %3188 = vmatpush.msra.mxu0 %v3187
        %v3189 = vand.u32 %v3038, 4294901760
        %v3190 = vsub.f32 %v3038, %v3189
        %3191 = vmatpush.msra.mxu0 %v3190
        %v3192 = vand.u32 %v3037, 4294901760
        %v3193 = vsub.f32 %v3037, %v3192
        %3194 = vmatpush.msra.mxu0 %v3193
        %v3195 = vand.u32 %v3036, 4294901760
        %v3196 = vsub.f32 %v3036, %v3195
        %3197 = vmatpush.msra.mxu0 %v3196
        %v3198 = vand.u32 %v3035, 4294901760
        %v3199 = vsub.f32 %v3035, %v3198
        %3200 = vmatpush.msra.mxu0 %v3199
        %v3201 = vand.u32 %v3034, 4294901760
        %v3202 = vsub.f32 %v3034, %v3201
        %3203 = vmatpush.msra.mxu0 %v3202
        %v3204 = vand.u32 %v3033, 4294901760
        %v3205 = vsub.f32 %v3033, %v3204
        %3206 = vmatpush.msra.mxu0 %v3205
        %v3207 = vand.u32 %v3032, 4294901760
        %v3208 = vsub.f32 %v3032, %v3207
        %3209 = vmatpush.msra.mxu0 %v3208
        %v3210 = vand.u32 %v3031, 4294901760
        %v3211 = vsub.f32 %v3031, %v3210
        %3212 = vmatpush.msra.mxu0 %v3211
        %v3213 = vand.u32 %v3030, 4294901760
        %v3214 = vsub.f32 %v3030, %v3213
        %3215 = vmatpush.msra.mxu0 %v3214
        %v3216 = vand.u32 %v3029, 4294901760
        %v3217 = vsub.f32 %v3029, %v3216
        %3218 = vmatpush.msra.mxu0 %v3217
        %v3219 = vand.u32 %v3028, 4294901760
        %v3220 = vsub.f32 %v3028, %v3219
        %3221 = vmatpush.msra.mxu0 %v3220
        %v3222 = vand.u32 %v3027, 4294901760
        %v3223 = vsub.f32 %v3027, %v3222
        %3224 = vmatpush.msra.mxu0 %v3223
        %v3225 = vand.u32 %v3026, 4294901760
        %v3226 = vsub.f32 %v3026, %v3225
        %3227 = vmatpush.msra.mxu0 %v3226
        %v3228 = vand.u32 %v3025, 4294901760
        %v3229 = vsub.f32 %v3025, %v3228
        %3230 = vmatpush.msra.mxu0 %v3229
        %v3231 = vand.u32 %v3022, 4294901760
        %v3232 = vsub.f32 %v3022, %v3231
        %3233 = vmatmul.f32.gmra.mxu0 %v3232
        %v3234 = vpop.f32.mrf.mxu0
        %v3235 = vadd.f32 %v3181, %v3234
        %3236 = vdwg.mxu0
        %v3237 = vand.u32 %v3040, 4294901760
        %3238 = vmatpush.msra.mxu0 %v3237
        %v3239 = vand.u32 %v3039, 4294901760
        %3240 = vmatpush.msra.mxu0 %v3239
        %v3241 = vand.u32 %v3038, 4294901760
        %3242 = vmatpush.msra.mxu0 %v3241
        %v3243 = vand.u32 %v3037, 4294901760
        %3244 = vmatpush.msra.mxu0 %v3243
        %v3245 = vand.u32 %v3036, 4294901760
        %3246 = vmatpush.msra.mxu0 %v3245
        %v3247 = vand.u32 %v3035, 4294901760
        %3248 = vmatpush.msra.mxu0 %v3247
        %v3249 = vand.u32 %v3034, 4294901760
        %3250 = vmatpush.msra.mxu0 %v3249
        %v3251 = vand.u32 %v3033, 4294901760
        %3252 = vmatpush.msra.mxu0 %v3251
        %v3253 = vand.u32 %v3032, 4294901760
        %3254 = vmatpush.msra.mxu0 %v3253
        %v3255 = vand.u32 %v3031, 4294901760
        %3256 = vmatpush.msra.mxu0 %v3255
        %v3257 = vand.u32 %v3030, 4294901760
        %3258 = vmatpush.msra.mxu0 %v3257
        %v3259 = vand.u32 %v3029, 4294901760
        %3260 = vmatpush.msra.mxu0 %v3259
        %v3261 = vand.u32 %v3028, 4294901760
        %3262 = vmatpush.msra.mxu0 %v3261
        %v3263 = vand.u32 %v3027, 4294901760
        %3264 = vmatpush.msra.mxu0 %v3263
        %v3265 = vand.u32 %v3026, 4294901760
        %3266 = vmatpush.msra.mxu0 %v3265
        %v3267 = vand.u32 %v3025, 4294901760
        %3268 = vmatpush.msra.mxu0 %v3267
        %v3269 = vand.u32 %v3022, 4294901760
        %v3270 = vsub.f32 %v3022, %v3269
        %v3271 = vand.u32 %v3270, 4294901760
        %3272 = vmatmul.f32.gmra.mxu0 %v3271
        %v3273 = vpop.f32.mrf.mxu0
        %v3274 = vadd.f32 %v3235, %v3273
        %3275 = vdwg.mxu0
        %v3276 = vand.u32 %v3040, 4294901760
        %v3277 = vsub.f32 %v3040, %v3276
        %v3278 = vand.u32 %v3277, 4294901760
        %3279 = vmatpush.msra.mxu0 %v3278
        %v3280 = vand.u32 %v3039, 4294901760
        %v3281 = vsub.f32 %v3039, %v3280
        %v3282 = vand.u32 %v3281, 4294901760
        %3283 = vmatpush.msra.mxu0 %v3282
        %v3284 = vand.u32 %v3038, 4294901760
        %v3285 = vsub.f32 %v3038, %v3284
        %v3286 = vand.u32 %v3285, 4294901760
        %3287 = vmatpush.msra.mxu0 %v3286
        %v3288 = vand.u32 %v3037, 4294901760
        %v3289 = vsub.f32 %v3037, %v3288
        %v3290 = vand.u32 %v3289, 4294901760
        %3291 = vmatpush.msra.mxu0 %v3290
        %v3292 = vand.u32 %v3036, 4294901760
        %v3293 = vsub.f32 %v3036, %v3292
        %v3294 = vand.u32 %v3293, 4294901760
        %3295 = vmatpush.msra.mxu0 %v3294
        %v3296 = vand.u32 %v3035, 4294901760
        %v3297 = vsub.f32 %v3035, %v3296
        %v3298 = vand.u32 %v3297, 4294901760
        %3299 = vmatpush.msra.mxu0 %v3298
        %v3300 = vand.u32 %v3034, 4294901760
        %v3301 = vsub.f32 %v3034, %v3300
        %v3302 = vand.u32 %v3301, 4294901760
        %3303 = vmatpush.msra.mxu0 %v3302
        %v3304 = vand.u32 %v3033, 4294901760
        %v3305 = vsub.f32 %v3033, %v3304
        %v3306 = vand.u32 %v3305, 4294901760
        %3307 = vmatpush.msra.mxu0 %v3306
        %v3308 = vand.u32 %v3032, 4294901760
        %v3309 = vsub.f32 %v3032, %v3308
        %v3310 = vand.u32 %v3309, 4294901760
        %3311 = vmatpush.msra.mxu0 %v3310
        %v3312 = vand.u32 %v3031, 4294901760
        %v3313 = vsub.f32 %v3031, %v3312
        %v3314 = vand.u32 %v3313, 4294901760
        %3315 = vmatpush.msra.mxu0 %v3314
        %v3316 = vand.u32 %v3030, 4294901760
        %v3317 = vsub.f32 %v3030, %v3316
        %v3318 = vand.u32 %v3317, 4294901760
        %3319 = vmatpush.msra.mxu0 %v3318
        %v3320 = vand.u32 %v3029, 4294901760
        %v3321 = vsub.f32 %v3029, %v3320
        %v3322 = vand.u32 %v3321, 4294901760
        %3323 = vmatpush.msra.mxu0 %v3322
        %v3324 = vand.u32 %v3028, 4294901760
        %v3325 = vsub.f32 %v3028, %v3324
        %v3326 = vand.u32 %v3325, 4294901760
        %3327 = vmatpush.msra.mxu0 %v3326
        %v3328 = vand.u32 %v3027, 4294901760
        %v3329 = vsub.f32 %v3027, %v3328
        %v3330 = vand.u32 %v3329, 4294901760
        %3331 = vmatpush.msra.mxu0 %v3330
        %v3332 = vand.u32 %v3026, 4294901760
        %v3333 = vsub.f32 %v3026, %v3332
        %v3334 = vand.u32 %v3333, 4294901760
        %3335 = vmatpush.msra.mxu0 %v3334
        %v3336 = vand.u32 %v3025, 4294901760
        %v3337 = vsub.f32 %v3025, %v3336
        %v3338 = vand.u32 %v3337, 4294901760
        %3339 = vmatpush.msra.mxu0 %v3338
        %v3340 = vand.u32 %v3022, 4294901760
        %3341 = vmatmul.f32.gmra.mxu0 %v3340
        %v3342 = vpop.f32.mrf.mxu0
        %v3343 = vadd.f32 %v3274, %v3342
        %3344 = vdwg.mxu0
        %v3345 = vand.u32 %v3040, 4294901760
        %3346 = vmatpush.msra.mxu0 %v3345
        %v3347 = vand.u32 %v3039, 4294901760
        %3348 = vmatpush.msra.mxu0 %v3347
        %v3349 = vand.u32 %v3038, 4294901760
        %3350 = vmatpush.msra.mxu0 %v3349
        %v3351 = vand.u32 %v3037, 4294901760
        %3352 = vmatpush.msra.mxu0 %v3351
        %v3353 = vand.u32 %v3036, 4294901760
        %3354 = vmatpush.msra.mxu0 %v3353
        %v3355 = vand.u32 %v3035, 4294901760
        %3356 = vmatpush.msra.mxu0 %v3355
        %v3357 = vand.u32 %v3034, 4294901760
        %3358 = vmatpush.msra.mxu0 %v3357
        %v3359 = vand.u32 %v3033, 4294901760
        %3360 = vmatpush.msra.mxu0 %v3359
        %v3361 = vand.u32 %v3032, 4294901760
        %3362 = vmatpush.msra.mxu0 %v3361
        %v3363 = vand.u32 %v3031, 4294901760
        %3364 = vmatpush.msra.mxu0 %v3363
        %v3365 = vand.u32 %v3030, 4294901760
        %3366 = vmatpush.msra.mxu0 %v3365
        %v3367 = vand.u32 %v3029, 4294901760
        %3368 = vmatpush.msra.mxu0 %v3367
        %v3369 = vand.u32 %v3028, 4294901760
        %3370 = vmatpush.msra.mxu0 %v3369
        %v3371 = vand.u32 %v3027, 4294901760
        %3372 = vmatpush.msra.mxu0 %v3371
        %v3373 = vand.u32 %v3026, 4294901760
        %3374 = vmatpush.msra.mxu0 %v3373
        %v3375 = vand.u32 %v3025, 4294901760
        %3376 = vmatpush.msra.mxu0 %v3375
        %v3377 = vand.u32 %v3022, 4294901760
        %3378 = vmatmul.f32.gmra.mxu0 %v3377
        %v3379 = vpop.f32.mrf.mxu0
        %v3380 = vadd.f32 %v3343, %v3379
        %3381 = vdwg.mxu0
        %s3382 = scalar_lea.vmem %s136, 1152 [#allocation2]
        %v3383 = vld [vmem:[%s3382] sm:$0xff]
        %v3384 = vld [vmem:[%s3382 + $0x8] sm:$0xff]
        %v3385 = vld [vmem:[%s3382 + $0x10] sm:$0xff]
        %v3386 = vld [vmem:[%s3382 + $0x18] sm:$0xff]
        %v3387 = vld [vmem:[%s3382 + $0x20] sm:$0xff]
        %v3388 = vld [vmem:[%s3382 + $0x28] sm:$0xff]
        %v3389 = vld [vmem:[%s3382 + $0x30] sm:$0xff]
        %v3390 = vld [vmem:[%s3382 + $0x38] sm:$0xff]
        %v3391 = vld [vmem:[%s3382 + $0x40] sm:$0xff]
        %v3392 = vld [vmem:[%s3382 + $0x48] sm:$0xff]
        %v3393 = vld [vmem:[%s3382 + $0x50] sm:$0xff]
        %v3394 = vld [vmem:[%s3382 + $0x58] sm:$0xff]
        %v3395 = vld [vmem:[%s3382 + $0x60] sm:$0xff]
        %v3396 = vld [vmem:[%s3382 + $0x68] sm:$0xff]
        %v3397 = vld [vmem:[%s3382 + $0x70] sm:$0xff]
        %v3398 = vld [vmem:[%s3382 + $0x78] sm:$0xff]
        %v3399 = vand.u32 %v3398, 4294901760
        %3400 = vmatpush.msra.mxu0 %v3399
        %v3401 = vand.u32 %v3397, 4294901760
        %3402 = vmatpush.msra.mxu0 %v3401
        %v3403 = vand.u32 %v3396, 4294901760
        %3404 = vmatpush.msra.mxu0 %v3403
        %v3405 = vand.u32 %v3395, 4294901760
        %3406 = vmatpush.msra.mxu0 %v3405
        %v3407 = vand.u32 %v3394, 4294901760
        %3408 = vmatpush.msra.mxu0 %v3407
        %v3409 = vand.u32 %v3393, 4294901760
        %3410 = vmatpush.msra.mxu0 %v3409
        %v3411 = vand.u32 %v3392, 4294901760
        %3412 = vmatpush.msra.mxu0 %v3411
        %v3413 = vand.u32 %v3391, 4294901760
        %3414 = vmatpush.msra.mxu0 %v3413
        %v3415 = vand.u32 %v3390, 4294901760
        %3416 = vmatpush.msra.mxu0 %v3415
        %v3417 = vand.u32 %v3389, 4294901760
        %3418 = vmatpush.msra.mxu0 %v3417
        %v3419 = vand.u32 %v3388, 4294901760
        %3420 = vmatpush.msra.mxu0 %v3419
        %v3421 = vand.u32 %v3387, 4294901760
        %3422 = vmatpush.msra.mxu0 %v3421
        %v3423 = vand.u32 %v3386, 4294901760
        %3424 = vmatpush.msra.mxu0 %v3423
        %v3425 = vand.u32 %v3385, 4294901760
        %3426 = vmatpush.msra.mxu0 %v3425
        %v3427 = vand.u32 %v3384, 4294901760
        %3428 = vmatpush.msra.mxu0 %v3427
        %v3429 = vand.u32 %v3383, 4294901760
        %3430 = vmatpush.msra.mxu0 %v3429
        %v3431 = vand.u32 %v3380, 4294901760
        %v3432 = vsub.f32 %v3380, %v3431
        %v3433 = vand.u32 %v3432, 4294901760
        %v3434 = vsub.f32 %v3432, %v3433
        %v3435 = vand.u32 %v3434, 4294901760
        %3436 = vmatmul.f32.gmra.mxu0 %v3435
        %v3437 = vpop.f32.mrf.mxu0
        %v3438 = vadd.f32 0.0, %v3437
        %3439 = vdwg.mxu0
        %v3440 = vand.u32 %v3398, 4294901760
        %v3441 = vsub.f32 %v3398, %v3440
        %v3442 = vand.u32 %v3441, 4294901760
        %v3443 = vsub.f32 %v3441, %v3442
        %v3444 = vand.u32 %v3443, 4294901760
        %3445 = vmatpush.msra.mxu0 %v3444
        %v3446 = vand.u32 %v3397, 4294901760
        %v3447 = vsub.f32 %v3397, %v3446
        %v3448 = vand.u32 %v3447, 4294901760
        %v3449 = vsub.f32 %v3447, %v3448
        %v3450 = vand.u32 %v3449, 4294901760
        %3451 = vmatpush.msra.mxu0 %v3450
        %v3452 = vand.u32 %v3396, 4294901760
        %v3453 = vsub.f32 %v3396, %v3452
        %v3454 = vand.u32 %v3453, 4294901760
        %v3455 = vsub.f32 %v3453, %v3454
        %v3456 = vand.u32 %v3455, 4294901760
        %3457 = vmatpush.msra.mxu0 %v3456
        %v3458 = vand.u32 %v3395, 4294901760
        %v3459 = vsub.f32 %v3395, %v3458
        %v3460 = vand.u32 %v3459, 4294901760
        %v3461 = vsub.f32 %v3459, %v3460
        %v3462 = vand.u32 %v3461, 4294901760
        %3463 = vmatpush.msra.mxu0 %v3462
        %v3464 = vand.u32 %v3394, 4294901760
        %v3465 = vsub.f32 %v3394, %v3464
        %v3466 = vand.u32 %v3465, 4294901760
        %v3467 = vsub.f32 %v3465, %v3466
        %v3468 = vand.u32 %v3467, 4294901760
        %3469 = vmatpush.msra.mxu0 %v3468
        %v3470 = vand.u32 %v3393, 4294901760
        %v3471 = vsub.f32 %v3393, %v3470
        %v3472 = vand.u32 %v3471, 4294901760
        %v3473 = vsub.f32 %v3471, %v3472
        %v3474 = vand.u32 %v3473, 4294901760
        %3475 = vmatpush.msra.mxu0 %v3474
        %v3476 = vand.u32 %v3392, 4294901760
        %v3477 = vsub.f32 %v3392, %v3476
        %v3478 = vand.u32 %v3477, 4294901760
        %v3479 = vsub.f32 %v3477, %v3478
        %v3480 = vand.u32 %v3479, 4294901760
        %3481 = vmatpush.msra.mxu0 %v3480
        %v3482 = vand.u32 %v3391, 4294901760
        %v3483 = vsub.f32 %v3391, %v3482
        %v3484 = vand.u32 %v3483, 4294901760
        %v3485 = vsub.f32 %v3483, %v3484
        %v3486 = vand.u32 %v3485, 4294901760
        %3487 = vmatpush.msra.mxu0 %v3486
        %v3488 = vand.u32 %v3390, 4294901760
        %v3489 = vsub.f32 %v3390, %v3488
        %v3490 = vand.u32 %v3489, 4294901760
        %v3491 = vsub.f32 %v3489, %v3490
        %v3492 = vand.u32 %v3491, 4294901760
        %3493 = vmatpush.msra.mxu0 %v3492
        %v3494 = vand.u32 %v3389, 4294901760
        %v3495 = vsub.f32 %v3389, %v3494
        %v3496 = vand.u32 %v3495, 4294901760
        %v3497 = vsub.f32 %v3495, %v3496
        %v3498 = vand.u32 %v3497, 4294901760
        %3499 = vmatpush.msra.mxu0 %v3498
        %v3500 = vand.u32 %v3388, 4294901760
        %v3501 = vsub.f32 %v3388, %v3500
        %v3502 = vand.u32 %v3501, 4294901760
        %v3503 = vsub.f32 %v3501, %v3502
        %v3504 = vand.u32 %v3503, 4294901760
        %3505 = vmatpush.msra.mxu0 %v3504
        %v3506 = vand.u32 %v3387, 4294901760
        %v3507 = vsub.f32 %v3387, %v3506
        %v3508 = vand.u32 %v3507, 4294901760
        %v3509 = vsub.f32 %v3507, %v3508
        %v3510 = vand.u32 %v3509, 4294901760
        %3511 = vmatpush.msra.mxu0 %v3510
        %v3512 = vand.u32 %v3386, 4294901760
        %v3513 = vsub.f32 %v3386, %v3512
        %v3514 = vand.u32 %v3513, 4294901760
        %v3515 = vsub.f32 %v3513, %v3514
        %v3516 = vand.u32 %v3515, 4294901760
        %3517 = vmatpush.msra.mxu0 %v3516
        %v3518 = vand.u32 %v3385, 4294901760
        %v3519 = vsub.f32 %v3385, %v3518
        %v3520 = vand.u32 %v3519, 4294901760
        %v3521 = vsub.f32 %v3519, %v3520
        %v3522 = vand.u32 %v3521, 4294901760
        %3523 = vmatpush.msra.mxu0 %v3522
        %v3524 = vand.u32 %v3384, 4294901760
        %v3525 = vsub.f32 %v3384, %v3524
        %v3526 = vand.u32 %v3525, 4294901760
        %v3527 = vsub.f32 %v3525, %v3526
        %v3528 = vand.u32 %v3527, 4294901760
        %3529 = vmatpush.msra.mxu0 %v3528
        %v3530 = vand.u32 %v3383, 4294901760
        %v3531 = vsub.f32 %v3383, %v3530
        %v3532 = vand.u32 %v3531, 4294901760
        %v3533 = vsub.f32 %v3531, %v3532
        %v3534 = vand.u32 %v3533, 4294901760
        %3535 = vmatpush.msra.mxu0 %v3534
        %v3536 = vand.u32 %v3380, 4294901760
        %3537 = vmatmul.f32.gmra.mxu0 %v3536
        %v3538 = vpop.f32.mrf.mxu0
        %v3539 = vadd.f32 %v3438, %v3538
        %3540 = vdwg.mxu0
        %v3541 = vand.u32 %v3398, 4294901760
        %v3542 = vsub.f32 %v3398, %v3541
        %3543 = vmatpush.msra.mxu0 %v3542
        %v3544 = vand.u32 %v3397, 4294901760
        %v3545 = vsub.f32 %v3397, %v3544
        %3546 = vmatpush.msra.mxu0 %v3545
        %v3547 = vand.u32 %v3396, 4294901760
        %v3548 = vsub.f32 %v3396, %v3547
        %3549 = vmatpush.msra.mxu0 %v3548
        %v3550 = vand.u32 %v3395, 4294901760
        %v3551 = vsub.f32 %v3395, %v3550
        %3552 = vmatpush.msra.mxu0 %v3551
        %v3553 = vand.u32 %v3394, 4294901760
        %v3554 = vsub.f32 %v3394, %v3553
        %3555 = vmatpush.msra.mxu0 %v3554
        %v3556 = vand.u32 %v3393, 4294901760
        %v3557 = vsub.f32 %v3393, %v3556
        %3558 = vmatpush.msra.mxu0 %v3557
        %v3559 = vand.u32 %v3392, 4294901760
        %v3560 = vsub.f32 %v3392, %v3559
        %3561 = vmatpush.msra.mxu0 %v3560
        %v3562 = vand.u32 %v3391, 4294901760
        %v3563 = vsub.f32 %v3391, %v3562
        %3564 = vmatpush.msra.mxu0 %v3563
        %v3565 = vand.u32 %v3390, 4294901760
        %v3566 = vsub.f32 %v3390, %v3565
        %3567 = vmatpush.msra.mxu0 %v3566
        %v3568 = vand.u32 %v3389, 4294901760
        %v3569 = vsub.f32 %v3389, %v3568
        %3570 = vmatpush.msra.mxu0 %v3569
        %v3571 = vand.u32 %v3388, 4294901760
        %v3572 = vsub.f32 %v3388, %v3571
        %3573 = vmatpush.msra.mxu0 %v3572
        %v3574 = vand.u32 %v3387, 4294901760
        %v3575 = vsub.f32 %v3387, %v3574
        %3576 = vmatpush.msra.mxu0 %v3575
        %v3577 = vand.u32 %v3386, 4294901760
        %v3578 = vsub.f32 %v3386, %v3577
        %3579 = vmatpush.msra.mxu0 %v3578
        %v3580 = vand.u32 %v3385, 4294901760
        %v3581 = vsub.f32 %v3385, %v3580
        %3582 = vmatpush.msra.mxu0 %v3581
        %v3583 = vand.u32 %v3384, 4294901760
        %v3584 = vsub.f32 %v3384, %v3583
        %3585 = vmatpush.msra.mxu0 %v3584
        %v3586 = vand.u32 %v3383, 4294901760
        %v3587 = vsub.f32 %v3383, %v3586
        %3588 = vmatpush.msra.mxu0 %v3587
        %v3589 = vand.u32 %v3380, 4294901760
        %v3590 = vsub.f32 %v3380, %v3589
        %3591 = vmatmul.f32.gmra.mxu0 %v3590
        %v3592 = vpop.f32.mrf.mxu0
        %v3593 = vadd.f32 %v3539, %v3592
        %3594 = vdwg.mxu0
        %v3595 = vand.u32 %v3398, 4294901760
        %3596 = vmatpush.msra.mxu0 %v3595
        %v3597 = vand.u32 %v3397, 4294901760
        %3598 = vmatpush.msra.mxu0 %v3597
        %v3599 = vand.u32 %v3396, 4294901760
        %3600 = vmatpush.msra.mxu0 %v3599
        %v3601 = vand.u32 %v3395, 4294901760
        %3602 = vmatpush.msra.mxu0 %v3601
        %v3603 = vand.u32 %v3394, 4294901760
        %3604 = vmatpush.msra.mxu0 %v3603
        %v3605 = vand.u32 %v3393, 4294901760
        %3606 = vmatpush.msra.mxu0 %v3605
        %v3607 = vand.u32 %v3392, 4294901760
        %3608 = vmatpush.msra.mxu0 %v3607
        %v3609 = vand.u32 %v3391, 4294901760
        %3610 = vmatpush.msra.mxu0 %v3609
        %v3611 = vand.u32 %v3390, 4294901760
        %3612 = vmatpush.msra.mxu0 %v3611
        %v3613 = vand.u32 %v3389, 4294901760
        %3614 = vmatpush.msra.mxu0 %v3613
        %v3615 = vand.u32 %v3388, 4294901760
        %3616 = vmatpush.msra.mxu0 %v3615
        %v3617 = vand.u32 %v3387, 4294901760
        %3618 = vmatpush.msra.mxu0 %v3617
        %v3619 = vand.u32 %v3386, 4294901760
        %3620 = vmatpush.msra.mxu0 %v3619
        %v3621 = vand.u32 %v3385, 4294901760
        %3622 = vmatpush.msra.mxu0 %v3621
        %v3623 = vand.u32 %v3384, 4294901760
        %3624 = vmatpush.msra.mxu0 %v3623
        %v3625 = vand.u32 %v3383, 4294901760
        %3626 = vmatpush.msra.mxu0 %v3625
        %v3627 = vand.u32 %v3380, 4294901760
        %v3628 = vsub.f32 %v3380, %v3627
        %v3629 = vand.u32 %v3628, 4294901760
        %3630 = vmatmul.f32.gmra.mxu0 %v3629
        %v3631 = vpop.f32.mrf.mxu0
        %v3632 = vadd.f32 %v3593, %v3631
        %3633 = vdwg.mxu0
        %v3634 = vand.u32 %v3398, 4294901760
        %v3635 = vsub.f32 %v3398, %v3634
        %v3636 = vand.u32 %v3635, 4294901760
        %3637 = vmatpush.msra.mxu0 %v3636
        %v3638 = vand.u32 %v3397, 4294901760
        %v3639 = vsub.f32 %v3397, %v3638
        %v3640 = vand.u32 %v3639, 4294901760
        %3641 = vmatpush.msra.mxu0 %v3640
        %v3642 = vand.u32 %v3396, 4294901760
        %v3643 = vsub.f32 %v3396, %v3642
        %v3644 = vand.u32 %v3643, 4294901760
        %3645 = vmatpush.msra.mxu0 %v3644
        %v3646 = vand.u32 %v3395, 4294901760
        %v3647 = vsub.f32 %v3395, %v3646
        %v3648 = vand.u32 %v3647, 4294901760
        %3649 = vmatpush.msra.mxu0 %v3648
        %v3650 = vand.u32 %v3394, 4294901760
        %v3651 = vsub.f32 %v3394, %v3650
        %v3652 = vand.u32 %v3651, 4294901760
        %3653 = vmatpush.msra.mxu0 %v3652
        %v3654 = vand.u32 %v3393, 4294901760
        %v3655 = vsub.f32 %v3393, %v3654
        %v3656 = vand.u32 %v3655, 4294901760
        %3657 = vmatpush.msra.mxu0 %v3656
        %v3658 = vand.u32 %v3392, 4294901760
        %v3659 = vsub.f32 %v3392, %v3658
        %v3660 = vand.u32 %v3659, 4294901760
        %3661 = vmatpush.msra.mxu0 %v3660
        %v3662 = vand.u32 %v3391, 4294901760
        %v3663 = vsub.f32 %v3391, %v3662
        %v3664 = vand.u32 %v3663, 4294901760
        %3665 = vmatpush.msra.mxu0 %v3664
        %v3666 = vand.u32 %v3390, 4294901760
        %v3667 = vsub.f32 %v3390, %v3666
        %v3668 = vand.u32 %v3667, 4294901760
        %3669 = vmatpush.msra.mxu0 %v3668
        %v3670 = vand.u32 %v3389, 4294901760
        %v3671 = vsub.f32 %v3389, %v3670
        %v3672 = vand.u32 %v3671, 4294901760
        %3673 = vmatpush.msra.mxu0 %v3672
        %v3674 = vand.u32 %v3388, 4294901760
        %v3675 = vsub.f32 %v3388, %v3674
        %v3676 = vand.u32 %v3675, 4294901760
        %3677 = vmatpush.msra.mxu0 %v3676
        %v3678 = vand.u32 %v3387, 4294901760
        %v3679 = vsub.f32 %v3387, %v3678
        %v3680 = vand.u32 %v3679, 4294901760
        %3681 = vmatpush.msra.mxu0 %v3680
        %v3682 = vand.u32 %v3386, 4294901760
        %v3683 = vsub.f32 %v3386, %v3682
        %v3684 = vand.u32 %v3683, 4294901760
        %3685 = vmatpush.msra.mxu0 %v3684
        %v3686 = vand.u32 %v3385, 4294901760
        %v3687 = vsub.f32 %v3385, %v3686
        %v3688 = vand.u32 %v3687, 4294901760
        %3689 = vmatpush.msra.mxu0 %v3688
        %v3690 = vand.u32 %v3384, 4294901760
        %v3691 = vsub.f32 %v3384, %v3690
        %v3692 = vand.u32 %v3691, 4294901760
        %3693 = vmatpush.msra.mxu0 %v3692
        %v3694 = vand.u32 %v3383, 4294901760
        %v3695 = vsub.f32 %v3383, %v3694
        %v3696 = vand.u32 %v3695, 4294901760
        %3697 = vmatpush.msra.mxu0 %v3696
        %v3698 = vand.u32 %v3380, 4294901760
        %3699 = vmatmul.f32.gmra.mxu0 %v3698
        %v3700 = vpop.f32.mrf.mxu0
        %v3701 = vadd.f32 %v3632, %v3700
        %3702 = vdwg.mxu0
        %v3703 = vand.u32 %v3398, 4294901760
        %3704 = vmatpush.msra.mxu0 %v3703
        %v3705 = vand.u32 %v3397, 4294901760
        %3706 = vmatpush.msra.mxu0 %v3705
        %v3707 = vand.u32 %v3396, 4294901760
        %3708 = vmatpush.msra.mxu0 %v3707
        %v3709 = vand.u32 %v3395, 4294901760
        %3710 = vmatpush.msra.mxu0 %v3709
        %v3711 = vand.u32 %v3394, 4294901760
        %3712 = vmatpush.msra.mxu0 %v3711
        %v3713 = vand.u32 %v3393, 4294901760
        %3714 = vmatpush.msra.mxu0 %v3713
        %v3715 = vand.u32 %v3392, 4294901760
        %3716 = vmatpush.msra.mxu0 %v3715
        %v3717 = vand.u32 %v3391, 4294901760
        %3718 = vmatpush.msra.mxu0 %v3717
        %v3719 = vand.u32 %v3390, 4294901760
        %3720 = vmatpush.msra.mxu0 %v3719
        %v3721 = vand.u32 %v3389, 4294901760
        %3722 = vmatpush.msra.mxu0 %v3721
        %v3723 = vand.u32 %v3388, 4294901760
        %3724 = vmatpush.msra.mxu0 %v3723
        %v3725 = vand.u32 %v3387, 4294901760
        %3726 = vmatpush.msra.mxu0 %v3725
        %v3727 = vand.u32 %v3386, 4294901760
        %3728 = vmatpush.msra.mxu0 %v3727
        %v3729 = vand.u32 %v3385, 4294901760
        %3730 = vmatpush.msra.mxu0 %v3729
        %v3731 = vand.u32 %v3384, 4294901760
        %3732 = vmatpush.msra.mxu0 %v3731
        %v3733 = vand.u32 %v3383, 4294901760
        %3734 = vmatpush.msra.mxu0 %v3733
        %v3735 = vand.u32 %v3380, 4294901760
        %3736 = vmatmul.f32.gmra.mxu0 %v3735
        %v3737 = vpop.f32.mrf.mxu0
        %v3738 = vadd.f32 %v3701, %v3737
        %3739 = vdwg.mxu0
        %s3740 = scalar_lea.vmem %s136, 1280 [#allocation2]
        %v3741 = vld [vmem:[%s3740] sm:$0xff]
        %v3742 = vld [vmem:[%s3740 + $0x8] sm:$0xff]
        %v3743 = vld [vmem:[%s3740 + $0x10] sm:$0xff]
        %v3744 = vld [vmem:[%s3740 + $0x18] sm:$0xff]
        %v3745 = vld [vmem:[%s3740 + $0x20] sm:$0xff]
        %v3746 = vld [vmem:[%s3740 + $0x28] sm:$0xff]
        %v3747 = vld [vmem:[%s3740 + $0x30] sm:$0xff]
        %v3748 = vld [vmem:[%s3740 + $0x38] sm:$0xff]
        %v3749 = vld [vmem:[%s3740 + $0x40] sm:$0xff]
        %v3750 = vld [vmem:[%s3740 + $0x48] sm:$0xff]
        %v3751 = vld [vmem:[%s3740 + $0x50] sm:$0xff]
        %v3752 = vld [vmem:[%s3740 + $0x58] sm:$0xff]
        %v3753 = vld [vmem:[%s3740 + $0x60] sm:$0xff]
        %v3754 = vld [vmem:[%s3740 + $0x68] sm:$0xff]
        %v3755 = vld [vmem:[%s3740 + $0x70] sm:$0xff]
        %v3756 = vld [vmem:[%s3740 + $0x78] sm:$0xff]
        %v3757 = vand.u32 %v3756, 4294901760
        %3758 = vmatpush.msra.mxu0 %v3757
        %v3759 = vand.u32 %v3755, 4294901760
        %3760 = vmatpush.msra.mxu0 %v3759
        %v3761 = vand.u32 %v3754, 4294901760
        %3762 = vmatpush.msra.mxu0 %v3761
        %v3763 = vand.u32 %v3753, 4294901760
        %3764 = vmatpush.msra.mxu0 %v3763
        %v3765 = vand.u32 %v3752, 4294901760
        %3766 = vmatpush.msra.mxu0 %v3765
        %v3767 = vand.u32 %v3751, 4294901760
        %3768 = vmatpush.msra.mxu0 %v3767
        %v3769 = vand.u32 %v3750, 4294901760
        %3770 = vmatpush.msra.mxu0 %v3769
        %v3771 = vand.u32 %v3749, 4294901760
        %3772 = vmatpush.msra.mxu0 %v3771
        %v3773 = vand.u32 %v3748, 4294901760
        %3774 = vmatpush.msra.mxu0 %v3773
        %v3775 = vand.u32 %v3747, 4294901760
        %3776 = vmatpush.msra.mxu0 %v3775
        %v3777 = vand.u32 %v3746, 4294901760
        %3778 = vmatpush.msra.mxu0 %v3777
        %v3779 = vand.u32 %v3745, 4294901760
        %3780 = vmatpush.msra.mxu0 %v3779
        %v3781 = vand.u32 %v3744, 4294901760
        %3782 = vmatpush.msra.mxu0 %v3781
        %v3783 = vand.u32 %v3743, 4294901760
        %3784 = vmatpush.msra.mxu0 %v3783
        %v3785 = vand.u32 %v3742, 4294901760
        %3786 = vmatpush.msra.mxu0 %v3785
        %v3787 = vand.u32 %v3741, 4294901760
        %3788 = vmatpush.msra.mxu0 %v3787
        %v3789 = vand.u32 %v3738, 4294901760
        %v3790 = vsub.f32 %v3738, %v3789
        %v3791 = vand.u32 %v3790, 4294901760
        %v3792 = vsub.f32 %v3790, %v3791
        %v3793 = vand.u32 %v3792, 4294901760
        %3794 = vmatmul.f32.gmra.mxu0 %v3793
        %v3795 = vpop.f32.mrf.mxu0
        %v3796 = vadd.f32 0.0, %v3795
        %3797 = vdwg.mxu0
        %v3798 = vand.u32 %v3756, 4294901760
        %v3799 = vsub.f32 %v3756, %v3798
        %v3800 = vand.u32 %v3799, 4294901760
        %v3801 = vsub.f32 %v3799, %v3800
        %v3802 = vand.u32 %v3801, 4294901760
        %3803 = vmatpush.msra.mxu0 %v3802
        %v3804 = vand.u32 %v3755, 4294901760
        %v3805 = vsub.f32 %v3755, %v3804
        %v3806 = vand.u32 %v3805, 4294901760
        %v3807 = vsub.f32 %v3805, %v3806
        %v3808 = vand.u32 %v3807, 4294901760
        %3809 = vmatpush.msra.mxu0 %v3808
        %v3810 = vand.u32 %v3754, 4294901760
        %v3811 = vsub.f32 %v3754, %v3810
        %v3812 = vand.u32 %v3811, 4294901760
        %v3813 = vsub.f32 %v3811, %v3812
        %v3814 = vand.u32 %v3813, 4294901760
        %3815 = vmatpush.msra.mxu0 %v3814
        %v3816 = vand.u32 %v3753, 4294901760
        %v3817 = vsub.f32 %v3753, %v3816
        %v3818 = vand.u32 %v3817, 4294901760
        %v3819 = vsub.f32 %v3817, %v3818
        %v3820 = vand.u32 %v3819, 4294901760
        %3821 = vmatpush.msra.mxu0 %v3820
        %v3822 = vand.u32 %v3752, 4294901760
        %v3823 = vsub.f32 %v3752, %v3822
        %v3824 = vand.u32 %v3823, 4294901760
        %v3825 = vsub.f32 %v3823, %v3824
        %v3826 = vand.u32 %v3825, 4294901760
        %3827 = vmatpush.msra.mxu0 %v3826
        %v3828 = vand.u32 %v3751, 4294901760
        %v3829 = vsub.f32 %v3751, %v3828
        %v3830 = vand.u32 %v3829, 4294901760
        %v3831 = vsub.f32 %v3829, %v3830
        %v3832 = vand.u32 %v3831, 4294901760
        %3833 = vmatpush.msra.mxu0 %v3832
        %v3834 = vand.u32 %v3750, 4294901760
        %v3835 = vsub.f32 %v3750, %v3834
        %v3836 = vand.u32 %v3835, 4294901760
        %v3837 = vsub.f32 %v3835, %v3836
        %v3838 = vand.u32 %v3837, 4294901760
        %3839 = vmatpush.msra.mxu0 %v3838
        %v3840 = vand.u32 %v3749, 4294901760
        %v3841 = vsub.f32 %v3749, %v3840
        %v3842 = vand.u32 %v3841, 4294901760
        %v3843 = vsub.f32 %v3841, %v3842
        %v3844 = vand.u32 %v3843, 4294901760
        %3845 = vmatpush.msra.mxu0 %v3844
        %v3846 = vand.u32 %v3748, 4294901760
        %v3847 = vsub.f32 %v3748, %v3846
        %v3848 = vand.u32 %v3847, 4294901760
        %v3849 = vsub.f32 %v3847, %v3848
        %v3850 = vand.u32 %v3849, 4294901760
        %3851 = vmatpush.msra.mxu0 %v3850
        %v3852 = vand.u32 %v3747, 4294901760
        %v3853 = vsub.f32 %v3747, %v3852
        %v3854 = vand.u32 %v3853, 4294901760
        %v3855 = vsub.f32 %v3853, %v3854
        %v3856 = vand.u32 %v3855, 4294901760
        %3857 = vmatpush.msra.mxu0 %v3856
        %v3858 = vand.u32 %v3746, 4294901760
        %v3859 = vsub.f32 %v3746, %v3858
        %v3860 = vand.u32 %v3859, 4294901760
        %v3861 = vsub.f32 %v3859, %v3860
        %v3862 = vand.u32 %v3861, 4294901760
        %3863 = vmatpush.msra.mxu0 %v3862
        %v3864 = vand.u32 %v3745, 4294901760
        %v3865 = vsub.f32 %v3745, %v3864
        %v3866 = vand.u32 %v3865, 4294901760
        %v3867 = vsub.f32 %v3865, %v3866
        %v3868 = vand.u32 %v3867, 4294901760
        %3869 = vmatpush.msra.mxu0 %v3868
        %v3870 = vand.u32 %v3744, 4294901760
        %v3871 = vsub.f32 %v3744, %v3870
        %v3872 = vand.u32 %v3871, 4294901760
        %v3873 = vsub.f32 %v3871, %v3872
        %v3874 = vand.u32 %v3873, 4294901760
        %3875 = vmatpush.msra.mxu0 %v3874
        %v3876 = vand.u32 %v3743, 4294901760
        %v3877 = vsub.f32 %v3743, %v3876
        %v3878 = vand.u32 %v3877, 4294901760
        %v3879 = vsub.f32 %v3877, %v3878
        %v3880 = vand.u32 %v3879, 4294901760
        %3881 = vmatpush.msra.mxu0 %v3880
        %v3882 = vand.u32 %v3742, 4294901760
        %v3883 = vsub.f32 %v3742, %v3882
        %v3884 = vand.u32 %v3883, 4294901760
        %v3885 = vsub.f32 %v3883, %v3884
        %v3886 = vand.u32 %v3885, 4294901760
        %3887 = vmatpush.msra.mxu0 %v3886
        %v3888 = vand.u32 %v3741, 4294901760
        %v3889 = vsub.f32 %v3741, %v3888
        %v3890 = vand.u32 %v3889, 4294901760
        %v3891 = vsub.f32 %v3889, %v3890
        %v3892 = vand.u32 %v3891, 4294901760
        %3893 = vmatpush.msra.mxu0 %v3892
        %v3894 = vand.u32 %v3738, 4294901760
        %3895 = vmatmul.f32.gmra.mxu0 %v3894
        %v3896 = vpop.f32.mrf.mxu0
        %v3897 = vadd.f32 %v3796, %v3896
        %3898 = vdwg.mxu0
        %v3899 = vand.u32 %v3756, 4294901760
        %v3900 = vsub.f32 %v3756, %v3899
        %3901 = vmatpush.msra.mxu0 %v3900
        %v3902 = vand.u32 %v3755, 4294901760
        %v3903 = vsub.f32 %v3755, %v3902
        %3904 = vmatpush.msra.mxu0 %v3903
        %v3905 = vand.u32 %v3754, 4294901760
        %v3906 = vsub.f32 %v3754, %v3905
        %3907 = vmatpush.msra.mxu0 %v3906
        %v3908 = vand.u32 %v3753, 4294901760
        %v3909 = vsub.f32 %v3753, %v3908
        %3910 = vmatpush.msra.mxu0 %v3909
        %v3911 = vand.u32 %v3752, 4294901760
        %v3912 = vsub.f32 %v3752, %v3911
        %3913 = vmatpush.msra.mxu0 %v3912
        %v3914 = vand.u32 %v3751, 4294901760
        %v3915 = vsub.f32 %v3751, %v3914
        %3916 = vmatpush.msra.mxu0 %v3915
        %v3917 = vand.u32 %v3750, 4294901760
        %v3918 = vsub.f32 %v3750, %v3917
        %3919 = vmatpush.msra.mxu0 %v3918
        %v3920 = vand.u32 %v3749, 4294901760
        %v3921 = vsub.f32 %v3749, %v3920
        %3922 = vmatpush.msra.mxu0 %v3921
        %v3923 = vand.u32 %v3748, 4294901760
        %v3924 = vsub.f32 %v3748, %v3923
        %3925 = vmatpush.msra.mxu0 %v3924
        %v3926 = vand.u32 %v3747, 4294901760
        %v3927 = vsub.f32 %v3747, %v3926
        %3928 = vmatpush.msra.mxu0 %v3927
        %v3929 = vand.u32 %v3746, 4294901760
        %v3930 = vsub.f32 %v3746, %v3929
        %3931 = vmatpush.msra.mxu0 %v3930
        %v3932 = vand.u32 %v3745, 4294901760
        %v3933 = vsub.f32 %v3745, %v3932
        %3934 = vmatpush.msra.mxu0 %v3933
        %v3935 = vand.u32 %v3744, 4294901760
        %v3936 = vsub.f32 %v3744, %v3935
        %3937 = vmatpush.msra.mxu0 %v3936
        %v3938 = vand.u32 %v3743, 4294901760
        %v3939 = vsub.f32 %v3743, %v3938
        %3940 = vmatpush.msra.mxu0 %v3939
        %v3941 = vand.u32 %v3742, 4294901760
        %v3942 = vsub.f32 %v3742, %v3941
        %3943 = vmatpush.msra.mxu0 %v3942
        %v3944 = vand.u32 %v3741, 4294901760
        %v3945 = vsub.f32 %v3741, %v3944
        %3946 = vmatpush.msra.mxu0 %v3945
        %v3947 = vand.u32 %v3738, 4294901760
        %v3948 = vsub.f32 %v3738, %v3947
        %3949 = vmatmul.f32.gmra.mxu0 %v3948
        %v3950 = vpop.f32.mrf.mxu0
        %v3951 = vadd.f32 %v3897, %v3950
        %3952 = vdwg.mxu0
        %v3953 = vand.u32 %v3756, 4294901760
        %3954 = vmatpush.msra.mxu0 %v3953
        %v3955 = vand.u32 %v3755, 4294901760
        %3956 = vmatpush.msra.mxu0 %v3955
        %v3957 = vand.u32 %v3754, 4294901760
        %3958 = vmatpush.msra.mxu0 %v3957
        %v3959 = vand.u32 %v3753, 4294901760
        %3960 = vmatpush.msra.mxu0 %v3959
        %v3961 = vand.u32 %v3752, 4294901760
        %3962 = vmatpush.msra.mxu0 %v3961
        %v3963 = vand.u32 %v3751, 4294901760
        %3964 = vmatpush.msra.mxu0 %v3963
        %v3965 = vand.u32 %v3750, 4294901760
        %3966 = vmatpush.msra.mxu0 %v3965
        %v3967 = vand.u32 %v3749, 4294901760
        %3968 = vmatpush.msra.mxu0 %v3967
        %v3969 = vand.u32 %v3748, 4294901760
        %3970 = vmatpush.msra.mxu0 %v3969
        %v3971 = vand.u32 %v3747, 4294901760
        %3972 = vmatpush.msra.mxu0 %v3971
        %v3973 = vand.u32 %v3746, 4294901760
        %3974 = vmatpush.msra.mxu0 %v3973
        %v3975 = vand.u32 %v3745, 4294901760
        %3976 = vmatpush.msra.mxu0 %v3975
        %v3977 = vand.u32 %v3744, 4294901760
        %3978 = vmatpush.msra.mxu0 %v3977
        %v3979 = vand.u32 %v3743, 4294901760
        %3980 = vmatpush.msra.mxu0 %v3979
        %v3981 = vand.u32 %v3742, 4294901760
        %3982 = vmatpush.msra.mxu0 %v3981
        %v3983 = vand.u32 %v3741, 4294901760
        %3984 = vmatpush.msra.mxu0 %v3983
        %v3985 = vand.u32 %v3738, 4294901760
        %v3986 = vsub.f32 %v3738, %v3985
        %v3987 = vand.u32 %v3986, 4294901760
        %3988 = vmatmul.f32.gmra.mxu0 %v3987
        %v3989 = vpop.f32.mrf.mxu0
        %v3990 = vadd.f32 %v3951, %v3989
        %3991 = vdwg.mxu0
        %v3992 = vand.u32 %v3756, 4294901760
        %v3993 = vsub.f32 %v3756, %v3992
        %v3994 = vand.u32 %v3993, 4294901760
        %3995 = vmatpush.msra.mxu0 %v3994
        %v3996 = vand.u32 %v3755, 4294901760
        %v3997 = vsub.f32 %v3755, %v3996
        %v3998 = vand.u32 %v3997, 4294901760
        %3999 = vmatpush.msra.mxu0 %v3998
        %v4000 = vand.u32 %v3754, 4294901760
        %v4001 = vsub.f32 %v3754, %v4000
        %v4002 = vand.u32 %v4001, 4294901760
        %4003 = vmatpush.msra.mxu0 %v4002
        %v4004 = vand.u32 %v3753, 4294901760
        %v4005 = vsub.f32 %v3753, %v4004
        %v4006 = vand.u32 %v4005, 4294901760
        %4007 = vmatpush.msra.mxu0 %v4006
        %v4008 = vand.u32 %v3752, 4294901760
        %v4009 = vsub.f32 %v3752, %v4008
        %v4010 = vand.u32 %v4009, 4294901760
        %4011 = vmatpush.msra.mxu0 %v4010
        %v4012 = vand.u32 %v3751, 4294901760
        %v4013 = vsub.f32 %v3751, %v4012
        %v4014 = vand.u32 %v4013, 4294901760
        %4015 = vmatpush.msra.mxu0 %v4014
        %v4016 = vand.u32 %v3750, 4294901760
        %v4017 = vsub.f32 %v3750, %v4016
        %v4018 = vand.u32 %v4017, 4294901760
        %4019 = vmatpush.msra.mxu0 %v4018
        %v4020 = vand.u32 %v3749, 4294901760
        %v4021 = vsub.f32 %v3749, %v4020
        %v4022 = vand.u32 %v4021, 4294901760
        %4023 = vmatpush.msra.mxu0 %v4022
        %v4024 = vand.u32 %v3748, 4294901760
        %v4025 = vsub.f32 %v3748, %v4024
        %v4026 = vand.u32 %v4025, 4294901760
        %4027 = vmatpush.msra.mxu0 %v4026
        %v4028 = vand.u32 %v3747, 4294901760
        %v4029 = vsub.f32 %v3747, %v4028
        %v4030 = vand.u32 %v4029, 4294901760
        %4031 = vmatpush.msra.mxu0 %v4030
        %v4032 = vand.u32 %v3746, 4294901760
        %v4033 = vsub.f32 %v3746, %v4032
        %v4034 = vand.u32 %v4033, 4294901760
        %4035 = vmatpush.msra.mxu0 %v4034
        %v4036 = vand.u32 %v3745, 4294901760
        %v4037 = vsub.f32 %v3745, %v4036
        %v4038 = vand.u32 %v4037, 4294901760
        %4039 = vmatpush.msra.mxu0 %v4038
        %v4040 = vand.u32 %v3744, 4294901760
        %v4041 = vsub.f32 %v3744, %v4040
        %v4042 = vand.u32 %v4041, 4294901760
        %4043 = vmatpush.msra.mxu0 %v4042
        %v4044 = vand.u32 %v3743, 4294901760
        %v4045 = vsub.f32 %v3743, %v4044
        %v4046 = vand.u32 %v4045, 4294901760
        %4047 = vmatpush.msra.mxu0 %v4046
        %v4048 = vand.u32 %v3742, 4294901760
        %v4049 = vsub.f32 %v3742, %v4048
        %v4050 = vand.u32 %v4049, 4294901760
        %4051 = vmatpush.msra.mxu0 %v4050
        %v4052 = vand.u32 %v3741, 4294901760
        %v4053 = vsub.f32 %v3741, %v4052
        %v4054 = vand.u32 %v4053, 4294901760
        %4055 = vmatpush.msra.mxu0 %v4054
        %v4056 = vand.u32 %v3738, 4294901760
        %4057 = vmatmul.f32.gmra.mxu0 %v4056
        %v4058 = vpop.f32.mrf.mxu0
        %v4059 = vadd.f32 %v3990, %v4058
        %4060 = vdwg.mxu0
        %v4061 = vand.u32 %v3756, 4294901760
        %4062 = vmatpush.msra.mxu0 %v4061
        %v4063 = vand.u32 %v3755, 4294901760
        %4064 = vmatpush.msra.mxu0 %v4063
        %v4065 = vand.u32 %v3754, 4294901760
        %4066 = vmatpush.msra.mxu0 %v4065
        %v4067 = vand.u32 %v3753, 4294901760
        %4068 = vmatpush.msra.mxu0 %v4067
        %v4069 = vand.u32 %v3752, 4294901760
        %4070 = vmatpush.msra.mxu0 %v4069
        %v4071 = vand.u32 %v3751, 4294901760
        %4072 = vmatpush.msra.mxu0 %v4071
        %v4073 = vand.u32 %v3750, 4294901760
        %4074 = vmatpush.msra.mxu0 %v4073
        %v4075 = vand.u32 %v3749, 4294901760
        %4076 = vmatpush.msra.mxu0 %v4075
        %v4077 = vand.u32 %v3748, 4294901760
        %4078 = vmatpush.msra.mxu0 %v4077
        %v4079 = vand.u32 %v3747, 4294901760
        %4080 = vmatpush.msra.mxu0 %v4079
        %v4081 = vand.u32 %v3746, 4294901760
        %4082 = vmatpush.msra.mxu0 %v4081
        %v4083 = vand.u32 %v3745, 4294901760
        %4084 = vmatpush.msra.mxu0 %v4083
        %v4085 = vand.u32 %v3744, 4294901760
        %4086 = vmatpush.msra.mxu0 %v4085
        %v4087 = vand.u32 %v3743, 4294901760
        %4088 = vmatpush.msra.mxu0 %v4087
        %v4089 = vand.u32 %v3742, 4294901760
        %4090 = vmatpush.msra.mxu0 %v4089
        %v4091 = vand.u32 %v3741, 4294901760
        %4092 = vmatpush.msra.mxu0 %v4091
        %v4093 = vand.u32 %v3738, 4294901760
        %4094 = vmatmul.f32.gmra.mxu0 %v4093
        %v4095 = vpop.f32.mrf.mxu0
        %v4096 = vadd.f32 %v4059, %v4095
        %4097 = vdwg.mxu0
        %s4098 = scalar_lea.vmem %s136, 1408 [#allocation2]
        %v4099 = vld [vmem:[%s4098] sm:$0xff]
        %v4100 = vld [vmem:[%s4098 + $0x8] sm:$0xff]
        %v4101 = vld [vmem:[%s4098 + $0x10] sm:$0xff]
        %v4102 = vld [vmem:[%s4098 + $0x18] sm:$0xff]
        %v4103 = vld [vmem:[%s4098 + $0x20] sm:$0xff]
        %v4104 = vld [vmem:[%s4098 + $0x28] sm:$0xff]
        %v4105 = vld [vmem:[%s4098 + $0x30] sm:$0xff]
        %v4106 = vld [vmem:[%s4098 + $0x38] sm:$0xff]
        %v4107 = vld [vmem:[%s4098 + $0x40] sm:$0xff]
        %v4108 = vld [vmem:[%s4098 + $0x48] sm:$0xff]
        %v4109 = vld [vmem:[%s4098 + $0x50] sm:$0xff]
        %v4110 = vld [vmem:[%s4098 + $0x58] sm:$0xff]
        %v4111 = vld [vmem:[%s4098 + $0x60] sm:$0xff]
        %v4112 = vld [vmem:[%s4098 + $0x68] sm:$0xff]
        %v4113 = vld [vmem:[%s4098 + $0x70] sm:$0xff]
        %v4114 = vld [vmem:[%s4098 + $0x78] sm:$0xff]
        %v4115 = vand.u32 %v4114, 4294901760
        %4116 = vmatpush.msra.mxu0 %v4115
        %v4117 = vand.u32 %v4113, 4294901760
        %4118 = vmatpush.msra.mxu0 %v4117
        %v4119 = vand.u32 %v4112, 4294901760
        %4120 = vmatpush.msra.mxu0 %v4119
        %v4121 = vand.u32 %v4111, 4294901760
        %4122 = vmatpush.msra.mxu0 %v4121
        %v4123 = vand.u32 %v4110, 4294901760
        %4124 = vmatpush.msra.mxu0 %v4123
        %v4125 = vand.u32 %v4109, 4294901760
        %4126 = vmatpush.msra.mxu0 %v4125
        %v4127 = vand.u32 %v4108, 4294901760
        %4128 = vmatpush.msra.mxu0 %v4127
        %v4129 = vand.u32 %v4107, 4294901760
        %4130 = vmatpush.msra.mxu0 %v4129
        %v4131 = vand.u32 %v4106, 4294901760
        %4132 = vmatpush.msra.mxu0 %v4131
        %v4133 = vand.u32 %v4105, 4294901760
        %4134 = vmatpush.msra.mxu0 %v4133
        %v4135 = vand.u32 %v4104, 4294901760
        %4136 = vmatpush.msra.mxu0 %v4135
        %v4137 = vand.u32 %v4103, 4294901760
        %4138 = vmatpush.msra.mxu0 %v4137
        %v4139 = vand.u32 %v4102, 4294901760
        %4140 = vmatpush.msra.mxu0 %v4139
        %v4141 = vand.u32 %v4101, 4294901760
        %4142 = vmatpush.msra.mxu0 %v4141
        %v4143 = vand.u32 %v4100, 4294901760
        %4144 = vmatpush.msra.mxu0 %v4143
        %v4145 = vand.u32 %v4099, 4294901760
        %4146 = vmatpush.msra.mxu0 %v4145
        %v4147 = vand.u32 %v4096, 4294901760
        %v4148 = vsub.f32 %v4096, %v4147
        %v4149 = vand.u32 %v4148, 4294901760
        %v4150 = vsub.f32 %v4148, %v4149
        %v4151 = vand.u32 %v4150, 4294901760
        %4152 = vmatmul.f32.gmra.mxu0 %v4151
        %v4153 = vpop.f32.mrf.mxu0
        %v4154 = vadd.f32 0.0, %v4153
        %4155 = vdwg.mxu0
        %v4156 = vand.u32 %v4114, 4294901760
        %v4157 = vsub.f32 %v4114, %v4156
        %v4158 = vand.u32 %v4157, 4294901760
        %v4159 = vsub.f32 %v4157, %v4158
        %v4160 = vand.u32 %v4159, 4294901760
        %4161 = vmatpush.msra.mxu0 %v4160
        %v4162 = vand.u32 %v4113, 4294901760
        %v4163 = vsub.f32 %v4113, %v4162
        %v4164 = vand.u32 %v4163, 4294901760
        %v4165 = vsub.f32 %v4163, %v4164
        %v4166 = vand.u32 %v4165, 4294901760
        %4167 = vmatpush.msra.mxu0 %v4166
        %v4168 = vand.u32 %v4112, 4294901760
        %v4169 = vsub.f32 %v4112, %v4168
        %v4170 = vand.u32 %v4169, 4294901760
        %v4171 = vsub.f32 %v4169, %v4170
        %v4172 = vand.u32 %v4171, 4294901760
        %4173 = vmatpush.msra.mxu0 %v4172
        %v4174 = vand.u32 %v4111, 4294901760
        %v4175 = vsub.f32 %v4111, %v4174
        %v4176 = vand.u32 %v4175, 4294901760
        %v4177 = vsub.f32 %v4175, %v4176
        %v4178 = vand.u32 %v4177, 4294901760
        %4179 = vmatpush.msra.mxu0 %v4178
        %v4180 = vand.u32 %v4110, 4294901760
        %v4181 = vsub.f32 %v4110, %v4180
        %v4182 = vand.u32 %v4181, 4294901760
        %v4183 = vsub.f32 %v4181, %v4182
        %v4184 = vand.u32 %v4183, 4294901760
        %4185 = vmatpush.msra.mxu0 %v4184
        %v4186 = vand.u32 %v4109, 4294901760
        %v4187 = vsub.f32 %v4109, %v4186
        %v4188 = vand.u32 %v4187, 4294901760
        %v4189 = vsub.f32 %v4187, %v4188
        %v4190 = vand.u32 %v4189, 4294901760
        %4191 = vmatpush.msra.mxu0 %v4190
        %v4192 = vand.u32 %v4108, 4294901760
        %v4193 = vsub.f32 %v4108, %v4192
        %v4194 = vand.u32 %v4193, 4294901760
        %v4195 = vsub.f32 %v4193, %v4194
        %v4196 = vand.u32 %v4195, 4294901760
        %4197 = vmatpush.msra.mxu0 %v4196
        %v4198 = vand.u32 %v4107, 4294901760
        %v4199 = vsub.f32 %v4107, %v4198
        %v4200 = vand.u32 %v4199, 4294901760
        %v4201 = vsub.f32 %v4199, %v4200
        %v4202 = vand.u32 %v4201, 4294901760
        %4203 = vmatpush.msra.mxu0 %v4202
        %v4204 = vand.u32 %v4106, 4294901760
        %v4205 = vsub.f32 %v4106, %v4204
        %v4206 = vand.u32 %v4205, 4294901760
        %v4207 = vsub.f32 %v4205, %v4206
        %v4208 = vand.u32 %v4207, 4294901760
        %4209 = vmatpush.msra.mxu0 %v4208
        %v4210 = vand.u32 %v4105, 4294901760
        %v4211 = vsub.f32 %v4105, %v4210
        %v4212 = vand.u32 %v4211, 4294901760
        %v4213 = vsub.f32 %v4211, %v4212
        %v4214 = vand.u32 %v4213, 4294901760
        %4215 = vmatpush.msra.mxu0 %v4214
        %v4216 = vand.u32 %v4104, 4294901760
        %v4217 = vsub.f32 %v4104, %v4216
        %v4218 = vand.u32 %v4217, 4294901760
        %v4219 = vsub.f32 %v4217, %v4218
        %v4220 = vand.u32 %v4219, 4294901760
        %4221 = vmatpush.msra.mxu0 %v4220
        %v4222 = vand.u32 %v4103, 4294901760
        %v4223 = vsub.f32 %v4103, %v4222
        %v4224 = vand.u32 %v4223, 4294901760
        %v4225 = vsub.f32 %v4223, %v4224
        %v4226 = vand.u32 %v4225, 4294901760
        %4227 = vmatpush.msra.mxu0 %v4226
        %v4228 = vand.u32 %v4102, 4294901760
        %v4229 = vsub.f32 %v4102, %v4228
        %v4230 = vand.u32 %v4229, 4294901760
        %v4231 = vsub.f32 %v4229, %v4230
        %v4232 = vand.u32 %v4231, 4294901760
        %4233 = vmatpush.msra.mxu0 %v4232
        %v4234 = vand.u32 %v4101, 4294901760
        %v4235 = vsub.f32 %v4101, %v4234
        %v4236 = vand.u32 %v4235, 4294901760
        %v4237 = vsub.f32 %v4235, %v4236
        %v4238 = vand.u32 %v4237, 4294901760
        %4239 = vmatpush.msra.mxu0 %v4238
        %v4240 = vand.u32 %v4100, 4294901760
        %v4241 = vsub.f32 %v4100, %v4240
        %v4242 = vand.u32 %v4241, 4294901760
        %v4243 = vsub.f32 %v4241, %v4242
        %v4244 = vand.u32 %v4243, 4294901760
        %4245 = vmatpush.msra.mxu0 %v4244
        %v4246 = vand.u32 %v4099, 4294901760
        %v4247 = vsub.f32 %v4099, %v4246
        %v4248 = vand.u32 %v4247, 4294901760
        %v4249 = vsub.f32 %v4247, %v4248
        %v4250 = vand.u32 %v4249, 4294901760
        %4251 = vmatpush.msra.mxu0 %v4250
        %v4252 = vand.u32 %v4096, 4294901760
        %4253 = vmatmul.f32.gmra.mxu0 %v4252
        %v4254 = vpop.f32.mrf.mxu0
        %v4255 = vadd.f32 %v4154, %v4254
        %4256 = vdwg.mxu0
        %v4257 = vand.u32 %v4114, 4294901760
        %v4258 = vsub.f32 %v4114, %v4257
        %4259 = vmatpush.msra.mxu0 %v4258
        %v4260 = vand.u32 %v4113, 4294901760
        %v4261 = vsub.f32 %v4113, %v4260
        %4262 = vmatpush.msra.mxu0 %v4261
        %v4263 = vand.u32 %v4112, 4294901760
        %v4264 = vsub.f32 %v4112, %v4263
        %4265 = vmatpush.msra.mxu0 %v4264
        %v4266 = vand.u32 %v4111, 4294901760
        %v4267 = vsub.f32 %v4111, %v4266
        %4268 = vmatpush.msra.mxu0 %v4267
        %v4269 = vand.u32 %v4110, 4294901760
        %v4270 = vsub.f32 %v4110, %v4269
        %4271 = vmatpush.msra.mxu0 %v4270
        %v4272 = vand.u32 %v4109, 4294901760
        %v4273 = vsub.f32 %v4109, %v4272
        %4274 = vmatpush.msra.mxu0 %v4273
        %v4275 = vand.u32 %v4108, 4294901760
        %v4276 = vsub.f32 %v4108, %v4275
        %4277 = vmatpush.msra.mxu0 %v4276
        %v4278 = vand.u32 %v4107, 4294901760
        %v4279 = vsub.f32 %v4107, %v4278
        %4280 = vmatpush.msra.mxu0 %v4279
        %v4281 = vand.u32 %v4106, 4294901760
        %v4282 = vsub.f32 %v4106, %v4281
        %4283 = vmatpush.msra.mxu0 %v4282
        %v4284 = vand.u32 %v4105, 4294901760
        %v4285 = vsub.f32 %v4105, %v4284
        %4286 = vmatpush.msra.mxu0 %v4285
        %v4287 = vand.u32 %v4104, 4294901760
        %v4288 = vsub.f32 %v4104, %v4287
        %4289 = vmatpush.msra.mxu0 %v4288
        %v4290 = vand.u32 %v4103, 4294901760
        %v4291 = vsub.f32 %v4103, %v4290
        %4292 = vmatpush.msra.mxu0 %v4291
        %v4293 = vand.u32 %v4102, 4294901760
        %v4294 = vsub.f32 %v4102, %v4293
        %4295 = vmatpush.msra.mxu0 %v4294
        %v4296 = vand.u32 %v4101, 4294901760
        %v4297 = vsub.f32 %v4101, %v4296
        %4298 = vmatpush.msra.mxu0 %v4297
        %v4299 = vand.u32 %v4100, 4294901760
        %v4300 = vsub.f32 %v4100, %v4299
        %4301 = vmatpush.msra.mxu0 %v4300
        %v4302 = vand.u32 %v4099, 4294901760
        %v4303 = vsub.f32 %v4099, %v4302
        %4304 = vmatpush.msra.mxu0 %v4303
        %v4305 = vand.u32 %v4096, 4294901760
        %v4306 = vsub.f32 %v4096, %v4305
        %4307 = vmatmul.f32.gmra.mxu0 %v4306
        %v4308 = vpop.f32.mrf.mxu0
        %v4309 = vadd.f32 %v4255, %v4308
        %4310 = vdwg.mxu0
        %v4311 = vand.u32 %v4114, 4294901760
        %4312 = vmatpush.msra.mxu0 %v4311
        %v4313 = vand.u32 %v4113, 4294901760
        %4314 = vmatpush.msra.mxu0 %v4313
        %v4315 = vand.u32 %v4112, 4294901760
        %4316 = vmatpush.msra.mxu0 %v4315
        %v4317 = vand.u32 %v4111, 4294901760
        %4318 = vmatpush.msra.mxu0 %v4317
        %v4319 = vand.u32 %v4110, 4294901760
        %4320 = vmatpush.msra.mxu0 %v4319
        %v4321 = vand.u32 %v4109, 4294901760
        %4322 = vmatpush.msra.mxu0 %v4321
        %v4323 = vand.u32 %v4108, 4294901760
        %4324 = vmatpush.msra.mxu0 %v4323
        %v4325 = vand.u32 %v4107, 4294901760
        %4326 = vmatpush.msra.mxu0 %v4325
        %v4327 = vand.u32 %v4106, 4294901760
        %4328 = vmatpush.msra.mxu0 %v4327
        %v4329 = vand.u32 %v4105, 4294901760
        %4330 = vmatpush.msra.mxu0 %v4329
        %v4331 = vand.u32 %v4104, 4294901760
        %4332 = vmatpush.msra.mxu0 %v4331
        %v4333 = vand.u32 %v4103, 4294901760
        %4334 = vmatpush.msra.mxu0 %v4333
        %v4335 = vand.u32 %v4102, 4294901760
        %4336 = vmatpush.msra.mxu0 %v4335
        %v4337 = vand.u32 %v4101, 4294901760
        %4338 = vmatpush.msra.mxu0 %v4337
        %v4339 = vand.u32 %v4100, 4294901760
        %4340 = vmatpush.msra.mxu0 %v4339
        %v4341 = vand.u32 %v4099, 4294901760
        %4342 = vmatpush.msra.mxu0 %v4341
        %v4343 = vand.u32 %v4096, 4294901760
        %v4344 = vsub.f32 %v4096, %v4343
        %v4345 = vand.u32 %v4344, 4294901760
        %4346 = vmatmul.f32.gmra.mxu0 %v4345
        %v4347 = vpop.f32.mrf.mxu0
        %v4348 = vadd.f32 %v4309, %v4347
        %4349 = vdwg.mxu0
        %v4350 = vand.u32 %v4114, 4294901760
        %v4351 = vsub.f32 %v4114, %v4350
        %v4352 = vand.u32 %v4351, 4294901760
        %4353 = vmatpush.msra.mxu0 %v4352
        %v4354 = vand.u32 %v4113, 4294901760
        %v4355 = vsub.f32 %v4113, %v4354
        %v4356 = vand.u32 %v4355, 4294901760
        %4357 = vmatpush.msra.mxu0 %v4356
        %v4358 = vand.u32 %v4112, 4294901760
        %v4359 = vsub.f32 %v4112, %v4358
        %v4360 = vand.u32 %v4359, 4294901760
        %4361 = vmatpush.msra.mxu0 %v4360
        %v4362 = vand.u32 %v4111, 4294901760
        %v4363 = vsub.f32 %v4111, %v4362
        %v4364 = vand.u32 %v4363, 4294901760
        %4365 = vmatpush.msra.mxu0 %v4364
        %v4366 = vand.u32 %v4110, 4294901760
        %v4367 = vsub.f32 %v4110, %v4366
        %v4368 = vand.u32 %v4367, 4294901760
        %4369 = vmatpush.msra.mxu0 %v4368
        %v4370 = vand.u32 %v4109, 4294901760
        %v4371 = vsub.f32 %v4109, %v4370
        %v4372 = vand.u32 %v4371, 4294901760
        %4373 = vmatpush.msra.mxu0 %v4372
        %v4374 = vand.u32 %v4108, 4294901760
        %v4375 = vsub.f32 %v4108, %v4374
        %v4376 = vand.u32 %v4375, 4294901760
        %4377 = vmatpush.msra.mxu0 %v4376
        %v4378 = vand.u32 %v4107, 4294901760
        %v4379 = vsub.f32 %v4107, %v4378
        %v4380 = vand.u32 %v4379, 4294901760
        %4381 = vmatpush.msra.mxu0 %v4380
        %v4382 = vand.u32 %v4106, 4294901760
        %v4383 = vsub.f32 %v4106, %v4382
        %v4384 = vand.u32 %v4383, 4294901760
        %4385 = vmatpush.msra.mxu0 %v4384
        %v4386 = vand.u32 %v4105, 4294901760
        %v4387 = vsub.f32 %v4105, %v4386
        %v4388 = vand.u32 %v4387, 4294901760
        %4389 = vmatpush.msra.mxu0 %v4388
        %v4390 = vand.u32 %v4104, 4294901760
        %v4391 = vsub.f32 %v4104, %v4390
        %v4392 = vand.u32 %v4391, 4294901760
        %4393 = vmatpush.msra.mxu0 %v4392
        %v4394 = vand.u32 %v4103, 4294901760
        %v4395 = vsub.f32 %v4103, %v4394
        %v4396 = vand.u32 %v4395, 4294901760
        %4397 = vmatpush.msra.mxu0 %v4396
        %v4398 = vand.u32 %v4102, 4294901760
        %v4399 = vsub.f32 %v4102, %v4398
        %v4400 = vand.u32 %v4399, 4294901760
        %4401 = vmatpush.msra.mxu0 %v4400
        %v4402 = vand.u32 %v4101, 4294901760
        %v4403 = vsub.f32 %v4101, %v4402
        %v4404 = vand.u32 %v4403, 4294901760
        %4405 = vmatpush.msra.mxu0 %v4404
        %v4406 = vand.u32 %v4100, 4294901760
        %v4407 = vsub.f32 %v4100, %v4406
        %v4408 = vand.u32 %v4407, 4294901760
        %4409 = vmatpush.msra.mxu0 %v4408
        %v4410 = vand.u32 %v4099, 4294901760
        %v4411 = vsub.f32 %v4099, %v4410
        %v4412 = vand.u32 %v4411, 4294901760
        %4413 = vmatpush.msra.mxu0 %v4412
        %v4414 = vand.u32 %v4096, 4294901760
        %4415 = vmatmul.f32.gmra.mxu0 %v4414
        %v4416 = vpop.f32.mrf.mxu0
        %v4417 = vadd.f32 %v4348, %v4416
        %4418 = vdwg.mxu0
        %v4419 = vand.u32 %v4114, 4294901760
        %4420 = vmatpush.msra.mxu0 %v4419
        %v4421 = vand.u32 %v4113, 4294901760
        %4422 = vmatpush.msra.mxu0 %v4421
        %v4423 = vand.u32 %v4112, 4294901760
        %4424 = vmatpush.msra.mxu0 %v4423
        %v4425 = vand.u32 %v4111, 4294901760
        %4426 = vmatpush.msra.mxu0 %v4425
        %v4427 = vand.u32 %v4110, 4294901760
        %4428 = vmatpush.msra.mxu0 %v4427
        %v4429 = vand.u32 %v4109, 4294901760
        %4430 = vmatpush.msra.mxu0 %v4429
        %v4431 = vand.u32 %v4108, 4294901760
        %4432 = vmatpush.msra.mxu0 %v4431
        %v4433 = vand.u32 %v4107, 4294901760
        %4434 = vmatpush.msra.mxu0 %v4433
        %v4435 = vand.u32 %v4106, 4294901760
        %4436 = vmatpush.msra.mxu0 %v4435
        %v4437 = vand.u32 %v4105, 4294901760
        %4438 = vmatpush.msra.mxu0 %v4437
        %v4439 = vand.u32 %v4104, 4294901760
        %4440 = vmatpush.msra.mxu0 %v4439
        %v4441 = vand.u32 %v4103, 4294901760
        %4442 = vmatpush.msra.mxu0 %v4441
        %v4443 = vand.u32 %v4102, 4294901760
        %4444 = vmatpush.msra.mxu0 %v4443
        %v4445 = vand.u32 %v4101, 4294901760
        %4446 = vmatpush.msra.mxu0 %v4445
        %v4447 = vand.u32 %v4100, 4294901760
        %4448 = vmatpush.msra.mxu0 %v4447
        %v4449 = vand.u32 %v4099, 4294901760
        %4450 = vmatpush.msra.mxu0 %v4449
        %v4451 = vand.u32 %v4096, 4294901760
        %4452 = vmatmul.f32.gmra.mxu0 %v4451
        %v4453 = vpop.f32.mrf.mxu0
        %v4454 = vadd.f32 %v4417, %v4453
        %4455 = vdwg.mxu0
        %s4456 = scalar_lea.vmem %s136, 1536 [#allocation2]
        %v4457 = vld [vmem:[%s4456] sm:$0xff]
        %v4458 = vld [vmem:[%s4456 + $0x8] sm:$0xff]
        %v4459 = vld [vmem:[%s4456 + $0x10] sm:$0xff]
        %v4460 = vld [vmem:[%s4456 + $0x18] sm:$0xff]
        %v4461 = vld [vmem:[%s4456 + $0x20] sm:$0xff]
        %v4462 = vld [vmem:[%s4456 + $0x28] sm:$0xff]
        %v4463 = vld [vmem:[%s4456 + $0x30] sm:$0xff]
        %v4464 = vld [vmem:[%s4456 + $0x38] sm:$0xff]
        %v4465 = vld [vmem:[%s4456 + $0x40] sm:$0xff]
        %v4466 = vld [vmem:[%s4456 + $0x48] sm:$0xff]
        %v4467 = vld [vmem:[%s4456 + $0x50] sm:$0xff]
        %v4468 = vld [vmem:[%s4456 + $0x58] sm:$0xff]
        %v4469 = vld [vmem:[%s4456 + $0x60] sm:$0xff]
        %v4470 = vld [vmem:[%s4456 + $0x68] sm:$0xff]
        %v4471 = vld [vmem:[%s4456 + $0x70] sm:$0xff]
        %v4472 = vld [vmem:[%s4456 + $0x78] sm:$0xff]
        %v4473 = vand.u32 %v4472, 4294901760
        %4474 = vmatpush.msra.mxu0 %v4473
        %v4475 = vand.u32 %v4471, 4294901760
        %4476 = vmatpush.msra.mxu0 %v4475
        %v4477 = vand.u32 %v4470, 4294901760
        %4478 = vmatpush.msra.mxu0 %v4477
        %v4479 = vand.u32 %v4469, 4294901760
        %4480 = vmatpush.msra.mxu0 %v4479
        %v4481 = vand.u32 %v4468, 4294901760
        %4482 = vmatpush.msra.mxu0 %v4481
        %v4483 = vand.u32 %v4467, 4294901760
        %4484 = vmatpush.msra.mxu0 %v4483
        %v4485 = vand.u32 %v4466, 4294901760
        %4486 = vmatpush.msra.mxu0 %v4485
        %v4487 = vand.u32 %v4465, 4294901760
        %4488 = vmatpush.msra.mxu0 %v4487
        %v4489 = vand.u32 %v4464, 4294901760
        %4490 = vmatpush.msra.mxu0 %v4489
        %v4491 = vand.u32 %v4463, 4294901760
        %4492 = vmatpush.msra.mxu0 %v4491
        %v4493 = vand.u32 %v4462, 4294901760
        %4494 = vmatpush.msra.mxu0 %v4493
        %v4495 = vand.u32 %v4461, 4294901760
        %4496 = vmatpush.msra.mxu0 %v4495
        %v4497 = vand.u32 %v4460, 4294901760
        %4498 = vmatpush.msra.mxu0 %v4497
        %v4499 = vand.u32 %v4459, 4294901760
        %4500 = vmatpush.msra.mxu0 %v4499
        %v4501 = vand.u32 %v4458, 4294901760
        %4502 = vmatpush.msra.mxu0 %v4501
        %v4503 = vand.u32 %v4457, 4294901760
        %4504 = vmatpush.msra.mxu0 %v4503
        %v4505 = vand.u32 %v4454, 4294901760
        %v4506 = vsub.f32 %v4454, %v4505
        %v4507 = vand.u32 %v4506, 4294901760
        %v4508 = vsub.f32 %v4506, %v4507
        %v4509 = vand.u32 %v4508, 4294901760
        %4510 = vmatmul.f32.gmra.mxu0 %v4509
        %v4511 = vpop.f32.mrf.mxu0
        %v4512 = vadd.f32 0.0, %v4511
        %4513 = vdwg.mxu0
        %v4514 = vand.u32 %v4472, 4294901760
        %v4515 = vsub.f32 %v4472, %v4514
        %v4516 = vand.u32 %v4515, 4294901760
        %v4517 = vsub.f32 %v4515, %v4516
        %v4518 = vand.u32 %v4517, 4294901760
        %4519 = vmatpush.msra.mxu0 %v4518
        %v4520 = vand.u32 %v4471, 4294901760
        %v4521 = vsub.f32 %v4471, %v4520
        %v4522 = vand.u32 %v4521, 4294901760
        %v4523 = vsub.f32 %v4521, %v4522
        %v4524 = vand.u32 %v4523, 4294901760
        %4525 = vmatpush.msra.mxu0 %v4524
        %v4526 = vand.u32 %v4470, 4294901760
        %v4527 = vsub.f32 %v4470, %v4526
        %v4528 = vand.u32 %v4527, 4294901760
        %v4529 = vsub.f32 %v4527, %v4528
        %v4530 = vand.u32 %v4529, 4294901760
        %4531 = vmatpush.msra.mxu0 %v4530
        %v4532 = vand.u32 %v4469, 4294901760
        %v4533 = vsub.f32 %v4469, %v4532
        %v4534 = vand.u32 %v4533, 4294901760
        %v4535 = vsub.f32 %v4533, %v4534
        %v4536 = vand.u32 %v4535, 4294901760
        %4537 = vmatpush.msra.mxu0 %v4536
        %v4538 = vand.u32 %v4468, 4294901760
        %v4539 = vsub.f32 %v4468, %v4538
        %v4540 = vand.u32 %v4539, 4294901760
        %v4541 = vsub.f32 %v4539, %v4540
        %v4542 = vand.u32 %v4541, 4294901760
        %4543 = vmatpush.msra.mxu0 %v4542
        %v4544 = vand.u32 %v4467, 4294901760
        %v4545 = vsub.f32 %v4467, %v4544
        %v4546 = vand.u32 %v4545, 4294901760
        %v4547 = vsub.f32 %v4545, %v4546
        %v4548 = vand.u32 %v4547, 4294901760
        %4549 = vmatpush.msra.mxu0 %v4548
        %v4550 = vand.u32 %v4466, 4294901760
        %v4551 = vsub.f32 %v4466, %v4550
        %v4552 = vand.u32 %v4551, 4294901760
        %v4553 = vsub.f32 %v4551, %v4552
        %v4554 = vand.u32 %v4553, 4294901760
        %4555 = vmatpush.msra.mxu0 %v4554
        %v4556 = vand.u32 %v4465, 4294901760
        %v4557 = vsub.f32 %v4465, %v4556
        %v4558 = vand.u32 %v4557, 4294901760
        %v4559 = vsub.f32 %v4557, %v4558
        %v4560 = vand.u32 %v4559, 4294901760
        %4561 = vmatpush.msra.mxu0 %v4560
        %v4562 = vand.u32 %v4464, 4294901760
        %v4563 = vsub.f32 %v4464, %v4562
        %v4564 = vand.u32 %v4563, 4294901760
        %v4565 = vsub.f32 %v4563, %v4564
        %v4566 = vand.u32 %v4565, 4294901760
        %4567 = vmatpush.msra.mxu0 %v4566
        %v4568 = vand.u32 %v4463, 4294901760
        %v4569 = vsub.f32 %v4463, %v4568
        %v4570 = vand.u32 %v4569, 4294901760
        %v4571 = vsub.f32 %v4569, %v4570
        %v4572 = vand.u32 %v4571, 4294901760
        %4573 = vmatpush.msra.mxu0 %v4572
        %v4574 = vand.u32 %v4462, 4294901760
        %v4575 = vsub.f32 %v4462, %v4574
        %v4576 = vand.u32 %v4575, 4294901760
        %v4577 = vsub.f32 %v4575, %v4576
        %v4578 = vand.u32 %v4577, 4294901760
        %4579 = vmatpush.msra.mxu0 %v4578
        %v4580 = vand.u32 %v4461, 4294901760
        %v4581 = vsub.f32 %v4461, %v4580
        %v4582 = vand.u32 %v4581, 4294901760
        %v4583 = vsub.f32 %v4581, %v4582
        %v4584 = vand.u32 %v4583, 4294901760
        %4585 = vmatpush.msra.mxu0 %v4584
        %v4586 = vand.u32 %v4460, 4294901760
        %v4587 = vsub.f32 %v4460, %v4586
        %v4588 = vand.u32 %v4587, 4294901760
        %v4589 = vsub.f32 %v4587, %v4588
        %v4590 = vand.u32 %v4589, 4294901760
        %4591 = vmatpush.msra.mxu0 %v4590
        %v4592 = vand.u32 %v4459, 4294901760
        %v4593 = vsub.f32 %v4459, %v4592
        %v4594 = vand.u32 %v4593, 4294901760
        %v4595 = vsub.f32 %v4593, %v4594
        %v4596 = vand.u32 %v4595, 4294901760
        %4597 = vmatpush.msra.mxu0 %v4596
        %v4598 = vand.u32 %v4458, 4294901760
        %v4599 = vsub.f32 %v4458, %v4598
        %v4600 = vand.u32 %v4599, 4294901760
        %v4601 = vsub.f32 %v4599, %v4600
        %v4602 = vand.u32 %v4601, 4294901760
        %4603 = vmatpush.msra.mxu0 %v4602
        %v4604 = vand.u32 %v4457, 4294901760
        %v4605 = vsub.f32 %v4457, %v4604
        %v4606 = vand.u32 %v4605, 4294901760
        %v4607 = vsub.f32 %v4605, %v4606
        %v4608 = vand.u32 %v4607, 4294901760
        %4609 = vmatpush.msra.mxu0 %v4608
        %v4610 = vand.u32 %v4454, 4294901760
        %4611 = vmatmul.f32.gmra.mxu0 %v4610
        %v4612 = vpop.f32.mrf.mxu0
        %v4613 = vadd.f32 %v4512, %v4612
        %4614 = vdwg.mxu0
        %v4615 = vand.u32 %v4472, 4294901760
        %v4616 = vsub.f32 %v4472, %v4615
        %4617 = vmatpush.msra.mxu0 %v4616
        %v4618 = vand.u32 %v4471, 4294901760
        %v4619 = vsub.f32 %v4471, %v4618
        %4620 = vmatpush.msra.mxu0 %v4619
        %v4621 = vand.u32 %v4470, 4294901760
        %v4622 = vsub.f32 %v4470, %v4621
        %4623 = vmatpush.msra.mxu0 %v4622
        %v4624 = vand.u32 %v4469, 4294901760
        %v4625 = vsub.f32 %v4469, %v4624
        %4626 = vmatpush.msra.mxu0 %v4625
        %v4627 = vand.u32 %v4468, 4294901760
        %v4628 = vsub.f32 %v4468, %v4627
        %4629 = vmatpush.msra.mxu0 %v4628
        %v4630 = vand.u32 %v4467, 4294901760
        %v4631 = vsub.f32 %v4467, %v4630
        %4632 = vmatpush.msra.mxu0 %v4631
        %v4633 = vand.u32 %v4466, 4294901760
        %v4634 = vsub.f32 %v4466, %v4633
        %4635 = vmatpush.msra.mxu0 %v4634
        %v4636 = vand.u32 %v4465, 4294901760
        %v4637 = vsub.f32 %v4465, %v4636
        %4638 = vmatpush.msra.mxu0 %v4637
        %v4639 = vand.u32 %v4464, 4294901760
        %v4640 = vsub.f32 %v4464, %v4639
        %4641 = vmatpush.msra.mxu0 %v4640
        %v4642 = vand.u32 %v4463, 4294901760
        %v4643 = vsub.f32 %v4463, %v4642
        %4644 = vmatpush.msra.mxu0 %v4643
        %v4645 = vand.u32 %v4462, 4294901760
        %v4646 = vsub.f32 %v4462, %v4645
        %4647 = vmatpush.msra.mxu0 %v4646
        %v4648 = vand.u32 %v4461, 4294901760
        %v4649 = vsub.f32 %v4461, %v4648
        %4650 = vmatpush.msra.mxu0 %v4649
        %v4651 = vand.u32 %v4460, 4294901760
        %v4652 = vsub.f32 %v4460, %v4651
        %4653 = vmatpush.msra.mxu0 %v4652
        %v4654 = vand.u32 %v4459, 4294901760
        %v4655 = vsub.f32 %v4459, %v4654
        %4656 = vmatpush.msra.mxu0 %v4655
        %v4657 = vand.u32 %v4458, 4294901760
        %v4658 = vsub.f32 %v4458, %v4657
        %4659 = vmatpush.msra.mxu0 %v4658
        %v4660 = vand.u32 %v4457, 4294901760
        %v4661 = vsub.f32 %v4457, %v4660
        %4662 = vmatpush.msra.mxu0 %v4661
        %v4663 = vand.u32 %v4454, 4294901760
        %v4664 = vsub.f32 %v4454, %v4663
        %4665 = vmatmul.f32.gmra.mxu0 %v4664
        %v4666 = vpop.f32.mrf.mxu0
        %v4667 = vadd.f32 %v4613, %v4666
        %4668 = vdwg.mxu0
        %v4669 = vand.u32 %v4472, 4294901760
        %4670 = vmatpush.msra.mxu0 %v4669
        %v4671 = vand.u32 %v4471, 4294901760
        %4672 = vmatpush.msra.mxu0 %v4671
        %v4673 = vand.u32 %v4470, 4294901760
        %4674 = vmatpush.msra.mxu0 %v4673
        %v4675 = vand.u32 %v4469, 4294901760
        %4676 = vmatpush.msra.mxu0 %v4675
        %v4677 = vand.u32 %v4468, 4294901760
        %4678 = vmatpush.msra.mxu0 %v4677
        %v4679 = vand.u32 %v4467, 4294901760
        %4680 = vmatpush.msra.mxu0 %v4679
        %v4681 = vand.u32 %v4466, 4294901760
        %4682 = vmatpush.msra.mxu0 %v4681
        %v4683 = vand.u32 %v4465, 4294901760
        %4684 = vmatpush.msra.mxu0 %v4683
        %v4685 = vand.u32 %v4464, 4294901760
        %4686 = vmatpush.msra.mxu0 %v4685
        %v4687 = vand.u32 %v4463, 4294901760
        %4688 = vmatpush.msra.mxu0 %v4687
        %v4689 = vand.u32 %v4462, 4294901760
        %4690 = vmatpush.msra.mxu0 %v4689
        %v4691 = vand.u32 %v4461, 4294901760
        %4692 = vmatpush.msra.mxu0 %v4691
        %v4693 = vand.u32 %v4460, 4294901760
        %4694 = vmatpush.msra.mxu0 %v4693
        %v4695 = vand.u32 %v4459, 4294901760
        %4696 = vmatpush.msra.mxu0 %v4695
        %v4697 = vand.u32 %v4458, 4294901760
        %4698 = vmatpush.msra.mxu0 %v4697
        %v4699 = vand.u32 %v4457, 4294901760
        %4700 = vmatpush.msra.mxu0 %v4699
        %v4701 = vand.u32 %v4454, 4294901760
        %v4702 = vsub.f32 %v4454, %v4701
        %v4703 = vand.u32 %v4702, 4294901760
        %4704 = vmatmul.f32.gmra.mxu0 %v4703
        %v4705 = vpop.f32.mrf.mxu0
        %v4706 = vadd.f32 %v4667, %v4705
        %4707 = vdwg.mxu0
        %v4708 = vand.u32 %v4472, 4294901760
        %v4709 = vsub.f32 %v4472, %v4708
        %v4710 = vand.u32 %v4709, 4294901760
        %4711 = vmatpush.msra.mxu0 %v4710
        %v4712 = vand.u32 %v4471, 4294901760
        %v4713 = vsub.f32 %v4471, %v4712
        %v4714 = vand.u32 %v4713, 4294901760
        %4715 = vmatpush.msra.mxu0 %v4714
        %v4716 = vand.u32 %v4470, 4294901760
        %v4717 = vsub.f32 %v4470, %v4716
        %v4718 = vand.u32 %v4717, 4294901760
        %4719 = vmatpush.msra.mxu0 %v4718
        %v4720 = vand.u32 %v4469, 4294901760
        %v4721 = vsub.f32 %v4469, %v4720
        %v4722 = vand.u32 %v4721, 4294901760
        %4723 = vmatpush.msra.mxu0 %v4722
        %v4724 = vand.u32 %v4468, 4294901760
        %v4725 = vsub.f32 %v4468, %v4724
        %v4726 = vand.u32 %v4725, 4294901760
        %4727 = vmatpush.msra.mxu0 %v4726
        %v4728 = vand.u32 %v4467, 4294901760
        %v4729 = vsub.f32 %v4467, %v4728
        %v4730 = vand.u32 %v4729, 4294901760
        %4731 = vmatpush.msra.mxu0 %v4730
        %v4732 = vand.u32 %v4466, 4294901760
        %v4733 = vsub.f32 %v4466, %v4732
        %v4734 = vand.u32 %v4733, 4294901760
        %4735 = vmatpush.msra.mxu0 %v4734
        %v4736 = vand.u32 %v4465, 4294901760
        %v4737 = vsub.f32 %v4465, %v4736
        %v4738 = vand.u32 %v4737, 4294901760
        %4739 = vmatpush.msra.mxu0 %v4738
        %v4740 = vand.u32 %v4464, 4294901760
        %v4741 = vsub.f32 %v4464, %v4740
        %v4742 = vand.u32 %v4741, 4294901760
        %4743 = vmatpush.msra.mxu0 %v4742
        %v4744 = vand.u32 %v4463, 4294901760
        %v4745 = vsub.f32 %v4463, %v4744
        %v4746 = vand.u32 %v4745, 4294901760
        %4747 = vmatpush.msra.mxu0 %v4746
        %v4748 = vand.u32 %v4462, 4294901760
        %v4749 = vsub.f32 %v4462, %v4748
        %v4750 = vand.u32 %v4749, 4294901760
        %4751 = vmatpush.msra.mxu0 %v4750
        %v4752 = vand.u32 %v4461, 4294901760
        %v4753 = vsub.f32 %v4461, %v4752
        %v4754 = vand.u32 %v4753, 4294901760
        %4755 = vmatpush.msra.mxu0 %v4754
        %v4756 = vand.u32 %v4460, 4294901760
        %v4757 = vsub.f32 %v4460, %v4756
        %v4758 = vand.u32 %v4757, 4294901760
        %4759 = vmatpush.msra.mxu0 %v4758
        %v4760 = vand.u32 %v4459, 4294901760
        %v4761 = vsub.f32 %v4459, %v4760
        %v4762 = vand.u32 %v4761, 4294901760
        %4763 = vmatpush.msra.mxu0 %v4762
        %v4764 = vand.u32 %v4458, 4294901760
        %v4765 = vsub.f32 %v4458, %v4764
        %v4766 = vand.u32 %v4765, 4294901760
        %4767 = vmatpush.msra.mxu0 %v4766
        %v4768 = vand.u32 %v4457, 4294901760
        %v4769 = vsub.f32 %v4457, %v4768
        %v4770 = vand.u32 %v4769, 4294901760
        %4771 = vmatpush.msra.mxu0 %v4770
        %v4772 = vand.u32 %v4454, 4294901760
        %4773 = vmatmul.f32.gmra.mxu0 %v4772
        %v4774 = vpop.f32.mrf.mxu0
        %v4775 = vadd.f32 %v4706, %v4774
        %4776 = vdwg.mxu0
        %v4777 = vand.u32 %v4472, 4294901760
        %4778 = vmatpush.msra.mxu0 %v4777
        %v4779 = vand.u32 %v4471, 4294901760
        %4780 = vmatpush.msra.mxu0 %v4779
        %v4781 = vand.u32 %v4470, 4294901760
        %4782 = vmatpush.msra.mxu0 %v4781
        %v4783 = vand.u32 %v4469, 4294901760
        %4784 = vmatpush.msra.mxu0 %v4783
        %v4785 = vand.u32 %v4468, 4294901760
        %4786 = vmatpush.msra.mxu0 %v4785
        %v4787 = vand.u32 %v4467, 4294901760
        %4788 = vmatpush.msra.mxu0 %v4787
        %v4789 = vand.u32 %v4466, 4294901760
        %4790 = vmatpush.msra.mxu0 %v4789
        %v4791 = vand.u32 %v4465, 4294901760
        %4792 = vmatpush.msra.mxu0 %v4791
        %v4793 = vand.u32 %v4464, 4294901760
        %4794 = vmatpush.msra.mxu0 %v4793
        %v4795 = vand.u32 %v4463, 4294901760
        %4796 = vmatpush.msra.mxu0 %v4795
        %v4797 = vand.u32 %v4462, 4294901760
        %4798 = vmatpush.msra.mxu0 %v4797
        %v4799 = vand.u32 %v4461, 4294901760
        %4800 = vmatpush.msra.mxu0 %v4799
        %v4801 = vand.u32 %v4460, 4294901760
        %4802 = vmatpush.msra.mxu0 %v4801
        %v4803 = vand.u32 %v4459, 4294901760
        %4804 = vmatpush.msra.mxu0 %v4803
        %v4805 = vand.u32 %v4458, 4294901760
        %4806 = vmatpush.msra.mxu0 %v4805
        %v4807 = vand.u32 %v4457, 4294901760
        %4808 = vmatpush.msra.mxu0 %v4807
        %v4809 = vand.u32 %v4454, 4294901760
        %4810 = vmatmul.f32.gmra.mxu0 %v4809
        %v4811 = vpop.f32.mrf.mxu0
        %v4812 = vadd.f32 %v4775, %v4811
        %4813 = vdwg.mxu0
        %s4814 = scalar_lea.vmem %s136, 1664 [#allocation2]
        %v4815 = vld [vmem:[%s4814] sm:$0xff]
        %v4816 = vld [vmem:[%s4814 + $0x8] sm:$0xff]
        %v4817 = vld [vmem:[%s4814 + $0x10] sm:$0xff]
        %v4818 = vld [vmem:[%s4814 + $0x18] sm:$0xff]
        %v4819 = vld [vmem:[%s4814 + $0x20] sm:$0xff]
        %v4820 = vld [vmem:[%s4814 + $0x28] sm:$0xff]
        %v4821 = vld [vmem:[%s4814 + $0x30] sm:$0xff]
        %v4822 = vld [vmem:[%s4814 + $0x38] sm:$0xff]
        %v4823 = vld [vmem:[%s4814 + $0x40] sm:$0xff]
        %v4824 = vld [vmem:[%s4814 + $0x48] sm:$0xff]
        %v4825 = vld [vmem:[%s4814 + $0x50] sm:$0xff]
        %v4826 = vld [vmem:[%s4814 + $0x58] sm:$0xff]
        %v4827 = vld [vmem:[%s4814 + $0x60] sm:$0xff]
        %v4828 = vld [vmem:[%s4814 + $0x68] sm:$0xff]
        %v4829 = vld [vmem:[%s4814 + $0x70] sm:$0xff]
        %v4830 = vld [vmem:[%s4814 + $0x78] sm:$0xff]
        %v4831 = vand.u32 %v4830, 4294901760
        %4832 = vmatpush.msra.mxu0 %v4831
        %v4833 = vand.u32 %v4829, 4294901760
        %4834 = vmatpush.msra.mxu0 %v4833
        %v4835 = vand.u32 %v4828, 4294901760
        %4836 = vmatpush.msra.mxu0 %v4835
        %v4837 = vand.u32 %v4827, 4294901760
        %4838 = vmatpush.msra.mxu0 %v4837
        %v4839 = vand.u32 %v4826, 4294901760
        %4840 = vmatpush.msra.mxu0 %v4839
        %v4841 = vand.u32 %v4825, 4294901760
        %4842 = vmatpush.msra.mxu0 %v4841
        %v4843 = vand.u32 %v4824, 4294901760
        %4844 = vmatpush.msra.mxu0 %v4843
        %v4845 = vand.u32 %v4823, 4294901760
        %4846 = vmatpush.msra.mxu0 %v4845
        %v4847 = vand.u32 %v4822, 4294901760
        %4848 = vmatpush.msra.mxu0 %v4847
        %v4849 = vand.u32 %v4821, 4294901760
        %4850 = vmatpush.msra.mxu0 %v4849
        %v4851 = vand.u32 %v4820, 4294901760
        %4852 = vmatpush.msra.mxu0 %v4851
        %v4853 = vand.u32 %v4819, 4294901760
        %4854 = vmatpush.msra.mxu0 %v4853
        %v4855 = vand.u32 %v4818, 4294901760
        %4856 = vmatpush.msra.mxu0 %v4855
        %v4857 = vand.u32 %v4817, 4294901760
        %4858 = vmatpush.msra.mxu0 %v4857
        %v4859 = vand.u32 %v4816, 4294901760
        %4860 = vmatpush.msra.mxu0 %v4859
        %v4861 = vand.u32 %v4815, 4294901760
        %4862 = vmatpush.msra.mxu0 %v4861
        %v4863 = vand.u32 %v4812, 4294901760
        %v4864 = vsub.f32 %v4812, %v4863
        %v4865 = vand.u32 %v4864, 4294901760
        %v4866 = vsub.f32 %v4864, %v4865
        %v4867 = vand.u32 %v4866, 4294901760
        %4868 = vmatmul.f32.gmra.mxu0 %v4867
        %v4869 = vpop.f32.mrf.mxu0
        %v4870 = vadd.f32 0.0, %v4869
        %4871 = vdwg.mxu0
        %v4872 = vand.u32 %v4830, 4294901760
        %v4873 = vsub.f32 %v4830, %v4872
        %v4874 = vand.u32 %v4873, 4294901760
        %v4875 = vsub.f32 %v4873, %v4874
        %v4876 = vand.u32 %v4875, 4294901760
        %4877 = vmatpush.msra.mxu0 %v4876
        %v4878 = vand.u32 %v4829, 4294901760
        %v4879 = vsub.f32 %v4829, %v4878
        %v4880 = vand.u32 %v4879, 4294901760
        %v4881 = vsub.f32 %v4879, %v4880
        %v4882 = vand.u32 %v4881, 4294901760
        %4883 = vmatpush.msra.mxu0 %v4882
        %v4884 = vand.u32 %v4828, 4294901760
        %v4885 = vsub.f32 %v4828, %v4884
        %v4886 = vand.u32 %v4885, 4294901760
        %v4887 = vsub.f32 %v4885, %v4886
        %v4888 = vand.u32 %v4887, 4294901760
        %4889 = vmatpush.msra.mxu0 %v4888
        %v4890 = vand.u32 %v4827, 4294901760
        %v4891 = vsub.f32 %v4827, %v4890
        %v4892 = vand.u32 %v4891, 4294901760
        %v4893 = vsub.f32 %v4891, %v4892
        %v4894 = vand.u32 %v4893, 4294901760
        %4895 = vmatpush.msra.mxu0 %v4894
        %v4896 = vand.u32 %v4826, 4294901760
        %v4897 = vsub.f32 %v4826, %v4896
        %v4898 = vand.u32 %v4897, 4294901760
        %v4899 = vsub.f32 %v4897, %v4898
        %v4900 = vand.u32 %v4899, 4294901760
        %4901 = vmatpush.msra.mxu0 %v4900
        %v4902 = vand.u32 %v4825, 4294901760
        %v4903 = vsub.f32 %v4825, %v4902
        %v4904 = vand.u32 %v4903, 4294901760
        %v4905 = vsub.f32 %v4903, %v4904
        %v4906 = vand.u32 %v4905, 4294901760
        %4907 = vmatpush.msra.mxu0 %v4906
        %v4908 = vand.u32 %v4824, 4294901760
        %v4909 = vsub.f32 %v4824, %v4908
        %v4910 = vand.u32 %v4909, 4294901760
        %v4911 = vsub.f32 %v4909, %v4910
        %v4912 = vand.u32 %v4911, 4294901760
        %4913 = vmatpush.msra.mxu0 %v4912
        %v4914 = vand.u32 %v4823, 4294901760
        %v4915 = vsub.f32 %v4823, %v4914
        %v4916 = vand.u32 %v4915, 4294901760
        %v4917 = vsub.f32 %v4915, %v4916
        %v4918 = vand.u32 %v4917, 4294901760
        %4919 = vmatpush.msra.mxu0 %v4918
        %v4920 = vand.u32 %v4822, 4294901760
        %v4921 = vsub.f32 %v4822, %v4920
        %v4922 = vand.u32 %v4921, 4294901760
        %v4923 = vsub.f32 %v4921, %v4922
        %v4924 = vand.u32 %v4923, 4294901760
        %4925 = vmatpush.msra.mxu0 %v4924
        %v4926 = vand.u32 %v4821, 4294901760
        %v4927 = vsub.f32 %v4821, %v4926
        %v4928 = vand.u32 %v4927, 4294901760
        %v4929 = vsub.f32 %v4927, %v4928
        %v4930 = vand.u32 %v4929, 4294901760
        %4931 = vmatpush.msra.mxu0 %v4930
        %v4932 = vand.u32 %v4820, 4294901760
        %v4933 = vsub.f32 %v4820, %v4932
        %v4934 = vand.u32 %v4933, 4294901760
        %v4935 = vsub.f32 %v4933, %v4934
        %v4936 = vand.u32 %v4935, 4294901760
        %4937 = vmatpush.msra.mxu0 %v4936
        %v4938 = vand.u32 %v4819, 4294901760
        %v4939 = vsub.f32 %v4819, %v4938
        %v4940 = vand.u32 %v4939, 4294901760
        %v4941 = vsub.f32 %v4939, %v4940
        %v4942 = vand.u32 %v4941, 4294901760
        %4943 = vmatpush.msra.mxu0 %v4942
        %v4944 = vand.u32 %v4818, 4294901760
        %v4945 = vsub.f32 %v4818, %v4944
        %v4946 = vand.u32 %v4945, 4294901760
        %v4947 = vsub.f32 %v4945, %v4946
        %v4948 = vand.u32 %v4947, 4294901760
        %4949 = vmatpush.msra.mxu0 %v4948
        %v4950 = vand.u32 %v4817, 4294901760
        %v4951 = vsub.f32 %v4817, %v4950
        %v4952 = vand.u32 %v4951, 4294901760
        %v4953 = vsub.f32 %v4951, %v4952
        %v4954 = vand.u32 %v4953, 4294901760
        %4955 = vmatpush.msra.mxu0 %v4954
        %v4956 = vand.u32 %v4816, 4294901760
        %v4957 = vsub.f32 %v4816, %v4956
        %v4958 = vand.u32 %v4957, 4294901760
        %v4959 = vsub.f32 %v4957, %v4958
        %v4960 = vand.u32 %v4959, 4294901760
        %4961 = vmatpush.msra.mxu0 %v4960
        %v4962 = vand.u32 %v4815, 4294901760
        %v4963 = vsub.f32 %v4815, %v4962
        %v4964 = vand.u32 %v4963, 4294901760
        %v4965 = vsub.f32 %v4963, %v4964
        %v4966 = vand.u32 %v4965, 4294901760
        %4967 = vmatpush.msra.mxu0 %v4966
        %v4968 = vand.u32 %v4812, 4294901760
        %4969 = vmatmul.f32.gmra.mxu0 %v4968
        %v4970 = vpop.f32.mrf.mxu0
        %v4971 = vadd.f32 %v4870, %v4970
        %4972 = vdwg.mxu0
        %v4973 = vand.u32 %v4830, 4294901760
        %v4974 = vsub.f32 %v4830, %v4973
        %4975 = vmatpush.msra.mxu0 %v4974
        %v4976 = vand.u32 %v4829, 4294901760
        %v4977 = vsub.f32 %v4829, %v4976
        %4978 = vmatpush.msra.mxu0 %v4977
        %v4979 = vand.u32 %v4828, 4294901760
        %v4980 = vsub.f32 %v4828, %v4979
        %4981 = vmatpush.msra.mxu0 %v4980
        %v4982 = vand.u32 %v4827, 4294901760
        %v4983 = vsub.f32 %v4827, %v4982
        %4984 = vmatpush.msra.mxu0 %v4983
        %v4985 = vand.u32 %v4826, 4294901760
        %v4986 = vsub.f32 %v4826, %v4985
        %4987 = vmatpush.msra.mxu0 %v4986
        %v4988 = vand.u32 %v4825, 4294901760
        %v4989 = vsub.f32 %v4825, %v4988
        %4990 = vmatpush.msra.mxu0 %v4989
        %v4991 = vand.u32 %v4824, 4294901760
        %v4992 = vsub.f32 %v4824, %v4991
        %4993 = vmatpush.msra.mxu0 %v4992
        %v4994 = vand.u32 %v4823, 4294901760
        %v4995 = vsub.f32 %v4823, %v4994
        %4996 = vmatpush.msra.mxu0 %v4995
        %v4997 = vand.u32 %v4822, 4294901760
        %v4998 = vsub.f32 %v4822, %v4997
        %4999 = vmatpush.msra.mxu0 %v4998
        %v5000 = vand.u32 %v4821, 4294901760
        %v5001 = vsub.f32 %v4821, %v5000
        %5002 = vmatpush.msra.mxu0 %v5001
        %v5003 = vand.u32 %v4820, 4294901760
        %v5004 = vsub.f32 %v4820, %v5003
        %5005 = vmatpush.msra.mxu0 %v5004
        %v5006 = vand.u32 %v4819, 4294901760
        %v5007 = vsub.f32 %v4819, %v5006
        %5008 = vmatpush.msra.mxu0 %v5007
        %v5009 = vand.u32 %v4818, 4294901760
        %v5010 = vsub.f32 %v4818, %v5009
        %5011 = vmatpush.msra.mxu0 %v5010
        %v5012 = vand.u32 %v4817, 4294901760
        %v5013 = vsub.f32 %v4817, %v5012
        %5014 = vmatpush.msra.mxu0 %v5013
        %v5015 = vand.u32 %v4816, 4294901760
        %v5016 = vsub.f32 %v4816, %v5015
        %5017 = vmatpush.msra.mxu0 %v5016
        %v5018 = vand.u32 %v4815, 4294901760
        %v5019 = vsub.f32 %v4815, %v5018
        %5020 = vmatpush.msra.mxu0 %v5019
        %v5021 = vand.u32 %v4812, 4294901760
        %v5022 = vsub.f32 %v4812, %v5021
        %5023 = vmatmul.f32.gmra.mxu0 %v5022
        %v5024 = vpop.f32.mrf.mxu0
        %v5025 = vadd.f32 %v4971, %v5024
        %5026 = vdwg.mxu0
        %v5027 = vand.u32 %v4830, 4294901760
        %5028 = vmatpush.msra.mxu0 %v5027
        %v5029 = vand.u32 %v4829, 4294901760
        %5030 = vmatpush.msra.mxu0 %v5029
        %v5031 = vand.u32 %v4828, 4294901760
        %5032 = vmatpush.msra.mxu0 %v5031
        %v5033 = vand.u32 %v4827, 4294901760
        %5034 = vmatpush.msra.mxu0 %v5033
        %v5035 = vand.u32 %v4826, 4294901760
        %5036 = vmatpush.msra.mxu0 %v5035
        %v5037 = vand.u32 %v4825, 4294901760
        %5038 = vmatpush.msra.mxu0 %v5037
        %v5039 = vand.u32 %v4824, 4294901760
        %5040 = vmatpush.msra.mxu0 %v5039
        %v5041 = vand.u32 %v4823, 4294901760
        %5042 = vmatpush.msra.mxu0 %v5041
        %v5043 = vand.u32 %v4822, 4294901760
        %5044 = vmatpush.msra.mxu0 %v5043
        %v5045 = vand.u32 %v4821, 4294901760
        %5046 = vmatpush.msra.mxu0 %v5045
        %v5047 = vand.u32 %v4820, 4294901760
        %5048 = vmatpush.msra.mxu0 %v5047
        %v5049 = vand.u32 %v4819, 4294901760
        %5050 = vmatpush.msra.mxu0 %v5049
        %v5051 = vand.u32 %v4818, 4294901760
        %5052 = vmatpush.msra.mxu0 %v5051
        %v5053 = vand.u32 %v4817, 4294901760
        %5054 = vmatpush.msra.mxu0 %v5053
        %v5055 = vand.u32 %v4816, 4294901760
        %5056 = vmatpush.msra.mxu0 %v5055
        %v5057 = vand.u32 %v4815, 4294901760
        %5058 = vmatpush.msra.mxu0 %v5057
        %v5059 = vand.u32 %v4812, 4294901760
        %v5060 = vsub.f32 %v4812, %v5059
        %v5061 = vand.u32 %v5060, 4294901760
        %5062 = vmatmul.f32.gmra.mxu0 %v5061
        %v5063 = vpop.f32.mrf.mxu0
        %v5064 = vadd.f32 %v5025, %v5063
        %5065 = vdwg.mxu0
        %v5066 = vand.u32 %v4830, 4294901760
        %v5067 = vsub.f32 %v4830, %v5066
        %v5068 = vand.u32 %v5067, 4294901760
        %5069 = vmatpush.msra.mxu0 %v5068
        %v5070 = vand.u32 %v4829, 4294901760
        %v5071 = vsub.f32 %v4829, %v5070
        %v5072 = vand.u32 %v5071, 4294901760
        %5073 = vmatpush.msra.mxu0 %v5072
        %v5074 = vand.u32 %v4828, 4294901760
        %v5075 = vsub.f32 %v4828, %v5074
        %v5076 = vand.u32 %v5075, 4294901760
        %5077 = vmatpush.msra.mxu0 %v5076
        %v5078 = vand.u32 %v4827, 4294901760
        %v5079 = vsub.f32 %v4827, %v5078
        %v5080 = vand.u32 %v5079, 4294901760
        %5081 = vmatpush.msra.mxu0 %v5080
        %v5082 = vand.u32 %v4826, 4294901760
        %v5083 = vsub.f32 %v4826, %v5082
        %v5084 = vand.u32 %v5083, 4294901760
        %5085 = vmatpush.msra.mxu0 %v5084
        %v5086 = vand.u32 %v4825, 4294901760
        %v5087 = vsub.f32 %v4825, %v5086
        %v5088 = vand.u32 %v5087, 4294901760
        %5089 = vmatpush.msra.mxu0 %v5088
        %v5090 = vand.u32 %v4824, 4294901760
        %v5091 = vsub.f32 %v4824, %v5090
        %v5092 = vand.u32 %v5091, 4294901760
        %5093 = vmatpush.msra.mxu0 %v5092
        %v5094 = vand.u32 %v4823, 4294901760
        %v5095 = vsub.f32 %v4823, %v5094
        %v5096 = vand.u32 %v5095, 4294901760
        %5097 = vmatpush.msra.mxu0 %v5096
        %v5098 = vand.u32 %v4822, 4294901760
        %v5099 = vsub.f32 %v4822, %v5098
        %v5100 = vand.u32 %v5099, 4294901760
        %5101 = vmatpush.msra.mxu0 %v5100
        %v5102 = vand.u32 %v4821, 4294901760
        %v5103 = vsub.f32 %v4821, %v5102
        %v5104 = vand.u32 %v5103, 4294901760
        %5105 = vmatpush.msra.mxu0 %v5104
        %v5106 = vand.u32 %v4820, 4294901760
        %v5107 = vsub.f32 %v4820, %v5106
        %v5108 = vand.u32 %v5107, 4294901760
        %5109 = vmatpush.msra.mxu0 %v5108
        %v5110 = vand.u32 %v4819, 4294901760
        %v5111 = vsub.f32 %v4819, %v5110
        %v5112 = vand.u32 %v5111, 4294901760
        %5113 = vmatpush.msra.mxu0 %v5112
        %v5114 = vand.u32 %v4818, 4294901760
        %v5115 = vsub.f32 %v4818, %v5114
        %v5116 = vand.u32 %v5115, 4294901760
        %5117 = vmatpush.msra.mxu0 %v5116
        %v5118 = vand.u32 %v4817, 4294901760
        %v5119 = vsub.f32 %v4817, %v5118
        %v5120 = vand.u32 %v5119, 4294901760
        %5121 = vmatpush.msra.mxu0 %v5120
        %v5122 = vand.u32 %v4816, 4294901760
        %v5123 = vsub.f32 %v4816, %v5122
        %v5124 = vand.u32 %v5123, 4294901760
        %5125 = vmatpush.msra.mxu0 %v5124
        %v5126 = vand.u32 %v4815, 4294901760
        %v5127 = vsub.f32 %v4815, %v5126
        %v5128 = vand.u32 %v5127, 4294901760
        %5129 = vmatpush.msra.mxu0 %v5128
        %v5130 = vand.u32 %v4812, 4294901760
        %5131 = vmatmul.f32.gmra.mxu0 %v5130
        %v5132 = vpop.f32.mrf.mxu0
        %v5133 = vadd.f32 %v5064, %v5132
        %5134 = vdwg.mxu0
        %v5135 = vand.u32 %v4830, 4294901760
        %5136 = vmatpush.msra.mxu0 %v5135
        %v5137 = vand.u32 %v4829, 4294901760
        %5138 = vmatpush.msra.mxu0 %v5137
        %v5139 = vand.u32 %v4828, 4294901760
        %5140 = vmatpush.msra.mxu0 %v5139
        %v5141 = vand.u32 %v4827, 4294901760
        %5142 = vmatpush.msra.mxu0 %v5141
        %v5143 = vand.u32 %v4826, 4294901760
        %5144 = vmatpush.msra.mxu0 %v5143
        %v5145 = vand.u32 %v4825, 4294901760
        %5146 = vmatpush.msra.mxu0 %v5145
        %v5147 = vand.u32 %v4824, 4294901760
        %5148 = vmatpush.msra.mxu0 %v5147
        %v5149 = vand.u32 %v4823, 4294901760
        %5150 = vmatpush.msra.mxu0 %v5149
        %v5151 = vand.u32 %v4822, 4294901760
        %5152 = vmatpush.msra.mxu0 %v5151
        %v5153 = vand.u32 %v4821, 4294901760
        %5154 = vmatpush.msra.mxu0 %v5153
        %v5155 = vand.u32 %v4820, 4294901760
        %5156 = vmatpush.msra.mxu0 %v5155
        %v5157 = vand.u32 %v4819, 4294901760
        %5158 = vmatpush.msra.mxu0 %v5157
        %v5159 = vand.u32 %v4818, 4294901760
        %5160 = vmatpush.msra.mxu0 %v5159
        %v5161 = vand.u32 %v4817, 4294901760
        %5162 = vmatpush.msra.mxu0 %v5161
        %v5163 = vand.u32 %v4816, 4294901760
        %5164 = vmatpush.msra.mxu0 %v5163
        %v5165 = vand.u32 %v4815, 4294901760
        %5166 = vmatpush.msra.mxu0 %v5165
        %v5167 = vand.u32 %v4812, 4294901760
        %5168 = vmatmul.f32.gmra.mxu0 %v5167
        %v5169 = vpop.f32.mrf.mxu0
        %v5170 = vadd.f32 %v5133, %v5169
        %5171 = vdwg.mxu0
        %s5172 = scalar_lea.vmem %s136, 1792 [#allocation2]
        %v5173 = vld [vmem:[%s5172] sm:$0xff]
        %v5174 = vld [vmem:[%s5172 + $0x8] sm:$0xff]
        %v5175 = vld [vmem:[%s5172 + $0x10] sm:$0xff]
        %v5176 = vld [vmem:[%s5172 + $0x18] sm:$0xff]
        %v5177 = vld [vmem:[%s5172 + $0x20] sm:$0xff]
        %v5178 = vld [vmem:[%s5172 + $0x28] sm:$0xff]
        %v5179 = vld [vmem:[%s5172 + $0x30] sm:$0xff]
        %v5180 = vld [vmem:[%s5172 + $0x38] sm:$0xff]
        %v5181 = vld [vmem:[%s5172 + $0x40] sm:$0xff]
        %v5182 = vld [vmem:[%s5172 + $0x48] sm:$0xff]
        %v5183 = vld [vmem:[%s5172 + $0x50] sm:$0xff]
        %v5184 = vld [vmem:[%s5172 + $0x58] sm:$0xff]
        %v5185 = vld [vmem:[%s5172 + $0x60] sm:$0xff]
        %v5186 = vld [vmem:[%s5172 + $0x68] sm:$0xff]
        %v5187 = vld [vmem:[%s5172 + $0x70] sm:$0xff]
        %v5188 = vld [vmem:[%s5172 + $0x78] sm:$0xff]
        %v5189 = vand.u32 %v5188, 4294901760
        %5190 = vmatpush.msra.mxu0 %v5189
        %v5191 = vand.u32 %v5187, 4294901760
        %5192 = vmatpush.msra.mxu0 %v5191
        %v5193 = vand.u32 %v5186, 4294901760
        %5194 = vmatpush.msra.mxu0 %v5193
        %v5195 = vand.u32 %v5185, 4294901760
        %5196 = vmatpush.msra.mxu0 %v5195
        %v5197 = vand.u32 %v5184, 4294901760
        %5198 = vmatpush.msra.mxu0 %v5197
        %v5199 = vand.u32 %v5183, 4294901760
        %5200 = vmatpush.msra.mxu0 %v5199
        %v5201 = vand.u32 %v5182, 4294901760
        %5202 = vmatpush.msra.mxu0 %v5201
        %v5203 = vand.u32 %v5181, 4294901760
        %5204 = vmatpush.msra.mxu0 %v5203
        %v5205 = vand.u32 %v5180, 4294901760
        %5206 = vmatpush.msra.mxu0 %v5205
        %v5207 = vand.u32 %v5179, 4294901760
        %5208 = vmatpush.msra.mxu0 %v5207
        %v5209 = vand.u32 %v5178, 4294901760
        %5210 = vmatpush.msra.mxu0 %v5209
        %v5211 = vand.u32 %v5177, 4294901760
        %5212 = vmatpush.msra.mxu0 %v5211
        %v5213 = vand.u32 %v5176, 4294901760
        %5214 = vmatpush.msra.mxu0 %v5213
        %v5215 = vand.u32 %v5175, 4294901760
        %5216 = vmatpush.msra.mxu0 %v5215
        %v5217 = vand.u32 %v5174, 4294901760
        %5218 = vmatpush.msra.mxu0 %v5217
        %v5219 = vand.u32 %v5173, 4294901760
        %5220 = vmatpush.msra.mxu0 %v5219
        %v5221 = vand.u32 %v5170, 4294901760
        %v5222 = vsub.f32 %v5170, %v5221
        %v5223 = vand.u32 %v5222, 4294901760
        %v5224 = vsub.f32 %v5222, %v5223
        %v5225 = vand.u32 %v5224, 4294901760
        %5226 = vmatmul.f32.gmra.mxu0 %v5225
        %v5227 = vpop.f32.mrf.mxu0
        %v5228 = vadd.f32 0.0, %v5227
        %5229 = vdwg.mxu0
        %v5230 = vand.u32 %v5188, 4294901760
        %v5231 = vsub.f32 %v5188, %v5230
        %v5232 = vand.u32 %v5231, 4294901760
        %v5233 = vsub.f32 %v5231, %v5232
        %v5234 = vand.u32 %v5233, 4294901760
        %5235 = vmatpush.msra.mxu0 %v5234
        %v5236 = vand.u32 %v5187, 4294901760
        %v5237 = vsub.f32 %v5187, %v5236
        %v5238 = vand.u32 %v5237, 4294901760
        %v5239 = vsub.f32 %v5237, %v5238
        %v5240 = vand.u32 %v5239, 4294901760
        %5241 = vmatpush.msra.mxu0 %v5240
        %v5242 = vand.u32 %v5186, 4294901760
        %v5243 = vsub.f32 %v5186, %v5242
        %v5244 = vand.u32 %v5243, 4294901760
        %v5245 = vsub.f32 %v5243, %v5244
        %v5246 = vand.u32 %v5245, 4294901760
        %5247 = vmatpush.msra.mxu0 %v5246
        %v5248 = vand.u32 %v5185, 4294901760
        %v5249 = vsub.f32 %v5185, %v5248
        %v5250 = vand.u32 %v5249, 4294901760
        %v5251 = vsub.f32 %v5249, %v5250
        %v5252 = vand.u32 %v5251, 4294901760
        %5253 = vmatpush.msra.mxu0 %v5252
        %v5254 = vand.u32 %v5184, 4294901760
        %v5255 = vsub.f32 %v5184, %v5254
        %v5256 = vand.u32 %v5255, 4294901760
        %v5257 = vsub.f32 %v5255, %v5256
        %v5258 = vand.u32 %v5257, 4294901760
        %5259 = vmatpush.msra.mxu0 %v5258
        %v5260 = vand.u32 %v5183, 4294901760
        %v5261 = vsub.f32 %v5183, %v5260
        %v5262 = vand.u32 %v5261, 4294901760
        %v5263 = vsub.f32 %v5261, %v5262
        %v5264 = vand.u32 %v5263, 4294901760
        %5265 = vmatpush.msra.mxu0 %v5264
        %v5266 = vand.u32 %v5182, 4294901760
        %v5267 = vsub.f32 %v5182, %v5266
        %v5268 = vand.u32 %v5267, 4294901760
        %v5269 = vsub.f32 %v5267, %v5268
        %v5270 = vand.u32 %v5269, 4294901760
        %5271 = vmatpush.msra.mxu0 %v5270
        %v5272 = vand.u32 %v5181, 4294901760
        %v5273 = vsub.f32 %v5181, %v5272
        %v5274 = vand.u32 %v5273, 4294901760
        %v5275 = vsub.f32 %v5273, %v5274
        %v5276 = vand.u32 %v5275, 4294901760
        %5277 = vmatpush.msra.mxu0 %v5276
        %v5278 = vand.u32 %v5180, 4294901760
        %v5279 = vsub.f32 %v5180, %v5278
        %v5280 = vand.u32 %v5279, 4294901760
        %v5281 = vsub.f32 %v5279, %v5280
        %v5282 = vand.u32 %v5281, 4294901760
        %5283 = vmatpush.msra.mxu0 %v5282
        %v5284 = vand.u32 %v5179, 4294901760
        %v5285 = vsub.f32 %v5179, %v5284
        %v5286 = vand.u32 %v5285, 4294901760
        %v5287 = vsub.f32 %v5285, %v5286
        %v5288 = vand.u32 %v5287, 4294901760
        %5289 = vmatpush.msra.mxu0 %v5288
        %v5290 = vand.u32 %v5178, 4294901760
        %v5291 = vsub.f32 %v5178, %v5290
        %v5292 = vand.u32 %v5291, 4294901760
        %v5293 = vsub.f32 %v5291, %v5292
        %v5294 = vand.u32 %v5293, 4294901760
        %5295 = vmatpush.msra.mxu0 %v5294
        %v5296 = vand.u32 %v5177, 4294901760
        %v5297 = vsub.f32 %v5177, %v5296
        %v5298 = vand.u32 %v5297, 4294901760
        %v5299 = vsub.f32 %v5297, %v5298
        %v5300 = vand.u32 %v5299, 4294901760
        %5301 = vmatpush.msra.mxu0 %v5300
        %v5302 = vand.u32 %v5176, 4294901760
        %v5303 = vsub.f32 %v5176, %v5302
        %v5304 = vand.u32 %v5303, 4294901760
        %v5305 = vsub.f32 %v5303, %v5304
        %v5306 = vand.u32 %v5305, 4294901760
        %5307 = vmatpush.msra.mxu0 %v5306
        %v5308 = vand.u32 %v5175, 4294901760
        %v5309 = vsub.f32 %v5175, %v5308
        %v5310 = vand.u32 %v5309, 4294901760
        %v5311 = vsub.f32 %v5309, %v5310
        %v5312 = vand.u32 %v5311, 4294901760
        %5313 = vmatpush.msra.mxu0 %v5312
        %v5314 = vand.u32 %v5174, 4294901760
        %v5315 = vsub.f32 %v5174, %v5314
        %v5316 = vand.u32 %v5315, 4294901760
        %v5317 = vsub.f32 %v5315, %v5316
        %v5318 = vand.u32 %v5317, 4294901760
        %5319 = vmatpush.msra.mxu0 %v5318
        %v5320 = vand.u32 %v5173, 4294901760
        %v5321 = vsub.f32 %v5173, %v5320
        %v5322 = vand.u32 %v5321, 4294901760
        %v5323 = vsub.f32 %v5321, %v5322
        %v5324 = vand.u32 %v5323, 4294901760
        %5325 = vmatpush.msra.mxu0 %v5324
        %v5326 = vand.u32 %v5170, 4294901760
        %5327 = vmatmul.f32.gmra.mxu0 %v5326
        %v5328 = vpop.f32.mrf.mxu0
        %v5329 = vadd.f32 %v5228, %v5328
        %5330 = vdwg.mxu0
        %v5331 = vand.u32 %v5188, 4294901760
        %v5332 = vsub.f32 %v5188, %v5331
        %5333 = vmatpush.msra.mxu0 %v5332
        %v5334 = vand.u32 %v5187, 4294901760
        %v5335 = vsub.f32 %v5187, %v5334
        %5336 = vmatpush.msra.mxu0 %v5335
        %v5337 = vand.u32 %v5186, 4294901760
        %v5338 = vsub.f32 %v5186, %v5337
        %5339 = vmatpush.msra.mxu0 %v5338
        %v5340 = vand.u32 %v5185, 4294901760
        %v5341 = vsub.f32 %v5185, %v5340
        %5342 = vmatpush.msra.mxu0 %v5341
        %v5343 = vand.u32 %v5184, 4294901760
        %v5344 = vsub.f32 %v5184, %v5343
        %5345 = vmatpush.msra.mxu0 %v5344
        %v5346 = vand.u32 %v5183, 4294901760
        %v5347 = vsub.f32 %v5183, %v5346
        %5348 = vmatpush.msra.mxu0 %v5347
        %v5349 = vand.u32 %v5182, 4294901760
        %v5350 = vsub.f32 %v5182, %v5349
        %5351 = vmatpush.msra.mxu0 %v5350
        %v5352 = vand.u32 %v5181, 4294901760
        %v5353 = vsub.f32 %v5181, %v5352
        %5354 = vmatpush.msra.mxu0 %v5353
        %v5355 = vand.u32 %v5180, 4294901760
        %v5356 = vsub.f32 %v5180, %v5355
        %5357 = vmatpush.msra.mxu0 %v5356
        %v5358 = vand.u32 %v5179, 4294901760
        %v5359 = vsub.f32 %v5179, %v5358
        %5360 = vmatpush.msra.mxu0 %v5359
        %v5361 = vand.u32 %v5178, 4294901760
        %v5362 = vsub.f32 %v5178, %v5361
        %5363 = vmatpush.msra.mxu0 %v5362
        %v5364 = vand.u32 %v5177, 4294901760
        %v5365 = vsub.f32 %v5177, %v5364
        %5366 = vmatpush.msra.mxu0 %v5365
        %v5367 = vand.u32 %v5176, 4294901760
        %v5368 = vsub.f32 %v5176, %v5367
        %5369 = vmatpush.msra.mxu0 %v5368
        %v5370 = vand.u32 %v5175, 4294901760
        %v5371 = vsub.f32 %v5175, %v5370
        %5372 = vmatpush.msra.mxu0 %v5371
        %v5373 = vand.u32 %v5174, 4294901760
        %v5374 = vsub.f32 %v5174, %v5373
        %5375 = vmatpush.msra.mxu0 %v5374
        %v5376 = vand.u32 %v5173, 4294901760
        %v5377 = vsub.f32 %v5173, %v5376
        %5378 = vmatpush.msra.mxu0 %v5377
        %v5379 = vand.u32 %v5170, 4294901760
        %v5380 = vsub.f32 %v5170, %v5379
        %5381 = vmatmul.f32.gmra.mxu0 %v5380
        %v5382 = vpop.f32.mrf.mxu0
        %v5383 = vadd.f32 %v5329, %v5382
        %5384 = vdwg.mxu0
        %v5385 = vand.u32 %v5188, 4294901760
        %5386 = vmatpush.msra.mxu0 %v5385
        %v5387 = vand.u32 %v5187, 4294901760
        %5388 = vmatpush.msra.mxu0 %v5387
        %v5389 = vand.u32 %v5186, 4294901760
        %5390 = vmatpush.msra.mxu0 %v5389
        %v5391 = vand.u32 %v5185, 4294901760
        %5392 = vmatpush.msra.mxu0 %v5391
        %v5393 = vand.u32 %v5184, 4294901760
        %5394 = vmatpush.msra.mxu0 %v5393
        %v5395 = vand.u32 %v5183, 4294901760
        %5396 = vmatpush.msra.mxu0 %v5395
        %v5397 = vand.u32 %v5182, 4294901760
        %5398 = vmatpush.msra.mxu0 %v5397
        %v5399 = vand.u32 %v5181, 4294901760
        %5400 = vmatpush.msra.mxu0 %v5399
        %v5401 = vand.u32 %v5180, 4294901760
        %5402 = vmatpush.msra.mxu0 %v5401
        %v5403 = vand.u32 %v5179, 4294901760
        %5404 = vmatpush.msra.mxu0 %v5403
        %v5405 = vand.u32 %v5178, 4294901760
        %5406 = vmatpush.msra.mxu0 %v5405
        %v5407 = vand.u32 %v5177, 4294901760
        %5408 = vmatpush.msra.mxu0 %v5407
        %v5409 = vand.u32 %v5176, 4294901760
        %5410 = vmatpush.msra.mxu0 %v5409
        %v5411 = vand.u32 %v5175, 4294901760
        %5412 = vmatpush.msra.mxu0 %v5411
        %v5413 = vand.u32 %v5174, 4294901760
        %5414 = vmatpush.msra.mxu0 %v5413
        %v5415 = vand.u32 %v5173, 4294901760
        %5416 = vmatpush.msra.mxu0 %v5415
        %v5417 = vand.u32 %v5170, 4294901760
        %v5418 = vsub.f32 %v5170, %v5417
        %v5419 = vand.u32 %v5418, 4294901760
        %5420 = vmatmul.f32.gmra.mxu0 %v5419
        %v5421 = vpop.f32.mrf.mxu0
        %v5422 = vadd.f32 %v5383, %v5421
        %5423 = vdwg.mxu0
        %v5424 = vand.u32 %v5188, 4294901760
        %v5425 = vsub.f32 %v5188, %v5424
        %v5426 = vand.u32 %v5425, 4294901760
        %5427 = vmatpush.msra.mxu0 %v5426
        %v5428 = vand.u32 %v5187, 4294901760
        %v5429 = vsub.f32 %v5187, %v5428
        %v5430 = vand.u32 %v5429, 4294901760
        %5431 = vmatpush.msra.mxu0 %v5430
        %v5432 = vand.u32 %v5186, 4294901760
        %v5433 = vsub.f32 %v5186, %v5432
        %v5434 = vand.u32 %v5433, 4294901760
        %5435 = vmatpush.msra.mxu0 %v5434
        %v5436 = vand.u32 %v5185, 4294901760
        %v5437 = vsub.f32 %v5185, %v5436
        %v5438 = vand.u32 %v5437, 4294901760
        %5439 = vmatpush.msra.mxu0 %v5438
        %v5440 = vand.u32 %v5184, 4294901760
        %v5441 = vsub.f32 %v5184, %v5440
        %v5442 = vand.u32 %v5441, 4294901760
        %5443 = vmatpush.msra.mxu0 %v5442
        %v5444 = vand.u32 %v5183, 4294901760
        %v5445 = vsub.f32 %v5183, %v5444
        %v5446 = vand.u32 %v5445, 4294901760
        %5447 = vmatpush.msra.mxu0 %v5446
        %v5448 = vand.u32 %v5182, 4294901760
        %v5449 = vsub.f32 %v5182, %v5448
        %v5450 = vand.u32 %v5449, 4294901760
        %5451 = vmatpush.msra.mxu0 %v5450
        %v5452 = vand.u32 %v5181, 4294901760
        %v5453 = vsub.f32 %v5181, %v5452
        %v5454 = vand.u32 %v5453, 4294901760
        %5455 = vmatpush.msra.mxu0 %v5454
        %v5456 = vand.u32 %v5180, 4294901760
        %v5457 = vsub.f32 %v5180, %v5456
        %v5458 = vand.u32 %v5457, 4294901760
        %5459 = vmatpush.msra.mxu0 %v5458
        %v5460 = vand.u32 %v5179, 4294901760
        %v5461 = vsub.f32 %v5179, %v5460
        %v5462 = vand.u32 %v5461, 4294901760
        %5463 = vmatpush.msra.mxu0 %v5462
        %v5464 = vand.u32 %v5178, 4294901760
        %v5465 = vsub.f32 %v5178, %v5464
        %v5466 = vand.u32 %v5465, 4294901760
        %5467 = vmatpush.msra.mxu0 %v5466
        %v5468 = vand.u32 %v5177, 4294901760
        %v5469 = vsub.f32 %v5177, %v5468
        %v5470 = vand.u32 %v5469, 4294901760
        %5471 = vmatpush.msra.mxu0 %v5470
        %v5472 = vand.u32 %v5176, 4294901760
        %v5473 = vsub.f32 %v5176, %v5472
        %v5474 = vand.u32 %v5473, 4294901760
        %5475 = vmatpush.msra.mxu0 %v5474
        %v5476 = vand.u32 %v5175, 4294901760
        %v5477 = vsub.f32 %v5175, %v5476
        %v5478 = vand.u32 %v5477, 4294901760
        %5479 = vmatpush.msra.mxu0 %v5478
        %v5480 = vand.u32 %v5174, 4294901760
        %v5481 = vsub.f32 %v5174, %v5480
        %v5482 = vand.u32 %v5481, 4294901760
        %5483 = vmatpush.msra.mxu0 %v5482
        %v5484 = vand.u32 %v5173, 4294901760
        %v5485 = vsub.f32 %v5173, %v5484
        %v5486 = vand.u32 %v5485, 4294901760
        %5487 = vmatpush.msra.mxu0 %v5486
        %v5488 = vand.u32 %v5170, 4294901760
        %5489 = vmatmul.f32.gmra.mxu0 %v5488
        %v5490 = vpop.f32.mrf.mxu0
        %v5491 = vadd.f32 %v5422, %v5490
        %5492 = vdwg.mxu0
        %v5493 = vand.u32 %v5188, 4294901760
        %5494 = vmatpush.msra.mxu0 %v5493
        %v5495 = vand.u32 %v5187, 4294901760
        %5496 = vmatpush.msra.mxu0 %v5495
        %v5497 = vand.u32 %v5186, 4294901760
        %5498 = vmatpush.msra.mxu0 %v5497
        %v5499 = vand.u32 %v5185, 4294901760
        %5500 = vmatpush.msra.mxu0 %v5499
        %v5501 = vand.u32 %v5184, 4294901760
        %5502 = vmatpush.msra.mxu0 %v5501
        %v5503 = vand.u32 %v5183, 4294901760
        %5504 = vmatpush.msra.mxu0 %v5503
        %v5505 = vand.u32 %v5182, 4294901760
        %5506 = vmatpush.msra.mxu0 %v5505
        %v5507 = vand.u32 %v5181, 4294901760
        %5508 = vmatpush.msra.mxu0 %v5507
        %v5509 = vand.u32 %v5180, 4294901760
        %5510 = vmatpush.msra.mxu0 %v5509
        %v5511 = vand.u32 %v5179, 4294901760
        %5512 = vmatpush.msra.mxu0 %v5511
        %v5513 = vand.u32 %v5178, 4294901760
        %5514 = vmatpush.msra.mxu0 %v5513
        %v5515 = vand.u32 %v5177, 4294901760
        %5516 = vmatpush.msra.mxu0 %v5515
        %v5517 = vand.u32 %v5176, 4294901760
        %5518 = vmatpush.msra.mxu0 %v5517
        %v5519 = vand.u32 %v5175, 4294901760
        %5520 = vmatpush.msra.mxu0 %v5519
        %v5521 = vand.u32 %v5174, 4294901760
        %5522 = vmatpush.msra.mxu0 %v5521
        %v5523 = vand.u32 %v5173, 4294901760
        %5524 = vmatpush.msra.mxu0 %v5523
        %v5525 = vand.u32 %v5170, 4294901760
        %5526 = vmatmul.f32.gmra.mxu0 %v5525
        %v5527 = vpop.f32.mrf.mxu0
        %v5528 = vadd.f32 %v5491, %v5527
        %5529 = vdwg.mxu0
        %s5530 = scalar_lea.vmem %s136, 1920 [#allocation2]
        %v5531 = vld [vmem:[%s5530] sm:$0xff]
        %v5532 = vld [vmem:[%s5530 + $0x8] sm:$0xff]
        %v5533 = vld [vmem:[%s5530 + $0x10] sm:$0xff]
        %v5534 = vld [vmem:[%s5530 + $0x18] sm:$0xff]
        %v5535 = vld [vmem:[%s5530 + $0x20] sm:$0xff]
        %v5536 = vld [vmem:[%s5530 + $0x28] sm:$0xff]
        %v5537 = vld [vmem:[%s5530 + $0x30] sm:$0xff]
        %v5538 = vld [vmem:[%s5530 + $0x38] sm:$0xff]
        %v5539 = vld [vmem:[%s5530 + $0x40] sm:$0xff]
        %v5540 = vld [vmem:[%s5530 + $0x48] sm:$0xff]
        %v5541 = vld [vmem:[%s5530 + $0x50] sm:$0xff]
        %v5542 = vld [vmem:[%s5530 + $0x58] sm:$0xff]
        %v5543 = vld [vmem:[%s5530 + $0x60] sm:$0xff]
        %v5544 = vld [vmem:[%s5530 + $0x68] sm:$0xff]
        %v5545 = vld [vmem:[%s5530 + $0x70] sm:$0xff]
        %v5546 = vld [vmem:[%s5530 + $0x78] sm:$0xff]
        %v5547 = vand.u32 %v5546, 4294901760
        %5548 = vmatpush.msra.mxu0 %v5547
        %v5549 = vand.u32 %v5545, 4294901760
        %5550 = vmatpush.msra.mxu0 %v5549
        %v5551 = vand.u32 %v5544, 4294901760
        %5552 = vmatpush.msra.mxu0 %v5551
        %v5553 = vand.u32 %v5543, 4294901760
        %5554 = vmatpush.msra.mxu0 %v5553
        %v5555 = vand.u32 %v5542, 4294901760
        %5556 = vmatpush.msra.mxu0 %v5555
        %v5557 = vand.u32 %v5541, 4294901760
        %5558 = vmatpush.msra.mxu0 %v5557
        %v5559 = vand.u32 %v5540, 4294901760
        %5560 = vmatpush.msra.mxu0 %v5559
        %v5561 = vand.u32 %v5539, 4294901760
        %5562 = vmatpush.msra.mxu0 %v5561
        %v5563 = vand.u32 %v5538, 4294901760
        %5564 = vmatpush.msra.mxu0 %v5563
        %v5565 = vand.u32 %v5537, 4294901760
        %5566 = vmatpush.msra.mxu0 %v5565
        %v5567 = vand.u32 %v5536, 4294901760
        %5568 = vmatpush.msra.mxu0 %v5567
        %v5569 = vand.u32 %v5535, 4294901760
        %5570 = vmatpush.msra.mxu0 %v5569
        %v5571 = vand.u32 %v5534, 4294901760
        %5572 = vmatpush.msra.mxu0 %v5571
        %v5573 = vand.u32 %v5533, 4294901760
        %5574 = vmatpush.msra.mxu0 %v5573
        %v5575 = vand.u32 %v5532, 4294901760
        %5576 = vmatpush.msra.mxu0 %v5575
        %v5577 = vand.u32 %v5531, 4294901760
        %5578 = vmatpush.msra.mxu0 %v5577
        %v5579 = vand.u32 %v5528, 4294901760
        %v5580 = vsub.f32 %v5528, %v5579
        %v5581 = vand.u32 %v5580, 4294901760
        %v5582 = vsub.f32 %v5580, %v5581
        %v5583 = vand.u32 %v5582, 4294901760
        %5584 = vmatmul.f32.gmra.mxu0 %v5583
        %v5585 = vpop.f32.mrf.mxu0
        %v5586 = vadd.f32 0.0, %v5585
        %5587 = vdwg.mxu0
        %v5588 = vand.u32 %v5546, 4294901760
        %v5589 = vsub.f32 %v5546, %v5588
        %v5590 = vand.u32 %v5589, 4294901760
        %v5591 = vsub.f32 %v5589, %v5590
        %v5592 = vand.u32 %v5591, 4294901760
        %5593 = vmatpush.msra.mxu0 %v5592
        %v5594 = vand.u32 %v5545, 4294901760
        %v5595 = vsub.f32 %v5545, %v5594
        %v5596 = vand.u32 %v5595, 4294901760
        %v5597 = vsub.f32 %v5595, %v5596
        %v5598 = vand.u32 %v5597, 4294901760
        %5599 = vmatpush.msra.mxu0 %v5598
        %v5600 = vand.u32 %v5544, 4294901760
        %v5601 = vsub.f32 %v5544, %v5600
        %v5602 = vand.u32 %v5601, 4294901760
        %v5603 = vsub.f32 %v5601, %v5602
        %v5604 = vand.u32 %v5603, 4294901760
        %5605 = vmatpush.msra.mxu0 %v5604
        %v5606 = vand.u32 %v5543, 4294901760
        %v5607 = vsub.f32 %v5543, %v5606
        %v5608 = vand.u32 %v5607, 4294901760
        %v5609 = vsub.f32 %v5607, %v5608
        %v5610 = vand.u32 %v5609, 4294901760
        %5611 = vmatpush.msra.mxu0 %v5610
        %v5612 = vand.u32 %v5542, 4294901760
        %v5613 = vsub.f32 %v5542, %v5612
        %v5614 = vand.u32 %v5613, 4294901760
        %v5615 = vsub.f32 %v5613, %v5614
        %v5616 = vand.u32 %v5615, 4294901760
        %5617 = vmatpush.msra.mxu0 %v5616
        %v5618 = vand.u32 %v5541, 4294901760
        %v5619 = vsub.f32 %v5541, %v5618
        %v5620 = vand.u32 %v5619, 4294901760
        %v5621 = vsub.f32 %v5619, %v5620
        %v5622 = vand.u32 %v5621, 4294901760
        %5623 = vmatpush.msra.mxu0 %v5622
        %v5624 = vand.u32 %v5540, 4294901760
        %v5625 = vsub.f32 %v5540, %v5624
        %v5626 = vand.u32 %v5625, 4294901760
        %v5627 = vsub.f32 %v5625, %v5626
        %v5628 = vand.u32 %v5627, 4294901760
        %5629 = vmatpush.msra.mxu0 %v5628
        %v5630 = vand.u32 %v5539, 4294901760
        %v5631 = vsub.f32 %v5539, %v5630
        %v5632 = vand.u32 %v5631, 4294901760
        %v5633 = vsub.f32 %v5631, %v5632
        %v5634 = vand.u32 %v5633, 4294901760
        %5635 = vmatpush.msra.mxu0 %v5634
        %v5636 = vand.u32 %v5538, 4294901760
        %v5637 = vsub.f32 %v5538, %v5636
        %v5638 = vand.u32 %v5637, 4294901760
        %v5639 = vsub.f32 %v5637, %v5638
        %v5640 = vand.u32 %v5639, 4294901760
        %5641 = vmatpush.msra.mxu0 %v5640
        %v5642 = vand.u32 %v5537, 4294901760
        %v5643 = vsub.f32 %v5537, %v5642
        %v5644 = vand.u32 %v5643, 4294901760
        %v5645 = vsub.f32 %v5643, %v5644
        %v5646 = vand.u32 %v5645, 4294901760
        %5647 = vmatpush.msra.mxu0 %v5646
        %v5648 = vand.u32 %v5536, 4294901760
        %v5649 = vsub.f32 %v5536, %v5648
        %v5650 = vand.u32 %v5649, 4294901760
        %v5651 = vsub.f32 %v5649, %v5650
        %v5652 = vand.u32 %v5651, 4294901760
        %5653 = vmatpush.msra.mxu0 %v5652
        %v5654 = vand.u32 %v5535, 4294901760
        %v5655 = vsub.f32 %v5535, %v5654
        %v5656 = vand.u32 %v5655, 4294901760
        %v5657 = vsub.f32 %v5655, %v5656
        %v5658 = vand.u32 %v5657, 4294901760
        %5659 = vmatpush.msra.mxu0 %v5658
        %v5660 = vand.u32 %v5534, 4294901760
        %v5661 = vsub.f32 %v5534, %v5660
        %v5662 = vand.u32 %v5661, 4294901760
        %v5663 = vsub.f32 %v5661, %v5662
        %v5664 = vand.u32 %v5663, 4294901760
        %5665 = vmatpush.msra.mxu0 %v5664
        %v5666 = vand.u32 %v5533, 4294901760
        %v5667 = vsub.f32 %v5533, %v5666
        %v5668 = vand.u32 %v5667, 4294901760
        %v5669 = vsub.f32 %v5667, %v5668
        %v5670 = vand.u32 %v5669, 4294901760
        %5671 = vmatpush.msra.mxu0 %v5670
        %v5672 = vand.u32 %v5532, 4294901760
        %v5673 = vsub.f32 %v5532, %v5672
        %v5674 = vand.u32 %v5673, 4294901760
        %v5675 = vsub.f32 %v5673, %v5674
        %v5676 = vand.u32 %v5675, 4294901760
        %5677 = vmatpush.msra.mxu0 %v5676
        %v5678 = vand.u32 %v5531, 4294901760
        %v5679 = vsub.f32 %v5531, %v5678
        %v5680 = vand.u32 %v5679, 4294901760
        %v5681 = vsub.f32 %v5679, %v5680
        %v5682 = vand.u32 %v5681, 4294901760
        %5683 = vmatpush.msra.mxu0 %v5682
        %v5684 = vand.u32 %v5528, 4294901760
        %5685 = vmatmul.f32.gmra.mxu0 %v5684
        %v5686 = vpop.f32.mrf.mxu0
        %v5687 = vadd.f32 %v5586, %v5686
        %5688 = vdwg.mxu0
        %v5689 = vand.u32 %v5546, 4294901760
        %v5690 = vsub.f32 %v5546, %v5689
        %5691 = vmatpush.msra.mxu0 %v5690
        %v5692 = vand.u32 %v5545, 4294901760
        %v5693 = vsub.f32 %v5545, %v5692
        %5694 = vmatpush.msra.mxu0 %v5693
        %v5695 = vand.u32 %v5544, 4294901760
        %v5696 = vsub.f32 %v5544, %v5695
        %5697 = vmatpush.msra.mxu0 %v5696
        %v5698 = vand.u32 %v5543, 4294901760
        %v5699 = vsub.f32 %v5543, %v5698
        %5700 = vmatpush.msra.mxu0 %v5699
        %v5701 = vand.u32 %v5542, 4294901760
        %v5702 = vsub.f32 %v5542, %v5701
        %5703 = vmatpush.msra.mxu0 %v5702
        %v5704 = vand.u32 %v5541, 4294901760
        %v5705 = vsub.f32 %v5541, %v5704
        %5706 = vmatpush.msra.mxu0 %v5705
        %v5707 = vand.u32 %v5540, 4294901760
        %v5708 = vsub.f32 %v5540, %v5707
        %5709 = vmatpush.msra.mxu0 %v5708
        %v5710 = vand.u32 %v5539, 4294901760
        %v5711 = vsub.f32 %v5539, %v5710
        %5712 = vmatpush.msra.mxu0 %v5711
        %v5713 = vand.u32 %v5538, 4294901760
        %v5714 = vsub.f32 %v5538, %v5713
        %5715 = vmatpush.msra.mxu0 %v5714
        %v5716 = vand.u32 %v5537, 4294901760
        %v5717 = vsub.f32 %v5537, %v5716
        %5718 = vmatpush.msra.mxu0 %v5717
        %v5719 = vand.u32 %v5536, 4294901760
        %v5720 = vsub.f32 %v5536, %v5719
        %5721 = vmatpush.msra.mxu0 %v5720
        %v5722 = vand.u32 %v5535, 4294901760
        %v5723 = vsub.f32 %v5535, %v5722
        %5724 = vmatpush.msra.mxu0 %v5723
        %v5725 = vand.u32 %v5534, 4294901760
        %v5726 = vsub.f32 %v5534, %v5725
        %5727 = vmatpush.msra.mxu0 %v5726
        %v5728 = vand.u32 %v5533, 4294901760
        %v5729 = vsub.f32 %v5533, %v5728
        %5730 = vmatpush.msra.mxu0 %v5729
        %v5731 = vand.u32 %v5532, 4294901760
        %v5732 = vsub.f32 %v5532, %v5731
        %5733 = vmatpush.msra.mxu0 %v5732
        %v5734 = vand.u32 %v5531, 4294901760
        %v5735 = vsub.f32 %v5531, %v5734
        %5736 = vmatpush.msra.mxu0 %v5735
        %v5737 = vand.u32 %v5528, 4294901760
        %v5738 = vsub.f32 %v5528, %v5737
        %5739 = vmatmul.f32.gmra.mxu0 %v5738
        %v5740 = vpop.f32.mrf.mxu0
        %v5741 = vadd.f32 %v5687, %v5740
        %5742 = vdwg.mxu0
        %v5743 = vand.u32 %v5546, 4294901760
        %5744 = vmatpush.msra.mxu0 %v5743
        %v5745 = vand.u32 %v5545, 4294901760
        %5746 = vmatpush.msra.mxu0 %v5745
        %v5747 = vand.u32 %v5544, 4294901760
        %5748 = vmatpush.msra.mxu0 %v5747
        %v5749 = vand.u32 %v5543, 4294901760
        %5750 = vmatpush.msra.mxu0 %v5749
        %v5751 = vand.u32 %v5542, 4294901760
        %5752 = vmatpush.msra.mxu0 %v5751
        %v5753 = vand.u32 %v5541, 4294901760
        %5754 = vmatpush.msra.mxu0 %v5753
        %v5755 = vand.u32 %v5540, 4294901760
        %5756 = vmatpush.msra.mxu0 %v5755
        %v5757 = vand.u32 %v5539, 4294901760
        %5758 = vmatpush.msra.mxu0 %v5757
        %v5759 = vand.u32 %v5538, 4294901760
        %5760 = vmatpush.msra.mxu0 %v5759
        %v5761 = vand.u32 %v5537, 4294901760
        %5762 = vmatpush.msra.mxu0 %v5761
        %v5763 = vand.u32 %v5536, 4294901760
        %5764 = vmatpush.msra.mxu0 %v5763
        %v5765 = vand.u32 %v5535, 4294901760
        %5766 = vmatpush.msra.mxu0 %v5765
        %v5767 = vand.u32 %v5534, 4294901760
        %5768 = vmatpush.msra.mxu0 %v5767
        %v5769 = vand.u32 %v5533, 4294901760
        %5770 = vmatpush.msra.mxu0 %v5769
        %v5771 = vand.u32 %v5532, 4294901760
        %5772 = vmatpush.msra.mxu0 %v5771
        %v5773 = vand.u32 %v5531, 4294901760
        %5774 = vmatpush.msra.mxu0 %v5773
        %v5775 = vand.u32 %v5528, 4294901760
        %v5776 = vsub.f32 %v5528, %v5775
        %v5777 = vand.u32 %v5776, 4294901760
        %5778 = vmatmul.f32.gmra.mxu0 %v5777
        %v5779 = vpop.f32.mrf.mxu0
        %v5780 = vadd.f32 %v5741, %v5779
        %5781 = vdwg.mxu0
        %v5782 = vand.u32 %v5546, 4294901760
        %v5783 = vsub.f32 %v5546, %v5782
        %v5784 = vand.u32 %v5783, 4294901760
        %5785 = vmatpush.msra.mxu0 %v5784
        %v5786 = vand.u32 %v5545, 4294901760
        %v5787 = vsub.f32 %v5545, %v5786
        %v5788 = vand.u32 %v5787, 4294901760
        %5789 = vmatpush.msra.mxu0 %v5788
        %v5790 = vand.u32 %v5544, 4294901760
        %v5791 = vsub.f32 %v5544, %v5790
        %v5792 = vand.u32 %v5791, 4294901760
        %5793 = vmatpush.msra.mxu0 %v5792
        %v5794 = vand.u32 %v5543, 4294901760
        %v5795 = vsub.f32 %v5543, %v5794
        %v5796 = vand.u32 %v5795, 4294901760
        %5797 = vmatpush.msra.mxu0 %v5796
        %v5798 = vand.u32 %v5542, 4294901760
        %v5799 = vsub.f32 %v5542, %v5798
        %v5800 = vand.u32 %v5799, 4294901760
        %5801 = vmatpush.msra.mxu0 %v5800
        %v5802 = vand.u32 %v5541, 4294901760
        %v5803 = vsub.f32 %v5541, %v5802
        %v5804 = vand.u32 %v5803, 4294901760
        %5805 = vmatpush.msra.mxu0 %v5804
        %v5806 = vand.u32 %v5540, 4294901760
        %v5807 = vsub.f32 %v5540, %v5806
        %v5808 = vand.u32 %v5807, 4294901760
        %5809 = vmatpush.msra.mxu0 %v5808
        %v5810 = vand.u32 %v5539, 4294901760
        %v5811 = vsub.f32 %v5539, %v5810
        %v5812 = vand.u32 %v5811, 4294901760
        %5813 = vmatpush.msra.mxu0 %v5812
        %v5814 = vand.u32 %v5538, 4294901760
        %v5815 = vsub.f32 %v5538, %v5814
        %v5816 = vand.u32 %v5815, 4294901760
        %5817 = vmatpush.msra.mxu0 %v5816
        %v5818 = vand.u32 %v5537, 4294901760
        %v5819 = vsub.f32 %v5537, %v5818
        %v5820 = vand.u32 %v5819, 4294901760
        %5821 = vmatpush.msra.mxu0 %v5820
        %v5822 = vand.u32 %v5536, 4294901760
        %v5823 = vsub.f32 %v5536, %v5822
        %v5824 = vand.u32 %v5823, 4294901760
        %5825 = vmatpush.msra.mxu0 %v5824
        %v5826 = vand.u32 %v5535, 4294901760
        %v5827 = vsub.f32 %v5535, %v5826
        %v5828 = vand.u32 %v5827, 4294901760
        %5829 = vmatpush.msra.mxu0 %v5828
        %v5830 = vand.u32 %v5534, 4294901760
        %v5831 = vsub.f32 %v5534, %v5830
        %v5832 = vand.u32 %v5831, 4294901760
        %5833 = vmatpush.msra.mxu0 %v5832
        %v5834 = vand.u32 %v5533, 4294901760
        %v5835 = vsub.f32 %v5533, %v5834
        %v5836 = vand.u32 %v5835, 4294901760
        %5837 = vmatpush.msra.mxu0 %v5836
        %v5838 = vand.u32 %v5532, 4294901760
        %v5839 = vsub.f32 %v5532, %v5838
        %v5840 = vand.u32 %v5839, 4294901760
        %5841 = vmatpush.msra.mxu0 %v5840
        %v5842 = vand.u32 %v5531, 4294901760
        %v5843 = vsub.f32 %v5531, %v5842
        %v5844 = vand.u32 %v5843, 4294901760
        %5845 = vmatpush.msra.mxu0 %v5844
        %v5846 = vand.u32 %v5528, 4294901760
        %5847 = vmatmul.f32.gmra.mxu0 %v5846
        %v5848 = vpop.f32.mrf.mxu0
        %v5849 = vadd.f32 %v5780, %v5848
        %5850 = vdwg.mxu0
        %v5851 = vand.u32 %v5546, 4294901760
        %5852 = vmatpush.msra.mxu0 %v5851
        %v5853 = vand.u32 %v5545, 4294901760
        %5854 = vmatpush.msra.mxu0 %v5853
        %v5855 = vand.u32 %v5544, 4294901760
        %5856 = vmatpush.msra.mxu0 %v5855
        %v5857 = vand.u32 %v5543, 4294901760
        %5858 = vmatpush.msra.mxu0 %v5857
        %v5859 = vand.u32 %v5542, 4294901760
        %5860 = vmatpush.msra.mxu0 %v5859
        %v5861 = vand.u32 %v5541, 4294901760
        %5862 = vmatpush.msra.mxu0 %v5861
        %v5863 = vand.u32 %v5540, 4294901760
        %5864 = vmatpush.msra.mxu0 %v5863
        %v5865 = vand.u32 %v5539, 4294901760
        %5866 = vmatpush.msra.mxu0 %v5865
        %v5867 = vand.u32 %v5538, 4294901760
        %5868 = vmatpush.msra.mxu0 %v5867
        %v5869 = vand.u32 %v5537, 4294901760
        %5870 = vmatpush.msra.mxu0 %v5869
        %v5871 = vand.u32 %v5536, 4294901760
        %5872 = vmatpush.msra.mxu0 %v5871
        %v5873 = vand.u32 %v5535, 4294901760
        %5874 = vmatpush.msra.mxu0 %v5873
        %v5875 = vand.u32 %v5534, 4294901760
        %5876 = vmatpush.msra.mxu0 %v5875
        %v5877 = vand.u32 %v5533, 4294901760
        %5878 = vmatpush.msra.mxu0 %v5877
        %v5879 = vand.u32 %v5532, 4294901760
        %5880 = vmatpush.msra.mxu0 %v5879
        %v5881 = vand.u32 %v5531, 4294901760
        %5882 = vmatpush.msra.mxu0 %v5881
        %v5883 = vand.u32 %v5528, 4294901760
        %5884 = vmatmul.f32.gmra.mxu0 %v5883
        %v5885 = vpop.f32.mrf.mxu0
        %v5886 = vadd.f32 %v5849, %v5885
        %5887 = vdwg.mxu0
        %s5888 = scalar_lea.vmem %s136, 2048 [#allocation2]
        %v5889 = vld [vmem:[%s5888] sm:$0xff]
        %v5890 = vld [vmem:[%s5888 + $0x8] sm:$0xff]
        %v5891 = vld [vmem:[%s5888 + $0x10] sm:$0xff]
        %v5892 = vld [vmem:[%s5888 + $0x18] sm:$0xff]
        %v5893 = vld [vmem:[%s5888 + $0x20] sm:$0xff]
        %v5894 = vld [vmem:[%s5888 + $0x28] sm:$0xff]
        %v5895 = vld [vmem:[%s5888 + $0x30] sm:$0xff]
        %v5896 = vld [vmem:[%s5888 + $0x38] sm:$0xff]
        %v5897 = vld [vmem:[%s5888 + $0x40] sm:$0xff]
        %v5898 = vld [vmem:[%s5888 + $0x48] sm:$0xff]
        %v5899 = vld [vmem:[%s5888 + $0x50] sm:$0xff]
        %v5900 = vld [vmem:[%s5888 + $0x58] sm:$0xff]
        %v5901 = vld [vmem:[%s5888 + $0x60] sm:$0xff]
        %v5902 = vld [vmem:[%s5888 + $0x68] sm:$0xff]
        %v5903 = vld [vmem:[%s5888 + $0x70] sm:$0xff]
        %v5904 = vld [vmem:[%s5888 + $0x78] sm:$0xff]
        %v5905 = vand.u32 %v5904, 4294901760
        %5906 = vmatpush.msra.mxu0 %v5905
        %v5907 = vand.u32 %v5903, 4294901760
        %5908 = vmatpush.msra.mxu0 %v5907
        %v5909 = vand.u32 %v5902, 4294901760
        %5910 = vmatpush.msra.mxu0 %v5909
        %v5911 = vand.u32 %v5901, 4294901760
        %5912 = vmatpush.msra.mxu0 %v5911
        %v5913 = vand.u32 %v5900, 4294901760
        %5914 = vmatpush.msra.mxu0 %v5913
        %v5915 = vand.u32 %v5899, 4294901760
        %5916 = vmatpush.msra.mxu0 %v5915
        %v5917 = vand.u32 %v5898, 4294901760
        %5918 = vmatpush.msra.mxu0 %v5917
        %v5919 = vand.u32 %v5897, 4294901760
        %5920 = vmatpush.msra.mxu0 %v5919
        %v5921 = vand.u32 %v5896, 4294901760
        %5922 = vmatpush.msra.mxu0 %v5921
        %v5923 = vand.u32 %v5895, 4294901760
        %5924 = vmatpush.msra.mxu0 %v5923
        %v5925 = vand.u32 %v5894, 4294901760
        %5926 = vmatpush.msra.mxu0 %v5925
        %v5927 = vand.u32 %v5893, 4294901760
        %5928 = vmatpush.msra.mxu0 %v5927
        %v5929 = vand.u32 %v5892, 4294901760
        %5930 = vmatpush.msra.mxu0 %v5929
        %v5931 = vand.u32 %v5891, 4294901760
        %5932 = vmatpush.msra.mxu0 %v5931
        %v5933 = vand.u32 %v5890, 4294901760
        %5934 = vmatpush.msra.mxu0 %v5933
        %v5935 = vand.u32 %v5889, 4294901760
        %5936 = vmatpush.msra.mxu0 %v5935
        %v5937 = vand.u32 %v5886, 4294901760
        %v5938 = vsub.f32 %v5886, %v5937
        %v5939 = vand.u32 %v5938, 4294901760
        %v5940 = vsub.f32 %v5938, %v5939
        %v5941 = vand.u32 %v5940, 4294901760
        %5942 = vmatmul.f32.gmra.mxu0 %v5941
        %v5943 = vpop.f32.mrf.mxu0
        %v5944 = vadd.f32 0.0, %v5943
        %5945 = vdwg.mxu0
        %v5946 = vand.u32 %v5904, 4294901760
        %v5947 = vsub.f32 %v5904, %v5946
        %v5948 = vand.u32 %v5947, 4294901760
        %v5949 = vsub.f32 %v5947, %v5948
        %v5950 = vand.u32 %v5949, 4294901760
        %5951 = vmatpush.msra.mxu0 %v5950
        %v5952 = vand.u32 %v5903, 4294901760
        %v5953 = vsub.f32 %v5903, %v5952
        %v5954 = vand.u32 %v5953, 4294901760
        %v5955 = vsub.f32 %v5953, %v5954
        %v5956 = vand.u32 %v5955, 4294901760
        %5957 = vmatpush.msra.mxu0 %v5956
        %v5958 = vand.u32 %v5902, 4294901760
        %v5959 = vsub.f32 %v5902, %v5958
        %v5960 = vand.u32 %v5959, 4294901760
        %v5961 = vsub.f32 %v5959, %v5960
        %v5962 = vand.u32 %v5961, 4294901760
        %5963 = vmatpush.msra.mxu0 %v5962
        %v5964 = vand.u32 %v5901, 4294901760
        %v5965 = vsub.f32 %v5901, %v5964
        %v5966 = vand.u32 %v5965, 4294901760
        %v5967 = vsub.f32 %v5965, %v5966
        %v5968 = vand.u32 %v5967, 4294901760
        %5969 = vmatpush.msra.mxu0 %v5968
        %v5970 = vand.u32 %v5900, 4294901760
        %v5971 = vsub.f32 %v5900, %v5970
        %v5972 = vand.u32 %v5971, 4294901760
        %v5973 = vsub.f32 %v5971, %v5972
        %v5974 = vand.u32 %v5973, 4294901760
        %5975 = vmatpush.msra.mxu0 %v5974
        %v5976 = vand.u32 %v5899, 4294901760
        %v5977 = vsub.f32 %v5899, %v5976
        %v5978 = vand.u32 %v5977, 4294901760
        %v5979 = vsub.f32 %v5977, %v5978
        %v5980 = vand.u32 %v5979, 4294901760
        %5981 = vmatpush.msra.mxu0 %v5980
        %v5982 = vand.u32 %v5898, 4294901760
        %v5983 = vsub.f32 %v5898, %v5982
        %v5984 = vand.u32 %v5983, 4294901760
        %v5985 = vsub.f32 %v5983, %v5984
        %v5986 = vand.u32 %v5985, 4294901760
        %5987 = vmatpush.msra.mxu0 %v5986
        %v5988 = vand.u32 %v5897, 4294901760
        %v5989 = vsub.f32 %v5897, %v5988
        %v5990 = vand.u32 %v5989, 4294901760
        %v5991 = vsub.f32 %v5989, %v5990
        %v5992 = vand.u32 %v5991, 4294901760
        %5993 = vmatpush.msra.mxu0 %v5992
        %v5994 = vand.u32 %v5896, 4294901760
        %v5995 = vsub.f32 %v5896, %v5994
        %v5996 = vand.u32 %v5995, 4294901760
        %v5997 = vsub.f32 %v5995, %v5996
        %v5998 = vand.u32 %v5997, 4294901760
        %5999 = vmatpush.msra.mxu0 %v5998
        %v6000 = vand.u32 %v5895, 4294901760
        %v6001 = vsub.f32 %v5895, %v6000
        %v6002 = vand.u32 %v6001, 4294901760
        %v6003 = vsub.f32 %v6001, %v6002
        %v6004 = vand.u32 %v6003, 4294901760
        %6005 = vmatpush.msra.mxu0 %v6004
        %v6006 = vand.u32 %v5894, 4294901760
        %v6007 = vsub.f32 %v5894, %v6006
        %v6008 = vand.u32 %v6007, 4294901760
        %v6009 = vsub.f32 %v6007, %v6008
        %v6010 = vand.u32 %v6009, 4294901760
        %6011 = vmatpush.msra.mxu0 %v6010
        %v6012 = vand.u32 %v5893, 4294901760
        %v6013 = vsub.f32 %v5893, %v6012
        %v6014 = vand.u32 %v6013, 4294901760
        %v6015 = vsub.f32 %v6013, %v6014
        %v6016 = vand.u32 %v6015, 4294901760
        %6017 = vmatpush.msra.mxu0 %v6016
        %v6018 = vand.u32 %v5892, 4294901760
        %v6019 = vsub.f32 %v5892, %v6018
        %v6020 = vand.u32 %v6019, 4294901760
        %v6021 = vsub.f32 %v6019, %v6020
        %v6022 = vand.u32 %v6021, 4294901760
        %6023 = vmatpush.msra.mxu0 %v6022
        %v6024 = vand.u32 %v5891, 4294901760
        %v6025 = vsub.f32 %v5891, %v6024
        %v6026 = vand.u32 %v6025, 4294901760
        %v6027 = vsub.f32 %v6025, %v6026
        %v6028 = vand.u32 %v6027, 4294901760
        %6029 = vmatpush.msra.mxu0 %v6028
        %v6030 = vand.u32 %v5890, 4294901760
        %v6031 = vsub.f32 %v5890, %v6030
        %v6032 = vand.u32 %v6031, 4294901760
        %v6033 = vsub.f32 %v6031, %v6032
        %v6034 = vand.u32 %v6033, 4294901760
        %6035 = vmatpush.msra.mxu0 %v6034
        %v6036 = vand.u32 %v5889, 4294901760
        %v6037 = vsub.f32 %v5889, %v6036
        %v6038 = vand.u32 %v6037, 4294901760
        %v6039 = vsub.f32 %v6037, %v6038
        %v6040 = vand.u32 %v6039, 4294901760
        %6041 = vmatpush.msra.mxu0 %v6040
        %v6042 = vand.u32 %v5886, 4294901760
        %6043 = vmatmul.f32.gmra.mxu0 %v6042
        %v6044 = vpop.f32.mrf.mxu0
        %v6045 = vadd.f32 %v5944, %v6044
        %6046 = vdwg.mxu0
        %v6047 = vand.u32 %v5904, 4294901760
        %v6048 = vsub.f32 %v5904, %v6047
        %6049 = vmatpush.msra.mxu0 %v6048
        %v6050 = vand.u32 %v5903, 4294901760
        %v6051 = vsub.f32 %v5903, %v6050
        %6052 = vmatpush.msra.mxu0 %v6051
        %v6053 = vand.u32 %v5902, 4294901760
        %v6054 = vsub.f32 %v5902, %v6053
        %6055 = vmatpush.msra.mxu0 %v6054
        %v6056 = vand.u32 %v5901, 4294901760
        %v6057 = vsub.f32 %v5901, %v6056
        %6058 = vmatpush.msra.mxu0 %v6057
        %v6059 = vand.u32 %v5900, 4294901760
        %v6060 = vsub.f32 %v5900, %v6059
        %6061 = vmatpush.msra.mxu0 %v6060
        %v6062 = vand.u32 %v5899, 4294901760
        %v6063 = vsub.f32 %v5899, %v6062
        %6064 = vmatpush.msra.mxu0 %v6063
        %v6065 = vand.u32 %v5898, 4294901760
        %v6066 = vsub.f32 %v5898, %v6065
        %6067 = vmatpush.msra.mxu0 %v6066
        %v6068 = vand.u32 %v5897, 4294901760
        %v6069 = vsub.f32 %v5897, %v6068
        %6070 = vmatpush.msra.mxu0 %v6069
        %v6071 = vand.u32 %v5896, 4294901760
        %v6072 = vsub.f32 %v5896, %v6071
        %6073 = vmatpush.msra.mxu0 %v6072
        %v6074 = vand.u32 %v5895, 4294901760
        %v6075 = vsub.f32 %v5895, %v6074
        %6076 = vmatpush.msra.mxu0 %v6075
        %v6077 = vand.u32 %v5894, 4294901760
        %v6078 = vsub.f32 %v5894, %v6077
        %6079 = vmatpush.msra.mxu0 %v6078
        %v6080 = vand.u32 %v5893, 4294901760
        %v6081 = vsub.f32 %v5893, %v6080
        %6082 = vmatpush.msra.mxu0 %v6081
        %v6083 = vand.u32 %v5892, 4294901760
        %v6084 = vsub.f32 %v5892, %v6083
        %6085 = vmatpush.msra.mxu0 %v6084
        %v6086 = vand.u32 %v5891, 4294901760
        %v6087 = vsub.f32 %v5891, %v6086
        %6088 = vmatpush.msra.mxu0 %v6087
        %v6089 = vand.u32 %v5890, 4294901760
        %v6090 = vsub.f32 %v5890, %v6089
        %6091 = vmatpush.msra.mxu0 %v6090
        %v6092 = vand.u32 %v5889, 4294901760
        %v6093 = vsub.f32 %v5889, %v6092
        %6094 = vmatpush.msra.mxu0 %v6093
        %v6095 = vand.u32 %v5886, 4294901760
        %v6096 = vsub.f32 %v5886, %v6095
        %6097 = vmatmul.f32.gmra.mxu0 %v6096
        %v6098 = vpop.f32.mrf.mxu0
        %v6099 = vadd.f32 %v6045, %v6098
        %6100 = vdwg.mxu0
        %v6101 = vand.u32 %v5904, 4294901760
        %6102 = vmatpush.msra.mxu0 %v6101
        %v6103 = vand.u32 %v5903, 4294901760
        %6104 = vmatpush.msra.mxu0 %v6103
        %v6105 = vand.u32 %v5902, 4294901760
        %6106 = vmatpush.msra.mxu0 %v6105
        %v6107 = vand.u32 %v5901, 4294901760
        %6108 = vmatpush.msra.mxu0 %v6107
        %v6109 = vand.u32 %v5900, 4294901760
        %6110 = vmatpush.msra.mxu0 %v6109
        %v6111 = vand.u32 %v5899, 4294901760
        %6112 = vmatpush.msra.mxu0 %v6111
        %v6113 = vand.u32 %v5898, 4294901760
        %6114 = vmatpush.msra.mxu0 %v6113
        %v6115 = vand.u32 %v5897, 4294901760
        %6116 = vmatpush.msra.mxu0 %v6115
        %v6117 = vand.u32 %v5896, 4294901760
        %6118 = vmatpush.msra.mxu0 %v6117
        %v6119 = vand.u32 %v5895, 4294901760
        %6120 = vmatpush.msra.mxu0 %v6119
        %v6121 = vand.u32 %v5894, 4294901760
        %6122 = vmatpush.msra.mxu0 %v6121
        %v6123 = vand.u32 %v5893, 4294901760
        %6124 = vmatpush.msra.mxu0 %v6123
        %v6125 = vand.u32 %v5892, 4294901760
        %6126 = vmatpush.msra.mxu0 %v6125
        %v6127 = vand.u32 %v5891, 4294901760
        %6128 = vmatpush.msra.mxu0 %v6127
        %v6129 = vand.u32 %v5890, 4294901760
        %6130 = vmatpush.msra.mxu0 %v6129
        %v6131 = vand.u32 %v5889, 4294901760
        %6132 = vmatpush.msra.mxu0 %v6131
        %v6133 = vand.u32 %v5886, 4294901760
        %v6134 = vsub.f32 %v5886, %v6133
        %v6135 = vand.u32 %v6134, 4294901760
        %6136 = vmatmul.f32.gmra.mxu0 %v6135
        %v6137 = vpop.f32.mrf.mxu0
        %v6138 = vadd.f32 %v6099, %v6137
        %6139 = vdwg.mxu0
        %v6140 = vand.u32 %v5904, 4294901760
        %v6141 = vsub.f32 %v5904, %v6140
        %v6142 = vand.u32 %v6141, 4294901760
        %6143 = vmatpush.msra.mxu0 %v6142
        %v6144 = vand.u32 %v5903, 4294901760
        %v6145 = vsub.f32 %v5903, %v6144
        %v6146 = vand.u32 %v6145, 4294901760
        %6147 = vmatpush.msra.mxu0 %v6146
        %v6148 = vand.u32 %v5902, 4294901760
        %v6149 = vsub.f32 %v5902, %v6148
        %v6150 = vand.u32 %v6149, 4294901760
        %6151 = vmatpush.msra.mxu0 %v6150
        %v6152 = vand.u32 %v5901, 4294901760
        %v6153 = vsub.f32 %v5901, %v6152
        %v6154 = vand.u32 %v6153, 4294901760
        %6155 = vmatpush.msra.mxu0 %v6154
        %v6156 = vand.u32 %v5900, 4294901760
        %v6157 = vsub.f32 %v5900, %v6156
        %v6158 = vand.u32 %v6157, 4294901760
        %6159 = vmatpush.msra.mxu0 %v6158
        %v6160 = vand.u32 %v5899, 4294901760
        %v6161 = vsub.f32 %v5899, %v6160
        %v6162 = vand.u32 %v6161, 4294901760
        %6163 = vmatpush.msra.mxu0 %v6162
        %v6164 = vand.u32 %v5898, 4294901760
        %v6165 = vsub.f32 %v5898, %v6164
        %v6166 = vand.u32 %v6165, 4294901760
        %6167 = vmatpush.msra.mxu0 %v6166
        %v6168 = vand.u32 %v5897, 4294901760
        %v6169 = vsub.f32 %v5897, %v6168
        %v6170 = vand.u32 %v6169, 4294901760
        %6171 = vmatpush.msra.mxu0 %v6170
        %v6172 = vand.u32 %v5896, 4294901760
        %v6173 = vsub.f32 %v5896, %v6172
        %v6174 = vand.u32 %v6173, 4294901760
        %6175 = vmatpush.msra.mxu0 %v6174
        %v6176 = vand.u32 %v5895, 4294901760
        %v6177 = vsub.f32 %v5895, %v6176
        %v6178 = vand.u32 %v6177, 4294901760
        %6179 = vmatpush.msra.mxu0 %v6178
        %v6180 = vand.u32 %v5894, 4294901760
        %v6181 = vsub.f32 %v5894, %v6180
        %v6182 = vand.u32 %v6181, 4294901760
        %6183 = vmatpush.msra.mxu0 %v6182
        %v6184 = vand.u32 %v5893, 4294901760
        %v6185 = vsub.f32 %v5893, %v6184
        %v6186 = vand.u32 %v6185, 4294901760
        %6187 = vmatpush.msra.mxu0 %v6186
        %v6188 = vand.u32 %v5892, 4294901760
        %v6189 = vsub.f32 %v5892, %v6188
        %v6190 = vand.u32 %v6189, 4294901760
        %6191 = vmatpush.msra.mxu0 %v6190
        %v6192 = vand.u32 %v5891, 4294901760
        %v6193 = vsub.f32 %v5891, %v6192
        %v6194 = vand.u32 %v6193, 4294901760
        %6195 = vmatpush.msra.mxu0 %v6194
        %v6196 = vand.u32 %v5890, 4294901760
        %v6197 = vsub.f32 %v5890, %v6196
        %v6198 = vand.u32 %v6197, 4294901760
        %6199 = vmatpush.msra.mxu0 %v6198
        %v6200 = vand.u32 %v5889, 4294901760
        %v6201 = vsub.f32 %v5889, %v6200
        %v6202 = vand.u32 %v6201, 4294901760
        %6203 = vmatpush.msra.mxu0 %v6202
        %v6204 = vand.u32 %v5886, 4294901760
        %6205 = vmatmul.f32.gmra.mxu0 %v6204
        %v6206 = vpop.f32.mrf.mxu0
        %v6207 = vadd.f32 %v6138, %v6206
        %6208 = vdwg.mxu0
        %v6209 = vand.u32 %v5904, 4294901760
        %6210 = vmatpush.msra.mxu0 %v6209
        %v6211 = vand.u32 %v5903, 4294901760
        %6212 = vmatpush.msra.mxu0 %v6211
        %v6213 = vand.u32 %v5902, 4294901760
        %6214 = vmatpush.msra.mxu0 %v6213
        %v6215 = vand.u32 %v5901, 4294901760
        %6216 = vmatpush.msra.mxu0 %v6215
        %v6217 = vand.u32 %v5900, 4294901760
        %6218 = vmatpush.msra.mxu0 %v6217
        %v6219 = vand.u32 %v5899, 4294901760
        %6220 = vmatpush.msra.mxu0 %v6219
        %v6221 = vand.u32 %v5898, 4294901760
        %6222 = vmatpush.msra.mxu0 %v6221
        %v6223 = vand.u32 %v5897, 4294901760
        %6224 = vmatpush.msra.mxu0 %v6223
        %v6225 = vand.u32 %v5896, 4294901760
        %6226 = vmatpush.msra.mxu0 %v6225
        %v6227 = vand.u32 %v5895, 4294901760
        %6228 = vmatpush.msra.mxu0 %v6227
        %v6229 = vand.u32 %v5894, 4294901760
        %6230 = vmatpush.msra.mxu0 %v6229
        %v6231 = vand.u32 %v5893, 4294901760
        %6232 = vmatpush.msra.mxu0 %v6231
        %v6233 = vand.u32 %v5892, 4294901760
        %6234 = vmatpush.msra.mxu0 %v6233
        %v6235 = vand.u32 %v5891, 4294901760
        %6236 = vmatpush.msra.mxu0 %v6235
        %v6237 = vand.u32 %v5890, 4294901760
        %6238 = vmatpush.msra.mxu0 %v6237
        %v6239 = vand.u32 %v5889, 4294901760
        %6240 = vmatpush.msra.mxu0 %v6239
        %v6241 = vand.u32 %v5886, 4294901760
        %6242 = vmatmul.f32.gmra.mxu0 %v6241
        %v6243 = vpop.f32.mrf.mxu0
        %v6244 = vadd.f32 %v6207, %v6243
        %6245 = vdwg.mxu0
        %s6246 = scalar_lea.vmem %s136, 2176 [#allocation2]
        %v6247 = vld [vmem:[%s6246] sm:$0xff]
        %v6248 = vld [vmem:[%s6246 + $0x8] sm:$0xff]
        %v6249 = vld [vmem:[%s6246 + $0x10] sm:$0xff]
        %v6250 = vld [vmem:[%s6246 + $0x18] sm:$0xff]
        %v6251 = vld [vmem:[%s6246 + $0x20] sm:$0xff]
        %v6252 = vld [vmem:[%s6246 + $0x28] sm:$0xff]
        %v6253 = vld [vmem:[%s6246 + $0x30] sm:$0xff]
        %v6254 = vld [vmem:[%s6246 + $0x38] sm:$0xff]
        %v6255 = vld [vmem:[%s6246 + $0x40] sm:$0xff]
        %v6256 = vld [vmem:[%s6246 + $0x48] sm:$0xff]
        %v6257 = vld [vmem:[%s6246 + $0x50] sm:$0xff]
        %v6258 = vld [vmem:[%s6246 + $0x58] sm:$0xff]
        %v6259 = vld [vmem:[%s6246 + $0x60] sm:$0xff]
        %v6260 = vld [vmem:[%s6246 + $0x68] sm:$0xff]
        %v6261 = vld [vmem:[%s6246 + $0x70] sm:$0xff]
        %v6262 = vld [vmem:[%s6246 + $0x78] sm:$0xff]
        %v6263 = vand.u32 %v6262, 4294901760
        %6264 = vmatpush.msra.mxu0 %v6263
        %v6265 = vand.u32 %v6261, 4294901760
        %6266 = vmatpush.msra.mxu0 %v6265
        %v6267 = vand.u32 %v6260, 4294901760
        %6268 = vmatpush.msra.mxu0 %v6267
        %v6269 = vand.u32 %v6259, 4294901760
        %6270 = vmatpush.msra.mxu0 %v6269
        %v6271 = vand.u32 %v6258, 4294901760
        %6272 = vmatpush.msra.mxu0 %v6271
        %v6273 = vand.u32 %v6257, 4294901760
        %6274 = vmatpush.msra.mxu0 %v6273
        %v6275 = vand.u32 %v6256, 4294901760
        %6276 = vmatpush.msra.mxu0 %v6275
        %v6277 = vand.u32 %v6255, 4294901760
        %6278 = vmatpush.msra.mxu0 %v6277
        %v6279 = vand.u32 %v6254, 4294901760
        %6280 = vmatpush.msra.mxu0 %v6279
        %v6281 = vand.u32 %v6253, 4294901760
        %6282 = vmatpush.msra.mxu0 %v6281
        %v6283 = vand.u32 %v6252, 4294901760
        %6284 = vmatpush.msra.mxu0 %v6283
        %v6285 = vand.u32 %v6251, 4294901760
        %6286 = vmatpush.msra.mxu0 %v6285
        %v6287 = vand.u32 %v6250, 4294901760
        %6288 = vmatpush.msra.mxu0 %v6287
        %v6289 = vand.u32 %v6249, 4294901760
        %6290 = vmatpush.msra.mxu0 %v6289
        %v6291 = vand.u32 %v6248, 4294901760
        %6292 = vmatpush.msra.mxu0 %v6291
        %v6293 = vand.u32 %v6247, 4294901760
        %6294 = vmatpush.msra.mxu0 %v6293
        %v6295 = vand.u32 %v6244, 4294901760
        %v6296 = vsub.f32 %v6244, %v6295
        %v6297 = vand.u32 %v6296, 4294901760
        %v6298 = vsub.f32 %v6296, %v6297
        %v6299 = vand.u32 %v6298, 4294901760
        %6300 = vmatmul.f32.gmra.mxu0 %v6299
        %v6301 = vpop.f32.mrf.mxu0
        %v6302 = vadd.f32 0.0, %v6301
        %6303 = vdwg.mxu0
        %v6304 = vand.u32 %v6262, 4294901760
        %v6305 = vsub.f32 %v6262, %v6304
        %v6306 = vand.u32 %v6305, 4294901760
        %v6307 = vsub.f32 %v6305, %v6306
        %v6308 = vand.u32 %v6307, 4294901760
        %6309 = vmatpush.msra.mxu0 %v6308
        %v6310 = vand.u32 %v6261, 4294901760
        %v6311 = vsub.f32 %v6261, %v6310
        %v6312 = vand.u32 %v6311, 4294901760
        %v6313 = vsub.f32 %v6311, %v6312
        %v6314 = vand.u32 %v6313, 4294901760
        %6315 = vmatpush.msra.mxu0 %v6314
        %v6316 = vand.u32 %v6260, 4294901760
        %v6317 = vsub.f32 %v6260, %v6316
        %v6318 = vand.u32 %v6317, 4294901760
        %v6319 = vsub.f32 %v6317, %v6318
        %v6320 = vand.u32 %v6319, 4294901760
        %6321 = vmatpush.msra.mxu0 %v6320
        %v6322 = vand.u32 %v6259, 4294901760
        %v6323 = vsub.f32 %v6259, %v6322
        %v6324 = vand.u32 %v6323, 4294901760
        %v6325 = vsub.f32 %v6323, %v6324
        %v6326 = vand.u32 %v6325, 4294901760
        %6327 = vmatpush.msra.mxu0 %v6326
        %v6328 = vand.u32 %v6258, 4294901760
        %v6329 = vsub.f32 %v6258, %v6328
        %v6330 = vand.u32 %v6329, 4294901760
        %v6331 = vsub.f32 %v6329, %v6330
        %v6332 = vand.u32 %v6331, 4294901760
        %6333 = vmatpush.msra.mxu0 %v6332
        %v6334 = vand.u32 %v6257, 4294901760
        %v6335 = vsub.f32 %v6257, %v6334
        %v6336 = vand.u32 %v6335, 4294901760
        %v6337 = vsub.f32 %v6335, %v6336
        %v6338 = vand.u32 %v6337, 4294901760
        %6339 = vmatpush.msra.mxu0 %v6338
        %v6340 = vand.u32 %v6256, 4294901760
        %v6341 = vsub.f32 %v6256, %v6340
        %v6342 = vand.u32 %v6341, 4294901760
        %v6343 = vsub.f32 %v6341, %v6342
        %v6344 = vand.u32 %v6343, 4294901760
        %6345 = vmatpush.msra.mxu0 %v6344
        %v6346 = vand.u32 %v6255, 4294901760
        %v6347 = vsub.f32 %v6255, %v6346
        %v6348 = vand.u32 %v6347, 4294901760
        %v6349 = vsub.f32 %v6347, %v6348
        %v6350 = vand.u32 %v6349, 4294901760
        %6351 = vmatpush.msra.mxu0 %v6350
        %v6352 = vand.u32 %v6254, 4294901760
        %v6353 = vsub.f32 %v6254, %v6352
        %v6354 = vand.u32 %v6353, 4294901760
        %v6355 = vsub.f32 %v6353, %v6354
        %v6356 = vand.u32 %v6355, 4294901760
        %6357 = vmatpush.msra.mxu0 %v6356
        %v6358 = vand.u32 %v6253, 4294901760
        %v6359 = vsub.f32 %v6253, %v6358
        %v6360 = vand.u32 %v6359, 4294901760
        %v6361 = vsub.f32 %v6359, %v6360
        %v6362 = vand.u32 %v6361, 4294901760
        %6363 = vmatpush.msra.mxu0 %v6362
        %v6364 = vand.u32 %v6252, 4294901760
        %v6365 = vsub.f32 %v6252, %v6364
        %v6366 = vand.u32 %v6365, 4294901760
        %v6367 = vsub.f32 %v6365, %v6366
        %v6368 = vand.u32 %v6367, 4294901760
        %6369 = vmatpush.msra.mxu0 %v6368
        %v6370 = vand.u32 %v6251, 4294901760
        %v6371 = vsub.f32 %v6251, %v6370
        %v6372 = vand.u32 %v6371, 4294901760
        %v6373 = vsub.f32 %v6371, %v6372
        %v6374 = vand.u32 %v6373, 4294901760
        %6375 = vmatpush.msra.mxu0 %v6374
        %v6376 = vand.u32 %v6250, 4294901760
        %v6377 = vsub.f32 %v6250, %v6376
        %v6378 = vand.u32 %v6377, 4294901760
        %v6379 = vsub.f32 %v6377, %v6378
        %v6380 = vand.u32 %v6379, 4294901760
        %6381 = vmatpush.msra.mxu0 %v6380
        %v6382 = vand.u32 %v6249, 4294901760
        %v6383 = vsub.f32 %v6249, %v6382
        %v6384 = vand.u32 %v6383, 4294901760
        %v6385 = vsub.f32 %v6383, %v6384
        %v6386 = vand.u32 %v6385, 4294901760
        %6387 = vmatpush.msra.mxu0 %v6386
        %v6388 = vand.u32 %v6248, 4294901760
        %v6389 = vsub.f32 %v6248, %v6388
        %v6390 = vand.u32 %v6389, 4294901760
        %v6391 = vsub.f32 %v6389, %v6390
        %v6392 = vand.u32 %v6391, 4294901760
        %6393 = vmatpush.msra.mxu0 %v6392
        %v6394 = vand.u32 %v6247, 4294901760
        %v6395 = vsub.f32 %v6247, %v6394
        %v6396 = vand.u32 %v6395, 4294901760
        %v6397 = vsub.f32 %v6395, %v6396
        %v6398 = vand.u32 %v6397, 4294901760
        %6399 = vmatpush.msra.mxu0 %v6398
        %v6400 = vand.u32 %v6244, 4294901760
        %6401 = vmatmul.f32.gmra.mxu0 %v6400
        %v6402 = vpop.f32.mrf.mxu0
        %v6403 = vadd.f32 %v6302, %v6402
        %6404 = vdwg.mxu0
        %v6405 = vand.u32 %v6262, 4294901760
        %v6406 = vsub.f32 %v6262, %v6405
        %6407 = vmatpush.msra.mxu0 %v6406
        %v6408 = vand.u32 %v6261, 4294901760
        %v6409 = vsub.f32 %v6261, %v6408
        %6410 = vmatpush.msra.mxu0 %v6409
        %v6411 = vand.u32 %v6260, 4294901760
        %v6412 = vsub.f32 %v6260, %v6411
        %6413 = vmatpush.msra.mxu0 %v6412
        %v6414 = vand.u32 %v6259, 4294901760
        %v6415 = vsub.f32 %v6259, %v6414
        %6416 = vmatpush.msra.mxu0 %v6415
        %v6417 = vand.u32 %v6258, 4294901760
        %v6418 = vsub.f32 %v6258, %v6417
        %6419 = vmatpush.msra.mxu0 %v6418
        %v6420 = vand.u32 %v6257, 4294901760
        %v6421 = vsub.f32 %v6257, %v6420
        %6422 = vmatpush.msra.mxu0 %v6421
        %v6423 = vand.u32 %v6256, 4294901760
        %v6424 = vsub.f32 %v6256, %v6423
        %6425 = vmatpush.msra.mxu0 %v6424
        %v6426 = vand.u32 %v6255, 4294901760
        %v6427 = vsub.f32 %v6255, %v6426
        %6428 = vmatpush.msra.mxu0 %v6427
        %v6429 = vand.u32 %v6254, 4294901760
        %v6430 = vsub.f32 %v6254, %v6429
        %6431 = vmatpush.msra.mxu0 %v6430
        %v6432 = vand.u32 %v6253, 4294901760
        %v6433 = vsub.f32 %v6253, %v6432
        %6434 = vmatpush.msra.mxu0 %v6433
        %v6435 = vand.u32 %v6252, 4294901760
        %v6436 = vsub.f32 %v6252, %v6435
        %6437 = vmatpush.msra.mxu0 %v6436
        %v6438 = vand.u32 %v6251, 4294901760
        %v6439 = vsub.f32 %v6251, %v6438
        %6440 = vmatpush.msra.mxu0 %v6439
        %v6441 = vand.u32 %v6250, 4294901760
        %v6442 = vsub.f32 %v6250, %v6441
        %6443 = vmatpush.msra.mxu0 %v6442
        %v6444 = vand.u32 %v6249, 4294901760
        %v6445 = vsub.f32 %v6249, %v6444
        %6446 = vmatpush.msra.mxu0 %v6445
        %v6447 = vand.u32 %v6248, 4294901760
        %v6448 = vsub.f32 %v6248, %v6447
        %6449 = vmatpush.msra.mxu0 %v6448
        %v6450 = vand.u32 %v6247, 4294901760
        %v6451 = vsub.f32 %v6247, %v6450
        %6452 = vmatpush.msra.mxu0 %v6451
        %v6453 = vand.u32 %v6244, 4294901760
        %v6454 = vsub.f32 %v6244, %v6453
        %6455 = vmatmul.f32.gmra.mxu0 %v6454
        %v6456 = vpop.f32.mrf.mxu0
        %v6457 = vadd.f32 %v6403, %v6456
        %6458 = vdwg.mxu0
        %v6459 = vand.u32 %v6262, 4294901760
        %6460 = vmatpush.msra.mxu0 %v6459
        %v6461 = vand.u32 %v6261, 4294901760
        %6462 = vmatpush.msra.mxu0 %v6461
        %v6463 = vand.u32 %v6260, 4294901760
        %6464 = vmatpush.msra.mxu0 %v6463
        %v6465 = vand.u32 %v6259, 4294901760
        %6466 = vmatpush.msra.mxu0 %v6465
        %v6467 = vand.u32 %v6258, 4294901760
        %6468 = vmatpush.msra.mxu0 %v6467
        %v6469 = vand.u32 %v6257, 4294901760
        %6470 = vmatpush.msra.mxu0 %v6469
        %v6471 = vand.u32 %v6256, 4294901760
        %6472 = vmatpush.msra.mxu0 %v6471
        %v6473 = vand.u32 %v6255, 4294901760
        %6474 = vmatpush.msra.mxu0 %v6473
        %v6475 = vand.u32 %v6254, 4294901760
        %6476 = vmatpush.msra.mxu0 %v6475
        %v6477 = vand.u32 %v6253, 4294901760
        %6478 = vmatpush.msra.mxu0 %v6477
        %v6479 = vand.u32 %v6252, 4294901760
        %6480 = vmatpush.msra.mxu0 %v6479
        %v6481 = vand.u32 %v6251, 4294901760
        %6482 = vmatpush.msra.mxu0 %v6481
        %v6483 = vand.u32 %v6250, 4294901760
        %6484 = vmatpush.msra.mxu0 %v6483
        %v6485 = vand.u32 %v6249, 4294901760
        %6486 = vmatpush.msra.mxu0 %v6485
        %v6487 = vand.u32 %v6248, 4294901760
        %6488 = vmatpush.msra.mxu0 %v6487
        %v6489 = vand.u32 %v6247, 4294901760
        %6490 = vmatpush.msra.mxu0 %v6489
        %v6491 = vand.u32 %v6244, 4294901760
        %v6492 = vsub.f32 %v6244, %v6491
        %v6493 = vand.u32 %v6492, 4294901760
        %6494 = vmatmul.f32.gmra.mxu0 %v6493
        %v6495 = vpop.f32.mrf.mxu0
        %v6496 = vadd.f32 %v6457, %v6495
        %6497 = vdwg.mxu0
        %v6498 = vand.u32 %v6262, 4294901760
        %v6499 = vsub.f32 %v6262, %v6498
        %v6500 = vand.u32 %v6499, 4294901760
        %6501 = vmatpush.msra.mxu0 %v6500
        %v6502 = vand.u32 %v6261, 4294901760
        %v6503 = vsub.f32 %v6261, %v6502
        %v6504 = vand.u32 %v6503, 4294901760
        %6505 = vmatpush.msra.mxu0 %v6504
        %v6506 = vand.u32 %v6260, 4294901760
        %v6507 = vsub.f32 %v6260, %v6506
        %v6508 = vand.u32 %v6507, 4294901760
        %6509 = vmatpush.msra.mxu0 %v6508
        %v6510 = vand.u32 %v6259, 4294901760
        %v6511 = vsub.f32 %v6259, %v6510
        %v6512 = vand.u32 %v6511, 4294901760
        %6513 = vmatpush.msra.mxu0 %v6512
        %v6514 = vand.u32 %v6258, 4294901760
        %v6515 = vsub.f32 %v6258, %v6514
        %v6516 = vand.u32 %v6515, 4294901760
        %6517 = vmatpush.msra.mxu0 %v6516
        %v6518 = vand.u32 %v6257, 4294901760
        %v6519 = vsub.f32 %v6257, %v6518
        %v6520 = vand.u32 %v6519, 4294901760
        %6521 = vmatpush.msra.mxu0 %v6520
        %v6522 = vand.u32 %v6256, 4294901760
        %v6523 = vsub.f32 %v6256, %v6522
        %v6524 = vand.u32 %v6523, 4294901760
        %6525 = vmatpush.msra.mxu0 %v6524
        %v6526 = vand.u32 %v6255, 4294901760
        %v6527 = vsub.f32 %v6255, %v6526
        %v6528 = vand.u32 %v6527, 4294901760
        %6529 = vmatpush.msra.mxu0 %v6528
        %v6530 = vand.u32 %v6254, 4294901760
        %v6531 = vsub.f32 %v6254, %v6530
        %v6532 = vand.u32 %v6531, 4294901760
        %6533 = vmatpush.msra.mxu0 %v6532
        %v6534 = vand.u32 %v6253, 4294901760
        %v6535 = vsub.f32 %v6253, %v6534
        %v6536 = vand.u32 %v6535, 4294901760
        %6537 = vmatpush.msra.mxu0 %v6536
        %v6538 = vand.u32 %v6252, 4294901760
        %v6539 = vsub.f32 %v6252, %v6538
        %v6540 = vand.u32 %v6539, 4294901760
        %6541 = vmatpush.msra.mxu0 %v6540
        %v6542 = vand.u32 %v6251, 4294901760
        %v6543 = vsub.f32 %v6251, %v6542
        %v6544 = vand.u32 %v6543, 4294901760
        %6545 = vmatpush.msra.mxu0 %v6544
        %v6546 = vand.u32 %v6250, 4294901760
        %v6547 = vsub.f32 %v6250, %v6546
        %v6548 = vand.u32 %v6547, 4294901760
        %6549 = vmatpush.msra.mxu0 %v6548
        %v6550 = vand.u32 %v6249, 4294901760
        %v6551 = vsub.f32 %v6249, %v6550
        %v6552 = vand.u32 %v6551, 4294901760
        %6553 = vmatpush.msra.mxu0 %v6552
        %v6554 = vand.u32 %v6248, 4294901760
        %v6555 = vsub.f32 %v6248, %v6554
        %v6556 = vand.u32 %v6555, 4294901760
        %6557 = vmatpush.msra.mxu0 %v6556
        %v6558 = vand.u32 %v6247, 4294901760
        %v6559 = vsub.f32 %v6247, %v6558
        %v6560 = vand.u32 %v6559, 4294901760
        %6561 = vmatpush.msra.mxu0 %v6560
        %v6562 = vand.u32 %v6244, 4294901760
        %6563 = vmatmul.f32.gmra.mxu0 %v6562
        %v6564 = vpop.f32.mrf.mxu0
        %v6565 = vadd.f32 %v6496, %v6564
        %6566 = vdwg.mxu0
        %v6567 = vand.u32 %v6262, 4294901760
        %6568 = vmatpush.msra.mxu0 %v6567
        %v6569 = vand.u32 %v6261, 4294901760
        %6570 = vmatpush.msra.mxu0 %v6569
        %v6571 = vand.u32 %v6260, 4294901760
        %6572 = vmatpush.msra.mxu0 %v6571
        %v6573 = vand.u32 %v6259, 4294901760
        %6574 = vmatpush.msra.mxu0 %v6573
        %v6575 = vand.u32 %v6258, 4294901760
        %6576 = vmatpush.msra.mxu0 %v6575
        %v6577 = vand.u32 %v6257, 4294901760
        %6578 = vmatpush.msra.mxu0 %v6577
        %v6579 = vand.u32 %v6256, 4294901760
        %6580 = vmatpush.msra.mxu0 %v6579
        %v6581 = vand.u32 %v6255, 4294901760
        %6582 = vmatpush.msra.mxu0 %v6581
        %v6583 = vand.u32 %v6254, 4294901760
        %6584 = vmatpush.msra.mxu0 %v6583
        %v6585 = vand.u32 %v6253, 4294901760
        %6586 = vmatpush.msra.mxu0 %v6585
        %v6587 = vand.u32 %v6252, 4294901760
        %6588 = vmatpush.msra.mxu0 %v6587
        %v6589 = vand.u32 %v6251, 4294901760
        %6590 = vmatpush.msra.mxu0 %v6589
        %v6591 = vand.u32 %v6250, 4294901760
        %6592 = vmatpush.msra.mxu0 %v6591
        %v6593 = vand.u32 %v6249, 4294901760
        %6594 = vmatpush.msra.mxu0 %v6593
        %v6595 = vand.u32 %v6248, 4294901760
        %6596 = vmatpush.msra.mxu0 %v6595
        %v6597 = vand.u32 %v6247, 4294901760
        %6598 = vmatpush.msra.mxu0 %v6597
        %v6599 = vand.u32 %v6244, 4294901760
        %6600 = vmatmul.f32.gmra.mxu0 %v6599
        %v6601 = vpop.f32.mrf.mxu0
        %v6602 = vadd.f32 %v6565, %v6601
        %6603 = vdwg.mxu0
        %s6604 = scalar_lea.vmem %s136, 2304 [#allocation2]
        %v6605 = vld [vmem:[%s6604] sm:$0xff]
        %v6606 = vld [vmem:[%s6604 + $0x8] sm:$0xff]
        %v6607 = vld [vmem:[%s6604 + $0x10] sm:$0xff]
        %v6608 = vld [vmem:[%s6604 + $0x18] sm:$0xff]
        %v6609 = vld [vmem:[%s6604 + $0x20] sm:$0xff]
        %v6610 = vld [vmem:[%s6604 + $0x28] sm:$0xff]
        %v6611 = vld [vmem:[%s6604 + $0x30] sm:$0xff]
        %v6612 = vld [vmem:[%s6604 + $0x38] sm:$0xff]
        %v6613 = vld [vmem:[%s6604 + $0x40] sm:$0xff]
        %v6614 = vld [vmem:[%s6604 + $0x48] sm:$0xff]
        %v6615 = vld [vmem:[%s6604 + $0x50] sm:$0xff]
        %v6616 = vld [vmem:[%s6604 + $0x58] sm:$0xff]
        %v6617 = vld [vmem:[%s6604 + $0x60] sm:$0xff]
        %v6618 = vld [vmem:[%s6604 + $0x68] sm:$0xff]
        %v6619 = vld [vmem:[%s6604 + $0x70] sm:$0xff]
        %v6620 = vld [vmem:[%s6604 + $0x78] sm:$0xff]
        %v6621 = vand.u32 %v6620, 4294901760
        %6622 = vmatpush.msra.mxu0 %v6621
        %v6623 = vand.u32 %v6619, 4294901760
        %6624 = vmatpush.msra.mxu0 %v6623
        %v6625 = vand.u32 %v6618, 4294901760
        %6626 = vmatpush.msra.mxu0 %v6625
        %v6627 = vand.u32 %v6617, 4294901760
        %6628 = vmatpush.msra.mxu0 %v6627
        %v6629 = vand.u32 %v6616, 4294901760
        %6630 = vmatpush.msra.mxu0 %v6629
        %v6631 = vand.u32 %v6615, 4294901760
        %6632 = vmatpush.msra.mxu0 %v6631
        %v6633 = vand.u32 %v6614, 4294901760
        %6634 = vmatpush.msra.mxu0 %v6633
        %v6635 = vand.u32 %v6613, 4294901760
        %6636 = vmatpush.msra.mxu0 %v6635
        %v6637 = vand.u32 %v6612, 4294901760
        %6638 = vmatpush.msra.mxu0 %v6637
        %v6639 = vand.u32 %v6611, 4294901760
        %6640 = vmatpush.msra.mxu0 %v6639
        %v6641 = vand.u32 %v6610, 4294901760
        %6642 = vmatpush.msra.mxu0 %v6641
        %v6643 = vand.u32 %v6609, 4294901760
        %6644 = vmatpush.msra.mxu0 %v6643
        %v6645 = vand.u32 %v6608, 4294901760
        %6646 = vmatpush.msra.mxu0 %v6645
        %v6647 = vand.u32 %v6607, 4294901760
        %6648 = vmatpush.msra.mxu0 %v6647
        %v6649 = vand.u32 %v6606, 4294901760
        %6650 = vmatpush.msra.mxu0 %v6649
        %v6651 = vand.u32 %v6605, 4294901760
        %6652 = vmatpush.msra.mxu0 %v6651
        %v6653 = vand.u32 %v6602, 4294901760
        %v6654 = vsub.f32 %v6602, %v6653
        %v6655 = vand.u32 %v6654, 4294901760
        %v6656 = vsub.f32 %v6654, %v6655
        %v6657 = vand.u32 %v6656, 4294901760
        %6658 = vmatmul.f32.gmra.mxu0 %v6657
        %v6659 = vpop.f32.mrf.mxu0
        %v6660 = vadd.f32 0.0, %v6659
        %6661 = vdwg.mxu0
        %v6662 = vand.u32 %v6620, 4294901760
        %v6663 = vsub.f32 %v6620, %v6662
        %v6664 = vand.u32 %v6663, 4294901760
        %v6665 = vsub.f32 %v6663, %v6664
        %v6666 = vand.u32 %v6665, 4294901760
        %6667 = vmatpush.msra.mxu0 %v6666
        %v6668 = vand.u32 %v6619, 4294901760
        %v6669 = vsub.f32 %v6619, %v6668
        %v6670 = vand.u32 %v6669, 4294901760
        %v6671 = vsub.f32 %v6669, %v6670
        %v6672 = vand.u32 %v6671, 4294901760
        %6673 = vmatpush.msra.mxu0 %v6672
        %v6674 = vand.u32 %v6618, 4294901760
        %v6675 = vsub.f32 %v6618, %v6674
        %v6676 = vand.u32 %v6675, 4294901760
        %v6677 = vsub.f32 %v6675, %v6676
        %v6678 = vand.u32 %v6677, 4294901760
        %6679 = vmatpush.msra.mxu0 %v6678
        %v6680 = vand.u32 %v6617, 4294901760
        %v6681 = vsub.f32 %v6617, %v6680
        %v6682 = vand.u32 %v6681, 4294901760
        %v6683 = vsub.f32 %v6681, %v6682
        %v6684 = vand.u32 %v6683, 4294901760
        %6685 = vmatpush.msra.mxu0 %v6684
        %v6686 = vand.u32 %v6616, 4294901760
        %v6687 = vsub.f32 %v6616, %v6686
        %v6688 = vand.u32 %v6687, 4294901760
        %v6689 = vsub.f32 %v6687, %v6688
        %v6690 = vand.u32 %v6689, 4294901760
        %6691 = vmatpush.msra.mxu0 %v6690
        %v6692 = vand.u32 %v6615, 4294901760
        %v6693 = vsub.f32 %v6615, %v6692
        %v6694 = vand.u32 %v6693, 4294901760
        %v6695 = vsub.f32 %v6693, %v6694
        %v6696 = vand.u32 %v6695, 4294901760
        %6697 = vmatpush.msra.mxu0 %v6696
        %v6698 = vand.u32 %v6614, 4294901760
        %v6699 = vsub.f32 %v6614, %v6698
        %v6700 = vand.u32 %v6699, 4294901760
        %v6701 = vsub.f32 %v6699, %v6700
        %v6702 = vand.u32 %v6701, 4294901760
        %6703 = vmatpush.msra.mxu0 %v6702
        %v6704 = vand.u32 %v6613, 4294901760
        %v6705 = vsub.f32 %v6613, %v6704
        %v6706 = vand.u32 %v6705, 4294901760
        %v6707 = vsub.f32 %v6705, %v6706
        %v6708 = vand.u32 %v6707, 4294901760
        %6709 = vmatpush.msra.mxu0 %v6708
        %v6710 = vand.u32 %v6612, 4294901760
        %v6711 = vsub.f32 %v6612, %v6710
        %v6712 = vand.u32 %v6711, 4294901760
        %v6713 = vsub.f32 %v6711, %v6712
        %v6714 = vand.u32 %v6713, 4294901760
        %6715 = vmatpush.msra.mxu0 %v6714
        %v6716 = vand.u32 %v6611, 4294901760
        %v6717 = vsub.f32 %v6611, %v6716
        %v6718 = vand.u32 %v6717, 4294901760
        %v6719 = vsub.f32 %v6717, %v6718
        %v6720 = vand.u32 %v6719, 4294901760
        %6721 = vmatpush.msra.mxu0 %v6720
        %v6722 = vand.u32 %v6610, 4294901760
        %v6723 = vsub.f32 %v6610, %v6722
        %v6724 = vand.u32 %v6723, 4294901760
        %v6725 = vsub.f32 %v6723, %v6724
        %v6726 = vand.u32 %v6725, 4294901760
        %6727 = vmatpush.msra.mxu0 %v6726
        %v6728 = vand.u32 %v6609, 4294901760
        %v6729 = vsub.f32 %v6609, %v6728
        %v6730 = vand.u32 %v6729, 4294901760
        %v6731 = vsub.f32 %v6729, %v6730
        %v6732 = vand.u32 %v6731, 4294901760
        %6733 = vmatpush.msra.mxu0 %v6732
        %v6734 = vand.u32 %v6608, 4294901760
        %v6735 = vsub.f32 %v6608, %v6734
        %v6736 = vand.u32 %v6735, 4294901760
        %v6737 = vsub.f32 %v6735, %v6736
        %v6738 = vand.u32 %v6737, 4294901760
        %6739 = vmatpush.msra.mxu0 %v6738
        %v6740 = vand.u32 %v6607, 4294901760
        %v6741 = vsub.f32 %v6607, %v6740
        %v6742 = vand.u32 %v6741, 4294901760
        %v6743 = vsub.f32 %v6741, %v6742
        %v6744 = vand.u32 %v6743, 4294901760
        %6745 = vmatpush.msra.mxu0 %v6744
        %v6746 = vand.u32 %v6606, 4294901760
        %v6747 = vsub.f32 %v6606, %v6746
        %v6748 = vand.u32 %v6747, 4294901760
        %v6749 = vsub.f32 %v6747, %v6748
        %v6750 = vand.u32 %v6749, 4294901760
        %6751 = vmatpush.msra.mxu0 %v6750
        %v6752 = vand.u32 %v6605, 4294901760
        %v6753 = vsub.f32 %v6605, %v6752
        %v6754 = vand.u32 %v6753, 4294901760
        %v6755 = vsub.f32 %v6753, %v6754
        %v6756 = vand.u32 %v6755, 4294901760
        %6757 = vmatpush.msra.mxu0 %v6756
        %v6758 = vand.u32 %v6602, 4294901760
        %6759 = vmatmul.f32.gmra.mxu0 %v6758
        %v6760 = vpop.f32.mrf.mxu0
        %v6761 = vadd.f32 %v6660, %v6760
        %6762 = vdwg.mxu0
        %v6763 = vand.u32 %v6620, 4294901760
        %v6764 = vsub.f32 %v6620, %v6763
        %6765 = vmatpush.msra.mxu0 %v6764
        %v6766 = vand.u32 %v6619, 4294901760
        %v6767 = vsub.f32 %v6619, %v6766
        %6768 = vmatpush.msra.mxu0 %v6767
        %v6769 = vand.u32 %v6618, 4294901760
        %v6770 = vsub.f32 %v6618, %v6769
        %6771 = vmatpush.msra.mxu0 %v6770
        %v6772 = vand.u32 %v6617, 4294901760
        %v6773 = vsub.f32 %v6617, %v6772
        %6774 = vmatpush.msra.mxu0 %v6773
        %v6775 = vand.u32 %v6616, 4294901760
        %v6776 = vsub.f32 %v6616, %v6775
        %6777 = vmatpush.msra.mxu0 %v6776
        %v6778 = vand.u32 %v6615, 4294901760
        %v6779 = vsub.f32 %v6615, %v6778
        %6780 = vmatpush.msra.mxu0 %v6779
        %v6781 = vand.u32 %v6614, 4294901760
        %v6782 = vsub.f32 %v6614, %v6781
        %6783 = vmatpush.msra.mxu0 %v6782
        %v6784 = vand.u32 %v6613, 4294901760
        %v6785 = vsub.f32 %v6613, %v6784
        %6786 = vmatpush.msra.mxu0 %v6785
        %v6787 = vand.u32 %v6612, 4294901760
        %v6788 = vsub.f32 %v6612, %v6787
        %6789 = vmatpush.msra.mxu0 %v6788
        %v6790 = vand.u32 %v6611, 4294901760
        %v6791 = vsub.f32 %v6611, %v6790
        %6792 = vmatpush.msra.mxu0 %v6791
        %v6793 = vand.u32 %v6610, 4294901760
        %v6794 = vsub.f32 %v6610, %v6793
        %6795 = vmatpush.msra.mxu0 %v6794
        %v6796 = vand.u32 %v6609, 4294901760
        %v6797 = vsub.f32 %v6609, %v6796
        %6798 = vmatpush.msra.mxu0 %v6797
        %v6799 = vand.u32 %v6608, 4294901760
        %v6800 = vsub.f32 %v6608, %v6799
        %6801 = vmatpush.msra.mxu0 %v6800
        %v6802 = vand.u32 %v6607, 4294901760
        %v6803 = vsub.f32 %v6607, %v6802
        %6804 = vmatpush.msra.mxu0 %v6803
        %v6805 = vand.u32 %v6606, 4294901760
        %v6806 = vsub.f32 %v6606, %v6805
        %6807 = vmatpush.msra.mxu0 %v6806
        %v6808 = vand.u32 %v6605, 4294901760
        %v6809 = vsub.f32 %v6605, %v6808
        %6810 = vmatpush.msra.mxu0 %v6809
        %v6811 = vand.u32 %v6602, 4294901760
        %v6812 = vsub.f32 %v6602, %v6811
        %6813 = vmatmul.f32.gmra.mxu0 %v6812
        %v6814 = vpop.f32.mrf.mxu0
        %v6815 = vadd.f32 %v6761, %v6814
        %6816 = vdwg.mxu0
        %v6817 = vand.u32 %v6620, 4294901760
        %6818 = vmatpush.msra.mxu0 %v6817
        %v6819 = vand.u32 %v6619, 4294901760
        %6820 = vmatpush.msra.mxu0 %v6819
        %v6821 = vand.u32 %v6618, 4294901760
        %6822 = vmatpush.msra.mxu0 %v6821
        %v6823 = vand.u32 %v6617, 4294901760
        %6824 = vmatpush.msra.mxu0 %v6823
        %v6825 = vand.u32 %v6616, 4294901760
        %6826 = vmatpush.msra.mxu0 %v6825
        %v6827 = vand.u32 %v6615, 4294901760
        %6828 = vmatpush.msra.mxu0 %v6827
        %v6829 = vand.u32 %v6614, 4294901760
        %6830 = vmatpush.msra.mxu0 %v6829
        %v6831 = vand.u32 %v6613, 4294901760
        %6832 = vmatpush.msra.mxu0 %v6831
        %v6833 = vand.u32 %v6612, 4294901760
        %6834 = vmatpush.msra.mxu0 %v6833
        %v6835 = vand.u32 %v6611, 4294901760
        %6836 = vmatpush.msra.mxu0 %v6835
        %v6837 = vand.u32 %v6610, 4294901760
        %6838 = vmatpush.msra.mxu0 %v6837
        %v6839 = vand.u32 %v6609, 4294901760
        %6840 = vmatpush.msra.mxu0 %v6839
        %v6841 = vand.u32 %v6608, 4294901760
        %6842 = vmatpush.msra.mxu0 %v6841
        %v6843 = vand.u32 %v6607, 4294901760
        %6844 = vmatpush.msra.mxu0 %v6843
        %v6845 = vand.u32 %v6606, 4294901760
        %6846 = vmatpush.msra.mxu0 %v6845
        %v6847 = vand.u32 %v6605, 4294901760
        %6848 = vmatpush.msra.mxu0 %v6847
        %v6849 = vand.u32 %v6602, 4294901760
        %v6850 = vsub.f32 %v6602, %v6849
        %v6851 = vand.u32 %v6850, 4294901760
        %6852 = vmatmul.f32.gmra.mxu0 %v6851
        %v6853 = vpop.f32.mrf.mxu0
        %v6854 = vadd.f32 %v6815, %v6853
        %6855 = vdwg.mxu0
        %v6856 = vand.u32 %v6620, 4294901760
        %v6857 = vsub.f32 %v6620, %v6856
        %v6858 = vand.u32 %v6857, 4294901760
        %6859 = vmatpush.msra.mxu0 %v6858
        %v6860 = vand.u32 %v6619, 4294901760
        %v6861 = vsub.f32 %v6619, %v6860
        %v6862 = vand.u32 %v6861, 4294901760
        %6863 = vmatpush.msra.mxu0 %v6862
        %v6864 = vand.u32 %v6618, 4294901760
        %v6865 = vsub.f32 %v6618, %v6864
        %v6866 = vand.u32 %v6865, 4294901760
        %6867 = vmatpush.msra.mxu0 %v6866
        %v6868 = vand.u32 %v6617, 4294901760
        %v6869 = vsub.f32 %v6617, %v6868
        %v6870 = vand.u32 %v6869, 4294901760
        %6871 = vmatpush.msra.mxu0 %v6870
        %v6872 = vand.u32 %v6616, 4294901760
        %v6873 = vsub.f32 %v6616, %v6872
        %v6874 = vand.u32 %v6873, 4294901760
        %6875 = vmatpush.msra.mxu0 %v6874
        %v6876 = vand.u32 %v6615, 4294901760
        %v6877 = vsub.f32 %v6615, %v6876
        %v6878 = vand.u32 %v6877, 4294901760
        %6879 = vmatpush.msra.mxu0 %v6878
        %v6880 = vand.u32 %v6614, 4294901760
        %v6881 = vsub.f32 %v6614, %v6880
        %v6882 = vand.u32 %v6881, 4294901760
        %6883 = vmatpush.msra.mxu0 %v6882
        %v6884 = vand.u32 %v6613, 4294901760
        %v6885 = vsub.f32 %v6613, %v6884
        %v6886 = vand.u32 %v6885, 4294901760
        %6887 = vmatpush.msra.mxu0 %v6886
        %v6888 = vand.u32 %v6612, 4294901760
        %v6889 = vsub.f32 %v6612, %v6888
        %v6890 = vand.u32 %v6889, 4294901760
        %6891 = vmatpush.msra.mxu0 %v6890
        %v6892 = vand.u32 %v6611, 4294901760
        %v6893 = vsub.f32 %v6611, %v6892
        %v6894 = vand.u32 %v6893, 4294901760
        %6895 = vmatpush.msra.mxu0 %v6894
        %v6896 = vand.u32 %v6610, 4294901760
        %v6897 = vsub.f32 %v6610, %v6896
        %v6898 = vand.u32 %v6897, 4294901760
        %6899 = vmatpush.msra.mxu0 %v6898
        %v6900 = vand.u32 %v6609, 4294901760
        %v6901 = vsub.f32 %v6609, %v6900
        %v6902 = vand.u32 %v6901, 4294901760
        %6903 = vmatpush.msra.mxu0 %v6902
        %v6904 = vand.u32 %v6608, 4294901760
        %v6905 = vsub.f32 %v6608, %v6904
        %v6906 = vand.u32 %v6905, 4294901760
        %6907 = vmatpush.msra.mxu0 %v6906
        %v6908 = vand.u32 %v6607, 4294901760
        %v6909 = vsub.f32 %v6607, %v6908
        %v6910 = vand.u32 %v6909, 4294901760
        %6911 = vmatpush.msra.mxu0 %v6910
        %v6912 = vand.u32 %v6606, 4294901760
        %v6913 = vsub.f32 %v6606, %v6912
        %v6914 = vand.u32 %v6913, 4294901760
        %6915 = vmatpush.msra.mxu0 %v6914
        %v6916 = vand.u32 %v6605, 4294901760
        %v6917 = vsub.f32 %v6605, %v6916
        %v6918 = vand.u32 %v6917, 4294901760
        %6919 = vmatpush.msra.mxu0 %v6918
        %v6920 = vand.u32 %v6602, 4294901760
        %6921 = vmatmul.f32.gmra.mxu0 %v6920
        %v6922 = vpop.f32.mrf.mxu0
        %v6923 = vadd.f32 %v6854, %v6922
        %6924 = vdwg.mxu0
        %v6925 = vand.u32 %v6620, 4294901760
        %6926 = vmatpush.msra.mxu0 %v6925
        %v6927 = vand.u32 %v6619, 4294901760
        %6928 = vmatpush.msra.mxu0 %v6927
        %v6929 = vand.u32 %v6618, 4294901760
        %6930 = vmatpush.msra.mxu0 %v6929
        %v6931 = vand.u32 %v6617, 4294901760
        %6932 = vmatpush.msra.mxu0 %v6931
        %v6933 = vand.u32 %v6616, 4294901760
        %6934 = vmatpush.msra.mxu0 %v6933
        %v6935 = vand.u32 %v6615, 4294901760
        %6936 = vmatpush.msra.mxu0 %v6935
        %v6937 = vand.u32 %v6614, 4294901760
        %6938 = vmatpush.msra.mxu0 %v6937
        %v6939 = vand.u32 %v6613, 4294901760
        %6940 = vmatpush.msra.mxu0 %v6939
        %v6941 = vand.u32 %v6612, 4294901760
        %6942 = vmatpush.msra.mxu0 %v6941
        %v6943 = vand.u32 %v6611, 4294901760
        %6944 = vmatpush.msra.mxu0 %v6943
        %v6945 = vand.u32 %v6610, 4294901760
        %6946 = vmatpush.msra.mxu0 %v6945
        %v6947 = vand.u32 %v6609, 4294901760
        %6948 = vmatpush.msra.mxu0 %v6947
        %v6949 = vand.u32 %v6608, 4294901760
        %6950 = vmatpush.msra.mxu0 %v6949
        %v6951 = vand.u32 %v6607, 4294901760
        %6952 = vmatpush.msra.mxu0 %v6951
        %v6953 = vand.u32 %v6606, 4294901760
        %6954 = vmatpush.msra.mxu0 %v6953
        %v6955 = vand.u32 %v6605, 4294901760
        %6956 = vmatpush.msra.mxu0 %v6955
        %v6957 = vand.u32 %v6602, 4294901760
        %6958 = vmatmul.f32.gmra.mxu0 %v6957
        %v6959 = vpop.f32.mrf.mxu0
        %v6960 = vadd.f32 %v6923, %v6959
        %6961 = vdwg.mxu0
        %s6962 = scalar_lea.vmem %s136, 2432 [#allocation2]
        %v6963 = vld [vmem:[%s6962] sm:$0xff]
        %v6964 = vld [vmem:[%s6962 + $0x8] sm:$0xff]
        %v6965 = vld [vmem:[%s6962 + $0x10] sm:$0xff]
        %v6966 = vld [vmem:[%s6962 + $0x18] sm:$0xff]
        %v6967 = vld [vmem:[%s6962 + $0x20] sm:$0xff]
        %v6968 = vld [vmem:[%s6962 + $0x28] sm:$0xff]
        %v6969 = vld [vmem:[%s6962 + $0x30] sm:$0xff]
        %v6970 = vld [vmem:[%s6962 + $0x38] sm:$0xff]
        %v6971 = vld [vmem:[%s6962 + $0x40] sm:$0xff]
        %v6972 = vld [vmem:[%s6962 + $0x48] sm:$0xff]
        %v6973 = vld [vmem:[%s6962 + $0x50] sm:$0xff]
        %v6974 = vld [vmem:[%s6962 + $0x58] sm:$0xff]
        %v6975 = vld [vmem:[%s6962 + $0x60] sm:$0xff]
        %v6976 = vld [vmem:[%s6962 + $0x68] sm:$0xff]
        %v6977 = vld [vmem:[%s6962 + $0x70] sm:$0xff]
        %v6978 = vld [vmem:[%s6962 + $0x78] sm:$0xff]
        %v6979 = vand.u32 %v6978, 4294901760
        %6980 = vmatpush.msra.mxu0 %v6979
        %v6981 = vand.u32 %v6977, 4294901760
        %6982 = vmatpush.msra.mxu0 %v6981
        %v6983 = vand.u32 %v6976, 4294901760
        %6984 = vmatpush.msra.mxu0 %v6983
        %v6985 = vand.u32 %v6975, 4294901760
        %6986 = vmatpush.msra.mxu0 %v6985
        %v6987 = vand.u32 %v6974, 4294901760
        %6988 = vmatpush.msra.mxu0 %v6987
        %v6989 = vand.u32 %v6973, 4294901760
        %6990 = vmatpush.msra.mxu0 %v6989
        %v6991 = vand.u32 %v6972, 4294901760
        %6992 = vmatpush.msra.mxu0 %v6991
        %v6993 = vand.u32 %v6971, 4294901760
        %6994 = vmatpush.msra.mxu0 %v6993
        %v6995 = vand.u32 %v6970, 4294901760
        %6996 = vmatpush.msra.mxu0 %v6995
        %v6997 = vand.u32 %v6969, 4294901760
        %6998 = vmatpush.msra.mxu0 %v6997
        %v6999 = vand.u32 %v6968, 4294901760
        %7000 = vmatpush.msra.mxu0 %v6999
        %v7001 = vand.u32 %v6967, 4294901760
        %7002 = vmatpush.msra.mxu0 %v7001
        %v7003 = vand.u32 %v6966, 4294901760
        %7004 = vmatpush.msra.mxu0 %v7003
        %v7005 = vand.u32 %v6965, 4294901760
        %7006 = vmatpush.msra.mxu0 %v7005
        %v7007 = vand.u32 %v6964, 4294901760
        %7008 = vmatpush.msra.mxu0 %v7007
        %v7009 = vand.u32 %v6963, 4294901760
        %7010 = vmatpush.msra.mxu0 %v7009
        %v7011 = vand.u32 %v6960, 4294901760
        %v7012 = vsub.f32 %v6960, %v7011
        %v7013 = vand.u32 %v7012, 4294901760
        %v7014 = vsub.f32 %v7012, %v7013
        %v7015 = vand.u32 %v7014, 4294901760
        %7016 = vmatmul.f32.gmra.mxu0 %v7015
        %v7017 = vpop.f32.mrf.mxu0
        %v7018 = vadd.f32 0.0, %v7017
        %7019 = vdwg.mxu0
        %v7020 = vand.u32 %v6978, 4294901760
        %v7021 = vsub.f32 %v6978, %v7020
        %v7022 = vand.u32 %v7021, 4294901760
        %v7023 = vsub.f32 %v7021, %v7022
        %v7024 = vand.u32 %v7023, 4294901760
        %7025 = vmatpush.msra.mxu0 %v7024
        %v7026 = vand.u32 %v6977, 4294901760
        %v7027 = vsub.f32 %v6977, %v7026
        %v7028 = vand.u32 %v7027, 4294901760
        %v7029 = vsub.f32 %v7027, %v7028
        %v7030 = vand.u32 %v7029, 4294901760
        %7031 = vmatpush.msra.mxu0 %v7030
        %v7032 = vand.u32 %v6976, 4294901760
        %v7033 = vsub.f32 %v6976, %v7032
        %v7034 = vand.u32 %v7033, 4294901760
        %v7035 = vsub.f32 %v7033, %v7034
        %v7036 = vand.u32 %v7035, 4294901760
        %7037 = vmatpush.msra.mxu0 %v7036
        %v7038 = vand.u32 %v6975, 4294901760
        %v7039 = vsub.f32 %v6975, %v7038
        %v7040 = vand.u32 %v7039, 4294901760
        %v7041 = vsub.f32 %v7039, %v7040
        %v7042 = vand.u32 %v7041, 4294901760
        %7043 = vmatpush.msra.mxu0 %v7042
        %v7044 = vand.u32 %v6974, 4294901760
        %v7045 = vsub.f32 %v6974, %v7044
        %v7046 = vand.u32 %v7045, 4294901760
        %v7047 = vsub.f32 %v7045, %v7046
        %v7048 = vand.u32 %v7047, 4294901760
        %7049 = vmatpush.msra.mxu0 %v7048
        %v7050 = vand.u32 %v6973, 4294901760
        %v7051 = vsub.f32 %v6973, %v7050
        %v7052 = vand.u32 %v7051, 4294901760
        %v7053 = vsub.f32 %v7051, %v7052
        %v7054 = vand.u32 %v7053, 4294901760
        %7055 = vmatpush.msra.mxu0 %v7054
        %v7056 = vand.u32 %v6972, 4294901760
        %v7057 = vsub.f32 %v6972, %v7056
        %v7058 = vand.u32 %v7057, 4294901760
        %v7059 = vsub.f32 %v7057, %v7058
        %v7060 = vand.u32 %v7059, 4294901760
        %7061 = vmatpush.msra.mxu0 %v7060
        %v7062 = vand.u32 %v6971, 4294901760
        %v7063 = vsub.f32 %v6971, %v7062
        %v7064 = vand.u32 %v7063, 4294901760
        %v7065 = vsub.f32 %v7063, %v7064
        %v7066 = vand.u32 %v7065, 4294901760
        %7067 = vmatpush.msra.mxu0 %v7066
        %v7068 = vand.u32 %v6970, 4294901760
        %v7069 = vsub.f32 %v6970, %v7068
        %v7070 = vand.u32 %v7069, 4294901760
        %v7071 = vsub.f32 %v7069, %v7070
        %v7072 = vand.u32 %v7071, 4294901760
        %7073 = vmatpush.msra.mxu0 %v7072
        %v7074 = vand.u32 %v6969, 4294901760
        %v7075 = vsub.f32 %v6969, %v7074
        %v7076 = vand.u32 %v7075, 4294901760
        %v7077 = vsub.f32 %v7075, %v7076
        %v7078 = vand.u32 %v7077, 4294901760
        %7079 = vmatpush.msra.mxu0 %v7078
        %v7080 = vand.u32 %v6968, 4294901760
        %v7081 = vsub.f32 %v6968, %v7080
        %v7082 = vand.u32 %v7081, 4294901760
        %v7083 = vsub.f32 %v7081, %v7082
        %v7084 = vand.u32 %v7083, 4294901760
        %7085 = vmatpush.msra.mxu0 %v7084
        %v7086 = vand.u32 %v6967, 4294901760
        %v7087 = vsub.f32 %v6967, %v7086
        %v7088 = vand.u32 %v7087, 4294901760
        %v7089 = vsub.f32 %v7087, %v7088
        %v7090 = vand.u32 %v7089, 4294901760
        %7091 = vmatpush.msra.mxu0 %v7090
        %v7092 = vand.u32 %v6966, 4294901760
        %v7093 = vsub.f32 %v6966, %v7092
        %v7094 = vand.u32 %v7093, 4294901760
        %v7095 = vsub.f32 %v7093, %v7094
        %v7096 = vand.u32 %v7095, 4294901760
        %7097 = vmatpush.msra.mxu0 %v7096
        %v7098 = vand.u32 %v6965, 4294901760
        %v7099 = vsub.f32 %v6965, %v7098
        %v7100 = vand.u32 %v7099, 4294901760
        %v7101 = vsub.f32 %v7099, %v7100
        %v7102 = vand.u32 %v7101, 4294901760
        %7103 = vmatpush.msra.mxu0 %v7102
        %v7104 = vand.u32 %v6964, 4294901760
        %v7105 = vsub.f32 %v6964, %v7104
        %v7106 = vand.u32 %v7105, 4294901760
        %v7107 = vsub.f32 %v7105, %v7106
        %v7108 = vand.u32 %v7107, 4294901760
        %7109 = vmatpush.msra.mxu0 %v7108
        %v7110 = vand.u32 %v6963, 4294901760
        %v7111 = vsub.f32 %v6963, %v7110
        %v7112 = vand.u32 %v7111, 4294901760
        %v7113 = vsub.f32 %v7111, %v7112
        %v7114 = vand.u32 %v7113, 4294901760
        %7115 = vmatpush.msra.mxu0 %v7114
        %v7116 = vand.u32 %v6960, 4294901760
        %7117 = vmatmul.f32.gmra.mxu0 %v7116
        %v7118 = vpop.f32.mrf.mxu0
        %v7119 = vadd.f32 %v7018, %v7118
        %7120 = vdwg.mxu0
        %v7121 = vand.u32 %v6978, 4294901760
        %v7122 = vsub.f32 %v6978, %v7121
        %7123 = vmatpush.msra.mxu0 %v7122
        %v7124 = vand.u32 %v6977, 4294901760
        %v7125 = vsub.f32 %v6977, %v7124
        %7126 = vmatpush.msra.mxu0 %v7125
        %v7127 = vand.u32 %v6976, 4294901760
        %v7128 = vsub.f32 %v6976, %v7127
        %7129 = vmatpush.msra.mxu0 %v7128
        %v7130 = vand.u32 %v6975, 4294901760
        %v7131 = vsub.f32 %v6975, %v7130
        %7132 = vmatpush.msra.mxu0 %v7131
        %v7133 = vand.u32 %v6974, 4294901760
        %v7134 = vsub.f32 %v6974, %v7133
        %7135 = vmatpush.msra.mxu0 %v7134
        %v7136 = vand.u32 %v6973, 4294901760
        %v7137 = vsub.f32 %v6973, %v7136
        %7138 = vmatpush.msra.mxu0 %v7137
        %v7139 = vand.u32 %v6972, 4294901760
        %v7140 = vsub.f32 %v6972, %v7139
        %7141 = vmatpush.msra.mxu0 %v7140
        %v7142 = vand.u32 %v6971, 4294901760
        %v7143 = vsub.f32 %v6971, %v7142
        %7144 = vmatpush.msra.mxu0 %v7143
        %v7145 = vand.u32 %v6970, 4294901760
        %v7146 = vsub.f32 %v6970, %v7145
        %7147 = vmatpush.msra.mxu0 %v7146
        %v7148 = vand.u32 %v6969, 4294901760
        %v7149 = vsub.f32 %v6969, %v7148
        %7150 = vmatpush.msra.mxu0 %v7149
        %v7151 = vand.u32 %v6968, 4294901760
        %v7152 = vsub.f32 %v6968, %v7151
        %7153 = vmatpush.msra.mxu0 %v7152
        %v7154 = vand.u32 %v6967, 4294901760
        %v7155 = vsub.f32 %v6967, %v7154
        %7156 = vmatpush.msra.mxu0 %v7155
        %v7157 = vand.u32 %v6966, 4294901760
        %v7158 = vsub.f32 %v6966, %v7157
        %7159 = vmatpush.msra.mxu0 %v7158
        %v7160 = vand.u32 %v6965, 4294901760
        %v7161 = vsub.f32 %v6965, %v7160
        %7162 = vmatpush.msra.mxu0 %v7161
        %v7163 = vand.u32 %v6964, 4294901760
        %v7164 = vsub.f32 %v6964, %v7163
        %7165 = vmatpush.msra.mxu0 %v7164
        %v7166 = vand.u32 %v6963, 4294901760
        %v7167 = vsub.f32 %v6963, %v7166
        %7168 = vmatpush.msra.mxu0 %v7167
        %v7169 = vand.u32 %v6960, 4294901760
        %v7170 = vsub.f32 %v6960, %v7169
        %7171 = vmatmul.f32.gmra.mxu0 %v7170
        %v7172 = vpop.f32.mrf.mxu0
        %v7173 = vadd.f32 %v7119, %v7172
        %7174 = vdwg.mxu0
        %v7175 = vand.u32 %v6978, 4294901760
        %7176 = vmatpush.msra.mxu0 %v7175
        %v7177 = vand.u32 %v6977, 4294901760
        %7178 = vmatpush.msra.mxu0 %v7177
        %v7179 = vand.u32 %v6976, 4294901760
        %7180 = vmatpush.msra.mxu0 %v7179
        %v7181 = vand.u32 %v6975, 4294901760
        %7182 = vmatpush.msra.mxu0 %v7181
        %v7183 = vand.u32 %v6974, 4294901760
        %7184 = vmatpush.msra.mxu0 %v7183
        %v7185 = vand.u32 %v6973, 4294901760
        %7186 = vmatpush.msra.mxu0 %v7185
        %v7187 = vand.u32 %v6972, 4294901760
        %7188 = vmatpush.msra.mxu0 %v7187
        %v7189 = vand.u32 %v6971, 4294901760
        %7190 = vmatpush.msra.mxu0 %v7189
        %v7191 = vand.u32 %v6970, 4294901760
        %7192 = vmatpush.msra.mxu0 %v7191
        %v7193 = vand.u32 %v6969, 4294901760
        %7194 = vmatpush.msra.mxu0 %v7193
        %v7195 = vand.u32 %v6968, 4294901760
        %7196 = vmatpush.msra.mxu0 %v7195
        %v7197 = vand.u32 %v6967, 4294901760
        %7198 = vmatpush.msra.mxu0 %v7197
        %v7199 = vand.u32 %v6966, 4294901760
        %7200 = vmatpush.msra.mxu0 %v7199
        %v7201 = vand.u32 %v6965, 4294901760
        %7202 = vmatpush.msra.mxu0 %v7201
        %v7203 = vand.u32 %v6964, 4294901760
        %7204 = vmatpush.msra.mxu0 %v7203
        %v7205 = vand.u32 %v6963, 4294901760
        %7206 = vmatpush.msra.mxu0 %v7205
        %v7207 = vand.u32 %v6960, 4294901760
        %v7208 = vsub.f32 %v6960, %v7207
        %v7209 = vand.u32 %v7208, 4294901760
        %7210 = vmatmul.f32.gmra.mxu0 %v7209
        %v7211 = vpop.f32.mrf.mxu0
        %v7212 = vadd.f32 %v7173, %v7211
        %7213 = vdwg.mxu0
        %v7214 = vand.u32 %v6978, 4294901760
        %v7215 = vsub.f32 %v6978, %v7214
        %v7216 = vand.u32 %v7215, 4294901760
        %7217 = vmatpush.msra.mxu0 %v7216
        %v7218 = vand.u32 %v6977, 4294901760
        %v7219 = vsub.f32 %v6977, %v7218
        %v7220 = vand.u32 %v7219, 4294901760
        %7221 = vmatpush.msra.mxu0 %v7220
        %v7222 = vand.u32 %v6976, 4294901760
        %v7223 = vsub.f32 %v6976, %v7222
        %v7224 = vand.u32 %v7223, 4294901760
        %7225 = vmatpush.msra.mxu0 %v7224
        %v7226 = vand.u32 %v6975, 4294901760
        %v7227 = vsub.f32 %v6975, %v7226
        %v7228 = vand.u32 %v7227, 4294901760
        %7229 = vmatpush.msra.mxu0 %v7228
        %v7230 = vand.u32 %v6974, 4294901760
        %v7231 = vsub.f32 %v6974, %v7230
        %v7232 = vand.u32 %v7231, 4294901760
        %7233 = vmatpush.msra.mxu0 %v7232
        %v7234 = vand.u32 %v6973, 4294901760
        %v7235 = vsub.f32 %v6973, %v7234
        %v7236 = vand.u32 %v7235, 4294901760
        %7237 = vmatpush.msra.mxu0 %v7236
        %v7238 = vand.u32 %v6972, 4294901760
        %v7239 = vsub.f32 %v6972, %v7238
        %v7240 = vand.u32 %v7239, 4294901760
        %7241 = vmatpush.msra.mxu0 %v7240
        %v7242 = vand.u32 %v6971, 4294901760
        %v7243 = vsub.f32 %v6971, %v7242
        %v7244 = vand.u32 %v7243, 4294901760
        %7245 = vmatpush.msra.mxu0 %v7244
        %v7246 = vand.u32 %v6970, 4294901760
        %v7247 = vsub.f32 %v6970, %v7246
        %v7248 = vand.u32 %v7247, 4294901760
        %7249 = vmatpush.msra.mxu0 %v7248
        %v7250 = vand.u32 %v6969, 4294901760
        %v7251 = vsub.f32 %v6969, %v7250
        %v7252 = vand.u32 %v7251, 4294901760
        %7253 = vmatpush.msra.mxu0 %v7252
        %v7254 = vand.u32 %v6968, 4294901760
        %v7255 = vsub.f32 %v6968, %v7254
        %v7256 = vand.u32 %v7255, 4294901760
        %7257 = vmatpush.msra.mxu0 %v7256
        %v7258 = vand.u32 %v6967, 4294901760
        %v7259 = vsub.f32 %v6967, %v7258
        %v7260 = vand.u32 %v7259, 4294901760
        %7261 = vmatpush.msra.mxu0 %v7260
        %v7262 = vand.u32 %v6966, 4294901760
        %v7263 = vsub.f32 %v6966, %v7262
        %v7264 = vand.u32 %v7263, 4294901760
        %7265 = vmatpush.msra.mxu0 %v7264
        %v7266 = vand.u32 %v6965, 4294901760
        %v7267 = vsub.f32 %v6965, %v7266
        %v7268 = vand.u32 %v7267, 4294901760
        %7269 = vmatpush.msra.mxu0 %v7268
        %v7270 = vand.u32 %v6964, 4294901760
        %v7271 = vsub.f32 %v6964, %v7270
        %v7272 = vand.u32 %v7271, 4294901760
        %7273 = vmatpush.msra.mxu0 %v7272
        %v7274 = vand.u32 %v6963, 4294901760
        %v7275 = vsub.f32 %v6963, %v7274
        %v7276 = vand.u32 %v7275, 4294901760
        %7277 = vmatpush.msra.mxu0 %v7276
        %v7278 = vand.u32 %v6960, 4294901760
        %7279 = vmatmul.f32.gmra.mxu0 %v7278
        %v7280 = vpop.f32.mrf.mxu0
        %v7281 = vadd.f32 %v7212, %v7280
        %7282 = vdwg.mxu0
        %v7283 = vand.u32 %v6978, 4294901760
        %7284 = vmatpush.msra.mxu0 %v7283
        %v7285 = vand.u32 %v6977, 4294901760
        %7286 = vmatpush.msra.mxu0 %v7285
        %v7287 = vand.u32 %v6976, 4294901760
        %7288 = vmatpush.msra.mxu0 %v7287
        %v7289 = vand.u32 %v6975, 4294901760
        %7290 = vmatpush.msra.mxu0 %v7289
        %v7291 = vand.u32 %v6974, 4294901760
        %7292 = vmatpush.msra.mxu0 %v7291
        %v7293 = vand.u32 %v6973, 4294901760
        %7294 = vmatpush.msra.mxu0 %v7293
        %v7295 = vand.u32 %v6972, 4294901760
        %7296 = vmatpush.msra.mxu0 %v7295
        %v7297 = vand.u32 %v6971, 4294901760
        %7298 = vmatpush.msra.mxu0 %v7297
        %v7299 = vand.u32 %v6970, 4294901760
        %7300 = vmatpush.msra.mxu0 %v7299
        %v7301 = vand.u32 %v6969, 4294901760
        %7302 = vmatpush.msra.mxu0 %v7301
        %v7303 = vand.u32 %v6968, 4294901760
        %7304 = vmatpush.msra.mxu0 %v7303
        %v7305 = vand.u32 %v6967, 4294901760
        %7306 = vmatpush.msra.mxu0 %v7305
        %v7307 = vand.u32 %v6966, 4294901760
        %7308 = vmatpush.msra.mxu0 %v7307
        %v7309 = vand.u32 %v6965, 4294901760
        %7310 = vmatpush.msra.mxu0 %v7309
        %v7311 = vand.u32 %v6964, 4294901760
        %7312 = vmatpush.msra.mxu0 %v7311
        %v7313 = vand.u32 %v6963, 4294901760
        %7314 = vmatpush.msra.mxu0 %v7313
        %v7315 = vand.u32 %v6960, 4294901760
        %7316 = vmatmul.f32.gmra.mxu0 %v7315
        %v7317 = vpop.f32.mrf.mxu0
        %v7318 = vadd.f32 %v7281, %v7317
        %7319 = vdwg.mxu0
        %s7320 = scalar_lea.vmem %s136, 2560 [#allocation2]
        %v7321 = vld [vmem:[%s7320] sm:$0xff]
        %v7322 = vld [vmem:[%s7320 + $0x8] sm:$0xff]
        %v7323 = vld [vmem:[%s7320 + $0x10] sm:$0xff]
        %v7324 = vld [vmem:[%s7320 + $0x18] sm:$0xff]
        %v7325 = vld [vmem:[%s7320 + $0x20] sm:$0xff]
        %v7326 = vld [vmem:[%s7320 + $0x28] sm:$0xff]
        %v7327 = vld [vmem:[%s7320 + $0x30] sm:$0xff]
        %v7328 = vld [vmem:[%s7320 + $0x38] sm:$0xff]
        %v7329 = vld [vmem:[%s7320 + $0x40] sm:$0xff]
        %v7330 = vld [vmem:[%s7320 + $0x48] sm:$0xff]
        %v7331 = vld [vmem:[%s7320 + $0x50] sm:$0xff]
        %v7332 = vld [vmem:[%s7320 + $0x58] sm:$0xff]
        %v7333 = vld [vmem:[%s7320 + $0x60] sm:$0xff]
        %v7334 = vld [vmem:[%s7320 + $0x68] sm:$0xff]
        %v7335 = vld [vmem:[%s7320 + $0x70] sm:$0xff]
        %v7336 = vld [vmem:[%s7320 + $0x78] sm:$0xff]
        %v7337 = vand.u32 %v7336, 4294901760
        %7338 = vmatpush.msra.mxu0 %v7337
        %v7339 = vand.u32 %v7335, 4294901760
        %7340 = vmatpush.msra.mxu0 %v7339
        %v7341 = vand.u32 %v7334, 4294901760
        %7342 = vmatpush.msra.mxu0 %v7341
        %v7343 = vand.u32 %v7333, 4294901760
        %7344 = vmatpush.msra.mxu0 %v7343
        %v7345 = vand.u32 %v7332, 4294901760
        %7346 = vmatpush.msra.mxu0 %v7345
        %v7347 = vand.u32 %v7331, 4294901760
        %7348 = vmatpush.msra.mxu0 %v7347
        %v7349 = vand.u32 %v7330, 4294901760
        %7350 = vmatpush.msra.mxu0 %v7349
        %v7351 = vand.u32 %v7329, 4294901760
        %7352 = vmatpush.msra.mxu0 %v7351
        %v7353 = vand.u32 %v7328, 4294901760
        %7354 = vmatpush.msra.mxu0 %v7353
        %v7355 = vand.u32 %v7327, 4294901760
        %7356 = vmatpush.msra.mxu0 %v7355
        %v7357 = vand.u32 %v7326, 4294901760
        %7358 = vmatpush.msra.mxu0 %v7357
        %v7359 = vand.u32 %v7325, 4294901760
        %7360 = vmatpush.msra.mxu0 %v7359
        %v7361 = vand.u32 %v7324, 4294901760
        %7362 = vmatpush.msra.mxu0 %v7361
        %v7363 = vand.u32 %v7323, 4294901760
        %7364 = vmatpush.msra.mxu0 %v7363
        %v7365 = vand.u32 %v7322, 4294901760
        %7366 = vmatpush.msra.mxu0 %v7365
        %v7367 = vand.u32 %v7321, 4294901760
        %7368 = vmatpush.msra.mxu0 %v7367
        %v7369 = vand.u32 %v7318, 4294901760
        %v7370 = vsub.f32 %v7318, %v7369
        %v7371 = vand.u32 %v7370, 4294901760
        %v7372 = vsub.f32 %v7370, %v7371
        %v7373 = vand.u32 %v7372, 4294901760
        %7374 = vmatmul.f32.gmra.mxu0 %v7373
        %v7375 = vpop.f32.mrf.mxu0
        %v7376 = vadd.f32 0.0, %v7375
        %7377 = vdwg.mxu0
        %v7378 = vand.u32 %v7336, 4294901760
        %v7379 = vsub.f32 %v7336, %v7378
        %v7380 = vand.u32 %v7379, 4294901760
        %v7381 = vsub.f32 %v7379, %v7380
        %v7382 = vand.u32 %v7381, 4294901760
        %7383 = vmatpush.msra.mxu0 %v7382
        %v7384 = vand.u32 %v7335, 4294901760
        %v7385 = vsub.f32 %v7335, %v7384
        %v7386 = vand.u32 %v7385, 4294901760
        %v7387 = vsub.f32 %v7385, %v7386
        %v7388 = vand.u32 %v7387, 4294901760
        %7389 = vmatpush.msra.mxu0 %v7388
        %v7390 = vand.u32 %v7334, 4294901760
        %v7391 = vsub.f32 %v7334, %v7390
        %v7392 = vand.u32 %v7391, 4294901760
        %v7393 = vsub.f32 %v7391, %v7392
        %v7394 = vand.u32 %v7393, 4294901760
        %7395 = vmatpush.msra.mxu0 %v7394
        %v7396 = vand.u32 %v7333, 4294901760
        %v7397 = vsub.f32 %v7333, %v7396
        %v7398 = vand.u32 %v7397, 4294901760
        %v7399 = vsub.f32 %v7397, %v7398
        %v7400 = vand.u32 %v7399, 4294901760
        %7401 = vmatpush.msra.mxu0 %v7400
        %v7402 = vand.u32 %v7332, 4294901760
        %v7403 = vsub.f32 %v7332, %v7402
        %v7404 = vand.u32 %v7403, 4294901760
        %v7405 = vsub.f32 %v7403, %v7404
        %v7406 = vand.u32 %v7405, 4294901760
        %7407 = vmatpush.msra.mxu0 %v7406
        %v7408 = vand.u32 %v7331, 4294901760
        %v7409 = vsub.f32 %v7331, %v7408
        %v7410 = vand.u32 %v7409, 4294901760
        %v7411 = vsub.f32 %v7409, %v7410
        %v7412 = vand.u32 %v7411, 4294901760
        %7413 = vmatpush.msra.mxu0 %v7412
        %v7414 = vand.u32 %v7330, 4294901760
        %v7415 = vsub.f32 %v7330, %v7414
        %v7416 = vand.u32 %v7415, 4294901760
        %v7417 = vsub.f32 %v7415, %v7416
        %v7418 = vand.u32 %v7417, 4294901760
        %7419 = vmatpush.msra.mxu0 %v7418
        %v7420 = vand.u32 %v7329, 4294901760
        %v7421 = vsub.f32 %v7329, %v7420
        %v7422 = vand.u32 %v7421, 4294901760
        %v7423 = vsub.f32 %v7421, %v7422
        %v7424 = vand.u32 %v7423, 4294901760
        %7425 = vmatpush.msra.mxu0 %v7424
        %v7426 = vand.u32 %v7328, 4294901760
        %v7427 = vsub.f32 %v7328, %v7426
        %v7428 = vand.u32 %v7427, 4294901760
        %v7429 = vsub.f32 %v7427, %v7428
        %v7430 = vand.u32 %v7429, 4294901760
        %7431 = vmatpush.msra.mxu0 %v7430
        %v7432 = vand.u32 %v7327, 4294901760
        %v7433 = vsub.f32 %v7327, %v7432
        %v7434 = vand.u32 %v7433, 4294901760
        %v7435 = vsub.f32 %v7433, %v7434
        %v7436 = vand.u32 %v7435, 4294901760
        %7437 = vmatpush.msra.mxu0 %v7436
        %v7438 = vand.u32 %v7326, 4294901760
        %v7439 = vsub.f32 %v7326, %v7438
        %v7440 = vand.u32 %v7439, 4294901760
        %v7441 = vsub.f32 %v7439, %v7440
        %v7442 = vand.u32 %v7441, 4294901760
        %7443 = vmatpush.msra.mxu0 %v7442
        %v7444 = vand.u32 %v7325, 4294901760
        %v7445 = vsub.f32 %v7325, %v7444
        %v7446 = vand.u32 %v7445, 4294901760
        %v7447 = vsub.f32 %v7445, %v7446
        %v7448 = vand.u32 %v7447, 4294901760
        %7449 = vmatpush.msra.mxu0 %v7448
        %v7450 = vand.u32 %v7324, 4294901760
        %v7451 = vsub.f32 %v7324, %v7450
        %v7452 = vand.u32 %v7451, 4294901760
        %v7453 = vsub.f32 %v7451, %v7452
        %v7454 = vand.u32 %v7453, 4294901760
        %7455 = vmatpush.msra.mxu0 %v7454
        %v7456 = vand.u32 %v7323, 4294901760
        %v7457 = vsub.f32 %v7323, %v7456
        %v7458 = vand.u32 %v7457, 4294901760
        %v7459 = vsub.f32 %v7457, %v7458
        %v7460 = vand.u32 %v7459, 4294901760
        %7461 = vmatpush.msra.mxu0 %v7460
        %v7462 = vand.u32 %v7322, 4294901760
        %v7463 = vsub.f32 %v7322, %v7462
        %v7464 = vand.u32 %v7463, 4294901760
        %v7465 = vsub.f32 %v7463, %v7464
        %v7466 = vand.u32 %v7465, 4294901760
        %7467 = vmatpush.msra.mxu0 %v7466
        %v7468 = vand.u32 %v7321, 4294901760
        %v7469 = vsub.f32 %v7321, %v7468
        %v7470 = vand.u32 %v7469, 4294901760
        %v7471 = vsub.f32 %v7469, %v7470
        %v7472 = vand.u32 %v7471, 4294901760
        %7473 = vmatpush.msra.mxu0 %v7472
        %v7474 = vand.u32 %v7318, 4294901760
        %7475 = vmatmul.f32.gmra.mxu0 %v7474
        %v7476 = vpop.f32.mrf.mxu0
        %v7477 = vadd.f32 %v7376, %v7476
        %7478 = vdwg.mxu0
        %v7479 = vand.u32 %v7336, 4294901760
        %v7480 = vsub.f32 %v7336, %v7479
        %7481 = vmatpush.msra.mxu0 %v7480
        %v7482 = vand.u32 %v7335, 4294901760
        %v7483 = vsub.f32 %v7335, %v7482
        %7484 = vmatpush.msra.mxu0 %v7483
        %v7485 = vand.u32 %v7334, 4294901760
        %v7486 = vsub.f32 %v7334, %v7485
        %7487 = vmatpush.msra.mxu0 %v7486
        %v7488 = vand.u32 %v7333, 4294901760
        %v7489 = vsub.f32 %v7333, %v7488
        %7490 = vmatpush.msra.mxu0 %v7489
        %v7491 = vand.u32 %v7332, 4294901760
        %v7492 = vsub.f32 %v7332, %v7491
        %7493 = vmatpush.msra.mxu0 %v7492
        %v7494 = vand.u32 %v7331, 4294901760
        %v7495 = vsub.f32 %v7331, %v7494
        %7496 = vmatpush.msra.mxu0 %v7495
        %v7497 = vand.u32 %v7330, 4294901760
        %v7498 = vsub.f32 %v7330, %v7497
        %7499 = vmatpush.msra.mxu0 %v7498
        %v7500 = vand.u32 %v7329, 4294901760
        %v7501 = vsub.f32 %v7329, %v7500
        %7502 = vmatpush.msra.mxu0 %v7501
        %v7503 = vand.u32 %v7328, 4294901760
        %v7504 = vsub.f32 %v7328, %v7503
        %7505 = vmatpush.msra.mxu0 %v7504
        %v7506 = vand.u32 %v7327, 4294901760
        %v7507 = vsub.f32 %v7327, %v7506
        %7508 = vmatpush.msra.mxu0 %v7507
        %v7509 = vand.u32 %v7326, 4294901760
        %v7510 = vsub.f32 %v7326, %v7509
        %7511 = vmatpush.msra.mxu0 %v7510
        %v7512 = vand.u32 %v7325, 4294901760
        %v7513 = vsub.f32 %v7325, %v7512
        %7514 = vmatpush.msra.mxu0 %v7513
        %v7515 = vand.u32 %v7324, 4294901760
        %v7516 = vsub.f32 %v7324, %v7515
        %7517 = vmatpush.msra.mxu0 %v7516
        %v7518 = vand.u32 %v7323, 4294901760
        %v7519 = vsub.f32 %v7323, %v7518
        %7520 = vmatpush.msra.mxu0 %v7519
        %v7521 = vand.u32 %v7322, 4294901760
        %v7522 = vsub.f32 %v7322, %v7521
        %7523 = vmatpush.msra.mxu0 %v7522
        %v7524 = vand.u32 %v7321, 4294901760
        %v7525 = vsub.f32 %v7321, %v7524
        %7526 = vmatpush.msra.mxu0 %v7525
        %v7527 = vand.u32 %v7318, 4294901760
        %v7528 = vsub.f32 %v7318, %v7527
        %7529 = vmatmul.f32.gmra.mxu0 %v7528
        %v7530 = vpop.f32.mrf.mxu0
        %v7531 = vadd.f32 %v7477, %v7530
        %7532 = vdwg.mxu0
        %v7533 = vand.u32 %v7336, 4294901760
        %7534 = vmatpush.msra.mxu0 %v7533
        %v7535 = vand.u32 %v7335, 4294901760
        %7536 = vmatpush.msra.mxu0 %v7535
        %v7537 = vand.u32 %v7334, 4294901760
        %7538 = vmatpush.msra.mxu0 %v7537
        %v7539 = vand.u32 %v7333, 4294901760
        %7540 = vmatpush.msra.mxu0 %v7539
        %v7541 = vand.u32 %v7332, 4294901760
        %7542 = vmatpush.msra.mxu0 %v7541
        %v7543 = vand.u32 %v7331, 4294901760
        %7544 = vmatpush.msra.mxu0 %v7543
        %v7545 = vand.u32 %v7330, 4294901760
        %7546 = vmatpush.msra.mxu0 %v7545
        %v7547 = vand.u32 %v7329, 4294901760
        %7548 = vmatpush.msra.mxu0 %v7547
        %v7549 = vand.u32 %v7328, 4294901760
        %7550 = vmatpush.msra.mxu0 %v7549
        %v7551 = vand.u32 %v7327, 4294901760
        %7552 = vmatpush.msra.mxu0 %v7551
        %v7553 = vand.u32 %v7326, 4294901760
        %7554 = vmatpush.msra.mxu0 %v7553
        %v7555 = vand.u32 %v7325, 4294901760
        %7556 = vmatpush.msra.mxu0 %v7555
        %v7557 = vand.u32 %v7324, 4294901760
        %7558 = vmatpush.msra.mxu0 %v7557
        %v7559 = vand.u32 %v7323, 4294901760
        %7560 = vmatpush.msra.mxu0 %v7559
        %v7561 = vand.u32 %v7322, 4294901760
        %7562 = vmatpush.msra.mxu0 %v7561
        %v7563 = vand.u32 %v7321, 4294901760
        %7564 = vmatpush.msra.mxu0 %v7563
        %v7565 = vand.u32 %v7318, 4294901760
        %v7566 = vsub.f32 %v7318, %v7565
        %v7567 = vand.u32 %v7566, 4294901760
        %7568 = vmatmul.f32.gmra.mxu0 %v7567
        %v7569 = vpop.f32.mrf.mxu0
        %v7570 = vadd.f32 %v7531, %v7569
        %7571 = vdwg.mxu0
        %v7572 = vand.u32 %v7336, 4294901760
        %v7573 = vsub.f32 %v7336, %v7572
        %v7574 = vand.u32 %v7573, 4294901760
        %7575 = vmatpush.msra.mxu0 %v7574
        %v7576 = vand.u32 %v7335, 4294901760
        %v7577 = vsub.f32 %v7335, %v7576
        %v7578 = vand.u32 %v7577, 4294901760
        %7579 = vmatpush.msra.mxu0 %v7578
        %v7580 = vand.u32 %v7334, 4294901760
        %v7581 = vsub.f32 %v7334, %v7580
        %v7582 = vand.u32 %v7581, 4294901760
        %7583 = vmatpush.msra.mxu0 %v7582
        %v7584 = vand.u32 %v7333, 4294901760
        %v7585 = vsub.f32 %v7333, %v7584
        %v7586 = vand.u32 %v7585, 4294901760
        %7587 = vmatpush.msra.mxu0 %v7586
        %v7588 = vand.u32 %v7332, 4294901760
        %v7589 = vsub.f32 %v7332, %v7588
        %v7590 = vand.u32 %v7589, 4294901760
        %7591 = vmatpush.msra.mxu0 %v7590
        %v7592 = vand.u32 %v7331, 4294901760
        %v7593 = vsub.f32 %v7331, %v7592
        %v7594 = vand.u32 %v7593, 4294901760
        %7595 = vmatpush.msra.mxu0 %v7594
        %v7596 = vand.u32 %v7330, 4294901760
        %v7597 = vsub.f32 %v7330, %v7596
        %v7598 = vand.u32 %v7597, 4294901760
        %7599 = vmatpush.msra.mxu0 %v7598
        %v7600 = vand.u32 %v7329, 4294901760
        %v7601 = vsub.f32 %v7329, %v7600
        %v7602 = vand.u32 %v7601, 4294901760
        %7603 = vmatpush.msra.mxu0 %v7602
        %v7604 = vand.u32 %v7328, 4294901760
        %v7605 = vsub.f32 %v7328, %v7604
        %v7606 = vand.u32 %v7605, 4294901760
        %7607 = vmatpush.msra.mxu0 %v7606
        %v7608 = vand.u32 %v7327, 4294901760
        %v7609 = vsub.f32 %v7327, %v7608
        %v7610 = vand.u32 %v7609, 4294901760
        %7611 = vmatpush.msra.mxu0 %v7610
        %v7612 = vand.u32 %v7326, 4294901760
        %v7613 = vsub.f32 %v7326, %v7612
        %v7614 = vand.u32 %v7613, 4294901760
        %7615 = vmatpush.msra.mxu0 %v7614
        %v7616 = vand.u32 %v7325, 4294901760
        %v7617 = vsub.f32 %v7325, %v7616
        %v7618 = vand.u32 %v7617, 4294901760
        %7619 = vmatpush.msra.mxu0 %v7618
        %v7620 = vand.u32 %v7324, 4294901760
        %v7621 = vsub.f32 %v7324, %v7620
        %v7622 = vand.u32 %v7621, 4294901760
        %7623 = vmatpush.msra.mxu0 %v7622
        %v7624 = vand.u32 %v7323, 4294901760
        %v7625 = vsub.f32 %v7323, %v7624
        %v7626 = vand.u32 %v7625, 4294901760
        %7627 = vmatpush.msra.mxu0 %v7626
        %v7628 = vand.u32 %v7322, 4294901760
        %v7629 = vsub.f32 %v7322, %v7628
        %v7630 = vand.u32 %v7629, 4294901760
        %7631 = vmatpush.msra.mxu0 %v7630
        %v7632 = vand.u32 %v7321, 4294901760
        %v7633 = vsub.f32 %v7321, %v7632
        %v7634 = vand.u32 %v7633, 4294901760
        %7635 = vmatpush.msra.mxu0 %v7634
        %v7636 = vand.u32 %v7318, 4294901760
        %7637 = vmatmul.f32.gmra.mxu0 %v7636
        %v7638 = vpop.f32.mrf.mxu0
        %v7639 = vadd.f32 %v7570, %v7638
        %7640 = vdwg.mxu0
        %v7641 = vand.u32 %v7336, 4294901760
        %7642 = vmatpush.msra.mxu0 %v7641
        %v7643 = vand.u32 %v7335, 4294901760
        %7644 = vmatpush.msra.mxu0 %v7643
        %v7645 = vand.u32 %v7334, 4294901760
        %7646 = vmatpush.msra.mxu0 %v7645
        %v7647 = vand.u32 %v7333, 4294901760
        %7648 = vmatpush.msra.mxu0 %v7647
        %v7649 = vand.u32 %v7332, 4294901760
        %7650 = vmatpush.msra.mxu0 %v7649
        %v7651 = vand.u32 %v7331, 4294901760
        %7652 = vmatpush.msra.mxu0 %v7651
        %v7653 = vand.u32 %v7330, 4294901760
        %7654 = vmatpush.msra.mxu0 %v7653
        %v7655 = vand.u32 %v7329, 4294901760
        %7656 = vmatpush.msra.mxu0 %v7655
        %v7657 = vand.u32 %v7328, 4294901760
        %7658 = vmatpush.msra.mxu0 %v7657
        %v7659 = vand.u32 %v7327, 4294901760
        %7660 = vmatpush.msra.mxu0 %v7659
        %v7661 = vand.u32 %v7326, 4294901760
        %7662 = vmatpush.msra.mxu0 %v7661
        %v7663 = vand.u32 %v7325, 4294901760
        %7664 = vmatpush.msra.mxu0 %v7663
        %v7665 = vand.u32 %v7324, 4294901760
        %7666 = vmatpush.msra.mxu0 %v7665
        %v7667 = vand.u32 %v7323, 4294901760
        %7668 = vmatpush.msra.mxu0 %v7667
        %v7669 = vand.u32 %v7322, 4294901760
        %7670 = vmatpush.msra.mxu0 %v7669
        %v7671 = vand.u32 %v7321, 4294901760
        %7672 = vmatpush.msra.mxu0 %v7671
        %v7673 = vand.u32 %v7318, 4294901760
        %7674 = vmatmul.f32.gmra.mxu0 %v7673
        %v7675 = vpop.f32.mrf.mxu0
        %v7676 = vadd.f32 %v7639, %v7675
        %7677 = vdwg.mxu0
        %s7678 = scalar_lea.vmem %s136, 2688 [#allocation2]
        %v7679 = vld [vmem:[%s7678] sm:$0xff]
        %v7680 = vld [vmem:[%s7678 + $0x8] sm:$0xff]
        %v7681 = vld [vmem:[%s7678 + $0x10] sm:$0xff]
        %v7682 = vld [vmem:[%s7678 + $0x18] sm:$0xff]
        %v7683 = vld [vmem:[%s7678 + $0x20] sm:$0xff]
        %v7684 = vld [vmem:[%s7678 + $0x28] sm:$0xff]
        %v7685 = vld [vmem:[%s7678 + $0x30] sm:$0xff]
        %v7686 = vld [vmem:[%s7678 + $0x38] sm:$0xff]
        %v7687 = vld [vmem:[%s7678 + $0x40] sm:$0xff]
        %v7688 = vld [vmem:[%s7678 + $0x48] sm:$0xff]
        %v7689 = vld [vmem:[%s7678 + $0x50] sm:$0xff]
        %v7690 = vld [vmem:[%s7678 + $0x58] sm:$0xff]
        %v7691 = vld [vmem:[%s7678 + $0x60] sm:$0xff]
        %v7692 = vld [vmem:[%s7678 + $0x68] sm:$0xff]
        %v7693 = vld [vmem:[%s7678 + $0x70] sm:$0xff]
        %v7694 = vld [vmem:[%s7678 + $0x78] sm:$0xff]
        %v7695 = vand.u32 %v7694, 4294901760
        %7696 = vmatpush.msra.mxu0 %v7695
        %v7697 = vand.u32 %v7693, 4294901760
        %7698 = vmatpush.msra.mxu0 %v7697
        %v7699 = vand.u32 %v7692, 4294901760
        %7700 = vmatpush.msra.mxu0 %v7699
        %v7701 = vand.u32 %v7691, 4294901760
        %7702 = vmatpush.msra.mxu0 %v7701
        %v7703 = vand.u32 %v7690, 4294901760
        %7704 = vmatpush.msra.mxu0 %v7703
        %v7705 = vand.u32 %v7689, 4294901760
        %7706 = vmatpush.msra.mxu0 %v7705
        %v7707 = vand.u32 %v7688, 4294901760
        %7708 = vmatpush.msra.mxu0 %v7707
        %v7709 = vand.u32 %v7687, 4294901760
        %7710 = vmatpush.msra.mxu0 %v7709
        %v7711 = vand.u32 %v7686, 4294901760
        %7712 = vmatpush.msra.mxu0 %v7711
        %v7713 = vand.u32 %v7685, 4294901760
        %7714 = vmatpush.msra.mxu0 %v7713
        %v7715 = vand.u32 %v7684, 4294901760
        %7716 = vmatpush.msra.mxu0 %v7715
        %v7717 = vand.u32 %v7683, 4294901760
        %7718 = vmatpush.msra.mxu0 %v7717
        %v7719 = vand.u32 %v7682, 4294901760
        %7720 = vmatpush.msra.mxu0 %v7719
        %v7721 = vand.u32 %v7681, 4294901760
        %7722 = vmatpush.msra.mxu0 %v7721
        %v7723 = vand.u32 %v7680, 4294901760
        %7724 = vmatpush.msra.mxu0 %v7723
        %v7725 = vand.u32 %v7679, 4294901760
        %7726 = vmatpush.msra.mxu0 %v7725
        %v7727 = vand.u32 %v7676, 4294901760
        %v7728 = vsub.f32 %v7676, %v7727
        %v7729 = vand.u32 %v7728, 4294901760
        %v7730 = vsub.f32 %v7728, %v7729
        %v7731 = vand.u32 %v7730, 4294901760
        %7732 = vmatmul.f32.gmra.mxu0 %v7731
        %v7733 = vpop.f32.mrf.mxu0
        %v7734 = vadd.f32 0.0, %v7733
        %7735 = vdwg.mxu0
        %v7736 = vand.u32 %v7694, 4294901760
        %v7737 = vsub.f32 %v7694, %v7736
        %v7738 = vand.u32 %v7737, 4294901760
        %v7739 = vsub.f32 %v7737, %v7738
        %v7740 = vand.u32 %v7739, 4294901760
        %7741 = vmatpush.msra.mxu0 %v7740
        %v7742 = vand.u32 %v7693, 4294901760
        %v7743 = vsub.f32 %v7693, %v7742
        %v7744 = vand.u32 %v7743, 4294901760
        %v7745 = vsub.f32 %v7743, %v7744
        %v7746 = vand.u32 %v7745, 4294901760
        %7747 = vmatpush.msra.mxu0 %v7746
        %v7748 = vand.u32 %v7692, 4294901760
        %v7749 = vsub.f32 %v7692, %v7748
        %v7750 = vand.u32 %v7749, 4294901760
        %v7751 = vsub.f32 %v7749, %v7750
        %v7752 = vand.u32 %v7751, 4294901760
        %7753 = vmatpush.msra.mxu0 %v7752
        %v7754 = vand.u32 %v7691, 4294901760
        %v7755 = vsub.f32 %v7691, %v7754
        %v7756 = vand.u32 %v7755, 4294901760
        %v7757 = vsub.f32 %v7755, %v7756
        %v7758 = vand.u32 %v7757, 4294901760
        %7759 = vmatpush.msra.mxu0 %v7758
        %v7760 = vand.u32 %v7690, 4294901760
        %v7761 = vsub.f32 %v7690, %v7760
        %v7762 = vand.u32 %v7761, 4294901760
        %v7763 = vsub.f32 %v7761, %v7762
        %v7764 = vand.u32 %v7763, 4294901760
        %7765 = vmatpush.msra.mxu0 %v7764
        %v7766 = vand.u32 %v7689, 4294901760
        %v7767 = vsub.f32 %v7689, %v7766
        %v7768 = vand.u32 %v7767, 4294901760
        %v7769 = vsub.f32 %v7767, %v7768
        %v7770 = vand.u32 %v7769, 4294901760
        %7771 = vmatpush.msra.mxu0 %v7770
        %v7772 = vand.u32 %v7688, 4294901760
        %v7773 = vsub.f32 %v7688, %v7772
        %v7774 = vand.u32 %v7773, 4294901760
        %v7775 = vsub.f32 %v7773, %v7774
        %v7776 = vand.u32 %v7775, 4294901760
        %7777 = vmatpush.msra.mxu0 %v7776
        %v7778 = vand.u32 %v7687, 4294901760
        %v7779 = vsub.f32 %v7687, %v7778
        %v7780 = vand.u32 %v7779, 4294901760
        %v7781 = vsub.f32 %v7779, %v7780
        %v7782 = vand.u32 %v7781, 4294901760
        %7783 = vmatpush.msra.mxu0 %v7782
        %v7784 = vand.u32 %v7686, 4294901760
        %v7785 = vsub.f32 %v7686, %v7784
        %v7786 = vand.u32 %v7785, 4294901760
        %v7787 = vsub.f32 %v7785, %v7786
        %v7788 = vand.u32 %v7787, 4294901760
        %7789 = vmatpush.msra.mxu0 %v7788
        %v7790 = vand.u32 %v7685, 4294901760
        %v7791 = vsub.f32 %v7685, %v7790
        %v7792 = vand.u32 %v7791, 4294901760
        %v7793 = vsub.f32 %v7791, %v7792
        %v7794 = vand.u32 %v7793, 4294901760
        %7795 = vmatpush.msra.mxu0 %v7794
        %v7796 = vand.u32 %v7684, 4294901760
        %v7797 = vsub.f32 %v7684, %v7796
        %v7798 = vand.u32 %v7797, 4294901760
        %v7799 = vsub.f32 %v7797, %v7798
        %v7800 = vand.u32 %v7799, 4294901760
        %7801 = vmatpush.msra.mxu0 %v7800
        %v7802 = vand.u32 %v7683, 4294901760
        %v7803 = vsub.f32 %v7683, %v7802
        %v7804 = vand.u32 %v7803, 4294901760
        %v7805 = vsub.f32 %v7803, %v7804
        %v7806 = vand.u32 %v7805, 4294901760
        %7807 = vmatpush.msra.mxu0 %v7806
        %v7808 = vand.u32 %v7682, 4294901760
        %v7809 = vsub.f32 %v7682, %v7808
        %v7810 = vand.u32 %v7809, 4294901760
        %v7811 = vsub.f32 %v7809, %v7810
        %v7812 = vand.u32 %v7811, 4294901760
        %7813 = vmatpush.msra.mxu0 %v7812
        %v7814 = vand.u32 %v7681, 4294901760
        %v7815 = vsub.f32 %v7681, %v7814
        %v7816 = vand.u32 %v7815, 4294901760
        %v7817 = vsub.f32 %v7815, %v7816
        %v7818 = vand.u32 %v7817, 4294901760
        %7819 = vmatpush.msra.mxu0 %v7818
        %v7820 = vand.u32 %v7680, 4294901760
        %v7821 = vsub.f32 %v7680, %v7820
        %v7822 = vand.u32 %v7821, 4294901760
        %v7823 = vsub.f32 %v7821, %v7822
        %v7824 = vand.u32 %v7823, 4294901760
        %7825 = vmatpush.msra.mxu0 %v7824
        %v7826 = vand.u32 %v7679, 4294901760
        %v7827 = vsub.f32 %v7679, %v7826
        %v7828 = vand.u32 %v7827, 4294901760
        %v7829 = vsub.f32 %v7827, %v7828
        %v7830 = vand.u32 %v7829, 4294901760
        %7831 = vmatpush.msra.mxu0 %v7830
        %v7832 = vand.u32 %v7676, 4294901760
        %7833 = vmatmul.f32.gmra.mxu0 %v7832
        %v7834 = vpop.f32.mrf.mxu0
        %v7835 = vadd.f32 %v7734, %v7834
        %7836 = vdwg.mxu0
        %v7837 = vand.u32 %v7694, 4294901760
        %v7838 = vsub.f32 %v7694, %v7837
        %7839 = vmatpush.msra.mxu0 %v7838
        %v7840 = vand.u32 %v7693, 4294901760
        %v7841 = vsub.f32 %v7693, %v7840
        %7842 = vmatpush.msra.mxu0 %v7841
        %v7843 = vand.u32 %v7692, 4294901760
        %v7844 = vsub.f32 %v7692, %v7843
        %7845 = vmatpush.msra.mxu0 %v7844
        %v7846 = vand.u32 %v7691, 4294901760
        %v7847 = vsub.f32 %v7691, %v7846
        %7848 = vmatpush.msra.mxu0 %v7847
        %v7849 = vand.u32 %v7690, 4294901760
        %v7850 = vsub.f32 %v7690, %v7849
        %7851 = vmatpush.msra.mxu0 %v7850
        %v7852 = vand.u32 %v7689, 4294901760
        %v7853 = vsub.f32 %v7689, %v7852
        %7854 = vmatpush.msra.mxu0 %v7853
        %v7855 = vand.u32 %v7688, 4294901760
        %v7856 = vsub.f32 %v7688, %v7855
        %7857 = vmatpush.msra.mxu0 %v7856
        %v7858 = vand.u32 %v7687, 4294901760
        %v7859 = vsub.f32 %v7687, %v7858
        %7860 = vmatpush.msra.mxu0 %v7859
        %v7861 = vand.u32 %v7686, 4294901760
        %v7862 = vsub.f32 %v7686, %v7861
        %7863 = vmatpush.msra.mxu0 %v7862
        %v7864 = vand.u32 %v7685, 4294901760
        %v7865 = vsub.f32 %v7685, %v7864
        %7866 = vmatpush.msra.mxu0 %v7865
        %v7867 = vand.u32 %v7684, 4294901760
        %v7868 = vsub.f32 %v7684, %v7867
        %7869 = vmatpush.msra.mxu0 %v7868
        %v7870 = vand.u32 %v7683, 4294901760
        %v7871 = vsub.f32 %v7683, %v7870
        %7872 = vmatpush.msra.mxu0 %v7871
        %v7873 = vand.u32 %v7682, 4294901760
        %v7874 = vsub.f32 %v7682, %v7873
        %7875 = vmatpush.msra.mxu0 %v7874
        %v7876 = vand.u32 %v7681, 4294901760
        %v7877 = vsub.f32 %v7681, %v7876
        %7878 = vmatpush.msra.mxu0 %v7877
        %v7879 = vand.u32 %v7680, 4294901760
        %v7880 = vsub.f32 %v7680, %v7879
        %7881 = vmatpush.msra.mxu0 %v7880
        %v7882 = vand.u32 %v7679, 4294901760
        %v7883 = vsub.f32 %v7679, %v7882
        %7884 = vmatpush.msra.mxu0 %v7883
        %v7885 = vand.u32 %v7676, 4294901760
        %v7886 = vsub.f32 %v7676, %v7885
        %7887 = vmatmul.f32.gmra.mxu0 %v7886
        %v7888 = vpop.f32.mrf.mxu0
        %v7889 = vadd.f32 %v7835, %v7888
        %7890 = vdwg.mxu0
        %v7891 = vand.u32 %v7694, 4294901760
        %7892 = vmatpush.msra.mxu0 %v7891
        %v7893 = vand.u32 %v7693, 4294901760
        %7894 = vmatpush.msra.mxu0 %v7893
        %v7895 = vand.u32 %v7692, 4294901760
        %7896 = vmatpush.msra.mxu0 %v7895
        %v7897 = vand.u32 %v7691, 4294901760
        %7898 = vmatpush.msra.mxu0 %v7897
        %v7899 = vand.u32 %v7690, 4294901760
        %7900 = vmatpush.msra.mxu0 %v7899
        %v7901 = vand.u32 %v7689, 4294901760
        %7902 = vmatpush.msra.mxu0 %v7901
        %v7903 = vand.u32 %v7688, 4294901760
        %7904 = vmatpush.msra.mxu0 %v7903
        %v7905 = vand.u32 %v7687, 4294901760
        %7906 = vmatpush.msra.mxu0 %v7905
        %v7907 = vand.u32 %v7686, 4294901760
        %7908 = vmatpush.msra.mxu0 %v7907
        %v7909 = vand.u32 %v7685, 4294901760
        %7910 = vmatpush.msra.mxu0 %v7909
        %v7911 = vand.u32 %v7684, 4294901760
        %7912 = vmatpush.msra.mxu0 %v7911
        %v7913 = vand.u32 %v7683, 4294901760
        %7914 = vmatpush.msra.mxu0 %v7913
        %v7915 = vand.u32 %v7682, 4294901760
        %7916 = vmatpush.msra.mxu0 %v7915
        %v7917 = vand.u32 %v7681, 4294901760
        %7918 = vmatpush.msra.mxu0 %v7917
        %v7919 = vand.u32 %v7680, 4294901760
        %7920 = vmatpush.msra.mxu0 %v7919
        %v7921 = vand.u32 %v7679, 4294901760
        %7922 = vmatpush.msra.mxu0 %v7921
        %v7923 = vand.u32 %v7676, 4294901760
        %v7924 = vsub.f32 %v7676, %v7923
        %v7925 = vand.u32 %v7924, 4294901760
        %7926 = vmatmul.f32.gmra.mxu0 %v7925
        %v7927 = vpop.f32.mrf.mxu0
        %v7928 = vadd.f32 %v7889, %v7927
        %7929 = vdwg.mxu0
        %v7930 = vand.u32 %v7694, 4294901760
        %v7931 = vsub.f32 %v7694, %v7930
        %v7932 = vand.u32 %v7931, 4294901760
        %7933 = vmatpush.msra.mxu0 %v7932
        %v7934 = vand.u32 %v7693, 4294901760
        %v7935 = vsub.f32 %v7693, %v7934
        %v7936 = vand.u32 %v7935, 4294901760
        %7937 = vmatpush.msra.mxu0 %v7936
        %v7938 = vand.u32 %v7692, 4294901760
        %v7939 = vsub.f32 %v7692, %v7938
        %v7940 = vand.u32 %v7939, 4294901760
        %7941 = vmatpush.msra.mxu0 %v7940
        %v7942 = vand.u32 %v7691, 4294901760
        %v7943 = vsub.f32 %v7691, %v7942
        %v7944 = vand.u32 %v7943, 4294901760
        %7945 = vmatpush.msra.mxu0 %v7944
        %v7946 = vand.u32 %v7690, 4294901760
        %v7947 = vsub.f32 %v7690, %v7946
        %v7948 = vand.u32 %v7947, 4294901760
        %7949 = vmatpush.msra.mxu0 %v7948
        %v7950 = vand.u32 %v7689, 4294901760
        %v7951 = vsub.f32 %v7689, %v7950
        %v7952 = vand.u32 %v7951, 4294901760
        %7953 = vmatpush.msra.mxu0 %v7952
        %v7954 = vand.u32 %v7688, 4294901760
        %v7955 = vsub.f32 %v7688, %v7954
        %v7956 = vand.u32 %v7955, 4294901760
        %7957 = vmatpush.msra.mxu0 %v7956
        %v7958 = vand.u32 %v7687, 4294901760
        %v7959 = vsub.f32 %v7687, %v7958
        %v7960 = vand.u32 %v7959, 4294901760
        %7961 = vmatpush.msra.mxu0 %v7960
        %v7962 = vand.u32 %v7686, 4294901760
        %v7963 = vsub.f32 %v7686, %v7962
        %v7964 = vand.u32 %v7963, 4294901760
        %7965 = vmatpush.msra.mxu0 %v7964
        %v7966 = vand.u32 %v7685, 4294901760
        %v7967 = vsub.f32 %v7685, %v7966
        %v7968 = vand.u32 %v7967, 4294901760
        %7969 = vmatpush.msra.mxu0 %v7968
        %v7970 = vand.u32 %v7684, 4294901760
        %v7971 = vsub.f32 %v7684, %v7970
        %v7972 = vand.u32 %v7971, 4294901760
        %7973 = vmatpush.msra.mxu0 %v7972
        %v7974 = vand.u32 %v7683, 4294901760
        %v7975 = vsub.f32 %v7683, %v7974
        %v7976 = vand.u32 %v7975, 4294901760
        %7977 = vmatpush.msra.mxu0 %v7976
        %v7978 = vand.u32 %v7682, 4294901760
        %v7979 = vsub.f32 %v7682, %v7978
        %v7980 = vand.u32 %v7979, 4294901760
        %7981 = vmatpush.msra.mxu0 %v7980
        %v7982 = vand.u32 %v7681, 4294901760
        %v7983 = vsub.f32 %v7681, %v7982
        %v7984 = vand.u32 %v7983, 4294901760
        %7985 = vmatpush.msra.mxu0 %v7984
        %v7986 = vand.u32 %v7680, 4294901760
        %v7987 = vsub.f32 %v7680, %v7986
        %v7988 = vand.u32 %v7987, 4294901760
        %7989 = vmatpush.msra.mxu0 %v7988
        %v7990 = vand.u32 %v7679, 4294901760
        %v7991 = vsub.f32 %v7679, %v7990
        %v7992 = vand.u32 %v7991, 4294901760
        %7993 = vmatpush.msra.mxu0 %v7992
        %v7994 = vand.u32 %v7676, 4294901760
        %7995 = vmatmul.f32.gmra.mxu0 %v7994
        %v7996 = vpop.f32.mrf.mxu0
        %v7997 = vadd.f32 %v7928, %v7996
        %7998 = vdwg.mxu0
        %v7999 = vand.u32 %v7694, 4294901760
        %8000 = vmatpush.msra.mxu0 %v7999
        %v8001 = vand.u32 %v7693, 4294901760
        %8002 = vmatpush.msra.mxu0 %v8001
        %v8003 = vand.u32 %v7692, 4294901760
        %8004 = vmatpush.msra.mxu0 %v8003
        %v8005 = vand.u32 %v7691, 4294901760
        %8006 = vmatpush.msra.mxu0 %v8005
        %v8007 = vand.u32 %v7690, 4294901760
        %8008 = vmatpush.msra.mxu0 %v8007
        %v8009 = vand.u32 %v7689, 4294901760
        %8010 = vmatpush.msra.mxu0 %v8009
        %v8011 = vand.u32 %v7688, 4294901760
        %8012 = vmatpush.msra.mxu0 %v8011
        %v8013 = vand.u32 %v7687, 4294901760
        %8014 = vmatpush.msra.mxu0 %v8013
        %v8015 = vand.u32 %v7686, 4294901760
        %8016 = vmatpush.msra.mxu0 %v8015
        %v8017 = vand.u32 %v7685, 4294901760
        %8018 = vmatpush.msra.mxu0 %v8017
        %v8019 = vand.u32 %v7684, 4294901760
        %8020 = vmatpush.msra.mxu0 %v8019
        %v8021 = vand.u32 %v7683, 4294901760
        %8022 = vmatpush.msra.mxu0 %v8021
        %v8023 = vand.u32 %v7682, 4294901760
        %8024 = vmatpush.msra.mxu0 %v8023
        %v8025 = vand.u32 %v7681, 4294901760
        %8026 = vmatpush.msra.mxu0 %v8025
        %v8027 = vand.u32 %v7680, 4294901760
        %8028 = vmatpush.msra.mxu0 %v8027
        %v8029 = vand.u32 %v7679, 4294901760
        %8030 = vmatpush.msra.mxu0 %v8029
        %v8031 = vand.u32 %v7676, 4294901760
        %8032 = vmatmul.f32.gmra.mxu0 %v8031
        %v8033 = vpop.f32.mrf.mxu0
        %v8034 = vadd.f32 %v7997, %v8033
        %8035 = vdwg.mxu0
        %8036 = vst [vmem:[#allocation5] sm:$0xff] %v8034
        // Predicated region
        $region37: #{linear_network_forward.1} parent=27 // pred_check
          %p8037 = pneg %p77
        $region38: #{linear_network_forward.1} parent=27 // pred_check_branch
          %8039 = sbr.rel (%p8037) target = $region40
        $region39: #{linear_network_forward.1} parent=27 // pred_region
          %8041 = vsyncadd [#allocation4], 0
          %s8043 = sshll.u32 [#allocation5], 4
          %s8044 = int_to_ptr.vmem [resolvable:$true] %s8043
          %s8045 = sshll.u32 %s2, 4
          %s8046 = int_to_ptr.hbm [resolvable:$true] %s8045
          %8048 = dma.vmem_to_hbm [thread:$0]  %s8044, 128, %s8046, [#allocation4]
        $region40: #{linear_network_forward.1} parent=27 // pred_fallthru
          _
        // Predicated region
        $region41: #{linear_network_forward.1} parent=27 // pred_check
          %p8049 = pneg %p77
        $region42: #{linear_network_forward.1} parent=27 // pred_check_branch
          %8051 = sbr.rel (%p8049) target = $region44
        $region43: #{linear_network_forward.1} parent=27 // pred_region
          %8053 = dma.done [#allocation4], 128
        $region44: #{linear_network_forward.1} parent=27 // pred_fallthru
          _
      $region28: #{linear_network_forward.1} parent=5 // pred_fallthru
        _
      %p8054 = scmp.le.s32.totalorder 2, %s12
      // Predicated region
      $region45: #{linear_network_forward.1} parent=5 // pred_check
        %p8055 = pneg %p8054
      $region46: #{linear_network_forward.1} parent=5 // pred_check_branch
        %8057 = sbr.rel (%p8055) target = $region48
      $region47: #{linear_network_forward.1} parent=5 // pred_region
        %s8058 = ssub.s32 %s12, 2
      $region48: #{linear_network_forward.1} parent=5 // pred_fallthru
        _
    $region6: #{linear_network_forward.1} parent=1 // loop_footer
      %s16 = sadd.s32 1, %s12
    $region7: #{linear_network_forward.1} parent=1 // loop_footer_branch
      %11 = sbr.rel target = $region3
    $region8: #{linear_network_forward.1} parent=1 // loop_exit
      _
    %8059 = vsyncpa [#allocation3], 1
    %s8060 = scalar_lea.sflag [#allocation3], 1
    %8061 = vsyncpa %s8060, 1
    %8062 = vsyncpa [#allocation4], 1
    %s8063 = scalar_lea.sflag [#allocation4], 1
    %8064 = vsyncpa %s8063, 1

</llo_original>
